<compile_context>
chip_gen: v7x
topology: tpu7x:2x2x1
jax: 0.10.0
libtpu: 0.0.40
codegen_flags: <defaults>
</compile_context>

<pallas_src>
from itertools import zip_longest
import math

import numpy as np
import jax
import jax.numpy as jnp
from jax import lax
from jax.experimental import pallas as pl
from jax.experimental.pallas import tpu as pltpu


# ---------------------------------------------------------------------------
# Pallas kernel: fused "concat along tau" + complex weight mix, all ell levels
# in one call.  refs = (part refs..., embedded-weight refs..., out refs...).
# ---------------------------------------------------------------------------
def _make_catmix_kernel(parts_per_level):
    n_parts = sum(parts_per_level)

    def kernel(*refs):
        x_refs = refs[:n_parts]
        w_refs = refs[n_parts:2 * n_parts]
        o_refs = refs[2 * n_parts:]
        idx = 0
        for lvl, nparts in enumerate(parts_per_level):
            if nparts == 0:
                o_refs[lvl][...] = jnp.zeros(o_refs[lvl].shape, o_refs[lvl].dtype)
                continue
            acc = None
            for _ in range(nparts):
                # (TILE_M, 2*tau_i) @ (2*tau_i, 2*tau_out) on the MXU; the sum
                # over parts IS the concat (contraction split across parts).
                y = jnp.dot(x_refs[idx][...], w_refs[idx][...],
                            preferred_element_type=jnp.float32)
                acc = y if acc is None else acc + y
                idx += 1
            o_refs[lvl][...] = acc.astype(o_refs[lvl].dtype)

    return kernel


def _lane_pad(w):
    return ((w + 127) // 128) * 128


def _choose_m_tiling(M, row_bytes):
    """Tile the flattened edge axis M.

    `row_bytes` = VMEM bytes occupied by one row of all (lane-padded) input +
    output blocks.  The tile is capped so the double-buffered working set stays
    <= ~8 MiB, which fits every generation's scoped-VMEM default (v5e 16 MiB,
    v6e/v7x 32 MiB) with headroom."""
    budget = 8 * 1024 * 1024

    def fits(t):
        return 2 * t * row_bytes <= budget

    # largest tile that divides M and fits the VMEM budget
    for t in (2048, 1024, 512, 256, 128, 64, 32, 16, 8):
        if t <= M and M % t == 0 and fits(t):
            return t, M
    # small / ragged M: a single full-extent tile is exempt from 8-alignment
    if M <= 512 and fits(M):
        return M, M
    # ragged large M: zero-pad up to a multiple of the largest fitting tile
    for t in (256, 128, 64, 32, 16, 8):
        if fits(t):
            return t, ((M + t - 1) // t) * t
    return 8, ((M + 7) // 8) * 8


def fused_cat_mix(parts_by_level, w2_by_level, tau_outs, lead_shape, dtype):
    """parts_by_level[l][i]: (M, 2*tau_{l,i}) natural view of an input part.
       w2_by_level[l][i]   : (2*tau_{l,i}, 2*tau_outs[l]) real-embedded weight.
       Returns one (lead_shape..., tau_outs[l], 2) array per ell level."""
    M = math.prod(lead_shape)
    itemsize = np.dtype(dtype).itemsize

    widths = [p.shape[1] for parts in parts_by_level for p in parts]
    out_widths = [2 * t for t in tau_outs]
    row_bytes = sum(_lane_pad(w) for w in widths + out_widths) * itemsize

    tile_m, m_pad = _choose_m_tiling(M, row_bytes)
    need_pad = m_pad != M

    flat_parts, flat_w2, parts_per_level = [], [], []
    part_specs, w_specs = [], []
    for parts, w2s in zip(parts_by_level, w2_by_level):
        parts_per_level.append(len(parts))
        for p, w2 in zip(parts, w2s):
            if need_pad:
                p = jnp.pad(p, ((0, m_pad - M), (0, 0)))
            flat_parts.append(p)
            flat_w2.append(w2)
            part_specs.append(pl.BlockSpec((tile_m, p.shape[1]), lambda j: (j, 0)))
            # tiny weight block, constant index -> loaded once, stays resident
            w_specs.append(pl.BlockSpec(tuple(w2.shape), lambda j: (0, 0)))

    out_shape = [jax.ShapeDtypeStruct((m_pad, 2 * t), dtype) for t in tau_outs]
    out_specs = [pl.BlockSpec((tile_m, 2 * t), lambda j: (j, 0)) for t in tau_outs]

    outs = pl.pallas_call(
        _make_catmix_kernel(parts_per_level),
        grid=(m_pad // tile_m,),
        in_specs=part_specs + w_specs,
        out_specs=out_specs,
        out_shape=out_shape,
        compiler_params=pltpu.CompilerParams(
            # M tiles are independent -> v7x shards the loop over both TCs.
            dimension_semantics=("parallel",),
            # Explicit, generation-safe limit; actual working set <= ~8 MiB.
            vmem_limit_bytes=16 * 1024 * 1024,
        ),
    )(*flat_parts, *flat_w2)

    results = []
    for o, t in zip(outs, tau_outs):
        if need_pad:
            o = o[:M]
        results.append(o.reshape(*lead_shape, t, 2))   # free reshape, no copy
    return results


def _real_embed(w_slice):
    """(tau_out, tau_in, 2) complex weight slice -> real (2*tau_in, 2*tau_out)
    matrix E such that, on interleaved (re, im) rows x of shape (M, 2*tau_in),
    x @ E is the interleaved complex product sum_b W[a, b] * x[b]."""
    w_re = w_slice[..., 0].T                       # (tau_in, tau_out)
    w_im = w_slice[..., 1].T
    from_re = jnp.stack([w_re, w_im], axis=-1)     # x_re -> (out_re, out_im)
    from_im = jnp.stack([-w_im, w_re], axis=-1)    # x_im -> (out_re, out_im)
    emb = jnp.stack([from_re, from_im], axis=1)    # (tau_in, 2, tau_out, 2)
    t_in, _, t_out, _ = emb.shape
    return emb.reshape(2 * t_in, 2 * t_out)


# ---------------------------------------------------------------------------
# CatMixRepsScalar (real=False path)
# ---------------------------------------------------------------------------
class CatMixRepsScalar:
    """JAX/Pallas port of cormorant's CatMixRepsScalar (complex / real=False).

    forward(edge_ops): edge_ops is a list of reps; each rep is a list of parts
    (one per ell level) with shape (..., tau, 2).  Parts of a given level are
    concatenated along tau across reps (zip_longest semantics) and the result
    is mixed by a per-level complex weight W_ell[tau_out, tau_cat, 2].
    Returns one (..., tau_out, 2) array per level.  Cat + Mix run fused inside
    a single Pallas kernel (the concat never materializes)."""

    def __init__(self, taus, tau_out, weight_init='randn', real=False, gain=1,
                 key=None, dtype=jnp.float32):
        # TODO(synk): real=True (cat_dim=-1, real weights) path not implemented.
        assert not real, "real=True path not supported by this Pallas port"
        self.real = False
        self.cat_dim = -2
        self.taus_in = [list(t) for t in taus]

        # CatRepsScalar bookkeeping
        self.tau_cat = [sum(t) for t in zip_longest(*taus, fillvalue=0)]

        # MixRepsScalar bookkeeping (trailing-zero trimming, int broadcast)
        tau_in = list(self.tau_cat)
        while tau_in and not tau_in[-1]:
            tau_in.pop()
        if isinstance(tau_out, int):
            tau_out = [tau_out] * len(tau_in)
        else:
            tau_out = list(tau_out)
            while tau_out and not tau_out[-1]:
                tau_out.pop()
        self.tau_mix_in = tau_in
        self.tau_out = list(tau_out)
        self.dtype = dtype

        # init_mix_reps_weights: complex weights (tau_out, tau_in, 2).
        # TODO(synk): exact cormorant init scaling not in the provided spec;
        # weight_init='randn' is implemented as gain * N(0, 1).
        if key is None:
            key = jax.random.PRNGKey(0)
        self.weights = []
        for t_in, t_o in zip(self.tau_mix_in, self.tau_out):
            key, sub = jax.random.split(key)
            self.weights.append(
                (gain * jax.random.normal(sub, (t_o, t_in, 2))).astype(dtype))

    def __call__(self, edge_ops):
        # --- CatRepsScalar type check (identical to the torch module) ---
        edge_taus = [
            [part.shape[self.cat_dim] if part.ndim > 1 else 0 for part in edge_op]
            for edge_op in edge_ops
        ]
        assert edge_taus == self.taus_in, (
            'Tau of input reps does not match predefined version! '
            f'{edge_taus} {self.taus_in}')

        # Group parts by ell level (zip_longest); drop missing / empty fillers.
        levels = []
        for level_parts in zip_longest(*edge_ops, fillvalue=None):
            parts = [p for p in level_parts
                     if p is not None and p.ndim > 1 and p.shape[-2] > 0]
            levels.append(parts)
        # mix_rep zips weights with the cat levels -> only the first
        # len(self.weights) levels produce outputs.
        levels = levels[:len(self.weights)]

        lead_shape = levels[0][0].shape[:-2]
        M = math.prod(lead_shape)

        parts_by_level, w2_by_level = [], []
        for parts, W, t_cat in zip(levels, self.weights, self.tau_mix_in):
            assert len(parts) > 0
            taus = [p.shape[-2] for p in parts]
            # MixRepsScalar type check: concatenated tau must match tau_in.
            assert sum(taus) == t_cat == W.shape[1], (
                'Input rep must have same type as initialized tau! '
                f'{sum(taus)} {t_cat}')
            xs, ws = [], []
            off = 0
            for p, t in zip(parts, taus):
                assert p.shape[:-2] == lead_shape and p.shape[-1] == 2
                xs.append(p.reshape(M, 2 * t))                 # free view
                ws.append(_real_embed(W[:, off:off + t, :]))   # (2t, 2*tau_out)
                off += t
            parts_by_level.append(xs)
            w2_by_level.append(ws)

        return fused_cat_mix(parts_by_level, w2_by_level, self.tau_out,
                             lead_shape, self.dtype)


# ---------------------------------------------------------------------------
# Demo / correctness check
# ---------------------------------------------------------------------------
if __name__ == "__main__":
    key = jax.random.PRNGKey(0)

    # Edge scalar reps with leading dims (B, N, N):  M = B*N*N = 2048 flattened
    # edge positions -> two 1024-row grid tiles in the fused kernel.
    B, N = 2, 32
    taus = [[3, 2], [5, 4], [1]]     # three reps; third rep has fewer ell levels
    tau_out = 4                      # MixRepsScalar int -> [4, 4]

    edge_ops = []
    for rep_taus in taus:
        rep = []
        for tau in rep_taus:
            key, sub = jax.random.split(key)
            rep.append(jax.random.normal(sub, (B, N, N, tau, 2), dtype=jnp.float32))
        edge_ops.append(rep)

    key, wkey = jax.random.split(key)
    module = CatMixRepsScalar(taus, tau_out, real=False, gain=1.0, key=wkey)

    outs = module(edge_ops)
    outs = jax.block_until_ready(outs)

    # ---- pure-JAX reference: materialize the concat, then complex mix ----
    cats = []
    for level_parts in zip_longest(*edge_ops, fillvalue=None):
        parts = [p for p in level_parts if p is not None]
        cats.append(jnp.concatenate(parts, axis=-2))

    hi = lax.Precision.HIGHEST
    refs = []
    for cat, W in zip(cats, module.weights):
        cr, ci = cat[..., 0], cat[..., 1]
        wr, wi = W[..., 0], W[..., 1]
        o_re = (jnp.einsum('ab,...b->...a', wr, cr, precision=hi)
                - jnp.einsum('ab,...b->...a', wi, ci, precision=hi))
        o_im = (jnp.einsum('ab,...b->...a', wr, ci, precision=hi)
                + jnp.einsum('ab,...b->...a', wi, cr, precision=hi))
        refs.append(jnp.stack([o_re, o_im], axis=-1))

    assert len(outs) == len(refs) == len(module.tau_out)
    for o, r, t in zip(outs, refs, module.tau_out):
        assert o.shape == r.shape == (B, N, N, t, 2), (o.shape, r.shape, t)
        max_err = float(jnp.max(jnp.abs(o - r)))
        assert jnp.allclose(o, r, rtol=2e-2, atol=2e-2), f"max abs err {max_err}"

    print("KERNEL_OK")
</pallas_src>

<mosaic_0001>
module attributes {stable_mosaic.version = 11 : i64} {
  func.func @kernel(%arg0: i32, %arg1: memref<1024x6xf32, #tpu.memory_space<vmem>>, %arg2: memref<1024x10xf32, #tpu.memory_space<vmem>>, %arg3: memref<1024x2xf32, #tpu.memory_space<vmem>>, %arg4: memref<1024x4xf32, #tpu.memory_space<vmem>>, %arg5: memref<1024x8xf32, #tpu.memory_space<vmem>>, %arg6: memref<6x8xf32, #tpu.memory_space<vmem>>, %arg7: memref<10x8xf32, #tpu.memory_space<vmem>>, %arg8: memref<2x8xf32, #tpu.memory_space<vmem>>, %arg9: memref<4x8xf32, #tpu.memory_space<vmem>>, %arg10: memref<8x8xf32, #tpu.memory_space<vmem>>, %arg11: memref<1024x8xf32, #tpu.memory_space<vmem>>, %arg12: memref<1024x8xf32, #tpu.memory_space<vmem>>) attributes {dimension_semantics = [#tpu.dimension_semantics<parallel>], iteration_bounds = array<i64: 2>, scalar_prefetch = 0 : i64, scratch_operands = 0 : i64, tpu.core_type = #tpu.core_type<tc>, window_params = [{transform_indices = @transform_0, window_bounds = array<i64: 1024, 6>}, {transform_indices = @transform_1, window_bounds = array<i64: 1024, 10>}, {transform_indices = @transform_2, window_bounds = array<i64: 1024, 2>}, {transform_indices = @transform_3, window_bounds = array<i64: 1024, 4>}, {transform_indices = @transform_4, window_bounds = array<i64: 1024, 8>}, {pipeline_mode = #tpu.pipeline_mode<synchronous>, transform_indices = @transform_5, window_bounds = array<i64: 6, 8>}, {pipeline_mode = #tpu.pipeline_mode<synchronous>, transform_indices = @transform_6, window_bounds = array<i64: 10, 8>}, {pipeline_mode = #tpu.pipeline_mode<synchronous>, transform_indices = @transform_7, window_bounds = array<i64: 2, 8>}, {pipeline_mode = #tpu.pipeline_mode<synchronous>, transform_indices = @transform_8, window_bounds = array<i64: 4, 8>}, {pipeline_mode = #tpu.pipeline_mode<synchronous>, transform_indices = @transform_9, window_bounds = array<i64: 8, 8>}, {transform_indices = @transform_10, window_bounds = array<i64: 1024, 8>}, {transform_indices = @transform_11, window_bounds = array<i64: 1024, 8>}]} {
    %c0 = arith.constant 0 : index
    %c0_0 = arith.constant 0 : index
    %0 = vector.load %arg1[%c0, %c0_0] : memref<1024x6xf32, #tpu.memory_space<vmem>>, vector<1024x6xf32>
    %c0_1 = arith.constant 0 : index
    %c0_2 = arith.constant 0 : index
    %1 = vector.load %arg6[%c0_1, %c0_2] : memref<6x8xf32, #tpu.memory_space<vmem>>, vector<6x8xf32>
    %cst = arith.constant dense<0.000000e+00> : vector<1024x8xf32>
    %2 = tpu.matmul %0, %1, %cst {dimension_numbers = #tpu.dot_dimension_numbers<[1], [0], [0], [1], [0, 0, 1, 1], [], []>} : vector<1024x6xf32>, vector<6x8xf32>, vector<1024x8xf32> -> vector<1024x8xf32>
    %c0_3 = arith.constant 0 : index
    %c0_4 = arith.constant 0 : index
    %3 = vector.load %arg2[%c0_3, %c0_4] : memref<1024x10xf32, #tpu.memory_space<vmem>>, vector<1024x10xf32>
    %c0_5 = arith.constant 0 : index
    %c0_6 = arith.constant 0 : index
    %4 = vector.load %arg7[%c0_5, %c0_6] : memref<10x8xf32, #tpu.memory_space<vmem>>, vector<10x8xf32>
    %cst_7 = arith.constant dense<0.000000e+00> : vector<1024x8xf32>
    %5 = tpu.matmul %3, %4, %cst_7 {dimension_numbers = #tpu.dot_dimension_numbers<[1], [0], [0], [1], [0, 0, 1, 1], [], []>} : vector<1024x10xf32>, vector<10x8xf32>, vector<1024x8xf32> -> vector<1024x8xf32>
    %6 = arith.addf %2, %5 : vector<1024x8xf32>
    %c0_8 = arith.constant 0 : index
    %c0_9 = arith.constant 0 : index
    %7 = vector.load %arg3[%c0_8, %c0_9] : memref<1024x2xf32, #tpu.memory_space<vmem>>, vector<1024x2xf32>
    %c0_10 = arith.constant 0 : index
    %c0_11 = arith.constant 0 : index
    %8 = vector.load %arg8[%c0_10, %c0_11] : memref<2x8xf32, #tpu.memory_space<vmem>>, vector<2x8xf32>
    %cst_12 = arith.constant dense<0.000000e+00> : vector<1024x8xf32>
    %9 = tpu.matmul %7, %8, %cst_12 {dimension_numbers = #tpu.dot_dimension_numbers<[1], [0], [0], [1], [0, 0, 1, 1], [], []>} : vector<1024x2xf32>, vector<2x8xf32>, vector<1024x8xf32> -> vector<1024x8xf32>
    %10 = arith.addf %6, %9 : vector<1024x8xf32>
    %c0_13 = arith.constant 0 : index
    %c0_14 = arith.constant 0 : index
    %11 = vector.load %arg11[%c0_13, %c0_14] : memref<1024x8xf32, #tpu.memory_space<vmem>>, vector<1024x8xf32>
    tpu.vector_store %arg11[%c0_13, %c0_14], %10 {strides = array<i32>} : memref<1024x8xf32, #tpu.memory_space<vmem>>, vector<1024x8xf32>,
    %c0_15 = arith.constant 0 : index
    %c0_16 = arith.constant 0 : index
    %12 = vector.load %arg4[%c0_15, %c0_16] : memref<1024x4xf32, #tpu.memory_space<vmem>>, vector<1024x4xf32>
    %c0_17 = arith.constant 0 : index
    %c0_18 = arith.constant 0 : index
    %13 = vector.load %arg9[%c0_17, %c0_18] : memref<4x8xf32, #tpu.memory_space<vmem>>, vector<4x8xf32>
    %cst_19 = arith.constant dense<0.000000e+00> : vector<1024x8xf32>
    %14 = tpu.matmul %12, %13, %cst_19 {dimension_numbers = #tpu.dot_dimension_numbers<[1], [0], [0], [1], [0, 0, 1, 1], [], []>} : vector<1024x4xf32>, vector<4x8xf32>, vector<1024x8xf32> -> vector<1024x8xf32>
    %c0_20 = arith.constant 0 : index
    %c0_21 = arith.constant 0 : index
    %15 = vector.load %arg5[%c0_20, %c0_21] : memref<1024x8xf32, #tpu.memory_space<vmem>>, vector<1024x8xf32>
    %c0_22 = arith.constant 0 : index
    %c0_23 = arith.constant 0 : index
    %16 = vector.load %arg10[%c0_22, %c0_23] : memref<8x8xf32, #tpu.memory_space<vmem>>, vector<8x8xf32>
    %cst_24 = arith.constant dense<0.000000e+00> : vector<1024x8xf32>
    %17 = tpu.matmul %15, %16, %cst_24 {dimension_numbers = #tpu.dot_dimension_numbers<[1], [0], [0], [1], [0, 0, 1, 1], [], []>} : vector<1024x8xf32>, vector<8x8xf32>, vector<1024x8xf32> -> vector<1024x8xf32>
    %18 = arith.addf %14, %17 : vector<1024x8xf32>
    %c0_25 = arith.constant 0 : index
    %c0_26 = arith.constant 0 : index
    %19 = vector.load %arg12[%c0_25, %c0_26] : memref<1024x8xf32, #tpu.memory_space<vmem>>, vector<1024x8xf32>
    tpu.vector_store %arg12[%c0_25, %c0_26], %18 {strides = array<i32>} : memref<1024x8xf32, #tpu.memory_space<vmem>>, vector<1024x8xf32>,
    return
  }
  func.func @transform_0(%arg0: i32) -> (i32, i32) {
    %c0_i32 = arith.constant 0 : i32
    %c0_i32_0 = arith.constant 0 : i32
    return %arg0, %c0_i32 : i32, i32
  }
  func.func @transform_1(%arg0: i32) -> (i32, i32) {
    %c0_i32 = arith.constant 0 : i32
    %c0_i32_0 = arith.constant 0 : i32
    return %arg0, %c0_i32 : i32, i32
  }
  func.func @transform_2(%arg0: i32) -> (i32, i32) {
    %c0_i32 = arith.constant 0 : i32
    %c0_i32_0 = arith.constant 0 : i32
    return %arg0, %c0_i32 : i32, i32
  }
  func.func @transform_3(%arg0: i32) -> (i32, i32) {
    %c0_i32 = arith.constant 0 : i32
    %c0_i32_0 = arith.constant 0 : i32
    return %arg0, %c0_i32 : i32, i32
  }
  func.func @transform_4(%arg0: i32) -> (i32, i32) {
    %c0_i32 = arith.constant 0 : i32
    %c0_i32_0 = arith.constant 0 : i32
    return %arg0, %c0_i32 : i32, i32
  }
  func.func @transform_5(%arg0: i32) -> (i32, i32) {
    %c0_i32 = arith.constant 0 : i32
    %c0_i32_0 = arith.constant 0 : i32
    %c0_i32_1 = arith.constant 0 : i32
    return %c0_i32, %c0_i32_0 : i32, i32
  }
  func.func @transform_6(%arg0: i32) -> (i32, i32) {
    %c0_i32 = arith.constant 0 : i32
    %c0_i32_0 = arith.constant 0 : i32
    %c0_i32_1 = arith.constant 0 : i32
    return %c0_i32, %c0_i32_0 : i32, i32
  }
  func.func @transform_7(%arg0: i32) -> (i32, i32) {
    %c0_i32 = arith.constant 0 : i32
    %c0_i32_0 = arith.constant 0 : i32
    %c0_i32_1 = arith.constant 0 : i32
    return %c0_i32, %c0_i32_0 : i32, i32
  }
  func.func @transform_8(%arg0: i32) -> (i32, i32) {
    %c0_i32 = arith.constant 0 : i32
    %c0_i32_0 = arith.constant 0 : i32
    %c0_i32_1 = arith.constant 0 : i32
    return %c0_i32, %c0_i32_0 : i32, i32
  }
  func.func @transform_9(%arg0: i32) -> (i32, i32) {
    %c0_i32 = arith.constant 0 : i32
    %c0_i32_0 = arith.constant 0 : i32
    %c0_i32_1 = arith.constant 0 : i32
    return %c0_i32, %c0_i32_0 : i32, i32
  }
  func.func @transform_10(%arg0: i32) -> (i32, i32) {
    %c0_i32 = arith.constant 0 : i32
    %c0_i32_0 = arith.constant 0 : i32
    return %arg0, %c0_i32 : i32, i32
  }
  func.func @transform_11(%arg0: i32) -> (i32, i32) {
    %c0_i32 = arith.constant 0 : i32
    %c0_i32_0 = arith.constant 0 : i32
    return %arg0, %c0_i32 : i32, i32
  }
}

</mosaic_0001>

<llo_original>
// kernel: tpu_custom_call.1
$region0: #{tpu_custom_call.1}
  #allocation0 [shape = 'u32[]', space=smem, size = 0x4, offset = 0x4, fixed_abs, tag = 'smem constant byte address 0x4 - core index']
  #allocation1 [shape = 'u32[144,128]{1,0:T(1,128)}', space=vmem, size = 0x12000, scoped, tag = 'internal scratch']
  %s0 = inlined_call_operand.vmem [shape: f32[2048,6], index: 0, kind: input, shape index: {}]
  %s1 = inlined_call_operand.vmem [shape: f32[2048,10], index: 1, kind: input, shape index: {}]
  %s2 = inlined_call_operand.vmem [shape: f32[2048,2], index: 2, kind: input, shape index: {}]
  %s3 = inlined_call_operand.vmem [shape: f32[2048,4], index: 3, kind: input, shape index: {}]
  %s4 = inlined_call_operand.vmem [shape: f32[2048,8], index: 4, kind: input, shape index: {}]
  %s5 = inlined_call_operand.vmem [shape: f32[6,8], index: 5, kind: input, shape index: {}]
  %s6 = inlined_call_operand.vmem [shape: f32[10,8], index: 6, kind: input, shape index: {}]
  %s7 = inlined_call_operand.vmem [shape: f32[2,8], index: 7, kind: input, shape index: {}]
  %s8 = inlined_call_operand.vmem [shape: f32[4,8], index: 8, kind: input, shape index: {}]
  %s9 = inlined_call_operand.vmem [shape: f32[8,8], index: 9, kind: input, shape index: {}]
  %s10 = inlined_call_operand.vmem [shape: f32[2048,8], index: 10, kind: output, shape index: {0}]
  %s11 = inlined_call_operand.vmem [shape: f32[2048,8], index: 11, kind: output, shape index: {1}]
  %12 = xla_tuple %s10, %s11
  %s13 = sld [smem:[#allocation0]]
  $region81: #{tpu_custom_call.1} parent=0
    _
  %s15 = ssub.s32 1, %s13
  %s16 = scalar_select 0, %s15, %s13
  loop: start=0, step=1, limit=4
  $region2: #{tpu_custom_call.1} parent=0 // loop_pre_header
    _
  $region3: #{tpu_custom_call.1} parent=0 // loop_header
    %s18 = sphi 0, %s22
    %p19 = scmp.ge.s32.totalorder %s18, 4
    %s28 = sphi 0, %s30
    %s31 = sphi 0, %s28
    %s32 = sphi 0, %s31
    %s48 = sphi 0, %s32
    %s54 = sphi 0, %s56
    %s57 = sphi 0, %s54
    %s58 = sphi 0, %s57
    %s74 = sphi 0, %s58
    %s80 = sphi 0, %s82
    %s83 = sphi 0, %s80
    %s84 = sphi 0, %s83
    %s100 = sphi 0, %s84
    %s106 = sphi 0, %s108
    %s109 = sphi 0, %s106
    %s110 = sphi 0, %s109
    %s126 = sphi 0, %s110
    %s132 = sphi 0, %s134
    %s135 = sphi 0, %s132
    %s136 = sphi 0, %s135
    %s152 = sphi 0, %s136
    %s156 = sphi 0, %s156
    %s158 = sphi 0, %s156
    %s159 = sphi 0, %s158
    %s173 = sphi 0, %s159
    %s177 = sphi 0, %s177
    %s179 = sphi 0, %s177
    %s180 = sphi 0, %s179
    %s194 = sphi 0, %s180
    %s198 = sphi 0, %s198
    %s200 = sphi 0, %s198
    %s201 = sphi 0, %s200
    %s215 = sphi 0, %s201
    %s219 = sphi 0, %s219
    %s221 = sphi 0, %s219
    %s222 = sphi 0, %s221
    %s236 = sphi 0, %s222
    %s240 = sphi 0, %s240
    %s242 = sphi 0, %s240
    %s243 = sphi 0, %s242
    %s257 = sphi 0, %s243
    %s263 = sphi 0, %s265
    %s266 = sphi 0, %s263
    %s267 = sphi 0, %s266
    %s283 = sphi 0, %s267
    %s289 = sphi 0, %s291
    %s292 = sphi 0, %s289
    %s293 = sphi 0, %s292
    %s309 = sphi 0, %s293
  $region4: #{tpu_custom_call.1} parent=0 // loop_header_branch
    %21 = sbr.rel (%p19) target = $region8
  $region5: #{tpu_custom_call.1} parent=0 // loop_body
    %s23 = ssub.s32 %s18, 1
    %s24 = ssub.s32 %s18, 2
    %s25 = sadd.s32 %s18, 1
    %s26 = ssub.s32 %s18, %s25
    %p27 = scmp.eq.s32.totalorder %s26, 0
    %s29 = sadd.s32 %s28, 1
    %s30 = scalar_select %p27, %s28, %s29
    %p33 = pneg %p27
    %p34 = scmp.eq.s32.totalorder %s18, 1
    %p35 = por %p33, %p34
    %p36 = scmp.ne.s32.totalorder %s28, %s31
    %p37 = scmp.eq.s32.totalorder %s18, 0
    %p38 = por %p36, %p37
    %p39 = scmp.ne.s32.totalorder %s28, %s31
    %p40 = scmp.eq.s32.totalorder %s23, 1
    %p41 = por %p39, %p40
    %p42 = scmp.ne.s32.totalorder %s31, %s32
    %p43 = scmp.eq.s32.totalorder %s23, 0
    %p44 = por %p42, %p43
    %p45 = scmp.ne.s32.totalorder %s31, %s32
    %p46 = scmp.eq.s32.totalorder %s24, 1
    %p47 = por %p45, %p46
    %p49 = scmp.ne.s32.totalorder %s32, %s48
    %p50 = scmp.eq.s32.totalorder %s24, 0
    %p51 = por %p49, %p50
    %s52 = ssub.s32 %s18, %s25
    %p53 = scmp.eq.s32.totalorder %s52, 0
    %s55 = sadd.s32 %s54, 1
    %s56 = scalar_select %p53, %s54, %s55
    %p59 = pneg %p53
    %p60 = scmp.eq.s32.totalorder %s18, 1
    %p61 = por %p59, %p60
    %p62 = scmp.ne.s32.totalorder %s54, %s57
    %p63 = scmp.eq.s32.totalorder %s18, 0
    %p64 = por %p62, %p63
    %p65 = scmp.ne.s32.totalorder %s54, %s57
    %p66 = scmp.eq.s32.totalorder %s23, 1
    %p67 = por %p65, %p66
    %p68 = scmp.ne.s32.totalorder %s57, %s58
    %p69 = scmp.eq.s32.totalorder %s23, 0
    %p70 = por %p68, %p69
    %p71 = scmp.ne.s32.totalorder %s57, %s58
    %p72 = scmp.eq.s32.totalorder %s24, 1
    %p73 = por %p71, %p72
    %p75 = scmp.ne.s32.totalorder %s58, %s74
    %p76 = scmp.eq.s32.totalorder %s24, 0
    %p77 = por %p75, %p76
    %s78 = ssub.s32 %s18, %s25
    %p79 = scmp.eq.s32.totalorder %s78, 0
    %s81 = sadd.s32 %s80, 1
    %s82 = scalar_select %p79, %s80, %s81
    %p85 = pneg %p79
    %p86 = scmp.eq.s32.totalorder %s18, 1
    %p87 = por %p85, %p86
    %p88 = scmp.ne.s32.totalorder %s80, %s83
    %p89 = scmp.eq.s32.totalorder %s18, 0
    %p90 = por %p88, %p89
    %p91 = scmp.ne.s32.totalorder %s80, %s83
    %p92 = scmp.eq.s32.totalorder %s23, 1
    %p93 = por %p91, %p92
    %p94 = scmp.ne.s32.totalorder %s83, %s84
    %p95 = scmp.eq.s32.totalorder %s23, 0
    %p96 = por %p94, %p95
    %p97 = scmp.ne.s32.totalorder %s83, %s84
    %p98 = scmp.eq.s32.totalorder %s24, 1
    %p99 = por %p97, %p98
    %p101 = scmp.ne.s32.totalorder %s84, %s100
    %p102 = scmp.eq.s32.totalorder %s24, 0
    %p103 = por %p101, %p102
    %s104 = ssub.s32 %s18, %s25
    %p105 = scmp.eq.s32.totalorder %s104, 0
    %s107 = sadd.s32 %s106, 1
    %s108 = scalar_select %p105, %s106, %s107
    %p111 = pneg %p105
    %p112 = scmp.eq.s32.totalorder %s18, 1
    %p113 = por %p111, %p112
    %p114 = scmp.ne.s32.totalorder %s106, %s109
    %p115 = scmp.eq.s32.totalorder %s18, 0
    %p116 = por %p114, %p115
    %p117 = scmp.ne.s32.totalorder %s106, %s109
    %p118 = scmp.eq.s32.totalorder %s23, 1
    %p119 = por %p117, %p118
    %p120 = scmp.ne.s32.totalorder %s109, %s110
    %p121 = scmp.eq.s32.totalorder %s23, 0
    %p122 = por %p120, %p121
    %p123 = scmp.ne.s32.totalorder %s109, %s110
    %p124 = scmp.eq.s32.totalorder %s24, 1
    %p125 = por %p123, %p124
    %p127 = scmp.ne.s32.totalorder %s110, %s126
    %p128 = scmp.eq.s32.totalorder %s24, 0
    %p129 = por %p127, %p128
    %s130 = ssub.s32 %s18, %s25
    %p131 = scmp.eq.s32.totalorder %s130, 0
    %s133 = sadd.s32 %s132, 1
    %s134 = scalar_select %p131, %s132, %s133
    %p137 = pneg %p131
    %p138 = scmp.eq.s32.totalorder %s18, 1
    %p139 = por %p137, %p138
    %p140 = scmp.ne.s32.totalorder %s132, %s135
    %p141 = scmp.eq.s32.totalorder %s18, 0
    %p142 = por %p140, %p141
    %p143 = scmp.ne.s32.totalorder %s132, %s135
    %p144 = scmp.eq.s32.totalorder %s23, 1
    %p145 = por %p143, %p144
    %p146 = scmp.ne.s32.totalorder %s135, %s136
    %p147 = scmp.eq.s32.totalorder %s23, 0
    %p148 = por %p146, %p147
    %p149 = scmp.ne.s32.totalorder %s135, %s136
    %p150 = scmp.eq.s32.totalorder %s24, 1
    %p151 = por %p149, %p150
    %p153 = scmp.ne.s32.totalorder %s136, %s152
    %p154 = scmp.eq.s32.totalorder %s24, 0
    %p155 = por %p153, %p154
    %s157 = sadd.s32 %s156, 1
    %p160 = scmp.eq.s32.totalorder %s18, 1
    %p161 = scmp.ne.s32.totalorder %s156, %s158
    %p162 = scmp.eq.s32.totalorder %s18, 0
    %p163 = por %p161, %p162
    %p164 = scmp.ne.s32.totalorder %s156, %s158
    %p165 = scmp.eq.s32.totalorder %s23, 1
    %p166 = por %p164, %p165
    %p167 = scmp.ne.s32.totalorder %s158, %s159
    %p168 = scmp.eq.s32.totalorder %s23, 0
    %p169 = por %p167, %p168
    %p170 = scmp.ne.s32.totalorder %s158, %s159
    %p171 = scmp.eq.s32.totalorder %s24, 1
    %p172 = por %p170, %p171
    %p174 = scmp.ne.s32.totalorder %s159, %s173
    %p175 = scmp.eq.s32.totalorder %s24, 0
    %p176 = por %p174, %p175
    %s178 = sadd.s32 %s177, 1
    %p181 = scmp.eq.s32.totalorder %s18, 1
    %p182 = scmp.ne.s32.totalorder %s177, %s179
    %p183 = scmp.eq.s32.totalorder %s18, 0
    %p184 = por %p182, %p183
    %p185 = scmp.ne.s32.totalorder %s177, %s179
    %p186 = scmp.eq.s32.totalorder %s23, 1
    %p187 = por %p185, %p186
    %p188 = scmp.ne.s32.totalorder %s179, %s180
    %p189 = scmp.eq.s32.totalorder %s23, 0
    %p190 = por %p188, %p189
    %p191 = scmp.ne.s32.totalorder %s179, %s180
    %p192 = scmp.eq.s32.totalorder %s24, 1
    %p193 = por %p191, %p192
    %p195 = scmp.ne.s32.totalorder %s180, %s194
    %p196 = scmp.eq.s32.totalorder %s24, 0
    %p197 = por %p195, %p196
    %s199 = sadd.s32 %s198, 1
    %p202 = scmp.eq.s32.totalorder %s18, 1
    %p203 = scmp.ne.s32.totalorder %s198, %s200
    %p204 = scmp.eq.s32.totalorder %s18, 0
    %p205 = por %p203, %p204
    %p206 = scmp.ne.s32.totalorder %s198, %s200
    %p207 = scmp.eq.s32.totalorder %s23, 1
    %p208 = por %p206, %p207
    %p209 = scmp.ne.s32.totalorder %s200, %s201
    %p210 = scmp.eq.s32.totalorder %s23, 0
    %p211 = por %p209, %p210
    %p212 = scmp.ne.s32.totalorder %s200, %s201
    %p213 = scmp.eq.s32.totalorder %s24, 1
    %p214 = por %p212, %p213
    %p216 = scmp.ne.s32.totalorder %s201, %s215
    %p217 = scmp.eq.s32.totalorder %s24, 0
    %p218 = por %p216, %p217
    %s220 = sadd.s32 %s219, 1
    %p223 = scmp.eq.s32.totalorder %s18, 1
    %p224 = scmp.ne.s32.totalorder %s219, %s221
    %p225 = scmp.eq.s32.totalorder %s18, 0
    %p226 = por %p224, %p225
    %p227 = scmp.ne.s32.totalorder %s219, %s221
    %p228 = scmp.eq.s32.totalorder %s23, 1
    %p229 = por %p227, %p228
    %p230 = scmp.ne.s32.totalorder %s221, %s222
    %p231 = scmp.eq.s32.totalorder %s23, 0
    %p232 = por %p230, %p231
    %p233 = scmp.ne.s32.totalorder %s221, %s222
    %p234 = scmp.eq.s32.totalorder %s24, 1
    %p235 = por %p233, %p234
    %p237 = scmp.ne.s32.totalorder %s222, %s236
    %p238 = scmp.eq.s32.totalorder %s24, 0
    %p239 = por %p237, %p238
    %s241 = sadd.s32 %s240, 1
    %p244 = scmp.eq.s32.totalorder %s18, 1
    %p245 = scmp.ne.s32.totalorder %s240, %s242
    %p246 = scmp.eq.s32.totalorder %s18, 0
    %p247 = por %p245, %p246
    %p248 = scmp.ne.s32.totalorder %s240, %s242
    %p249 = scmp.eq.s32.totalorder %s23, 1
    %p250 = por %p248, %p249
    %p251 = scmp.ne.s32.totalorder %s242, %s243
    %p252 = scmp.eq.s32.totalorder %s23, 0
    %p253 = por %p251, %p252
    %p254 = scmp.ne.s32.totalorder %s242, %s243
    %p255 = scmp.eq.s32.totalorder %s24, 1
    %p256 = por %p254, %p255
    %p258 = scmp.ne.s32.totalorder %s243, %s257
    %p259 = scmp.eq.s32.totalorder %s24, 0
    %p260 = por %p258, %p259
    %s261 = ssub.s32 %s18, %s25
    %p262 = scmp.eq.s32.totalorder %s261, 0
    %s264 = sadd.s32 %s263, 1
    %s265 = scalar_select %p262, %s263, %s264
    %p268 = pneg %p262
    %p269 = scmp.eq.s32.totalorder %s18, 1
    %p270 = por %p268, %p269
    %p271 = scmp.ne.s32.totalorder %s263, %s266
    %p272 = scmp.eq.s32.totalorder %s18, 0
    %p273 = por %p271, %p272
    %p274 = scmp.ne.s32.totalorder %s263, %s266
    %p275 = scmp.eq.s32.totalorder %s23, 1
    %p276 = por %p274, %p275
    %p277 = scmp.ne.s32.totalorder %s266, %s267
    %p278 = scmp.eq.s32.totalorder %s23, 0
    %p279 = por %p277, %p278
    %p280 = scmp.ne.s32.totalorder %s266, %s267
    %p281 = scmp.eq.s32.totalorder %s24, 1
    %p282 = por %p280, %p281
    %p284 = scmp.ne.s32.totalorder %s267, %s283
    %p285 = scmp.eq.s32.totalorder %s24, 0
    %p286 = por %p284, %p285
    %s287 = ssub.s32 %s18, %s25
    %p288 = scmp.eq.s32.totalorder %s287, 0
    %s290 = sadd.s32 %s289, 1
    %s291 = scalar_select %p288, %s289, %s290
    %p294 = pneg %p288
    %p295 = scmp.eq.s32.totalorder %s18, 1
    %p296 = por %p294, %p295
    %p297 = scmp.ne.s32.totalorder %s289, %s292
    %p298 = scmp.eq.s32.totalorder %s18, 0
    %p299 = por %p297, %p298
    %p300 = scmp.ne.s32.totalorder %s289, %s292
    %p301 = scmp.eq.s32.totalorder %s23, 1
    %p302 = por %p300, %p301
    %p303 = scmp.ne.s32.totalorder %s292, %s293
    %p304 = scmp.eq.s32.totalorder %s23, 0
    %p305 = por %p303, %p304
    %p306 = scmp.ne.s32.totalorder %s292, %s293
    %p307 = scmp.eq.s32.totalorder %s24, 1
    %p308 = por %p306, %p307
    %p310 = scmp.ne.s32.totalorder %s293, %s309
    %p311 = scmp.eq.s32.totalorder %s24, 0
    %p312 = por %p310, %p311
    %p313 = scmp.le.s32.totalorder 1, %s18
    %p314 = scmp.lt.s32.totalorder %s18, 3
    %p315 = pnand %p313, %p314
    %p316 = pneg %p315
    // Predicated region
    $region9: #{tpu_custom_call.1} parent=5 // pred_check
      _
    $region10: #{tpu_custom_call.1} parent=5 // pred_check_branch
      %318 = sbr.rel (%p315) target = $region12
    $region11: #{tpu_custom_call.1} parent=5 // pred_region
      %s319 = ssub.s32 %s18, 1
      // Predicated region
      $region13: #{tpu_custom_call.1} parent=11 // pred_check
        %p320 = pneg %p169
      $region14: #{tpu_custom_call.1} parent=11 // pred_check_branch
        %322 = sbr.rel (%p320) target = $region16
      $region15: #{tpu_custom_call.1} parent=11 // pred_region
        _
      $region16: #{tpu_custom_call.1} parent=11 // pred_fallthru
        _
      // Predicated region
      $region17: #{tpu_custom_call.1} parent=11 // pred_check
        %p323 = pneg %p190
      $region18: #{tpu_custom_call.1} parent=11 // pred_check_branch
        %325 = sbr.rel (%p323) target = $region20
      $region19: #{tpu_custom_call.1} parent=11 // pred_region
        _
      $region20: #{tpu_custom_call.1} parent=11 // pred_fallthru
        _
      // Predicated region
      $region21: #{tpu_custom_call.1} parent=11 // pred_check
        %p326 = pneg %p211
      $region22: #{tpu_custom_call.1} parent=11 // pred_check_branch
        %328 = sbr.rel (%p326) target = $region24
      $region23: #{tpu_custom_call.1} parent=11 // pred_region
        _
      $region24: #{tpu_custom_call.1} parent=11 // pred_fallthru
        _
      // Predicated region
      $region25: #{tpu_custom_call.1} parent=11 // pred_check
        %p329 = pneg %p232
      $region26: #{tpu_custom_call.1} parent=11 // pred_check_branch
        %331 = sbr.rel (%p329) target = $region28
      $region27: #{tpu_custom_call.1} parent=11 // pred_region
        _
      $region28: #{tpu_custom_call.1} parent=11 // pred_fallthru
        _
      // Predicated region
      $region29: #{tpu_custom_call.1} parent=11 // pred_check
        %p332 = pneg %p253
      $region30: #{tpu_custom_call.1} parent=11 // pred_check_branch
        %334 = sbr.rel (%p332) target = $region32
      $region31: #{tpu_custom_call.1} parent=11 // pred_region
        _
      $region32: #{tpu_custom_call.1} parent=11 // pred_fallthru
        _
    $region12: #{tpu_custom_call.1} parent=5 // pred_fallthru
      _
    %p335 = scmp.lt.s32.totalorder %s18, 2
    // Predicated region
    $region33: #{tpu_custom_call.1} parent=5 // pred_check
      %p336 = pneg %p335
    $region34: #{tpu_custom_call.1} parent=5 // pred_check_branch
      %338 = sbr.rel (%p336) target = $region36
    $region35: #{tpu_custom_call.1} parent=5 // pred_region
      // Predicated region
      $region37: #{tpu_custom_call.1} parent=35 // pred_check
        %p339 = pneg %p38
      $region38: #{tpu_custom_call.1} parent=35 // pred_check_branch
        %341 = sbr.rel (%p339) target = $region40
      $region39: #{tpu_custom_call.1} parent=35 // pred_region
        %s342 = smul.u32 128, %s18
        %p343 = scmp.lt.s32.totalorder %s342, 255
        %s344 = scalar_select %p343, %s342, 255
        %s345 = smul.addr %s344, 8
        %s346 = scalar_lea.vmem %s0, %s345
        %s347 = smul.u32 128, %s18
      $region40: #{tpu_custom_call.1} parent=35 // pred_fallthru
        _
      // Predicated region
      $region41: #{tpu_custom_call.1} parent=35 // pred_check
        %p348 = pneg %p64
      $region42: #{tpu_custom_call.1} parent=35 // pred_check_branch
        %350 = sbr.rel (%p348) target = $region44
      $region43: #{tpu_custom_call.1} parent=35 // pred_region
        %s351 = smul.u32 128, %s18
        %p352 = scmp.lt.s32.totalorder %s351, 255
        %s353 = scalar_select %p352, %s351, 255
        %s354 = smul.addr %s353, 8
        %s355 = scalar_lea.vmem %s1, %s354
        %s356 = smul.u32 128, %s18
      $region44: #{tpu_custom_call.1} parent=35 // pred_fallthru
        _
      // Predicated region
      $region45: #{tpu_custom_call.1} parent=35 // pred_check
        %p357 = pneg %p90
      $region46: #{tpu_custom_call.1} parent=35 // pred_check_branch
        %359 = sbr.rel (%p357) target = $region48
      $region47: #{tpu_custom_call.1} parent=35 // pred_region
        %s360 = smul.u32 128, %s18
        %p361 = scmp.lt.s32.totalorder %s360, 255
        %s362 = scalar_select %p361, %s360, 255
        %s363 = smul.addr %s362, 8
        %s364 = scalar_lea.vmem %s2, %s363
        %s365 = smul.u32 128, %s18
      $region48: #{tpu_custom_call.1} parent=35 // pred_fallthru
        _
      // Predicated region
      $region49: #{tpu_custom_call.1} parent=35 // pred_check
        %p366 = pneg %p116
      $region50: #{tpu_custom_call.1} parent=35 // pred_check_branch
        %368 = sbr.rel (%p366) target = $region52
      $region51: #{tpu_custom_call.1} parent=35 // pred_region
        %s369 = smul.u32 128, %s18
        %p370 = scmp.lt.s32.totalorder %s369, 255
        %s371 = scalar_select %p370, %s369, 255
        %s372 = smul.addr %s371, 8
        %s373 = scalar_lea.vmem %s3, %s372
        %s374 = smul.u32 128, %s18
      $region52: #{tpu_custom_call.1} parent=35 // pred_fallthru
        _
      // Predicated region
      $region53: #{tpu_custom_call.1} parent=35 // pred_check
        %p375 = pneg %p142
      $region54: #{tpu_custom_call.1} parent=35 // pred_check_branch
        %377 = sbr.rel (%p375) target = $region56
      $region55: #{tpu_custom_call.1} parent=35 // pred_region
        %s378 = smul.u32 128, %s18
        %p379 = scmp.lt.s32.totalorder %s378, 255
        %s380 = scalar_select %p379, %s378, 255
        %s381 = smul.addr %s380, 8
        %s382 = scalar_lea.vmem %s4, %s381
        %s383 = smul.u32 128, %s18
      $region56: #{tpu_custom_call.1} parent=35 // pred_fallthru
        _
    $region36: #{tpu_custom_call.1} parent=5 // pred_fallthru
      _
    %p384 = scmp.le.s32.totalorder 1, %s18
    %p385 = scmp.lt.s32.totalorder %s18, 3
    %p386 = pnand %p384, %p385
    %p387 = pneg %p386
    // Predicated region
    $region57: #{tpu_custom_call.1} parent=5 // pred_check
      _
    $region58: #{tpu_custom_call.1} parent=5 // pred_check_branch
      %389 = sbr.rel (%p386) target = $region60
    $region59: #{tpu_custom_call.1} parent=5 // pred_region
      %s390 = ssub.s32 %s18, 1
      %s391 = smul.u32 128, %s23
      %p392 = scmp.lt.s32.totalorder %s391, 255
      %s393 = scalar_select %p392, %s391, 255
      %s394 = smul.addr %s393, 8
      %s395 = scalar_lea.vmem %s0, %s394
      %p396 = pneg %p44
      %p397 = pneg %p41
      %s398 = smul.u32 128, %s23
      %p399 = scmp.lt.s32.totalorder %s398, 255
      %s400 = scalar_select %p399, %s398, 255
      %s401 = smul.addr %s400, 8
      %s402 = scalar_lea.vmem %s1, %s401
      %p403 = pneg %p70
      %p404 = pneg %p67
      %s405 = smul.u32 128, %s23
      %p406 = scmp.lt.s32.totalorder %s405, 255
      %s407 = scalar_select %p406, %s405, 255
      %s408 = smul.addr %s407, 8
      %s409 = scalar_lea.vmem %s2, %s408
      %p410 = pneg %p96
      %p411 = pneg %p93
      %s412 = smul.u32 128, %s23
      %p413 = scmp.lt.s32.totalorder %s412, 255
      %s414 = scalar_select %p413, %s412, 255
      %s415 = smul.addr %s414, 8
      %s416 = scalar_lea.vmem %s3, %s415
      %p417 = pneg %p122
      %p418 = pneg %p119
      %s419 = smul.u32 128, %s23
      %p420 = scmp.lt.s32.totalorder %s419, 255
      %s421 = scalar_select %p420, %s419, 255
      %s422 = smul.addr %s421, 8
      %s423 = scalar_lea.vmem %s4, %s422
      %p424 = pneg %p148
      %p425 = pneg %p145
      %p426 = pneg %p169
      %p427 = pneg %p166
      %p428 = pneg %p190
      %p429 = pneg %p187
      %p430 = pneg %p211
      %p431 = pneg %p208
      %p432 = pneg %p232
      %p433 = pneg %p229
      %p434 = pneg %p253
      %p435 = pneg %p250
      %p436 = pneg %p279
      %p437 = pneg %p276
      %s438 = smul.u32 128, %s23
      %p439 = scmp.lt.s32.totalorder %s438, 255
      %s440 = scalar_select %p439, %s438, 255
      %s441 = smul.addr %s440, 8
      %s442 = scalar_lea.vmem %s10, %s441
      %p443 = pneg %p305
      %p444 = pneg %p302
      %s445 = smul.u32 128, %s23
      %p446 = scmp.lt.s32.totalorder %s445, 255
      %s447 = scalar_select %p446, %s445, 255
      %s448 = smul.addr %s447, 8
      %s449 = scalar_lea.vmem %s11, %s448
      %s450 = smul.u32 128, %s23
      %p451 = scmp.lt.s32.totalorder %s450, 255
      %s452 = scalar_select %p451, %s450, 255
      %s453 = smul.addr %s452, 8
      %s454 = scalar_lea.vmem %s0, %s453
      %s455 = smul.u32 128, %s23
      %s456 = smul.u32 128, %s23
      %p457 = scmp.lt.s32.totalorder %s456, 255
      %s458 = scalar_select %p457, %s456, 255
      %s459 = smul.addr %s458, 8
      %s460 = scalar_lea.vmem %s1, %s459
      %s461 = smul.u32 128, %s23
      %s462 = smul.u32 128, %s23
      %p463 = scmp.lt.s32.totalorder %s462, 255
      %s464 = scalar_select %p463, %s462, 255
      %s465 = smul.addr %s464, 8
      %s466 = scalar_lea.vmem %s2, %s465
      %s467 = smul.u32 128, %s23
      %s468 = smul.u32 128, %s23
      %p469 = scmp.lt.s32.totalorder %s468, 255
      %s470 = scalar_select %p469, %s468, 255
      %s471 = smul.addr %s470, 8
      %s472 = scalar_lea.vmem %s3, %s471
      %s473 = smul.u32 128, %s23
      %s474 = smul.u32 128, %s23
      %p475 = scmp.lt.s32.totalorder %s474, 255
      %s476 = scalar_select %p475, %s474, 255
      %s477 = smul.addr %s476, 8
      %s478 = scalar_lea.vmem %s4, %s477
      %s479 = smul.u32 128, %s23
      %s480 = smul.u32 128, %s23
      %p481 = scmp.lt.s32.totalorder %s480, 255
      %s482 = scalar_select %p481, %s480, 255
      %s483 = smul.addr %s482, 8
      %s484 = scalar_lea.vmem %s10, %s483
      %s485 = smul.u32 128, %s23
      %s486 = smul.u32 128, %s23
      %p487 = scmp.lt.s32.totalorder %s486, 255
      %s488 = scalar_select %p487, %s486, 255
      %s489 = smul.addr %s488, 8
      %s490 = scalar_lea.vmem %s11, %s489
      %s491 = smul.u32 128, %s23
      %v492 = vld [vmem:[%s454] sm:$0xff]
      %v493 = vld [vmem:[%s454 + $0x8] sm:$0xff]
      %v494 = vld [vmem:[%s454 + $0x10] sm:$0xff]
      %v495 = vld [vmem:[%s454 + $0x18] sm:$0xff]
      %v496 = vld [vmem:[%s454 + $0x20] sm:$0xff]
      %v497 = vld [vmem:[%s454 + $0x28] sm:$0xff]
      %v498 = vld [vmem:[%s454 + $0x30] sm:$0xff]
      %v499 = vld [vmem:[%s454 + $0x38] sm:$0xff]
      %v500 = vld [vmem:[%s454 + $0x40] sm:$0xff]
      %v501 = vld [vmem:[%s454 + $0x48] sm:$0xff]
      %v502 = vld [vmem:[%s454 + $0x50] sm:$0xff]
      %v503 = vld [vmem:[%s454 + $0x58] sm:$0xff]
      %v504 = vld [vmem:[%s454 + $0x60] sm:$0xff]
      %v505 = vld [vmem:[%s454 + $0x68] sm:$0xff]
      %v506 = vld [vmem:[%s454 + $0x70] sm:$0xff]
      %v507 = vld [vmem:[%s454 + $0x78] sm:$0xff]
      %v508 = vld [vmem:[%s454 + $0x80] sm:$0xff]
      %v509 = vld [vmem:[%s454 + $0x88] sm:$0xff]
      %v510 = vld [vmem:[%s454 + $0x90] sm:$0xff]
      %v511 = vld [vmem:[%s454 + $0x98] sm:$0xff]
      %v512 = vld [vmem:[%s454 + $0xa0] sm:$0xff]
      %v513 = vld [vmem:[%s454 + $0xa8] sm:$0xff]
      %v514 = vld [vmem:[%s454 + $0xb0] sm:$0xff]
      %v515 = vld [vmem:[%s454 + $0xb8] sm:$0xff]
      %v516 = vld [vmem:[%s454 + $0xc0] sm:$0xff]
      %v517 = vld [vmem:[%s454 + $0xc8] sm:$0xff]
      %v518 = vld [vmem:[%s454 + $0xd0] sm:$0xff]
      %v519 = vld [vmem:[%s454 + $0xd8] sm:$0xff]
      %v520 = vld [vmem:[%s454 + $0xe0] sm:$0xff]
      %v521 = vld [vmem:[%s454 + $0xe8] sm:$0xff]
      %v522 = vld [vmem:[%s454 + $0xf0] sm:$0xff]
      %v523 = vld [vmem:[%s454 + $0xf8] sm:$0xff]
      %v524 = vld [vmem:[%s454 + $0x100] sm:$0xff]
      %v525 = vld [vmem:[%s454 + $0x108] sm:$0xff]
      %v526 = vld [vmem:[%s454 + $0x110] sm:$0xff]
      %v527 = vld [vmem:[%s454 + $0x118] sm:$0xff]
      %v528 = vld [vmem:[%s454 + $0x120] sm:$0xff]
      %v529 = vld [vmem:[%s454 + $0x128] sm:$0xff]
      %v530 = vld [vmem:[%s454 + $0x130] sm:$0xff]
      %v531 = vld [vmem:[%s454 + $0x138] sm:$0xff]
      %v532 = vld [vmem:[%s454 + $0x140] sm:$0xff]
      %v533 = vld [vmem:[%s454 + $0x148] sm:$0xff]
      %v534 = vld [vmem:[%s454 + $0x150] sm:$0xff]
      %v535 = vld [vmem:[%s454 + $0x158] sm:$0xff]
      %v536 = vld [vmem:[%s454 + $0x160] sm:$0xff]
      %v537 = vld [vmem:[%s454 + $0x168] sm:$0xff]
      %v538 = vld [vmem:[%s454 + $0x170] sm:$0xff]
      %v539 = vld [vmem:[%s454 + $0x178] sm:$0xff]
      %v540 = vld [vmem:[%s454 + $0x180] sm:$0xff]
      %v541 = vld [vmem:[%s454 + $0x188] sm:$0xff]
      %v542 = vld [vmem:[%s454 + $0x190] sm:$0xff]
      %v543 = vld [vmem:[%s454 + $0x198] sm:$0xff]
      %v544 = vld [vmem:[%s454 + $0x1a0] sm:$0xff]
      %v545 = vld [vmem:[%s454 + $0x1a8] sm:$0xff]
      %v546 = vld [vmem:[%s454 + $0x1b0] sm:$0xff]
      %v547 = vld [vmem:[%s454 + $0x1b8] sm:$0xff]
      %v548 = vld [vmem:[%s454 + $0x1c0] sm:$0xff]
      %v549 = vld [vmem:[%s454 + $0x1c8] sm:$0xff]
      %v550 = vld [vmem:[%s454 + $0x1d0] sm:$0xff]
      %v551 = vld [vmem:[%s454 + $0x1d8] sm:$0xff]
      %v552 = vld [vmem:[%s454 + $0x1e0] sm:$0xff]
      %v553 = vld [vmem:[%s454 + $0x1e8] sm:$0xff]
      %v554 = vld [vmem:[%s454 + $0x1f0] sm:$0xff]
      %v555 = vld [vmem:[%s454 + $0x1f8] sm:$0xff]
      %v556 = vld [vmem:[%s454 + $0x200] sm:$0xff]
      %v557 = vld [vmem:[%s454 + $0x208] sm:$0xff]
      %v558 = vld [vmem:[%s454 + $0x210] sm:$0xff]
      %v559 = vld [vmem:[%s454 + $0x218] sm:$0xff]
      %v560 = vld [vmem:[%s454 + $0x220] sm:$0xff]
      %v561 = vld [vmem:[%s454 + $0x228] sm:$0xff]
      %v562 = vld [vmem:[%s454 + $0x230] sm:$0xff]
      %v563 = vld [vmem:[%s454 + $0x238] sm:$0xff]
      %v564 = vld [vmem:[%s454 + $0x240] sm:$0xff]
      %v565 = vld [vmem:[%s454 + $0x248] sm:$0xff]
      %v566 = vld [vmem:[%s454 + $0x250] sm:$0xff]
      %v567 = vld [vmem:[%s454 + $0x258] sm:$0xff]
      %v568 = vld [vmem:[%s454 + $0x260] sm:$0xff]
      %v569 = vld [vmem:[%s454 + $0x268] sm:$0xff]
      %v570 = vld [vmem:[%s454 + $0x270] sm:$0xff]
      %v571 = vld [vmem:[%s454 + $0x278] sm:$0xff]
      %v572 = vld [vmem:[%s454 + $0x280] sm:$0xff]
      %v573 = vld [vmem:[%s454 + $0x288] sm:$0xff]
      %v574 = vld [vmem:[%s454 + $0x290] sm:$0xff]
      %v575 = vld [vmem:[%s454 + $0x298] sm:$0xff]
      %v576 = vld [vmem:[%s454 + $0x2a0] sm:$0xff]
      %v577 = vld [vmem:[%s454 + $0x2a8] sm:$0xff]
      %v578 = vld [vmem:[%s454 + $0x2b0] sm:$0xff]
      %v579 = vld [vmem:[%s454 + $0x2b8] sm:$0xff]
      %v580 = vld [vmem:[%s454 + $0x2c0] sm:$0xff]
      %v581 = vld [vmem:[%s454 + $0x2c8] sm:$0xff]
      %v582 = vld [vmem:[%s454 + $0x2d0] sm:$0xff]
      %v583 = vld [vmem:[%s454 + $0x2d8] sm:$0xff]
      %v584 = vld [vmem:[%s454 + $0x2e0] sm:$0xff]
      %v585 = vld [vmem:[%s454 + $0x2e8] sm:$0xff]
      %v586 = vld [vmem:[%s454 + $0x2f0] sm:$0xff]
      %v587 = vld [vmem:[%s454 + $0x2f8] sm:$0xff]
      %v588 = vld [vmem:[%s454 + $0x300] sm:$0xff]
      %v589 = vld [vmem:[%s454 + $0x308] sm:$0xff]
      %v590 = vld [vmem:[%s454 + $0x310] sm:$0xff]
      %v591 = vld [vmem:[%s454 + $0x318] sm:$0xff]
      %v592 = vld [vmem:[%s454 + $0x320] sm:$0xff]
      %v593 = vld [vmem:[%s454 + $0x328] sm:$0xff]
      %v594 = vld [vmem:[%s454 + $0x330] sm:$0xff]
      %v595 = vld [vmem:[%s454 + $0x338] sm:$0xff]
      %v596 = vld [vmem:[%s454 + $0x340] sm:$0xff]
      %v597 = vld [vmem:[%s454 + $0x348] sm:$0xff]
      %v598 = vld [vmem:[%s454 + $0x350] sm:$0xff]
      %v599 = vld [vmem:[%s454 + $0x358] sm:$0xff]
      %v600 = vld [vmem:[%s454 + $0x360] sm:$0xff]
      %v601 = vld [vmem:[%s454 + $0x368] sm:$0xff]
      %v602 = vld [vmem:[%s454 + $0x370] sm:$0xff]
      %v603 = vld [vmem:[%s454 + $0x378] sm:$0xff]
      %v604 = vld [vmem:[%s454 + $0x380] sm:$0xff]
      %v605 = vld [vmem:[%s454 + $0x388] sm:$0xff]
      %v606 = vld [vmem:[%s454 + $0x390] sm:$0xff]
      %v607 = vld [vmem:[%s454 + $0x398] sm:$0xff]
      %v608 = vld [vmem:[%s454 + $0x3a0] sm:$0xff]
      %v609 = vld [vmem:[%s454 + $0x3a8] sm:$0xff]
      %v610 = vld [vmem:[%s454 + $0x3b0] sm:$0xff]
      %v611 = vld [vmem:[%s454 + $0x3b8] sm:$0xff]
      %v612 = vld [vmem:[%s454 + $0x3c0] sm:$0xff]
      %v613 = vld [vmem:[%s454 + $0x3c8] sm:$0xff]
      %v614 = vld [vmem:[%s454 + $0x3d0] sm:$0xff]
      %v615 = vld [vmem:[%s454 + $0x3d8] sm:$0xff]
      %v616 = vld [vmem:[%s454 + $0x3e0] sm:$0xff]
      %v617 = vld [vmem:[%s454 + $0x3e8] sm:$0xff]
      %v618 = vld [vmem:[%s454 + $0x3f0] sm:$0xff]
      %v619 = vld [vmem:[%s454 + $0x3f8] sm:$0xff]
      %v620 = vld [vmem:[%s5] sm:$0x3f]
      %v621 = vld [vmem:[%s460] sm:$0xff]
      %v622 = vld [vmem:[%s460 + $0x8] sm:$0xff]
      %v623 = vld [vmem:[%s460 + $0x10] sm:$0xff]
      %v624 = vld [vmem:[%s460 + $0x18] sm:$0xff]
      %v625 = vld [vmem:[%s460 + $0x20] sm:$0xff]
      %v626 = vld [vmem:[%s460 + $0x28] sm:$0xff]
      %v627 = vld [vmem:[%s460 + $0x30] sm:$0xff]
      %v628 = vld [vmem:[%s460 + $0x38] sm:$0xff]
      %v629 = vld [vmem:[%s460 + $0x40] sm:$0xff]
      %v630 = vld [vmem:[%s460 + $0x48] sm:$0xff]
      %v631 = vld [vmem:[%s460 + $0x50] sm:$0xff]
      %v632 = vld [vmem:[%s460 + $0x58] sm:$0xff]
      %v633 = vld [vmem:[%s460 + $0x60] sm:$0xff]
      %v634 = vld [vmem:[%s460 + $0x68] sm:$0xff]
      %v635 = vld [vmem:[%s460 + $0x70] sm:$0xff]
      %v636 = vld [vmem:[%s460 + $0x78] sm:$0xff]
      %v637 = vld [vmem:[%s460 + $0x80] sm:$0xff]
      %v638 = vld [vmem:[%s460 + $0x88] sm:$0xff]
      %v639 = vld [vmem:[%s460 + $0x90] sm:$0xff]
      %v640 = vld [vmem:[%s460 + $0x98] sm:$0xff]
      %v641 = vld [vmem:[%s460 + $0xa0] sm:$0xff]
      %v642 = vld [vmem:[%s460 + $0xa8] sm:$0xff]
      %v643 = vld [vmem:[%s460 + $0xb0] sm:$0xff]
      %v644 = vld [vmem:[%s460 + $0xb8] sm:$0xff]
      %v645 = vld [vmem:[%s460 + $0xc0] sm:$0xff]
      %v646 = vld [vmem:[%s460 + $0xc8] sm:$0xff]
      %v647 = vld [vmem:[%s460 + $0xd0] sm:$0xff]
      %v648 = vld [vmem:[%s460 + $0xd8] sm:$0xff]
      %v649 = vld [vmem:[%s460 + $0xe0] sm:$0xff]
      %v650 = vld [vmem:[%s460 + $0xe8] sm:$0xff]
      %v651 = vld [vmem:[%s460 + $0xf0] sm:$0xff]
      %v652 = vld [vmem:[%s460 + $0xf8] sm:$0xff]
      %v653 = vld [vmem:[%s460 + $0x100] sm:$0xff]
      %v654 = vld [vmem:[%s460 + $0x108] sm:$0xff]
      %v655 = vld [vmem:[%s460 + $0x110] sm:$0xff]
      %v656 = vld [vmem:[%s460 + $0x118] sm:$0xff]
      %v657 = vld [vmem:[%s460 + $0x120] sm:$0xff]
      %v658 = vld [vmem:[%s460 + $0x128] sm:$0xff]
      %v659 = vld [vmem:[%s460 + $0x130] sm:$0xff]
      %v660 = vld [vmem:[%s460 + $0x138] sm:$0xff]
      %v661 = vld [vmem:[%s460 + $0x140] sm:$0xff]
      %v662 = vld [vmem:[%s460 + $0x148] sm:$0xff]
      %v663 = vld [vmem:[%s460 + $0x150] sm:$0xff]
      %v664 = vld [vmem:[%s460 + $0x158] sm:$0xff]
      %v665 = vld [vmem:[%s460 + $0x160] sm:$0xff]
      %v666 = vld [vmem:[%s460 + $0x168] sm:$0xff]
      %v667 = vld [vmem:[%s460 + $0x170] sm:$0xff]
      %v668 = vld [vmem:[%s460 + $0x178] sm:$0xff]
      %v669 = vld [vmem:[%s460 + $0x180] sm:$0xff]
      %v670 = vld [vmem:[%s460 + $0x188] sm:$0xff]
      %v671 = vld [vmem:[%s460 + $0x190] sm:$0xff]
      %v672 = vld [vmem:[%s460 + $0x198] sm:$0xff]
      %v673 = vld [vmem:[%s460 + $0x1a0] sm:$0xff]
      %v674 = vld [vmem:[%s460 + $0x1a8] sm:$0xff]
      %v675 = vld [vmem:[%s460 + $0x1b0] sm:$0xff]
      %v676 = vld [vmem:[%s460 + $0x1b8] sm:$0xff]
      %v677 = vld [vmem:[%s460 + $0x1c0] sm:$0xff]
      %v678 = vld [vmem:[%s460 + $0x1c8] sm:$0xff]
      %v679 = vld [vmem:[%s460 + $0x1d0] sm:$0xff]
      %v680 = vld [vmem:[%s460 + $0x1d8] sm:$0xff]
      %v681 = vld [vmem:[%s460 + $0x1e0] sm:$0xff]
      %v682 = vld [vmem:[%s460 + $0x1e8] sm:$0xff]
      %v683 = vld [vmem:[%s460 + $0x1f0] sm:$0xff]
      %v684 = vld [vmem:[%s460 + $0x1f8] sm:$0xff]
      %v685 = vld [vmem:[%s460 + $0x200] sm:$0xff]
      %v686 = vld [vmem:[%s460 + $0x208] sm:$0xff]
      %v687 = vld [vmem:[%s460 + $0x210] sm:$0xff]
      %v688 = vld [vmem:[%s460 + $0x218] sm:$0xff]
      %v689 = vld [vmem:[%s460 + $0x220] sm:$0xff]
      %v690 = vld [vmem:[%s460 + $0x228] sm:$0xff]
      %v691 = vld [vmem:[%s460 + $0x230] sm:$0xff]
      %v692 = vld [vmem:[%s460 + $0x238] sm:$0xff]
      %v693 = vld [vmem:[%s460 + $0x240] sm:$0xff]
      %v694 = vld [vmem:[%s460 + $0x248] sm:$0xff]
      %v695 = vld [vmem:[%s460 + $0x250] sm:$0xff]
      %v696 = vld [vmem:[%s460 + $0x258] sm:$0xff]
      %v697 = vld [vmem:[%s460 + $0x260] sm:$0xff]
      %v698 = vld [vmem:[%s460 + $0x268] sm:$0xff]
      %v699 = vld [vmem:[%s460 + $0x270] sm:$0xff]
      %v700 = vld [vmem:[%s460 + $0x278] sm:$0xff]
      %v701 = vld [vmem:[%s460 + $0x280] sm:$0xff]
      %v702 = vld [vmem:[%s460 + $0x288] sm:$0xff]
      %v703 = vld [vmem:[%s460 + $0x290] sm:$0xff]
      %v704 = vld [vmem:[%s460 + $0x298] sm:$0xff]
      %v705 = vld [vmem:[%s460 + $0x2a0] sm:$0xff]
      %v706 = vld [vmem:[%s460 + $0x2a8] sm:$0xff]
      %v707 = vld [vmem:[%s460 + $0x2b0] sm:$0xff]
      %v708 = vld [vmem:[%s460 + $0x2b8] sm:$0xff]
      %v709 = vld [vmem:[%s460 + $0x2c0] sm:$0xff]
      %v710 = vld [vmem:[%s460 + $0x2c8] sm:$0xff]
      %v711 = vld [vmem:[%s460 + $0x2d0] sm:$0xff]
      %v712 = vld [vmem:[%s460 + $0x2d8] sm:$0xff]
      %v713 = vld [vmem:[%s460 + $0x2e0] sm:$0xff]
      %v714 = vld [vmem:[%s460 + $0x2e8] sm:$0xff]
      %v715 = vld [vmem:[%s460 + $0x2f0] sm:$0xff]
      %v716 = vld [vmem:[%s460 + $0x2f8] sm:$0xff]
      %v717 = vld [vmem:[%s460 + $0x300] sm:$0xff]
      %v718 = vld [vmem:[%s460 + $0x308] sm:$0xff]
      %v719 = vld [vmem:[%s460 + $0x310] sm:$0xff]
      %v720 = vld [vmem:[%s460 + $0x318] sm:$0xff]
      %v721 = vld [vmem:[%s460 + $0x320] sm:$0xff]
      %v722 = vld [vmem:[%s460 + $0x328] sm:$0xff]
      %v723 = vld [vmem:[%s460 + $0x330] sm:$0xff]
      %v724 = vld [vmem:[%s460 + $0x338] sm:$0xff]
      %v725 = vld [vmem:[%s460 + $0x340] sm:$0xff]
      %v726 = vld [vmem:[%s460 + $0x348] sm:$0xff]
      %v727 = vld [vmem:[%s460 + $0x350] sm:$0xff]
      %v728 = vld [vmem:[%s460 + $0x358] sm:$0xff]
      %v729 = vld [vmem:[%s460 + $0x360] sm:$0xff]
      %v730 = vld [vmem:[%s460 + $0x368] sm:$0xff]
      %v731 = vld [vmem:[%s460 + $0x370] sm:$0xff]
      %v732 = vld [vmem:[%s460 + $0x378] sm:$0xff]
      %v733 = vld [vmem:[%s460 + $0x380] sm:$0xff]
      %v734 = vld [vmem:[%s460 + $0x388] sm:$0xff]
      %v735 = vld [vmem:[%s460 + $0x390] sm:$0xff]
      %v736 = vld [vmem:[%s460 + $0x398] sm:$0xff]
      %v737 = vld [vmem:[%s460 + $0x3a0] sm:$0xff]
      %v738 = vld [vmem:[%s460 + $0x3a8] sm:$0xff]
      %v739 = vld [vmem:[%s460 + $0x3b0] sm:$0xff]
      %v740 = vld [vmem:[%s460 + $0x3b8] sm:$0xff]
      %v741 = vld [vmem:[%s460 + $0x3c0] sm:$0xff]
      %v742 = vld [vmem:[%s460 + $0x3c8] sm:$0xff]
      %v743 = vld [vmem:[%s460 + $0x3d0] sm:$0xff]
      %v744 = vld [vmem:[%s460 + $0x3d8] sm:$0xff]
      %v745 = vld [vmem:[%s460 + $0x3e0] sm:$0xff]
      %v746 = vld [vmem:[%s460 + $0x3e8] sm:$0xff]
      %v747 = vld [vmem:[%s460 + $0x3f0] sm:$0xff]
      %v748 = vld [vmem:[%s460 + $0x3f8] sm:$0xff]
      %v749 = vld [vmem:[%s6] sm:$0xff]
      %v750 = vld [vmem:[%s6 + $0x8] sm:$0x3]
      %vm751 = vcmask 80896
      %v753 = vsel %vm751, %v621, 0
      %v756 = vsel %vm751, %v622, 0
      %v759 = vsel %vm751, %v623, 0
      %v762 = vsel %vm751, %v624, 0
      %v765 = vsel %vm751, %v625, 0
      %v768 = vsel %vm751, %v626, 0
      %v771 = vsel %vm751, %v627, 0
      %v774 = vsel %vm751, %v628, 0
      %v777 = vsel %vm751, %v629, 0
      %v780 = vsel %vm751, %v630, 0
      %v783 = vsel %vm751, %v631, 0
      %v786 = vsel %vm751, %v632, 0
      %v789 = vsel %vm751, %v633, 0
      %v792 = vsel %vm751, %v634, 0
      %v795 = vsel %vm751, %v635, 0
      %v798 = vsel %vm751, %v636, 0
      %v801 = vsel %vm751, %v637, 0
      %v804 = vsel %vm751, %v638, 0
      %v807 = vsel %vm751, %v639, 0
      %v810 = vsel %vm751, %v640, 0
      %v813 = vsel %vm751, %v641, 0
      %v816 = vsel %vm751, %v642, 0
      %v819 = vsel %vm751, %v643, 0
      %v822 = vsel %vm751, %v644, 0
      %v825 = vsel %vm751, %v645, 0
      %v828 = vsel %vm751, %v646, 0
      %v831 = vsel %vm751, %v647, 0
      %v834 = vsel %vm751, %v648, 0
      %v837 = vsel %vm751, %v649, 0
      %v840 = vsel %vm751, %v650, 0
      %v843 = vsel %vm751, %v651, 0
      %v846 = vsel %vm751, %v652, 0
      %v849 = vsel %vm751, %v653, 0
      %v852 = vsel %vm751, %v654, 0
      %v855 = vsel %vm751, %v655, 0
      %v858 = vsel %vm751, %v656, 0
      %v861 = vsel %vm751, %v657, 0
      %v864 = vsel %vm751, %v658, 0
      %v867 = vsel %vm751, %v659, 0
      %v870 = vsel %vm751, %v660, 0
      %v873 = vsel %vm751, %v661, 0
      %v876 = vsel %vm751, %v662, 0
      %v879 = vsel %vm751, %v663, 0
      %v882 = vsel %vm751, %v664, 0
      %v885 = vsel %vm751, %v665, 0
      %v888 = vsel %vm751, %v666, 0
      %v891 = vsel %vm751, %v667, 0
      %v894 = vsel %vm751, %v668, 0
      %v897 = vsel %vm751, %v669, 0
      %v900 = vsel %vm751, %v670, 0
      %v903 = vsel %vm751, %v671, 0
      %v906 = vsel %vm751, %v672, 0
      %v909 = vsel %vm751, %v673, 0
      %v912 = vsel %vm751, %v674, 0
      %v915 = vsel %vm751, %v675, 0
      %v918 = vsel %vm751, %v676, 0
      %v921 = vsel %vm751, %v677, 0
      %v924 = vsel %vm751, %v678, 0
      %v927 = vsel %vm751, %v679, 0
      %v930 = vsel %vm751, %v680, 0
      %v933 = vsel %vm751, %v681, 0
      %v936 = vsel %vm751, %v682, 0
      %v939 = vsel %vm751, %v683, 0
      %v942 = vsel %vm751, %v684, 0
      %v945 = vsel %vm751, %v685, 0
      %v948 = vsel %vm751, %v686, 0
      %v951 = vsel %vm751, %v687, 0
      %v954 = vsel %vm751, %v688, 0
      %v957 = vsel %vm751, %v689, 0
      %v960 = vsel %vm751, %v690, 0
      %v963 = vsel %vm751, %v691, 0
      %v966 = vsel %vm751, %v692, 0
      %v969 = vsel %vm751, %v693, 0
      %v972 = vsel %vm751, %v694, 0
      %v975 = vsel %vm751, %v695, 0
      %v978 = vsel %vm751, %v696, 0
      %v981 = vsel %vm751, %v697, 0
      %v984 = vsel %vm751, %v698, 0
      %v987 = vsel %vm751, %v699, 0
      %v990 = vsel %vm751, %v700, 0
      %v993 = vsel %vm751, %v701, 0
      %v996 = vsel %vm751, %v702, 0
      %v999 = vsel %vm751, %v703, 0
      %v1002 = vsel %vm751, %v704, 0
      %v1005 = vsel %vm751, %v705, 0
      %v1008 = vsel %vm751, %v706, 0
      %v1011 = vsel %vm751, %v707, 0
      %v1014 = vsel %vm751, %v708, 0
      %v1017 = vsel %vm751, %v709, 0
      %v1020 = vsel %vm751, %v710, 0
      %v1023 = vsel %vm751, %v711, 0
      %v1026 = vsel %vm751, %v712, 0
      %v1029 = vsel %vm751, %v713, 0
      %v1032 = vsel %vm751, %v714, 0
      %v1035 = vsel %vm751, %v715, 0
      %v1038 = vsel %vm751, %v716, 0
      %v1041 = vsel %vm751, %v717, 0
      %v1044 = vsel %vm751, %v718, 0
      %v1047 = vsel %vm751, %v719, 0
      %v1050 = vsel %vm751, %v720, 0
      %v1053 = vsel %vm751, %v721, 0
      %v1056 = vsel %vm751, %v722, 0
      %v1059 = vsel %vm751, %v723, 0
      %v1062 = vsel %vm751, %v724, 0
      %v1065 = vsel %vm751, %v725, 0
      %v1068 = vsel %vm751, %v726, 0
      %v1071 = vsel %vm751, %v727, 0
      %v1074 = vsel %vm751, %v728, 0
      %v1077 = vsel %vm751, %v729, 0
      %v1080 = vsel %vm751, %v730, 0
      %v1083 = vsel %vm751, %v731, 0
      %v1086 = vsel %vm751, %v732, 0
      %v1089 = vsel %vm751, %v733, 0
      %v1092 = vsel %vm751, %v734, 0
      %v1095 = vsel %vm751, %v735, 0
      %v1098 = vsel %vm751, %v736, 0
      %v1101 = vsel %vm751, %v737, 0
      %v1104 = vsel %vm751, %v738, 0
      %v1107 = vsel %vm751, %v739, 0
      %v1110 = vsel %vm751, %v740, 0
      %v1113 = vsel %vm751, %v741, 0
      %v1116 = vsel %vm751, %v742, 0
      %v1119 = vsel %vm751, %v743, 0
      %v1122 = vsel %vm751, %v744, 0
      %v1125 = vsel %vm751, %v745, 0
      %v1128 = vsel %vm751, %v746, 0
      %v1131 = vsel %vm751, %v747, 0
      %v1134 = vsel %vm751, %v748, 0
      %vm1136 = vcmask 1041408
      %v1138 = vsel %vm1136, %v750, 0
      %1140 = vmatprep.subr.mxu0 0.0
      %1141 = vmatpush1.msra.mxu0 %v749
      %1142 = vmatprep.subr.mxu0 0.0
      %1143 = vmatpush1.msra.mxu0 %v1138
      %1144 = vmatprep.subr.mxu0 0.0
      %1145 = vmatpush1.msra.mxu0 0.0
      %1146 = vmatprep.subr.mxu0 0.0
      %1147 = vmatpush1.msra.mxu0 0.0
      %1148 = vmatprep.subr.mxu0 0.0
      %1149 = vmatpush1.msra.mxu0 0.0
      %1150 = vmatprep.subr.mxu0 0.0
      %1151 = vmatpush1.msra.mxu0 0.0
      %1152 = vmatprep.subr.mxu0 0.0
      %1153 = vmatpush1.msra.mxu0 0.0
      %1154 = vmatprep.subr.mxu0 0.0
      %1155 = vmatpush1.msra.mxu0 0.0
      %1156 = vmatprep.subr.mxu0 0.0
      %1157 = vmatpush1.msra.mxu0 0.0
      %1158 = vmatprep.subr.mxu0 0.0
      %1159 = vmatpush1.msra.mxu0 0.0
      %1160 = vmatprep.subr.mxu0 0.0
      %1161 = vmatpush1.msra.mxu0 0.0
      %1162 = vmatprep.subr.mxu0 0.0
      %1163 = vmatpush1.msra.mxu0 0.0
      %1164 = vmatprep.subr.mxu0 0.0
      %1165 = vmatpush1.msra.mxu0 0.0
      %1166 = vmatprep.subr.mxu0 0.0
      %1167 = vmatpush1.msra.mxu0 0.0
      %1168 = vmatprep.subr.mxu0 0.0
      %1169 = vmatpush1.msra.mxu0 0.0
      %1170 = vmatprep.subr.mxu0 0.0
      %1171 = vmatpush1.msra.mxu0 0.0
      %1172 = vmatprep.subr.mxu0 0.0
      %1173 = vmatpush1.msra.mxu0 0.0
      %1174 = vmatprep.subr.mxu0 0.0
      %1175 = vmatpush1.msra.mxu0 0.0
      %1176 = vmatprep.subr.mxu0 0.0
      %1177 = vmatpush1.msra.mxu0 0.0
      %1178 = vmatprep.subr.mxu0 0.0
      %1179 = vmatpush1.msra.mxu0 0.0
      %1180 = vmatprep.subr.mxu0 0.0
      %1181 = vmatpush1.msra.mxu0 0.0
      %1182 = vmatprep.subr.mxu0 0.0
      %1183 = vmatpush1.msra.mxu0 0.0
      %1184 = vmatprep.subr.mxu0 0.0
      %1185 = vmatpush1.msra.mxu0 0.0
      %1186 = vmatprep.subr.mxu0 0.0
      %1187 = vmatpush1.msra.mxu0 0.0
      %1188 = vmatprep.subr.mxu0 0.0
      %1189 = vmatpush1.msra.mxu0 0.0
      %1190 = vmatprep.subr.mxu0 0.0
      %1191 = vmatpush1.msra.mxu0 0.0
      %1192 = vmatprep.subr.mxu0 0.0
      %1193 = vmatpush1.msra.mxu0 0.0
      %1194 = vmatprep.subr.mxu0 0.0
      %1195 = vmatpush1.msra.mxu0 0.0
      %1196 = vmatprep.subr.mxu0 0.0
      %1197 = vmatpush1.msra.mxu0 0.0
      %1198 = vmatprep.subr.mxu0 0.0
      %1199 = vmatpush1.msra.mxu0 0.0
      %1200 = vmatprep.subr.mxu0 0.0
      %1201 = vmatpush1.msra.mxu0 0.0
      %1202 = vmatprep.subr.mxu0 0.0
      %1203 = vmatpush1.msra.mxu0 0.0
      %1204 = vmatprep.mubr.f32.mxu0 0.0
      %1205 = vmatmul.mubr.f32.gmra.mrb[0].mxu0 %v753
      %v1206 = vpop.f32.mrb[0].mxu0
      %v1207 = vadd.f32 0.0, %v1206
      %v1208 = vpop.f32.mrb[0].mxu0
      %1209 = vmatprep.mubr.f32.mxu0 0.0
      %1210 = vmatmul.mubr.f32.gmra.mrb[0].mxu0 %v756
      %v1211 = vpop.f32.mrb[0].mxu0
      %v1212 = vadd.f32 0.0, %v1211
      %v1213 = vpop.f32.mrb[0].mxu0
      %1214 = vmatprep.mubr.f32.mxu0 0.0
      %1215 = vmatmul.mubr.f32.gmra.mrb[0].mxu0 %v759
      %v1216 = vpop.f32.mrb[0].mxu0
      %v1217 = vadd.f32 0.0, %v1216
      %v1218 = vpop.f32.mrb[0].mxu0
      %1219 = vmatprep.mubr.f32.mxu0 0.0
      %1220 = vmatmul.mubr.f32.gmra.mrb[0].mxu0 %v762
      %v1221 = vpop.f32.mrb[0].mxu0
      %v1222 = vadd.f32 0.0, %v1221
      %v1223 = vpop.f32.mrb[0].mxu0
      %1224 = vmatprep.mubr.f32.mxu0 0.0
      %1225 = vmatmul.mubr.f32.gmra.mrb[0].mxu0 %v765
      %v1226 = vpop.f32.mrb[0].mxu0
      %v1227 = vadd.f32 0.0, %v1226
      %v1228 = vpop.f32.mrb[0].mxu0
      %1229 = vmatprep.mubr.f32.mxu0 0.0
      %1230 = vmatmul.mubr.f32.gmra.mrb[0].mxu0 %v768
      %v1231 = vpop.f32.mrb[0].mxu0
      %v1232 = vadd.f32 0.0, %v1231
      %v1233 = vpop.f32.mrb[0].mxu0
      %1234 = vmatprep.mubr.f32.mxu0 0.0
      %1235 = vmatmul.mubr.f32.gmra.mrb[0].mxu0 %v771
      %v1236 = vpop.f32.mrb[0].mxu0
      %v1237 = vadd.f32 0.0, %v1236
      %v1238 = vpop.f32.mrb[0].mxu0
      %1239 = vmatprep.mubr.f32.mxu0 0.0
      %1240 = vmatmul.mubr.f32.gmra.mrb[0].mxu0 %v774
      %v1241 = vpop.f32.mrb[0].mxu0
      %v1242 = vadd.f32 0.0, %v1241
      %v1243 = vpop.f32.mrb[0].mxu0
      %1244 = vmatprep.mubr.f32.mxu0 0.0
      %1245 = vmatmul.mubr.f32.gmra.mrb[0].mxu0 %v777
      %v1246 = vpop.f32.mrb[0].mxu0
      %v1247 = vadd.f32 0.0, %v1246
      %v1248 = vpop.f32.mrb[0].mxu0
      %1249 = vmatprep.mubr.f32.mxu0 0.0
      %1250 = vmatmul.mubr.f32.gmra.mrb[0].mxu0 %v780
      %v1251 = vpop.f32.mrb[0].mxu0
      %v1252 = vadd.f32 0.0, %v1251
      %v1253 = vpop.f32.mrb[0].mxu0
      %1254 = vmatprep.mubr.f32.mxu0 0.0
      %1255 = vmatmul.mubr.f32.gmra.mrb[0].mxu0 %v783
      %v1256 = vpop.f32.mrb[0].mxu0
      %v1257 = vadd.f32 0.0, %v1256
      %v1258 = vpop.f32.mrb[0].mxu0
      %1259 = vmatprep.mubr.f32.mxu0 0.0
      %1260 = vmatmul.mubr.f32.gmra.mrb[0].mxu0 %v786
      %v1261 = vpop.f32.mrb[0].mxu0
      %v1262 = vadd.f32 0.0, %v1261
      %v1263 = vpop.f32.mrb[0].mxu0
      %1264 = vmatprep.mubr.f32.mxu0 0.0
      %1265 = vmatmul.mubr.f32.gmra.mrb[0].mxu0 %v789
      %v1266 = vpop.f32.mrb[0].mxu0
      %v1267 = vadd.f32 0.0, %v1266
      %v1268 = vpop.f32.mrb[0].mxu0
      %1269 = vmatprep.mubr.f32.mxu0 0.0
      %1270 = vmatmul.mubr.f32.gmra.mrb[0].mxu0 %v792
      %v1271 = vpop.f32.mrb[0].mxu0
      %v1272 = vadd.f32 0.0, %v1271
      %v1273 = vpop.f32.mrb[0].mxu0
      %1274 = vmatprep.mubr.f32.mxu0 0.0
      %1275 = vmatmul.mubr.f32.gmra.mrb[0].mxu0 %v795
      %v1276 = vpop.f32.mrb[0].mxu0
      %v1277 = vadd.f32 0.0, %v1276
      %v1278 = vpop.f32.mrb[0].mxu0
      %1279 = vmatprep.mubr.f32.mxu0 0.0
      %1280 = vmatmul.mubr.f32.gmra.mrb[0].mxu0 %v798
      %v1281 = vpop.f32.mrb[0].mxu0
      %v1282 = vadd.f32 0.0, %v1281
      %v1283 = vpop.f32.mrb[0].mxu0
      %1284 = vmatprep.mubr.f32.mxu0 0.0
      %1285 = vmatmul.mubr.f32.gmra.mrb[0].mxu0 %v801
      %v1286 = vpop.f32.mrb[0].mxu0
      %v1287 = vadd.f32 0.0, %v1286
      %v1288 = vpop.f32.mrb[0].mxu0
      %1289 = vmatprep.mubr.f32.mxu0 0.0
      %1290 = vmatmul.mubr.f32.gmra.mrb[0].mxu0 %v804
      %v1291 = vpop.f32.mrb[0].mxu0
      %v1292 = vadd.f32 0.0, %v1291
      %v1293 = vpop.f32.mrb[0].mxu0
      %1294 = vmatprep.mubr.f32.mxu0 0.0
      %1295 = vmatmul.mubr.f32.gmra.mrb[0].mxu0 %v807
      %v1296 = vpop.f32.mrb[0].mxu0
      %v1297 = vadd.f32 0.0, %v1296
      %v1298 = vpop.f32.mrb[0].mxu0
      %1299 = vmatprep.mubr.f32.mxu0 0.0
      %1300 = vmatmul.mubr.f32.gmra.mrb[0].mxu0 %v810
      %v1301 = vpop.f32.mrb[0].mxu0
      %v1302 = vadd.f32 0.0, %v1301
      %v1303 = vpop.f32.mrb[0].mxu0
      %1304 = vmatprep.mubr.f32.mxu0 0.0
      %1305 = vmatmul.mubr.f32.gmra.mrb[0].mxu0 %v813
      %v1306 = vpop.f32.mrb[0].mxu0
      %v1307 = vadd.f32 0.0, %v1306
      %v1308 = vpop.f32.mrb[0].mxu0
      %1309 = vmatprep.mubr.f32.mxu0 0.0
      %1310 = vmatmul.mubr.f32.gmra.mrb[0].mxu0 %v816
      %v1311 = vpop.f32.mrb[0].mxu0
      %v1312 = vadd.f32 0.0, %v1311
      %v1313 = vpop.f32.mrb[0].mxu0
      %1314 = vmatprep.mubr.f32.mxu0 0.0
      %1315 = vmatmul.mubr.f32.gmra.mrb[0].mxu0 %v819
      %v1316 = vpop.f32.mrb[0].mxu0
      %v1317 = vadd.f32 0.0, %v1316
      %v1318 = vpop.f32.mrb[0].mxu0
      %1319 = vmatprep.mubr.f32.mxu0 0.0
      %1320 = vmatmul.mubr.f32.gmra.mrb[0].mxu0 %v822
      %v1321 = vpop.f32.mrb[0].mxu0
      %v1322 = vadd.f32 0.0, %v1321
      %v1323 = vpop.f32.mrb[0].mxu0
      %1324 = vmatprep.mubr.f32.mxu0 0.0
      %1325 = vmatmul.mubr.f32.gmra.mrb[0].mxu0 %v825
      %v1326 = vpop.f32.mrb[0].mxu0
      %v1327 = vadd.f32 0.0, %v1326
      %v1328 = vpop.f32.mrb[0].mxu0
      %1329 = vmatprep.mubr.f32.mxu0 0.0
      %1330 = vmatmul.mubr.f32.gmra.mrb[0].mxu0 %v828
      %v1331 = vpop.f32.mrb[0].mxu0
      %v1332 = vadd.f32 0.0, %v1331
      %v1333 = vpop.f32.mrb[0].mxu0
      %1334 = vmatprep.mubr.f32.mxu0 0.0
      %1335 = vmatmul.mubr.f32.gmra.mrb[0].mxu0 %v831
      %v1336 = vpop.f32.mrb[0].mxu0
      %v1337 = vadd.f32 0.0, %v1336
      %v1338 = vpop.f32.mrb[0].mxu0
      %1339 = vmatprep.mubr.f32.mxu0 0.0
      %1340 = vmatmul.mubr.f32.gmra.mrb[0].mxu0 %v834
      %v1341 = vpop.f32.mrb[0].mxu0
      %v1342 = vadd.f32 0.0, %v1341
      %v1343 = vpop.f32.mrb[0].mxu0
      %1344 = vmatprep.mubr.f32.mxu0 0.0
      %1345 = vmatmul.mubr.f32.gmra.mrb[0].mxu0 %v837
      %v1346 = vpop.f32.mrb[0].mxu0
      %v1347 = vadd.f32 0.0, %v1346
      %v1348 = vpop.f32.mrb[0].mxu0
      %1349 = vmatprep.mubr.f32.mxu0 0.0
      %1350 = vmatmul.mubr.f32.gmra.mrb[0].mxu0 %v840
      %v1351 = vpop.f32.mrb[0].mxu0
      %v1352 = vadd.f32 0.0, %v1351
      %v1353 = vpop.f32.mrb[0].mxu0
      %1354 = vmatprep.mubr.f32.mxu0 0.0
      %1355 = vmatmul.mubr.f32.gmra.mrb[0].mxu0 %v843
      %v1356 = vpop.f32.mrb[0].mxu0
      %v1357 = vadd.f32 0.0, %v1356
      %v1358 = vpop.f32.mrb[0].mxu0
      %1359 = vmatprep.mubr.f32.mxu0 0.0
      %1360 = vmatmul.mubr.f32.gmra.mrb[0].mxu0 %v846
      %v1361 = vpop.f32.mrb[0].mxu0
      %v1362 = vadd.f32 0.0, %v1361
      %v1363 = vpop.f32.mrb[0].mxu0
      %1364 = vmatprep.mubr.f32.mxu0 0.0
      %1365 = vmatmul.mubr.f32.gmra.mrb[0].mxu0 %v849
      %v1366 = vpop.f32.mrb[0].mxu0
      %v1367 = vadd.f32 0.0, %v1366
      %v1368 = vpop.f32.mrb[0].mxu0
      %1369 = vmatprep.mubr.f32.mxu0 0.0
      %1370 = vmatmul.mubr.f32.gmra.mrb[0].mxu0 %v852
      %v1371 = vpop.f32.mrb[0].mxu0
      %v1372 = vadd.f32 0.0, %v1371
      %v1373 = vpop.f32.mrb[0].mxu0
      %1374 = vmatprep.mubr.f32.mxu0 0.0
      %1375 = vmatmul.mubr.f32.gmra.mrb[0].mxu0 %v855
      %v1376 = vpop.f32.mrb[0].mxu0
      %v1377 = vadd.f32 0.0, %v1376
      %v1378 = vpop.f32.mrb[0].mxu0
      %1379 = vmatprep.mubr.f32.mxu0 0.0
      %1380 = vmatmul.mubr.f32.gmra.mrb[0].mxu0 %v858
      %v1381 = vpop.f32.mrb[0].mxu0
      %v1382 = vadd.f32 0.0, %v1381
      %v1383 = vpop.f32.mrb[0].mxu0
      %1384 = vmatprep.mubr.f32.mxu0 0.0
      %1385 = vmatmul.mubr.f32.gmra.mrb[0].mxu0 %v861
      %v1386 = vpop.f32.mrb[0].mxu0
      %v1387 = vadd.f32 0.0, %v1386
      %v1388 = vpop.f32.mrb[0].mxu0
      %1389 = vmatprep.mubr.f32.mxu0 0.0
      %1390 = vmatmul.mubr.f32.gmra.mrb[0].mxu0 %v864
      %v1391 = vpop.f32.mrb[0].mxu0
      %v1392 = vadd.f32 0.0, %v1391
      %v1393 = vpop.f32.mrb[0].mxu0
      %1394 = vmatprep.mubr.f32.mxu0 0.0
      %1395 = vmatmul.mubr.f32.gmra.mrb[0].mxu0 %v867
      %v1396 = vpop.f32.mrb[0].mxu0
      %v1397 = vadd.f32 0.0, %v1396
      %v1398 = vpop.f32.mrb[0].mxu0
      %1399 = vmatprep.mubr.f32.mxu0 0.0
      %1400 = vmatmul.mubr.f32.gmra.mrb[0].mxu0 %v870
      %v1401 = vpop.f32.mrb[0].mxu0
      %v1402 = vadd.f32 0.0, %v1401
      %v1403 = vpop.f32.mrb[0].mxu0
      %1404 = vmatprep.mubr.f32.mxu0 0.0
      %1405 = vmatmul.mubr.f32.gmra.mrb[0].mxu0 %v873
      %v1406 = vpop.f32.mrb[0].mxu0
      %v1407 = vadd.f32 0.0, %v1406
      %v1408 = vpop.f32.mrb[0].mxu0
      %1409 = vmatprep.mubr.f32.mxu0 0.0
      %1410 = vmatmul.mubr.f32.gmra.mrb[0].mxu0 %v876
      %v1411 = vpop.f32.mrb[0].mxu0
      %v1412 = vadd.f32 0.0, %v1411
      %v1413 = vpop.f32.mrb[0].mxu0
      %1414 = vmatprep.mubr.f32.mxu0 0.0
      %1415 = vmatmul.mubr.f32.gmra.mrb[0].mxu0 %v879
      %v1416 = vpop.f32.mrb[0].mxu0
      %v1417 = vadd.f32 0.0, %v1416
      %v1418 = vpop.f32.mrb[0].mxu0
      %1419 = vmatprep.mubr.f32.mxu0 0.0
      %1420 = vmatmul.mubr.f32.gmra.mrb[0].mxu0 %v882
      %v1421 = vpop.f32.mrb[0].mxu0
      %v1422 = vadd.f32 0.0, %v1421
      %v1423 = vpop.f32.mrb[0].mxu0
      %1424 = vmatprep.mubr.f32.mxu0 0.0
      %1425 = vmatmul.mubr.f32.gmra.mrb[0].mxu0 %v885
      %v1426 = vpop.f32.mrb[0].mxu0
      %v1427 = vadd.f32 0.0, %v1426
      %v1428 = vpop.f32.mrb[0].mxu0
      %1429 = vmatprep.mubr.f32.mxu0 0.0
      %1430 = vmatmul.mubr.f32.gmra.mrb[0].mxu0 %v888
      %v1431 = vpop.f32.mrb[0].mxu0
      %v1432 = vadd.f32 0.0, %v1431
      %v1433 = vpop.f32.mrb[0].mxu0
      %1434 = vmatprep.mubr.f32.mxu0 0.0
      %1435 = vmatmul.mubr.f32.gmra.mrb[0].mxu0 %v891
      %v1436 = vpop.f32.mrb[0].mxu0
      %v1437 = vadd.f32 0.0, %v1436
      %v1438 = vpop.f32.mrb[0].mxu0
      %1439 = vmatprep.mubr.f32.mxu0 0.0
      %1440 = vmatmul.mubr.f32.gmra.mrb[0].mxu0 %v894
      %v1441 = vpop.f32.mrb[0].mxu0
      %v1442 = vadd.f32 0.0, %v1441
      %v1443 = vpop.f32.mrb[0].mxu0
      %1444 = vmatprep.mubr.f32.mxu0 0.0
      %1445 = vmatmul.mubr.f32.gmra.mrb[0].mxu0 %v897
      %v1446 = vpop.f32.mrb[0].mxu0
      %v1447 = vadd.f32 0.0, %v1446
      %v1448 = vpop.f32.mrb[0].mxu0
      %1449 = vmatprep.mubr.f32.mxu0 0.0
      %1450 = vmatmul.mubr.f32.gmra.mrb[0].mxu0 %v900
      %v1451 = vpop.f32.mrb[0].mxu0
      %v1452 = vadd.f32 0.0, %v1451
      %v1453 = vpop.f32.mrb[0].mxu0
      %1454 = vmatprep.mubr.f32.mxu0 0.0
      %1455 = vmatmul.mubr.f32.gmra.mrb[0].mxu0 %v903
      %v1456 = vpop.f32.mrb[0].mxu0
      %v1457 = vadd.f32 0.0, %v1456
      %v1458 = vpop.f32.mrb[0].mxu0
      %1459 = vmatprep.mubr.f32.mxu0 0.0
      %1460 = vmatmul.mubr.f32.gmra.mrb[0].mxu0 %v906
      %v1461 = vpop.f32.mrb[0].mxu0
      %v1462 = vadd.f32 0.0, %v1461
      %v1463 = vpop.f32.mrb[0].mxu0
      %1464 = vmatprep.mubr.f32.mxu0 0.0
      %1465 = vmatmul.mubr.f32.gmra.mrb[0].mxu0 %v909
      %v1466 = vpop.f32.mrb[0].mxu0
      %v1467 = vadd.f32 0.0, %v1466
      %v1468 = vpop.f32.mrb[0].mxu0
      %1469 = vmatprep.mubr.f32.mxu0 0.0
      %1470 = vmatmul.mubr.f32.gmra.mrb[0].mxu0 %v912
      %v1471 = vpop.f32.mrb[0].mxu0
      %v1472 = vadd.f32 0.0, %v1471
      %v1473 = vpop.f32.mrb[0].mxu0
      %1474 = vmatprep.mubr.f32.mxu0 0.0
      %1475 = vmatmul.mubr.f32.gmra.mrb[0].mxu0 %v915
      %v1476 = vpop.f32.mrb[0].mxu0
      %v1477 = vadd.f32 0.0, %v1476
      %v1478 = vpop.f32.mrb[0].mxu0
      %1479 = vmatprep.mubr.f32.mxu0 0.0
      %1480 = vmatmul.mubr.f32.gmra.mrb[0].mxu0 %v918
      %v1481 = vpop.f32.mrb[0].mxu0
      %v1482 = vadd.f32 0.0, %v1481
      %v1483 = vpop.f32.mrb[0].mxu0
      %1484 = vmatprep.mubr.f32.mxu0 0.0
      %1485 = vmatmul.mubr.f32.gmra.mrb[0].mxu0 %v921
      %v1486 = vpop.f32.mrb[0].mxu0
      %v1487 = vadd.f32 0.0, %v1486
      %v1488 = vpop.f32.mrb[0].mxu0
      %1489 = vmatprep.mubr.f32.mxu0 0.0
      %1490 = vmatmul.mubr.f32.gmra.mrb[0].mxu0 %v924
      %v1491 = vpop.f32.mrb[0].mxu0
      %v1492 = vadd.f32 0.0, %v1491
      %v1493 = vpop.f32.mrb[0].mxu0
      %1494 = vmatprep.mubr.f32.mxu0 0.0
      %1495 = vmatmul.mubr.f32.gmra.mrb[0].mxu0 %v927
      %v1496 = vpop.f32.mrb[0].mxu0
      %v1497 = vadd.f32 0.0, %v1496
      %v1498 = vpop.f32.mrb[0].mxu0
      %1499 = vmatprep.mubr.f32.mxu0 0.0
      %1500 = vmatmul.mubr.f32.gmra.mrb[0].mxu0 %v930
      %v1501 = vpop.f32.mrb[0].mxu0
      %v1502 = vadd.f32 0.0, %v1501
      %v1503 = vpop.f32.mrb[0].mxu0
      %1504 = vmatprep.mubr.f32.mxu0 0.0
      %1505 = vmatmul.mubr.f32.gmra.mrb[0].mxu0 %v933
      %v1506 = vpop.f32.mrb[0].mxu0
      %v1507 = vadd.f32 0.0, %v1506
      %v1508 = vpop.f32.mrb[0].mxu0
      %1509 = vmatprep.mubr.f32.mxu0 0.0
      %1510 = vmatmul.mubr.f32.gmra.mrb[0].mxu0 %v936
      %v1511 = vpop.f32.mrb[0].mxu0
      %v1512 = vadd.f32 0.0, %v1511
      %v1513 = vpop.f32.mrb[0].mxu0
      %1514 = vmatprep.mubr.f32.mxu0 0.0
      %1515 = vmatmul.mubr.f32.gmra.mrb[0].mxu0 %v939
      %v1516 = vpop.f32.mrb[0].mxu0
      %v1517 = vadd.f32 0.0, %v1516
      %v1518 = vpop.f32.mrb[0].mxu0
      %1519 = vmatprep.mubr.f32.mxu0 0.0
      %1520 = vmatmul.mubr.f32.gmra.mrb[0].mxu0 %v942
      %v1521 = vpop.f32.mrb[0].mxu0
      %v1522 = vadd.f32 0.0, %v1521
      %v1523 = vpop.f32.mrb[0].mxu0
      %1524 = vmatprep.mubr.f32.mxu0 0.0
      %1525 = vmatmul.mubr.f32.gmra.mrb[0].mxu0 %v945
      %v1526 = vpop.f32.mrb[0].mxu0
      %v1527 = vadd.f32 0.0, %v1526
      %v1528 = vpop.f32.mrb[0].mxu0
      %1529 = vmatprep.mubr.f32.mxu0 0.0
      %1530 = vmatmul.mubr.f32.gmra.mrb[0].mxu0 %v948
      %v1531 = vpop.f32.mrb[0].mxu0
      %v1532 = vadd.f32 0.0, %v1531
      %v1533 = vpop.f32.mrb[0].mxu0
      %1534 = vmatprep.mubr.f32.mxu0 0.0
      %1535 = vmatmul.mubr.f32.gmra.mrb[0].mxu0 %v951
      %v1536 = vpop.f32.mrb[0].mxu0
      %v1537 = vadd.f32 0.0, %v1536
      %v1538 = vpop.f32.mrb[0].mxu0
      %1539 = vmatprep.mubr.f32.mxu0 0.0
      %1540 = vmatmul.mubr.f32.gmra.mrb[0].mxu0 %v954
      %v1541 = vpop.f32.mrb[0].mxu0
      %v1542 = vadd.f32 0.0, %v1541
      %v1543 = vpop.f32.mrb[0].mxu0
      %1544 = vmatprep.mubr.f32.mxu0 0.0
      %1545 = vmatmul.mubr.f32.gmra.mrb[0].mxu0 %v957
      %v1546 = vpop.f32.mrb[0].mxu0
      %v1547 = vadd.f32 0.0, %v1546
      %v1548 = vpop.f32.mrb[0].mxu0
      %1549 = vmatprep.mubr.f32.mxu0 0.0
      %1550 = vmatmul.mubr.f32.gmra.mrb[0].mxu0 %v960
      %v1551 = vpop.f32.mrb[0].mxu0
      %v1552 = vadd.f32 0.0, %v1551
      %v1553 = vpop.f32.mrb[0].mxu0
      %1554 = vmatprep.mubr.f32.mxu0 0.0
      %1555 = vmatmul.mubr.f32.gmra.mrb[0].mxu0 %v963
      %v1556 = vpop.f32.mrb[0].mxu0
      %v1557 = vadd.f32 0.0, %v1556
      %v1558 = vpop.f32.mrb[0].mxu0
      %1559 = vmatprep.mubr.f32.mxu0 0.0
      %1560 = vmatmul.mubr.f32.gmra.mrb[0].mxu0 %v966
      %v1561 = vpop.f32.mrb[0].mxu0
      %v1562 = vadd.f32 0.0, %v1561
      %v1563 = vpop.f32.mrb[0].mxu0
      %1564 = vmatprep.mubr.f32.mxu0 0.0
      %1565 = vmatmul.mubr.f32.gmra.mrb[0].mxu0 %v969
      %v1566 = vpop.f32.mrb[0].mxu0
      %v1567 = vadd.f32 0.0, %v1566
      %v1568 = vpop.f32.mrb[0].mxu0
      %1569 = vmatprep.mubr.f32.mxu0 0.0
      %1570 = vmatmul.mubr.f32.gmra.mrb[0].mxu0 %v972
      %v1571 = vpop.f32.mrb[0].mxu0
      %v1572 = vadd.f32 0.0, %v1571
      %v1573 = vpop.f32.mrb[0].mxu0
      %1574 = vmatprep.mubr.f32.mxu0 0.0
      %1575 = vmatmul.mubr.f32.gmra.mrb[0].mxu0 %v975
      %v1576 = vpop.f32.mrb[0].mxu0
      %v1577 = vadd.f32 0.0, %v1576
      %v1578 = vpop.f32.mrb[0].mxu0
      %1579 = vmatprep.mubr.f32.mxu0 0.0
      %1580 = vmatmul.mubr.f32.gmra.mrb[0].mxu0 %v978
      %v1581 = vpop.f32.mrb[0].mxu0
      %v1582 = vadd.f32 0.0, %v1581
      %v1583 = vpop.f32.mrb[0].mxu0
      %1584 = vmatprep.mubr.f32.mxu0 0.0
      %1585 = vmatmul.mubr.f32.gmra.mrb[0].mxu0 %v981
      %v1586 = vpop.f32.mrb[0].mxu0
      %v1587 = vadd.f32 0.0, %v1586
      %v1588 = vpop.f32.mrb[0].mxu0
      %1589 = vmatprep.mubr.f32.mxu0 0.0
      %1590 = vmatmul.mubr.f32.gmra.mrb[0].mxu0 %v984
      %v1591 = vpop.f32.mrb[0].mxu0
      %v1592 = vadd.f32 0.0, %v1591
      %v1593 = vpop.f32.mrb[0].mxu0
      %1594 = vmatprep.mubr.f32.mxu0 0.0
      %1595 = vmatmul.mubr.f32.gmra.mrb[0].mxu0 %v987
      %v1596 = vpop.f32.mrb[0].mxu0
      %v1597 = vadd.f32 0.0, %v1596
      %v1598 = vpop.f32.mrb[0].mxu0
      %1599 = vmatprep.mubr.f32.mxu0 0.0
      %1600 = vmatmul.mubr.f32.gmra.mrb[0].mxu0 %v990
      %v1601 = vpop.f32.mrb[0].mxu0
      %v1602 = vadd.f32 0.0, %v1601
      %v1603 = vpop.f32.mrb[0].mxu0
      %1604 = vmatprep.mubr.f32.mxu0 0.0
      %1605 = vmatmul.mubr.f32.gmra.mrb[0].mxu0 %v993
      %v1606 = vpop.f32.mrb[0].mxu0
      %v1607 = vadd.f32 0.0, %v1606
      %v1608 = vpop.f32.mrb[0].mxu0
      %1609 = vmatprep.mubr.f32.mxu0 0.0
      %1610 = vmatmul.mubr.f32.gmra.mrb[0].mxu0 %v996
      %v1611 = vpop.f32.mrb[0].mxu0
      %v1612 = vadd.f32 0.0, %v1611
      %v1613 = vpop.f32.mrb[0].mxu0
      %1614 = vmatprep.mubr.f32.mxu0 0.0
      %1615 = vmatmul.mubr.f32.gmra.mrb[0].mxu0 %v999
      %v1616 = vpop.f32.mrb[0].mxu0
      %v1617 = vadd.f32 0.0, %v1616
      %v1618 = vpop.f32.mrb[0].mxu0
      %1619 = vmatprep.mubr.f32.mxu0 0.0
      %1620 = vmatmul.mubr.f32.gmra.mrb[0].mxu0 %v1002
      %v1621 = vpop.f32.mrb[0].mxu0
      %v1622 = vadd.f32 0.0, %v1621
      %v1623 = vpop.f32.mrb[0].mxu0
      %1624 = vmatprep.mubr.f32.mxu0 0.0
      %1625 = vmatmul.mubr.f32.gmra.mrb[0].mxu0 %v1005
      %v1626 = vpop.f32.mrb[0].mxu0
      %v1627 = vadd.f32 0.0, %v1626
      %v1628 = vpop.f32.mrb[0].mxu0
      %1629 = vmatprep.mubr.f32.mxu0 0.0
      %1630 = vmatmul.mubr.f32.gmra.mrb[0].mxu0 %v1008
      %v1631 = vpop.f32.mrb[0].mxu0
      %v1632 = vadd.f32 0.0, %v1631
      %v1633 = vpop.f32.mrb[0].mxu0
      %1634 = vmatprep.mubr.f32.mxu0 0.0
      %1635 = vmatmul.mubr.f32.gmra.mrb[0].mxu0 %v1011
      %v1636 = vpop.f32.mrb[0].mxu0
      %v1637 = vadd.f32 0.0, %v1636
      %v1638 = vpop.f32.mrb[0].mxu0
      %1639 = vmatprep.mubr.f32.mxu0 0.0
      %1640 = vmatmul.mubr.f32.gmra.mrb[0].mxu0 %v1014
      %v1641 = vpop.f32.mrb[0].mxu0
      %v1642 = vadd.f32 0.0, %v1641
      %v1643 = vpop.f32.mrb[0].mxu0
      %1644 = vmatprep.mubr.f32.mxu0 0.0
      %1645 = vmatmul.mubr.f32.gmra.mrb[0].mxu0 %v1017
      %v1646 = vpop.f32.mrb[0].mxu0
      %v1647 = vadd.f32 0.0, %v1646
      %v1648 = vpop.f32.mrb[0].mxu0
      %1649 = vmatprep.mubr.f32.mxu0 0.0
      %1650 = vmatmul.mubr.f32.gmra.mrb[0].mxu0 %v1020
      %v1651 = vpop.f32.mrb[0].mxu0
      %v1652 = vadd.f32 0.0, %v1651
      %v1653 = vpop.f32.mrb[0].mxu0
      %1654 = vmatprep.mubr.f32.mxu0 0.0
      %1655 = vmatmul.mubr.f32.gmra.mrb[0].mxu0 %v1023
      %v1656 = vpop.f32.mrb[0].mxu0
      %v1657 = vadd.f32 0.0, %v1656
      %v1658 = vpop.f32.mrb[0].mxu0
      %1659 = vmatprep.mubr.f32.mxu0 0.0
      %1660 = vmatmul.mubr.f32.gmra.mrb[0].mxu0 %v1026
      %v1661 = vpop.f32.mrb[0].mxu0
      %v1662 = vadd.f32 0.0, %v1661
      %v1663 = vpop.f32.mrb[0].mxu0
      %1664 = vmatprep.mubr.f32.mxu0 0.0
      %1665 = vmatmul.mubr.f32.gmra.mrb[0].mxu0 %v1029
      %v1666 = vpop.f32.mrb[0].mxu0
      %v1667 = vadd.f32 0.0, %v1666
      %v1668 = vpop.f32.mrb[0].mxu0
      %1669 = vmatprep.mubr.f32.mxu0 0.0
      %1670 = vmatmul.mubr.f32.gmra.mrb[0].mxu0 %v1032
      %v1671 = vpop.f32.mrb[0].mxu0
      %v1672 = vadd.f32 0.0, %v1671
      %v1673 = vpop.f32.mrb[0].mxu0
      %1674 = vmatprep.mubr.f32.mxu0 0.0
      %1675 = vmatmul.mubr.f32.gmra.mrb[0].mxu0 %v1035
      %v1676 = vpop.f32.mrb[0].mxu0
      %v1677 = vadd.f32 0.0, %v1676
      %v1678 = vpop.f32.mrb[0].mxu0
      %1679 = vmatprep.mubr.f32.mxu0 0.0
      %1680 = vmatmul.mubr.f32.gmra.mrb[0].mxu0 %v1038
      %v1681 = vpop.f32.mrb[0].mxu0
      %v1682 = vadd.f32 0.0, %v1681
      %v1683 = vpop.f32.mrb[0].mxu0
      %1684 = vmatprep.mubr.f32.mxu0 0.0
      %1685 = vmatmul.mubr.f32.gmra.mrb[0].mxu0 %v1041
      %v1686 = vpop.f32.mrb[0].mxu0
      %v1687 = vadd.f32 0.0, %v1686
      %v1688 = vpop.f32.mrb[0].mxu0
      %1689 = vmatprep.mubr.f32.mxu0 0.0
      %1690 = vmatmul.mubr.f32.gmra.mrb[0].mxu0 %v1044
      %v1691 = vpop.f32.mrb[0].mxu0
      %v1692 = vadd.f32 0.0, %v1691
      %v1693 = vpop.f32.mrb[0].mxu0
      %1694 = vmatprep.mubr.f32.mxu0 0.0
      %1695 = vmatmul.mubr.f32.gmra.mrb[0].mxu0 %v1047
      %v1696 = vpop.f32.mrb[0].mxu0
      %v1697 = vadd.f32 0.0, %v1696
      %v1698 = vpop.f32.mrb[0].mxu0
      %1699 = vmatprep.mubr.f32.mxu0 0.0
      %1700 = vmatmul.mubr.f32.gmra.mrb[0].mxu0 %v1050
      %v1701 = vpop.f32.mrb[0].mxu0
      %v1702 = vadd.f32 0.0, %v1701
      %v1703 = vpop.f32.mrb[0].mxu0
      %1704 = vmatprep.mubr.f32.mxu0 0.0
      %1705 = vmatmul.mubr.f32.gmra.mrb[0].mxu0 %v1053
      %v1706 = vpop.f32.mrb[0].mxu0
      %v1707 = vadd.f32 0.0, %v1706
      %v1708 = vpop.f32.mrb[0].mxu0
      %1709 = vmatprep.mubr.f32.mxu0 0.0
      %1710 = vmatmul.mubr.f32.gmra.mrb[0].mxu0 %v1056
      %v1711 = vpop.f32.mrb[0].mxu0
      %v1712 = vadd.f32 0.0, %v1711
      %v1713 = vpop.f32.mrb[0].mxu0
      %1714 = vmatprep.mubr.f32.mxu0 0.0
      %1715 = vmatmul.mubr.f32.gmra.mrb[0].mxu0 %v1059
      %v1716 = vpop.f32.mrb[0].mxu0
      %v1717 = vadd.f32 0.0, %v1716
      %v1718 = vpop.f32.mrb[0].mxu0
      %1719 = vmatprep.mubr.f32.mxu0 0.0
      %1720 = vmatmul.mubr.f32.gmra.mrb[0].mxu0 %v1062
      %v1721 = vpop.f32.mrb[0].mxu0
      %v1722 = vadd.f32 0.0, %v1721
      %v1723 = vpop.f32.mrb[0].mxu0
      %1724 = vmatprep.mubr.f32.mxu0 0.0
      %1725 = vmatmul.mubr.f32.gmra.mrb[0].mxu0 %v1065
      %v1726 = vpop.f32.mrb[0].mxu0
      %v1727 = vadd.f32 0.0, %v1726
      %v1728 = vpop.f32.mrb[0].mxu0
      %1729 = vmatprep.mubr.f32.mxu0 0.0
      %1730 = vmatmul.mubr.f32.gmra.mrb[0].mxu0 %v1068
      %v1731 = vpop.f32.mrb[0].mxu0
      %v1732 = vadd.f32 0.0, %v1731
      %v1733 = vpop.f32.mrb[0].mxu0
      %1734 = vmatprep.mubr.f32.mxu0 0.0
      %1735 = vmatmul.mubr.f32.gmra.mrb[0].mxu0 %v1071
      %v1736 = vpop.f32.mrb[0].mxu0
      %v1737 = vadd.f32 0.0, %v1736
      %v1738 = vpop.f32.mrb[0].mxu0
      %1739 = vmatprep.mubr.f32.mxu0 0.0
      %1740 = vmatmul.mubr.f32.gmra.mrb[0].mxu0 %v1074
      %v1741 = vpop.f32.mrb[0].mxu0
      %v1742 = vadd.f32 0.0, %v1741
      %v1743 = vpop.f32.mrb[0].mxu0
      %1744 = vmatprep.mubr.f32.mxu0 0.0
      %1745 = vmatmul.mubr.f32.gmra.mrb[0].mxu0 %v1077
      %v1746 = vpop.f32.mrb[0].mxu0
      %v1747 = vadd.f32 0.0, %v1746
      %v1748 = vpop.f32.mrb[0].mxu0
      %1749 = vmatprep.mubr.f32.mxu0 0.0
      %1750 = vmatmul.mubr.f32.gmra.mrb[0].mxu0 %v1080
      %v1751 = vpop.f32.mrb[0].mxu0
      %v1752 = vadd.f32 0.0, %v1751
      %v1753 = vpop.f32.mrb[0].mxu0
      %1754 = vmatprep.mubr.f32.mxu0 0.0
      %1755 = vmatmul.mubr.f32.gmra.mrb[0].mxu0 %v1083
      %v1756 = vpop.f32.mrb[0].mxu0
      %v1757 = vadd.f32 0.0, %v1756
      %v1758 = vpop.f32.mrb[0].mxu0
      %1759 = vmatprep.mubr.f32.mxu0 0.0
      %1760 = vmatmul.mubr.f32.gmra.mrb[0].mxu0 %v1086
      %v1761 = vpop.f32.mrb[0].mxu0
      %v1762 = vadd.f32 0.0, %v1761
      %v1763 = vpop.f32.mrb[0].mxu0
      %1764 = vmatprep.mubr.f32.mxu0 0.0
      %1765 = vmatmul.mubr.f32.gmra.mrb[0].mxu0 %v1089
      %v1766 = vpop.f32.mrb[0].mxu0
      %v1767 = vadd.f32 0.0, %v1766
      %v1768 = vpop.f32.mrb[0].mxu0
      %1769 = vmatprep.mubr.f32.mxu0 0.0
      %1770 = vmatmul.mubr.f32.gmra.mrb[0].mxu0 %v1092
      %v1771 = vpop.f32.mrb[0].mxu0
      %v1772 = vadd.f32 0.0, %v1771
      %v1773 = vpop.f32.mrb[0].mxu0
      %1774 = vmatprep.mubr.f32.mxu0 0.0
      %1775 = vmatmul.mubr.f32.gmra.mrb[0].mxu0 %v1095
      %v1776 = vpop.f32.mrb[0].mxu0
      %v1777 = vadd.f32 0.0, %v1776
      %v1778 = vpop.f32.mrb[0].mxu0
      %1779 = vmatprep.mubr.f32.mxu0 0.0
      %1780 = vmatmul.mubr.f32.gmra.mrb[0].mxu0 %v1098
      %v1781 = vpop.f32.mrb[0].mxu0
      %v1782 = vadd.f32 0.0, %v1781
      %v1783 = vpop.f32.mrb[0].mxu0
      %1784 = vmatprep.mubr.f32.mxu0 0.0
      %1785 = vmatmul.mubr.f32.gmra.mrb[0].mxu0 %v1101
      %v1786 = vpop.f32.mrb[0].mxu0
      %v1787 = vadd.f32 0.0, %v1786
      %v1788 = vpop.f32.mrb[0].mxu0
      %1789 = vmatprep.mubr.f32.mxu0 0.0
      %1790 = vmatmul.mubr.f32.gmra.mrb[0].mxu0 %v1104
      %v1791 = vpop.f32.mrb[0].mxu0
      %v1792 = vadd.f32 0.0, %v1791
      %v1793 = vpop.f32.mrb[0].mxu0
      %1794 = vmatprep.mubr.f32.mxu0 0.0
      %1795 = vmatmul.mubr.f32.gmra.mrb[0].mxu0 %v1107
      %v1796 = vpop.f32.mrb[0].mxu0
      %v1797 = vadd.f32 0.0, %v1796
      %v1798 = vpop.f32.mrb[0].mxu0
      %1799 = vmatprep.mubr.f32.mxu0 0.0
      %1800 = vmatmul.mubr.f32.gmra.mrb[0].mxu0 %v1110
      %v1801 = vpop.f32.mrb[0].mxu0
      %v1802 = vadd.f32 0.0, %v1801
      %v1803 = vpop.f32.mrb[0].mxu0
      %1804 = vmatprep.mubr.f32.mxu0 0.0
      %1805 = vmatmul.mubr.f32.gmra.mrb[0].mxu0 %v1113
      %v1806 = vpop.f32.mrb[0].mxu0
      %v1807 = vadd.f32 0.0, %v1806
      %v1808 = vpop.f32.mrb[0].mxu0
      %1809 = vmatprep.mubr.f32.mxu0 0.0
      %1810 = vmatmul.mubr.f32.gmra.mrb[0].mxu0 %v1116
      %v1811 = vpop.f32.mrb[0].mxu0
      %v1812 = vadd.f32 0.0, %v1811
      %v1813 = vpop.f32.mrb[0].mxu0
      %1814 = vmatprep.mubr.f32.mxu0 0.0
      %1815 = vmatmul.mubr.f32.gmra.mrb[0].mxu0 %v1119
      %v1816 = vpop.f32.mrb[0].mxu0
      %v1817 = vadd.f32 0.0, %v1816
      %v1818 = vpop.f32.mrb[0].mxu0
      %1819 = vmatprep.mubr.f32.mxu0 0.0
      %1820 = vmatmul.mubr.f32.gmra.mrb[0].mxu0 %v1122
      %v1821 = vpop.f32.mrb[0].mxu0
      %v1822 = vadd.f32 0.0, %v1821
      %v1823 = vpop.f32.mrb[0].mxu0
      %1824 = vmatprep.mubr.f32.mxu0 0.0
      %1825 = vmatmul.mubr.f32.gmra.mrb[0].mxu0 %v1125
      %v1826 = vpop.f32.mrb[0].mxu0
      %v1827 = vadd.f32 0.0, %v1826
      %v1828 = vpop.f32.mrb[0].mxu0
      %1829 = vmatprep.mubr.f32.mxu0 0.0
      %1830 = vmatmul.mubr.f32.gmra.mrb[0].mxu0 %v1128
      %v1831 = vpop.f32.mrb[0].mxu0
      %v1832 = vadd.f32 0.0, %v1831
      %v1833 = vpop.f32.mrb[0].mxu0
      %1834 = vmatprep.mubr.f32.mxu0 0.0
      %1835 = vmatmul.mubr.f32.gmra.mrb[0].mxu0 %v1131
      %v1836 = vpop.f32.mrb[0].mxu0
      %v1837 = vadd.f32 0.0, %v1836
      %v1838 = vpop.f32.mrb[0].mxu0
      %1839 = vmatprep.mubr.f32.mxu0 0.0
      %1840 = vmatmul.mubr.f32.gmra.mrb[0].mxu0 %v1134
      %v1841 = vpop.f32.mrb[0].mxu0
      %v1842 = vadd.f32 0.0, %v1841
      %v1843 = vpop.f32.mrb[0].mxu0
      %1844 = vdwg.mxu0
      %vm1845 = vcmask 48128
      %v1847 = vsel %vm1845, %v492, 0
      %v1850 = vsel %vm1845, %v493, 0
      %v1853 = vsel %vm1845, %v494, 0
      %v1856 = vsel %vm1845, %v495, 0
      %v1859 = vsel %vm1845, %v496, 0
      %v1862 = vsel %vm1845, %v497, 0
      %v1865 = vsel %vm1845, %v498, 0
      %v1868 = vsel %vm1845, %v499, 0
      %v1871 = vsel %vm1845, %v500, 0
      %v1874 = vsel %vm1845, %v501, 0
      %v1877 = vsel %vm1845, %v502, 0
      %v1880 = vsel %vm1845, %v503, 0
      %v1883 = vsel %vm1845, %v504, 0
      %v1886 = vsel %vm1845, %v505, 0
      %v1889 = vsel %vm1845, %v506, 0
      %v1892 = vsel %vm1845, %v507, 0
      %v1895 = vsel %vm1845, %v508, 0
      %v1898 = vsel %vm1845, %v509, 0
      %v1901 = vsel %vm1845, %v510, 0
      %v1904 = vsel %vm1845, %v511, 0
      %v1907 = vsel %vm1845, %v512, 0
      %v1910 = vsel %vm1845, %v513, 0
      %v1913 = vsel %vm1845, %v514, 0
      %v1916 = vsel %vm1845, %v515, 0
      %v1919 = vsel %vm1845, %v516, 0
      %v1922 = vsel %vm1845, %v517, 0
      %v1925 = vsel %vm1845, %v518, 0
      %v1928 = vsel %vm1845, %v519, 0
      %v1931 = vsel %vm1845, %v520, 0
      %v1934 = vsel %vm1845, %v521, 0
      %v1937 = vsel %vm1845, %v522, 0
      %v1940 = vsel %vm1845, %v523, 0
      %v1943 = vsel %vm1845, %v524, 0
      %v1946 = vsel %vm1845, %v525, 0
      %v1949 = vsel %vm1845, %v526, 0
      %v1952 = vsel %vm1845, %v527, 0
      %v1955 = vsel %vm1845, %v528, 0
      %v1958 = vsel %vm1845, %v529, 0
      %v1961 = vsel %vm1845, %v530, 0
      %v1964 = vsel %vm1845, %v531, 0
      %v1967 = vsel %vm1845, %v532, 0
      %v1970 = vsel %vm1845, %v533, 0
      %v1973 = vsel %vm1845, %v534, 0
      %v1976 = vsel %vm1845, %v535, 0
      %v1979 = vsel %vm1845, %v536, 0
      %v1982 = vsel %vm1845, %v537, 0
      %v1985 = vsel %vm1845, %v538, 0
      %v1988 = vsel %vm1845, %v539, 0
      %v1991 = vsel %vm1845, %v540, 0
      %v1994 = vsel %vm1845, %v541, 0
      %v1997 = vsel %vm1845, %v542, 0
      %v2000 = vsel %vm1845, %v543, 0
      %v2003 = vsel %vm1845, %v544, 0
      %v2006 = vsel %vm1845, %v545, 0
      %v2009 = vsel %vm1845, %v546, 0
      %v2012 = vsel %vm1845, %v547, 0
      %v2015 = vsel %vm1845, %v548, 0
      %v2018 = vsel %vm1845, %v549, 0
      %v2021 = vsel %vm1845, %v550, 0
      %v2024 = vsel %vm1845, %v551, 0
      %v2027 = vsel %vm1845, %v552, 0
      %v2030 = vsel %vm1845, %v553, 0
      %v2033 = vsel %vm1845, %v554, 0
      %v2036 = vsel %vm1845, %v555, 0
      %v2039 = vsel %vm1845, %v556, 0
      %v2042 = vsel %vm1845, %v557, 0
      %v2045 = vsel %vm1845, %v558, 0
      %v2048 = vsel %vm1845, %v559, 0
      %v2051 = vsel %vm1845, %v560, 0
      %v2054 = vsel %vm1845, %v561, 0
      %v2057 = vsel %vm1845, %v562, 0
      %v2060 = vsel %vm1845, %v563, 0
      %v2063 = vsel %vm1845, %v564, 0
      %v2066 = vsel %vm1845, %v565, 0
      %v2069 = vsel %vm1845, %v566, 0
      %v2072 = vsel %vm1845, %v567, 0
      %v2075 = vsel %vm1845, %v568, 0
      %v2078 = vsel %vm1845, %v569, 0
      %v2081 = vsel %vm1845, %v570, 0
      %v2084 = vsel %vm1845, %v571, 0
      %v2087 = vsel %vm1845, %v572, 0
      %v2090 = vsel %vm1845, %v573, 0
      %v2093 = vsel %vm1845, %v574, 0
      %v2096 = vsel %vm1845, %v575, 0
      %v2099 = vsel %vm1845, %v576, 0
      %v2102 = vsel %vm1845, %v577, 0
      %v2105 = vsel %vm1845, %v578, 0
      %v2108 = vsel %vm1845, %v579, 0
      %v2111 = vsel %vm1845, %v580, 0
      %v2114 = vsel %vm1845, %v581, 0
      %v2117 = vsel %vm1845, %v582, 0
      %v2120 = vsel %vm1845, %v583, 0
      %v2123 = vsel %vm1845, %v584, 0
      %v2126 = vsel %vm1845, %v585, 0
      %v2129 = vsel %vm1845, %v586, 0
      %v2132 = vsel %vm1845, %v587, 0
      %v2135 = vsel %vm1845, %v588, 0
      %v2138 = vsel %vm1845, %v589, 0
      %v2141 = vsel %vm1845, %v590, 0
      %v2144 = vsel %vm1845, %v591, 0
      %v2147 = vsel %vm1845, %v592, 0
      %v2150 = vsel %vm1845, %v593, 0
      %v2153 = vsel %vm1845, %v594, 0
      %v2156 = vsel %vm1845, %v595, 0
      %v2159 = vsel %vm1845, %v596, 0
      %v2162 = vsel %vm1845, %v597, 0
      %v2165 = vsel %vm1845, %v598, 0
      %v2168 = vsel %vm1845, %v599, 0
      %v2171 = vsel %vm1845, %v600, 0
      %v2174 = vsel %vm1845, %v601, 0
      %v2177 = vsel %vm1845, %v602, 0
      %v2180 = vsel %vm1845, %v603, 0
      %v2183 = vsel %vm1845, %v604, 0
      %v2186 = vsel %vm1845, %v605, 0
      %v2189 = vsel %vm1845, %v606, 0
      %v2192 = vsel %vm1845, %v607, 0
      %v2195 = vsel %vm1845, %v608, 0
      %v2198 = vsel %vm1845, %v609, 0
      %v2201 = vsel %vm1845, %v610, 0
      %v2204 = vsel %vm1845, %v611, 0
      %v2207 = vsel %vm1845, %v612, 0
      %v2210 = vsel %vm1845, %v613, 0
      %v2213 = vsel %vm1845, %v614, 0
      %v2216 = vsel %vm1845, %v615, 0
      %v2219 = vsel %vm1845, %v616, 0
      %v2222 = vsel %vm1845, %v617, 0
      %v2225 = vsel %vm1845, %v618, 0
      %v2228 = vsel %vm1845, %v619, 0
      %vm2230 = vcmask 1045504
      %v2232 = vsel %vm2230, %v620, 0
      %2234 = vmatprep.subr.mxu0 0.0
      %2235 = vmatpush1.msra.mxu0 %v2232
      %2236 = vmatprep.subr.mxu0 0.0
      %2237 = vmatpush1.msra.mxu0 0.0
      %2238 = vmatprep.subr.mxu0 0.0
      %2239 = vmatpush1.msra.mxu0 0.0
      %2240 = vmatprep.subr.mxu0 0.0
      %2241 = vmatpush1.msra.mxu0 0.0
      %2242 = vmatprep.subr.mxu0 0.0
      %2243 = vmatpush1.msra.mxu0 0.0
      %2244 = vmatprep.subr.mxu0 0.0
      %2245 = vmatpush1.msra.mxu0 0.0
      %2246 = vmatprep.subr.mxu0 0.0
      %2247 = vmatpush1.msra.mxu0 0.0
      %2248 = vmatprep.subr.mxu0 0.0
      %2249 = vmatpush1.msra.mxu0 0.0
      %2250 = vmatprep.subr.mxu0 0.0
      %2251 = vmatpush1.msra.mxu0 0.0
      %2252 = vmatprep.subr.mxu0 0.0
      %2253 = vmatpush1.msra.mxu0 0.0
      %2254 = vmatprep.subr.mxu0 0.0
      %2255 = vmatpush1.msra.mxu0 0.0
      %2256 = vmatprep.subr.mxu0 0.0
      %2257 = vmatpush1.msra.mxu0 0.0
      %2258 = vmatprep.subr.mxu0 0.0
      %2259 = vmatpush1.msra.mxu0 0.0
      %2260 = vmatprep.subr.mxu0 0.0
      %2261 = vmatpush1.msra.mxu0 0.0
      %2262 = vmatprep.subr.mxu0 0.0
      %2263 = vmatpush1.msra.mxu0 0.0
      %2264 = vmatprep.subr.mxu0 0.0
      %2265 = vmatpush1.msra.mxu0 0.0
      %2266 = vmatprep.subr.mxu0 0.0
      %2267 = vmatpush1.msra.mxu0 0.0
      %2268 = vmatprep.subr.mxu0 0.0
      %2269 = vmatpush1.msra.mxu0 0.0
      %2270 = vmatprep.subr.mxu0 0.0
      %2271 = vmatpush1.msra.mxu0 0.0
      %2272 = vmatprep.subr.mxu0 0.0
      %2273 = vmatpush1.msra.mxu0 0.0
      %2274 = vmatprep.subr.mxu0 0.0
      %2275 = vmatpush1.msra.mxu0 0.0
      %2276 = vmatprep.subr.mxu0 0.0
      %2277 = vmatpush1.msra.mxu0 0.0
      %2278 = vmatprep.subr.mxu0 0.0
      %2279 = vmatpush1.msra.mxu0 0.0
      %2280 = vmatprep.subr.mxu0 0.0
      %2281 = vmatpush1.msra.mxu0 0.0
      %2282 = vmatprep.subr.mxu0 0.0
      %2283 = vmatpush1.msra.mxu0 0.0
      %2284 = vmatprep.subr.mxu0 0.0
      %2285 = vmatpush1.msra.mxu0 0.0
      %2286 = vmatprep.subr.mxu0 0.0
      %2287 = vmatpush1.msra.mxu0 0.0
      %2288 = vmatprep.subr.mxu0 0.0
      %2289 = vmatpush1.msra.mxu0 0.0
      %2290 = vmatprep.subr.mxu0 0.0
      %2291 = vmatpush1.msra.mxu0 0.0
      %2292 = vmatprep.subr.mxu0 0.0
      %2293 = vmatpush1.msra.mxu0 0.0
      %2294 = vmatprep.subr.mxu0 0.0
      %2295 = vmatpush1.msra.mxu0 0.0
      %2296 = vmatprep.subr.mxu0 0.0
      %2297 = vmatpush1.msra.mxu0 0.0
      %2298 = vmatprep.mubr.f32.mxu0 0.0
      %2299 = vmatmul.mubr.f32.gmra.mrb[0].mxu0 %v1847
      %v2300 = vpop.f32.mrb[0].mxu0
      %v2301 = vadd.f32 %v1207, %v2300
      %v2302 = vpop.f32.mrb[0].mxu0
      %2303 = vmatprep.mubr.f32.mxu0 0.0
      %2304 = vmatmul.mubr.f32.gmra.mrb[0].mxu0 %v1850
      %v2305 = vpop.f32.mrb[0].mxu0
      %v2306 = vadd.f32 %v1212, %v2305
      %v2307 = vpop.f32.mrb[0].mxu0
      %2308 = vmatprep.mubr.f32.mxu0 0.0
      %2309 = vmatmul.mubr.f32.gmra.mrb[0].mxu0 %v1853
      %v2310 = vpop.f32.mrb[0].mxu0
      %v2311 = vadd.f32 %v1217, %v2310
      %v2312 = vpop.f32.mrb[0].mxu0
      %2313 = vmatprep.mubr.f32.mxu0 0.0
      %2314 = vmatmul.mubr.f32.gmra.mrb[0].mxu0 %v1856
      %v2315 = vpop.f32.mrb[0].mxu0
      %v2316 = vadd.f32 %v1222, %v2315
      %v2317 = vpop.f32.mrb[0].mxu0
      %2318 = vmatprep.mubr.f32.mxu0 0.0
      %2319 = vmatmul.mubr.f32.gmra.mrb[0].mxu0 %v1859
      %v2320 = vpop.f32.mrb[0].mxu0
      %v2321 = vadd.f32 %v1227, %v2320
      %v2322 = vpop.f32.mrb[0].mxu0
      %2323 = vmatprep.mubr.f32.mxu0 0.0
      %2324 = vmatmul.mubr.f32.gmra.mrb[0].mxu0 %v1862
      %v2325 = vpop.f32.mrb[0].mxu0
      %v2326 = vadd.f32 %v1232, %v2325
      %v2327 = vpop.f32.mrb[0].mxu0
      %2328 = vmatprep.mubr.f32.mxu0 0.0
      %2329 = vmatmul.mubr.f32.gmra.mrb[0].mxu0 %v1865
      %v2330 = vpop.f32.mrb[0].mxu0
      %v2331 = vadd.f32 %v1237, %v2330
      %v2332 = vpop.f32.mrb[0].mxu0
      %2333 = vmatprep.mubr.f32.mxu0 0.0
      %2334 = vmatmul.mubr.f32.gmra.mrb[0].mxu0 %v1868
      %v2335 = vpop.f32.mrb[0].mxu0
      %v2336 = vadd.f32 %v1242, %v2335
      %v2337 = vpop.f32.mrb[0].mxu0
      %2338 = vmatprep.mubr.f32.mxu0 0.0
      %2339 = vmatmul.mubr.f32.gmra.mrb[0].mxu0 %v1871
      %v2340 = vpop.f32.mrb[0].mxu0
      %v2341 = vadd.f32 %v1247, %v2340
      %v2342 = vpop.f32.mrb[0].mxu0
      %2343 = vmatprep.mubr.f32.mxu0 0.0
      %2344 = vmatmul.mubr.f32.gmra.mrb[0].mxu0 %v1874
      %v2345 = vpop.f32.mrb[0].mxu0
      %v2346 = vadd.f32 %v1252, %v2345
      %v2347 = vpop.f32.mrb[0].mxu0
      %2348 = vmatprep.mubr.f32.mxu0 0.0
      %2349 = vmatmul.mubr.f32.gmra.mrb[0].mxu0 %v1877
      %v2350 = vpop.f32.mrb[0].mxu0
      %v2351 = vadd.f32 %v1257, %v2350
      %v2352 = vpop.f32.mrb[0].mxu0
      %2353 = vmatprep.mubr.f32.mxu0 0.0
      %2354 = vmatmul.mubr.f32.gmra.mrb[0].mxu0 %v1880
      %v2355 = vpop.f32.mrb[0].mxu0
      %v2356 = vadd.f32 %v1262, %v2355
      %v2357 = vpop.f32.mrb[0].mxu0
      %2358 = vmatprep.mubr.f32.mxu0 0.0
      %2359 = vmatmul.mubr.f32.gmra.mrb[0].mxu0 %v1883
      %v2360 = vpop.f32.mrb[0].mxu0
      %v2361 = vadd.f32 %v1267, %v2360
      %v2362 = vpop.f32.mrb[0].mxu0
      %2363 = vmatprep.mubr.f32.mxu0 0.0
      %2364 = vmatmul.mubr.f32.gmra.mrb[0].mxu0 %v1886
      %v2365 = vpop.f32.mrb[0].mxu0
      %v2366 = vadd.f32 %v1272, %v2365
      %v2367 = vpop.f32.mrb[0].mxu0
      %2368 = vmatprep.mubr.f32.mxu0 0.0
      %2369 = vmatmul.mubr.f32.gmra.mrb[0].mxu0 %v1889
      %v2370 = vpop.f32.mrb[0].mxu0
      %v2371 = vadd.f32 %v1277, %v2370
      %v2372 = vpop.f32.mrb[0].mxu0
      %2373 = vmatprep.mubr.f32.mxu0 0.0
      %2374 = vmatmul.mubr.f32.gmra.mrb[0].mxu0 %v1892
      %v2375 = vpop.f32.mrb[0].mxu0
      %v2376 = vadd.f32 %v1282, %v2375
      %v2377 = vpop.f32.mrb[0].mxu0
      %2378 = vmatprep.mubr.f32.mxu0 0.0
      %2379 = vmatmul.mubr.f32.gmra.mrb[0].mxu0 %v1895
      %v2380 = vpop.f32.mrb[0].mxu0
      %v2381 = vadd.f32 %v1287, %v2380
      %v2382 = vpop.f32.mrb[0].mxu0
      %2383 = vmatprep.mubr.f32.mxu0 0.0
      %2384 = vmatmul.mubr.f32.gmra.mrb[0].mxu0 %v1898
      %v2385 = vpop.f32.mrb[0].mxu0
      %v2386 = vadd.f32 %v1292, %v2385
      %v2387 = vpop.f32.mrb[0].mxu0
      %2388 = vmatprep.mubr.f32.mxu0 0.0
      %2389 = vmatmul.mubr.f32.gmra.mrb[0].mxu0 %v1901
      %v2390 = vpop.f32.mrb[0].mxu0
      %v2391 = vadd.f32 %v1297, %v2390
      %v2392 = vpop.f32.mrb[0].mxu0
      %2393 = vmatprep.mubr.f32.mxu0 0.0
      %2394 = vmatmul.mubr.f32.gmra.mrb[0].mxu0 %v1904
      %v2395 = vpop.f32.mrb[0].mxu0
      %v2396 = vadd.f32 %v1302, %v2395
      %v2397 = vpop.f32.mrb[0].mxu0
      %2398 = vmatprep.mubr.f32.mxu0 0.0
      %2399 = vmatmul.mubr.f32.gmra.mrb[0].mxu0 %v1907
      %v2400 = vpop.f32.mrb[0].mxu0
      %v2401 = vadd.f32 %v1307, %v2400
      %v2402 = vpop.f32.mrb[0].mxu0
      %2403 = vmatprep.mubr.f32.mxu0 0.0
      %2404 = vmatmul.mubr.f32.gmra.mrb[0].mxu0 %v1910
      %v2405 = vpop.f32.mrb[0].mxu0
      %v2406 = vadd.f32 %v1312, %v2405
      %v2407 = vpop.f32.mrb[0].mxu0
      %2408 = vmatprep.mubr.f32.mxu0 0.0
      %2409 = vmatmul.mubr.f32.gmra.mrb[0].mxu0 %v1913
      %v2410 = vpop.f32.mrb[0].mxu0
      %v2411 = vadd.f32 %v1317, %v2410
      %v2412 = vpop.f32.mrb[0].mxu0
      %2413 = vmatprep.mubr.f32.mxu0 0.0
      %2414 = vmatmul.mubr.f32.gmra.mrb[0].mxu0 %v1916
      %v2415 = vpop.f32.mrb[0].mxu0
      %v2416 = vadd.f32 %v1322, %v2415
      %v2417 = vpop.f32.mrb[0].mxu0
      %2418 = vmatprep.mubr.f32.mxu0 0.0
      %2419 = vmatmul.mubr.f32.gmra.mrb[0].mxu0 %v1919
      %v2420 = vpop.f32.mrb[0].mxu0
      %v2421 = vadd.f32 %v1327, %v2420
      %v2422 = vpop.f32.mrb[0].mxu0
      %2423 = vmatprep.mubr.f32.mxu0 0.0
      %2424 = vmatmul.mubr.f32.gmra.mrb[0].mxu0 %v1922
      %v2425 = vpop.f32.mrb[0].mxu0
      %v2426 = vadd.f32 %v1332, %v2425
      %v2427 = vpop.f32.mrb[0].mxu0
      %2428 = vmatprep.mubr.f32.mxu0 0.0
      %2429 = vmatmul.mubr.f32.gmra.mrb[0].mxu0 %v1925
      %v2430 = vpop.f32.mrb[0].mxu0
      %v2431 = vadd.f32 %v1337, %v2430
      %v2432 = vpop.f32.mrb[0].mxu0
      %2433 = vmatprep.mubr.f32.mxu0 0.0
      %2434 = vmatmul.mubr.f32.gmra.mrb[0].mxu0 %v1928
      %v2435 = vpop.f32.mrb[0].mxu0
      %v2436 = vadd.f32 %v1342, %v2435
      %v2437 = vpop.f32.mrb[0].mxu0
      %2438 = vmatprep.mubr.f32.mxu0 0.0
      %2439 = vmatmul.mubr.f32.gmra.mrb[0].mxu0 %v1931
      %v2440 = vpop.f32.mrb[0].mxu0
      %v2441 = vadd.f32 %v1347, %v2440
      %v2442 = vpop.f32.mrb[0].mxu0
      %2443 = vmatprep.mubr.f32.mxu0 0.0
      %2444 = vmatmul.mubr.f32.gmra.mrb[0].mxu0 %v1934
      %v2445 = vpop.f32.mrb[0].mxu0
      %v2446 = vadd.f32 %v1352, %v2445
      %v2447 = vpop.f32.mrb[0].mxu0
      %2448 = vmatprep.mubr.f32.mxu0 0.0
      %2449 = vmatmul.mubr.f32.gmra.mrb[0].mxu0 %v1937
      %v2450 = vpop.f32.mrb[0].mxu0
      %v2451 = vadd.f32 %v1357, %v2450
      %v2452 = vpop.f32.mrb[0].mxu0
      %2453 = vmatprep.mubr.f32.mxu0 0.0
      %2454 = vmatmul.mubr.f32.gmra.mrb[0].mxu0 %v1940
      %v2455 = vpop.f32.mrb[0].mxu0
      %v2456 = vadd.f32 %v1362, %v2455
      %v2457 = vpop.f32.mrb[0].mxu0
      %2458 = vmatprep.mubr.f32.mxu0 0.0
      %2459 = vmatmul.mubr.f32.gmra.mrb[0].mxu0 %v1943
      %v2460 = vpop.f32.mrb[0].mxu0
      %v2461 = vadd.f32 %v1367, %v2460
      %v2462 = vpop.f32.mrb[0].mxu0
      %2463 = vmatprep.mubr.f32.mxu0 0.0
      %2464 = vmatmul.mubr.f32.gmra.mrb[0].mxu0 %v1946
      %v2465 = vpop.f32.mrb[0].mxu0
      %v2466 = vadd.f32 %v1372, %v2465
      %v2467 = vpop.f32.mrb[0].mxu0
      %2468 = vmatprep.mubr.f32.mxu0 0.0
      %2469 = vmatmul.mubr.f32.gmra.mrb[0].mxu0 %v1949
      %v2470 = vpop.f32.mrb[0].mxu0
      %v2471 = vadd.f32 %v1377, %v2470
      %v2472 = vpop.f32.mrb[0].mxu0
      %2473 = vmatprep.mubr.f32.mxu0 0.0
      %2474 = vmatmul.mubr.f32.gmra.mrb[0].mxu0 %v1952
      %v2475 = vpop.f32.mrb[0].mxu0
      %v2476 = vadd.f32 %v1382, %v2475
      %v2477 = vpop.f32.mrb[0].mxu0
      %2478 = vmatprep.mubr.f32.mxu0 0.0
      %2479 = vmatmul.mubr.f32.gmra.mrb[0].mxu0 %v1955
      %v2480 = vpop.f32.mrb[0].mxu0
      %v2481 = vadd.f32 %v1387, %v2480
      %v2482 = vpop.f32.mrb[0].mxu0
      %2483 = vmatprep.mubr.f32.mxu0 0.0
      %2484 = vmatmul.mubr.f32.gmra.mrb[0].mxu0 %v1958
      %v2485 = vpop.f32.mrb[0].mxu0
      %v2486 = vadd.f32 %v1392, %v2485
      %v2487 = vpop.f32.mrb[0].mxu0
      %2488 = vmatprep.mubr.f32.mxu0 0.0
      %2489 = vmatmul.mubr.f32.gmra.mrb[0].mxu0 %v1961
      %v2490 = vpop.f32.mrb[0].mxu0
      %v2491 = vadd.f32 %v1397, %v2490
      %v2492 = vpop.f32.mrb[0].mxu0
      %2493 = vmatprep.mubr.f32.mxu0 0.0
      %2494 = vmatmul.mubr.f32.gmra.mrb[0].mxu0 %v1964
      %v2495 = vpop.f32.mrb[0].mxu0
      %v2496 = vadd.f32 %v1402, %v2495
      %v2497 = vpop.f32.mrb[0].mxu0
      %2498 = vmatprep.mubr.f32.mxu0 0.0
      %2499 = vmatmul.mubr.f32.gmra.mrb[0].mxu0 %v1967
      %v2500 = vpop.f32.mrb[0].mxu0
      %v2501 = vadd.f32 %v1407, %v2500
      %v2502 = vpop.f32.mrb[0].mxu0
      %2503 = vmatprep.mubr.f32.mxu0 0.0
      %2504 = vmatmul.mubr.f32.gmra.mrb[0].mxu0 %v1970
      %v2505 = vpop.f32.mrb[0].mxu0
      %v2506 = vadd.f32 %v1412, %v2505
      %v2507 = vpop.f32.mrb[0].mxu0
      %2508 = vmatprep.mubr.f32.mxu0 0.0
      %2509 = vmatmul.mubr.f32.gmra.mrb[0].mxu0 %v1973
      %v2510 = vpop.f32.mrb[0].mxu0
      %v2511 = vadd.f32 %v1417, %v2510
      %v2512 = vpop.f32.mrb[0].mxu0
      %2513 = vmatprep.mubr.f32.mxu0 0.0
      %2514 = vmatmul.mubr.f32.gmra.mrb[0].mxu0 %v1976
      %v2515 = vpop.f32.mrb[0].mxu0
      %v2516 = vadd.f32 %v1422, %v2515
      %v2517 = vpop.f32.mrb[0].mxu0
      %2518 = vmatprep.mubr.f32.mxu0 0.0
      %2519 = vmatmul.mubr.f32.gmra.mrb[0].mxu0 %v1979
      %v2520 = vpop.f32.mrb[0].mxu0
      %v2521 = vadd.f32 %v1427, %v2520
      %v2522 = vpop.f32.mrb[0].mxu0
      %2523 = vmatprep.mubr.f32.mxu0 0.0
      %2524 = vmatmul.mubr.f32.gmra.mrb[0].mxu0 %v1982
      %v2525 = vpop.f32.mrb[0].mxu0
      %v2526 = vadd.f32 %v1432, %v2525
      %v2527 = vpop.f32.mrb[0].mxu0
      %2528 = vmatprep.mubr.f32.mxu0 0.0
      %2529 = vmatmul.mubr.f32.gmra.mrb[0].mxu0 %v1985
      %v2530 = vpop.f32.mrb[0].mxu0
      %v2531 = vadd.f32 %v1437, %v2530
      %v2532 = vpop.f32.mrb[0].mxu0
      %2533 = vmatprep.mubr.f32.mxu0 0.0
      %2534 = vmatmul.mubr.f32.gmra.mrb[0].mxu0 %v1988
      %v2535 = vpop.f32.mrb[0].mxu0
      %v2536 = vadd.f32 %v1442, %v2535
      %v2537 = vpop.f32.mrb[0].mxu0
      %2538 = vmatprep.mubr.f32.mxu0 0.0
      %2539 = vmatmul.mubr.f32.gmra.mrb[0].mxu0 %v1991
      %v2540 = vpop.f32.mrb[0].mxu0
      %v2541 = vadd.f32 %v1447, %v2540
      %v2542 = vpop.f32.mrb[0].mxu0
      %2543 = vmatprep.mubr.f32.mxu0 0.0
      %2544 = vmatmul.mubr.f32.gmra.mrb[0].mxu0 %v1994
      %v2545 = vpop.f32.mrb[0].mxu0
      %v2546 = vadd.f32 %v1452, %v2545
      %v2547 = vpop.f32.mrb[0].mxu0
      %2548 = vmatprep.mubr.f32.mxu0 0.0
      %2549 = vmatmul.mubr.f32.gmra.mrb[0].mxu0 %v1997
      %v2550 = vpop.f32.mrb[0].mxu0
      %v2551 = vadd.f32 %v1457, %v2550
      %v2552 = vpop.f32.mrb[0].mxu0
      %2553 = vmatprep.mubr.f32.mxu0 0.0
      %2554 = vmatmul.mubr.f32.gmra.mrb[0].mxu0 %v2000
      %v2555 = vpop.f32.mrb[0].mxu0
      %v2556 = vadd.f32 %v1462, %v2555
      %v2557 = vpop.f32.mrb[0].mxu0
      %2558 = vmatprep.mubr.f32.mxu0 0.0
      %2559 = vmatmul.mubr.f32.gmra.mrb[0].mxu0 %v2003
      %v2560 = vpop.f32.mrb[0].mxu0
      %v2561 = vadd.f32 %v1467, %v2560
      %v2562 = vpop.f32.mrb[0].mxu0
      %2563 = vmatprep.mubr.f32.mxu0 0.0
      %2564 = vmatmul.mubr.f32.gmra.mrb[0].mxu0 %v2006
      %v2565 = vpop.f32.mrb[0].mxu0
      %v2566 = vadd.f32 %v1472, %v2565
      %v2567 = vpop.f32.mrb[0].mxu0
      %2568 = vmatprep.mubr.f32.mxu0 0.0
      %2569 = vmatmul.mubr.f32.gmra.mrb[0].mxu0 %v2009
      %v2570 = vpop.f32.mrb[0].mxu0
      %v2571 = vadd.f32 %v1477, %v2570
      %v2572 = vpop.f32.mrb[0].mxu0
      %2573 = vmatprep.mubr.f32.mxu0 0.0
      %2574 = vmatmul.mubr.f32.gmra.mrb[0].mxu0 %v2012
      %v2575 = vpop.f32.mrb[0].mxu0
      %v2576 = vadd.f32 %v1482, %v2575
      %v2577 = vpop.f32.mrb[0].mxu0
      %2578 = vmatprep.mubr.f32.mxu0 0.0
      %2579 = vmatmul.mubr.f32.gmra.mrb[0].mxu0 %v2015
      %v2580 = vpop.f32.mrb[0].mxu0
      %v2581 = vadd.f32 %v1487, %v2580
      %v2582 = vpop.f32.mrb[0].mxu0
      %2583 = vmatprep.mubr.f32.mxu0 0.0
      %2584 = vmatmul.mubr.f32.gmra.mrb[0].mxu0 %v2018
      %v2585 = vpop.f32.mrb[0].mxu0
      %v2586 = vadd.f32 %v1492, %v2585
      %v2587 = vpop.f32.mrb[0].mxu0
      %2588 = vmatprep.mubr.f32.mxu0 0.0
      %2589 = vmatmul.mubr.f32.gmra.mrb[0].mxu0 %v2021
      %v2590 = vpop.f32.mrb[0].mxu0
      %v2591 = vadd.f32 %v1497, %v2590
      %v2592 = vpop.f32.mrb[0].mxu0
      %2593 = vmatprep.mubr.f32.mxu0 0.0
      %2594 = vmatmul.mubr.f32.gmra.mrb[0].mxu0 %v2024
      %v2595 = vpop.f32.mrb[0].mxu0
      %v2596 = vadd.f32 %v1502, %v2595
      %v2597 = vpop.f32.mrb[0].mxu0
      %2598 = vmatprep.mubr.f32.mxu0 0.0
      %2599 = vmatmul.mubr.f32.gmra.mrb[0].mxu0 %v2027
      %v2600 = vpop.f32.mrb[0].mxu0
      %v2601 = vadd.f32 %v1507, %v2600
      %v2602 = vpop.f32.mrb[0].mxu0
      %2603 = vmatprep.mubr.f32.mxu0 0.0
      %2604 = vmatmul.mubr.f32.gmra.mrb[0].mxu0 %v2030
      %v2605 = vpop.f32.mrb[0].mxu0
      %v2606 = vadd.f32 %v1512, %v2605
      %v2607 = vpop.f32.mrb[0].mxu0
      %2608 = vmatprep.mubr.f32.mxu0 0.0
      %2609 = vmatmul.mubr.f32.gmra.mrb[0].mxu0 %v2033
      %v2610 = vpop.f32.mrb[0].mxu0
      %v2611 = vadd.f32 %v1517, %v2610
      %v2612 = vpop.f32.mrb[0].mxu0
      %2613 = vmatprep.mubr.f32.mxu0 0.0
      %2614 = vmatmul.mubr.f32.gmra.mrb[0].mxu0 %v2036
      %v2615 = vpop.f32.mrb[0].mxu0
      %v2616 = vadd.f32 %v1522, %v2615
      %v2617 = vpop.f32.mrb[0].mxu0
      %2618 = vmatprep.mubr.f32.mxu0 0.0
      %2619 = vmatmul.mubr.f32.gmra.mrb[0].mxu0 %v2039
      %v2620 = vpop.f32.mrb[0].mxu0
      %v2621 = vadd.f32 %v1527, %v2620
      %v2622 = vpop.f32.mrb[0].mxu0
      %2623 = vmatprep.mubr.f32.mxu0 0.0
      %2624 = vmatmul.mubr.f32.gmra.mrb[0].mxu0 %v2042
      %v2625 = vpop.f32.mrb[0].mxu0
      %v2626 = vadd.f32 %v1532, %v2625
      %v2627 = vpop.f32.mrb[0].mxu0
      %2628 = vmatprep.mubr.f32.mxu0 0.0
      %2629 = vmatmul.mubr.f32.gmra.mrb[0].mxu0 %v2045
      %v2630 = vpop.f32.mrb[0].mxu0
      %v2631 = vadd.f32 %v1537, %v2630
      %v2632 = vpop.f32.mrb[0].mxu0
      %2633 = vmatprep.mubr.f32.mxu0 0.0
      %2634 = vmatmul.mubr.f32.gmra.mrb[0].mxu0 %v2048
      %v2635 = vpop.f32.mrb[0].mxu0
      %v2636 = vadd.f32 %v1542, %v2635
      %v2637 = vpop.f32.mrb[0].mxu0
      %2638 = vmatprep.mubr.f32.mxu0 0.0
      %2639 = vmatmul.mubr.f32.gmra.mrb[0].mxu0 %v2051
      %v2640 = vpop.f32.mrb[0].mxu0
      %v2641 = vadd.f32 %v1547, %v2640
      %v2642 = vpop.f32.mrb[0].mxu0
      %2643 = vmatprep.mubr.f32.mxu0 0.0
      %2644 = vmatmul.mubr.f32.gmra.mrb[0].mxu0 %v2054
      %v2645 = vpop.f32.mrb[0].mxu0
      %v2646 = vadd.f32 %v1552, %v2645
      %v2647 = vpop.f32.mrb[0].mxu0
      %2648 = vmatprep.mubr.f32.mxu0 0.0
      %2649 = vmatmul.mubr.f32.gmra.mrb[0].mxu0 %v2057
      %v2650 = vpop.f32.mrb[0].mxu0
      %v2651 = vadd.f32 %v1557, %v2650
      %v2652 = vpop.f32.mrb[0].mxu0
      %2653 = vmatprep.mubr.f32.mxu0 0.0
      %2654 = vmatmul.mubr.f32.gmra.mrb[0].mxu0 %v2060
      %v2655 = vpop.f32.mrb[0].mxu0
      %v2656 = vadd.f32 %v1562, %v2655
      %v2657 = vpop.f32.mrb[0].mxu0
      %2658 = vmatprep.mubr.f32.mxu0 0.0
      %2659 = vmatmul.mubr.f32.gmra.mrb[0].mxu0 %v2063
      %v2660 = vpop.f32.mrb[0].mxu0
      %v2661 = vadd.f32 %v1567, %v2660
      %v2662 = vpop.f32.mrb[0].mxu0
      %2663 = vmatprep.mubr.f32.mxu0 0.0
      %2664 = vmatmul.mubr.f32.gmra.mrb[0].mxu0 %v2066
      %v2665 = vpop.f32.mrb[0].mxu0
      %v2666 = vadd.f32 %v1572, %v2665
      %v2667 = vpop.f32.mrb[0].mxu0
      %2668 = vmatprep.mubr.f32.mxu0 0.0
      %2669 = vmatmul.mubr.f32.gmra.mrb[0].mxu0 %v2069
      %v2670 = vpop.f32.mrb[0].mxu0
      %v2671 = vadd.f32 %v1577, %v2670
      %v2672 = vpop.f32.mrb[0].mxu0
      %2673 = vmatprep.mubr.f32.mxu0 0.0
      %2674 = vmatmul.mubr.f32.gmra.mrb[0].mxu0 %v2072
      %v2675 = vpop.f32.mrb[0].mxu0
      %v2676 = vadd.f32 %v1582, %v2675
      %v2677 = vpop.f32.mrb[0].mxu0
      %2678 = vmatprep.mubr.f32.mxu0 0.0
      %2679 = vmatmul.mubr.f32.gmra.mrb[0].mxu0 %v2075
      %v2680 = vpop.f32.mrb[0].mxu0
      %v2681 = vadd.f32 %v1587, %v2680
      %v2682 = vpop.f32.mrb[0].mxu0
      %2683 = vmatprep.mubr.f32.mxu0 0.0
      %2684 = vmatmul.mubr.f32.gmra.mrb[0].mxu0 %v2078
      %v2685 = vpop.f32.mrb[0].mxu0
      %v2686 = vadd.f32 %v1592, %v2685
      %v2687 = vpop.f32.mrb[0].mxu0
      %2688 = vmatprep.mubr.f32.mxu0 0.0
      %2689 = vmatmul.mubr.f32.gmra.mrb[0].mxu0 %v2081
      %v2690 = vpop.f32.mrb[0].mxu0
      %v2691 = vadd.f32 %v1597, %v2690
      %v2692 = vpop.f32.mrb[0].mxu0
      %2693 = vmatprep.mubr.f32.mxu0 0.0
      %2694 = vmatmul.mubr.f32.gmra.mrb[0].mxu0 %v2084
      %v2695 = vpop.f32.mrb[0].mxu0
      %v2696 = vadd.f32 %v1602, %v2695
      %v2697 = vpop.f32.mrb[0].mxu0
      %2698 = vmatprep.mubr.f32.mxu0 0.0
      %2699 = vmatmul.mubr.f32.gmra.mrb[0].mxu0 %v2087
      %v2700 = vpop.f32.mrb[0].mxu0
      %v2701 = vadd.f32 %v1607, %v2700
      %v2702 = vpop.f32.mrb[0].mxu0
      %2703 = vmatprep.mubr.f32.mxu0 0.0
      %2704 = vmatmul.mubr.f32.gmra.mrb[0].mxu0 %v2090
      %v2705 = vpop.f32.mrb[0].mxu0
      %v2706 = vadd.f32 %v1612, %v2705
      %v2707 = vpop.f32.mrb[0].mxu0
      %2708 = vmatprep.mubr.f32.mxu0 0.0
      %2709 = vmatmul.mubr.f32.gmra.mrb[0].mxu0 %v2093
      %v2710 = vpop.f32.mrb[0].mxu0
      %v2711 = vadd.f32 %v1617, %v2710
      %v2712 = vpop.f32.mrb[0].mxu0
      %2713 = vmatprep.mubr.f32.mxu0 0.0
      %2714 = vmatmul.mubr.f32.gmra.mrb[0].mxu0 %v2096
      %v2715 = vpop.f32.mrb[0].mxu0
      %v2716 = vadd.f32 %v1622, %v2715
      %v2717 = vpop.f32.mrb[0].mxu0
      %2718 = vmatprep.mubr.f32.mxu0 0.0
      %2719 = vmatmul.mubr.f32.gmra.mrb[0].mxu0 %v2099
      %v2720 = vpop.f32.mrb[0].mxu0
      %v2721 = vadd.f32 %v1627, %v2720
      %v2722 = vpop.f32.mrb[0].mxu0
      %2723 = vmatprep.mubr.f32.mxu0 0.0
      %2724 = vmatmul.mubr.f32.gmra.mrb[0].mxu0 %v2102
      %v2725 = vpop.f32.mrb[0].mxu0
      %v2726 = vadd.f32 %v1632, %v2725
      %v2727 = vpop.f32.mrb[0].mxu0
      %2728 = vmatprep.mubr.f32.mxu0 0.0
      %2729 = vmatmul.mubr.f32.gmra.mrb[0].mxu0 %v2105
      %v2730 = vpop.f32.mrb[0].mxu0
      %v2731 = vadd.f32 %v1637, %v2730
      %v2732 = vpop.f32.mrb[0].mxu0
      %2733 = vmatprep.mubr.f32.mxu0 0.0
      %2734 = vmatmul.mubr.f32.gmra.mrb[0].mxu0 %v2108
      %v2735 = vpop.f32.mrb[0].mxu0
      %v2736 = vadd.f32 %v1642, %v2735
      %v2737 = vpop.f32.mrb[0].mxu0
      %2738 = vmatprep.mubr.f32.mxu0 0.0
      %2739 = vmatmul.mubr.f32.gmra.mrb[0].mxu0 %v2111
      %v2740 = vpop.f32.mrb[0].mxu0
      %v2741 = vadd.f32 %v1647, %v2740
      %v2742 = vpop.f32.mrb[0].mxu0
      %2743 = vmatprep.mubr.f32.mxu0 0.0
      %2744 = vmatmul.mubr.f32.gmra.mrb[0].mxu0 %v2114
      %v2745 = vpop.f32.mrb[0].mxu0
      %v2746 = vadd.f32 %v1652, %v2745
      %v2747 = vpop.f32.mrb[0].mxu0
      %2748 = vmatprep.mubr.f32.mxu0 0.0
      %2749 = vmatmul.mubr.f32.gmra.mrb[0].mxu0 %v2117
      %v2750 = vpop.f32.mrb[0].mxu0
      %v2751 = vadd.f32 %v1657, %v2750
      %v2752 = vpop.f32.mrb[0].mxu0
      %2753 = vmatprep.mubr.f32.mxu0 0.0
      %2754 = vmatmul.mubr.f32.gmra.mrb[0].mxu0 %v2120
      %v2755 = vpop.f32.mrb[0].mxu0
      %v2756 = vadd.f32 %v1662, %v2755
      %v2757 = vpop.f32.mrb[0].mxu0
      %2758 = vmatprep.mubr.f32.mxu0 0.0
      %2759 = vmatmul.mubr.f32.gmra.mrb[0].mxu0 %v2123
      %v2760 = vpop.f32.mrb[0].mxu0
      %v2761 = vadd.f32 %v1667, %v2760
      %v2762 = vpop.f32.mrb[0].mxu0
      %2763 = vmatprep.mubr.f32.mxu0 0.0
      %2764 = vmatmul.mubr.f32.gmra.mrb[0].mxu0 %v2126
      %v2765 = vpop.f32.mrb[0].mxu0
      %v2766 = vadd.f32 %v1672, %v2765
      %v2767 = vpop.f32.mrb[0].mxu0
      %2768 = vmatprep.mubr.f32.mxu0 0.0
      %2769 = vmatmul.mubr.f32.gmra.mrb[0].mxu0 %v2129
      %v2770 = vpop.f32.mrb[0].mxu0
      %v2771 = vadd.f32 %v1677, %v2770
      %v2772 = vpop.f32.mrb[0].mxu0
      %2773 = vmatprep.mubr.f32.mxu0 0.0
      %2774 = vmatmul.mubr.f32.gmra.mrb[0].mxu0 %v2132
      %v2775 = vpop.f32.mrb[0].mxu0
      %v2776 = vadd.f32 %v1682, %v2775
      %v2777 = vpop.f32.mrb[0].mxu0
      %2778 = vmatprep.mubr.f32.mxu0 0.0
      %2779 = vmatmul.mubr.f32.gmra.mrb[0].mxu0 %v2135
      %v2780 = vpop.f32.mrb[0].mxu0
      %v2781 = vadd.f32 %v1687, %v2780
      %v2782 = vpop.f32.mrb[0].mxu0
      %2783 = vmatprep.mubr.f32.mxu0 0.0
      %2784 = vmatmul.mubr.f32.gmra.mrb[0].mxu0 %v2138
      %v2785 = vpop.f32.mrb[0].mxu0
      %v2786 = vadd.f32 %v1692, %v2785
      %v2787 = vpop.f32.mrb[0].mxu0
      %2788 = vmatprep.mubr.f32.mxu0 0.0
      %2789 = vmatmul.mubr.f32.gmra.mrb[0].mxu0 %v2141
      %v2790 = vpop.f32.mrb[0].mxu0
      %v2791 = vadd.f32 %v1697, %v2790
      %v2792 = vpop.f32.mrb[0].mxu0
      %2793 = vmatprep.mubr.f32.mxu0 0.0
      %2794 = vmatmul.mubr.f32.gmra.mrb[0].mxu0 %v2144
      %v2795 = vpop.f32.mrb[0].mxu0
      %v2796 = vadd.f32 %v1702, %v2795
      %v2797 = vpop.f32.mrb[0].mxu0
      %2798 = vmatprep.mubr.f32.mxu0 0.0
      %2799 = vmatmul.mubr.f32.gmra.mrb[0].mxu0 %v2147
      %v2800 = vpop.f32.mrb[0].mxu0
      %v2801 = vadd.f32 %v1707, %v2800
      %v2802 = vpop.f32.mrb[0].mxu0
      %2803 = vmatprep.mubr.f32.mxu0 0.0
      %2804 = vmatmul.mubr.f32.gmra.mrb[0].mxu0 %v2150
      %v2805 = vpop.f32.mrb[0].mxu0
      %v2806 = vadd.f32 %v1712, %v2805
      %v2807 = vpop.f32.mrb[0].mxu0
      %2808 = vmatprep.mubr.f32.mxu0 0.0
      %2809 = vmatmul.mubr.f32.gmra.mrb[0].mxu0 %v2153
      %v2810 = vpop.f32.mrb[0].mxu0
      %v2811 = vadd.f32 %v1717, %v2810
      %v2812 = vpop.f32.mrb[0].mxu0
      %2813 = vmatprep.mubr.f32.mxu0 0.0
      %2814 = vmatmul.mubr.f32.gmra.mrb[0].mxu0 %v2156
      %v2815 = vpop.f32.mrb[0].mxu0
      %v2816 = vadd.f32 %v1722, %v2815
      %v2817 = vpop.f32.mrb[0].mxu0
      %2818 = vmatprep.mubr.f32.mxu0 0.0
      %2819 = vmatmul.mubr.f32.gmra.mrb[0].mxu0 %v2159
      %v2820 = vpop.f32.mrb[0].mxu0
      %v2821 = vadd.f32 %v1727, %v2820
      %v2822 = vpop.f32.mrb[0].mxu0
      %2823 = vmatprep.mubr.f32.mxu0 0.0
      %2824 = vmatmul.mubr.f32.gmra.mrb[0].mxu0 %v2162
      %v2825 = vpop.f32.mrb[0].mxu0
      %v2826 = vadd.f32 %v1732, %v2825
      %v2827 = vpop.f32.mrb[0].mxu0
      %2828 = vmatprep.mubr.f32.mxu0 0.0
      %2829 = vmatmul.mubr.f32.gmra.mrb[0].mxu0 %v2165
      %v2830 = vpop.f32.mrb[0].mxu0
      %v2831 = vadd.f32 %v1737, %v2830
      %v2832 = vpop.f32.mrb[0].mxu0
      %2833 = vmatprep.mubr.f32.mxu0 0.0
      %2834 = vmatmul.mubr.f32.gmra.mrb[0].mxu0 %v2168
      %v2835 = vpop.f32.mrb[0].mxu0
      %v2836 = vadd.f32 %v1742, %v2835
      %v2837 = vpop.f32.mrb[0].mxu0
      %2838 = vmatprep.mubr.f32.mxu0 0.0
      %2839 = vmatmul.mubr.f32.gmra.mrb[0].mxu0 %v2171
      %v2840 = vpop.f32.mrb[0].mxu0
      %v2841 = vadd.f32 %v1747, %v2840
      %v2842 = vpop.f32.mrb[0].mxu0
      %2843 = vmatprep.mubr.f32.mxu0 0.0
      %2844 = vmatmul.mubr.f32.gmra.mrb[0].mxu0 %v2174
      %v2845 = vpop.f32.mrb[0].mxu0
      %v2846 = vadd.f32 %v1752, %v2845
      %v2847 = vpop.f32.mrb[0].mxu0
      %2848 = vmatprep.mubr.f32.mxu0 0.0
      %2849 = vmatmul.mubr.f32.gmra.mrb[0].mxu0 %v2177
      %v2850 = vpop.f32.mrb[0].mxu0
      %v2851 = vadd.f32 %v1757, %v2850
      %v2852 = vpop.f32.mrb[0].mxu0
      %2853 = vmatprep.mubr.f32.mxu0 0.0
      %2854 = vmatmul.mubr.f32.gmra.mrb[0].mxu0 %v2180
      %v2855 = vpop.f32.mrb[0].mxu0
      %v2856 = vadd.f32 %v1762, %v2855
      %v2857 = vpop.f32.mrb[0].mxu0
      %2858 = vmatprep.mubr.f32.mxu0 0.0
      %2859 = vmatmul.mubr.f32.gmra.mrb[0].mxu0 %v2183
      %v2860 = vpop.f32.mrb[0].mxu0
      %v2861 = vadd.f32 %v1767, %v2860
      %v2862 = vpop.f32.mrb[0].mxu0
      %2863 = vmatprep.mubr.f32.mxu0 0.0
      %2864 = vmatmul.mubr.f32.gmra.mrb[0].mxu0 %v2186
      %v2865 = vpop.f32.mrb[0].mxu0
      %v2866 = vadd.f32 %v1772, %v2865
      %v2867 = vpop.f32.mrb[0].mxu0
      %2868 = vmatprep.mubr.f32.mxu0 0.0
      %2869 = vmatmul.mubr.f32.gmra.mrb[0].mxu0 %v2189
      %v2870 = vpop.f32.mrb[0].mxu0
      %v2871 = vadd.f32 %v1777, %v2870
      %v2872 = vpop.f32.mrb[0].mxu0
      %2873 = vmatprep.mubr.f32.mxu0 0.0
      %2874 = vmatmul.mubr.f32.gmra.mrb[0].mxu0 %v2192
      %v2875 = vpop.f32.mrb[0].mxu0
      %v2876 = vadd.f32 %v1782, %v2875
      %v2877 = vpop.f32.mrb[0].mxu0
      %2878 = vmatprep.mubr.f32.mxu0 0.0
      %2879 = vmatmul.mubr.f32.gmra.mrb[0].mxu0 %v2195
      %v2880 = vpop.f32.mrb[0].mxu0
      %v2881 = vadd.f32 %v1787, %v2880
      %v2882 = vpop.f32.mrb[0].mxu0
      %2883 = vmatprep.mubr.f32.mxu0 0.0
      %2884 = vmatmul.mubr.f32.gmra.mrb[0].mxu0 %v2198
      %v2885 = vpop.f32.mrb[0].mxu0
      %v2886 = vadd.f32 %v1792, %v2885
      %v2887 = vpop.f32.mrb[0].mxu0
      %2888 = vmatprep.mubr.f32.mxu0 0.0
      %2889 = vmatmul.mubr.f32.gmra.mrb[0].mxu0 %v2201
      %v2890 = vpop.f32.mrb[0].mxu0
      %v2891 = vadd.f32 %v1797, %v2890
      %v2892 = vpop.f32.mrb[0].mxu0
      %2893 = vmatprep.mubr.f32.mxu0 0.0
      %2894 = vmatmul.mubr.f32.gmra.mrb[0].mxu0 %v2204
      %v2895 = vpop.f32.mrb[0].mxu0
      %v2896 = vadd.f32 %v1802, %v2895
      %v2897 = vpop.f32.mrb[0].mxu0
      %2898 = vmatprep.mubr.f32.mxu0 0.0
      %2899 = vmatmul.mubr.f32.gmra.mrb[0].mxu0 %v2207
      %v2900 = vpop.f32.mrb[0].mxu0
      %v2901 = vadd.f32 %v1807, %v2900
      %v2902 = vpop.f32.mrb[0].mxu0
      %2903 = vmatprep.mubr.f32.mxu0 0.0
      %2904 = vmatmul.mubr.f32.gmra.mrb[0].mxu0 %v2210
      %v2905 = vpop.f32.mrb[0].mxu0
      %v2906 = vadd.f32 %v1812, %v2905
      %v2907 = vpop.f32.mrb[0].mxu0
      %2908 = vmatprep.mubr.f32.mxu0 0.0
      %2909 = vmatmul.mubr.f32.gmra.mrb[0].mxu0 %v2213
      %v2910 = vpop.f32.mrb[0].mxu0
      %v2911 = vadd.f32 %v1817, %v2910
      %v2912 = vpop.f32.mrb[0].mxu0
      %2913 = vmatprep.mubr.f32.mxu0 0.0
      %2914 = vmatmul.mubr.f32.gmra.mrb[0].mxu0 %v2216
      %v2915 = vpop.f32.mrb[0].mxu0
      %v2916 = vadd.f32 %v1822, %v2915
      %v2917 = vpop.f32.mrb[0].mxu0
      %2918 = vmatprep.mubr.f32.mxu0 0.0
      %2919 = vmatmul.mubr.f32.gmra.mrb[0].mxu0 %v2219
      %v2920 = vpop.f32.mrb[0].mxu0
      %v2921 = vadd.f32 %v1827, %v2920
      %v2922 = vpop.f32.mrb[0].mxu0
      %2923 = vmatprep.mubr.f32.mxu0 0.0
      %2924 = vmatmul.mubr.f32.gmra.mrb[0].mxu0 %v2222
      %v2925 = vpop.f32.mrb[0].mxu0
      %v2926 = vadd.f32 %v1832, %v2925
      %v2927 = vpop.f32.mrb[0].mxu0
      %2928 = vmatprep.mubr.f32.mxu0 0.0
      %2929 = vmatmul.mubr.f32.gmra.mrb[0].mxu0 %v2225
      %v2930 = vpop.f32.mrb[0].mxu0
      %v2931 = vadd.f32 %v1837, %v2930
      %v2932 = vpop.f32.mrb[0].mxu0
      %2933 = vmatprep.mubr.f32.mxu0 0.0
      %2934 = vmatmul.mubr.f32.gmra.mrb[0].mxu0 %v2228
      %v2935 = vpop.f32.mrb[0].mxu0
      %v2936 = vadd.f32 %v1842, %v2935
      %v2937 = vpop.f32.mrb[0].mxu0
      %2938 = vdwg.mxu0
      %v2939 = vld [vmem:[%s466] sm:$0xff]
      %v2940 = vld [vmem:[%s466 + $0x8] sm:$0xff]
      %v2941 = vld [vmem:[%s466 + $0x10] sm:$0xff]
      %v2942 = vld [vmem:[%s466 + $0x18] sm:$0xff]
      %v2943 = vld [vmem:[%s466 + $0x20] sm:$0xff]
      %v2944 = vld [vmem:[%s466 + $0x28] sm:$0xff]
      %v2945 = vld [vmem:[%s466 + $0x30] sm:$0xff]
      %v2946 = vld [vmem:[%s466 + $0x38] sm:$0xff]
      %v2947 = vld [vmem:[%s466 + $0x40] sm:$0xff]
      %v2948 = vld [vmem:[%s466 + $0x48] sm:$0xff]
      %v2949 = vld [vmem:[%s466 + $0x50] sm:$0xff]
      %v2950 = vld [vmem:[%s466 + $0x58] sm:$0xff]
      %v2951 = vld [vmem:[%s466 + $0x60] sm:$0xff]
      %v2952 = vld [vmem:[%s466 + $0x68] sm:$0xff]
      %v2953 = vld [vmem:[%s466 + $0x70] sm:$0xff]
      %v2954 = vld [vmem:[%s466 + $0x78] sm:$0xff]
      %v2955 = vld [vmem:[%s466 + $0x80] sm:$0xff]
      %v2956 = vld [vmem:[%s466 + $0x88] sm:$0xff]
      %v2957 = vld [vmem:[%s466 + $0x90] sm:$0xff]
      %v2958 = vld [vmem:[%s466 + $0x98] sm:$0xff]
      %v2959 = vld [vmem:[%s466 + $0xa0] sm:$0xff]
      %v2960 = vld [vmem:[%s466 + $0xa8] sm:$0xff]
      %v2961 = vld [vmem:[%s466 + $0xb0] sm:$0xff]
      %v2962 = vld [vmem:[%s466 + $0xb8] sm:$0xff]
      %v2963 = vld [vmem:[%s466 + $0xc0] sm:$0xff]
      %v2964 = vld [vmem:[%s466 + $0xc8] sm:$0xff]
      %v2965 = vld [vmem:[%s466 + $0xd0] sm:$0xff]
      %v2966 = vld [vmem:[%s466 + $0xd8] sm:$0xff]
      %v2967 = vld [vmem:[%s466 + $0xe0] sm:$0xff]
      %v2968 = vld [vmem:[%s466 + $0xe8] sm:$0xff]
      %v2969 = vld [vmem:[%s466 + $0xf0] sm:$0xff]
      %v2970 = vld [vmem:[%s466 + $0xf8] sm:$0xff]
      %v2971 = vld [vmem:[%s466 + $0x100] sm:$0xff]
      %v2972 = vld [vmem:[%s466 + $0x108] sm:$0xff]
      %v2973 = vld [vmem:[%s466 + $0x110] sm:$0xff]
      %v2974 = vld [vmem:[%s466 + $0x118] sm:$0xff]
      %v2975 = vld [vmem:[%s466 + $0x120] sm:$0xff]
      %v2976 = vld [vmem:[%s466 + $0x128] sm:$0xff]
      %v2977 = vld [vmem:[%s466 + $0x130] sm:$0xff]
      %v2978 = vld [vmem:[%s466 + $0x138] sm:$0xff]
      %v2979 = vld [vmem:[%s466 + $0x140] sm:$0xff]
      %v2980 = vld [vmem:[%s466 + $0x148] sm:$0xff]
      %v2981 = vld [vmem:[%s466 + $0x150] sm:$0xff]
      %v2982 = vld [vmem:[%s466 + $0x158] sm:$0xff]
      %v2983 = vld [vmem:[%s466 + $0x160] sm:$0xff]
      %v2984 = vld [vmem:[%s466 + $0x168] sm:$0xff]
      %v2985 = vld [vmem:[%s466 + $0x170] sm:$0xff]
      %v2986 = vld [vmem:[%s466 + $0x178] sm:$0xff]
      %v2987 = vld [vmem:[%s466 + $0x180] sm:$0xff]
      %v2988 = vld [vmem:[%s466 + $0x188] sm:$0xff]
      %v2989 = vld [vmem:[%s466 + $0x190] sm:$0xff]
      %v2990 = vld [vmem:[%s466 + $0x198] sm:$0xff]
      %v2991 = vld [vmem:[%s466 + $0x1a0] sm:$0xff]
      %v2992 = vld [vmem:[%s466 + $0x1a8] sm:$0xff]
      %v2993 = vld [vmem:[%s466 + $0x1b0] sm:$0xff]
      %v2994 = vld [vmem:[%s466 + $0x1b8] sm:$0xff]
      %v2995 = vld [vmem:[%s466 + $0x1c0] sm:$0xff]
      %v2996 = vld [vmem:[%s466 + $0x1c8] sm:$0xff]
      %v2997 = vld [vmem:[%s466 + $0x1d0] sm:$0xff]
      %v2998 = vld [vmem:[%s466 + $0x1d8] sm:$0xff]
      %v2999 = vld [vmem:[%s466 + $0x1e0] sm:$0xff]
      %v3000 = vld [vmem:[%s466 + $0x1e8] sm:$0xff]
      %v3001 = vld [vmem:[%s466 + $0x1f0] sm:$0xff]
      %v3002 = vld [vmem:[%s466 + $0x1f8] sm:$0xff]
      %v3003 = vld [vmem:[%s466 + $0x200] sm:$0xff]
      %v3004 = vld [vmem:[%s466 + $0x208] sm:$0xff]
      %v3005 = vld [vmem:[%s466 + $0x210] sm:$0xff]
      %v3006 = vld [vmem:[%s466 + $0x218] sm:$0xff]
      %v3007 = vld [vmem:[%s466 + $0x220] sm:$0xff]
      %v3008 = vld [vmem:[%s466 + $0x228] sm:$0xff]
      %v3009 = vld [vmem:[%s466 + $0x230] sm:$0xff]
      %v3010 = vld [vmem:[%s466 + $0x238] sm:$0xff]
      %v3011 = vld [vmem:[%s466 + $0x240] sm:$0xff]
      %v3012 = vld [vmem:[%s466 + $0x248] sm:$0xff]
      %v3013 = vld [vmem:[%s466 + $0x250] sm:$0xff]
      %v3014 = vld [vmem:[%s466 + $0x258] sm:$0xff]
      %v3015 = vld [vmem:[%s466 + $0x260] sm:$0xff]
      %v3016 = vld [vmem:[%s466 + $0x268] sm:$0xff]
      %v3017 = vld [vmem:[%s466 + $0x270] sm:$0xff]
      %v3018 = vld [vmem:[%s466 + $0x278] sm:$0xff]
      %v3019 = vld [vmem:[%s466 + $0x280] sm:$0xff]
      %v3020 = vld [vmem:[%s466 + $0x288] sm:$0xff]
      %v3021 = vld [vmem:[%s466 + $0x290] sm:$0xff]
      %v3022 = vld [vmem:[%s466 + $0x298] sm:$0xff]
      %v3023 = vld [vmem:[%s466 + $0x2a0] sm:$0xff]
      %v3024 = vld [vmem:[%s466 + $0x2a8] sm:$0xff]
      %v3025 = vld [vmem:[%s466 + $0x2b0] sm:$0xff]
      %v3026 = vld [vmem:[%s466 + $0x2b8] sm:$0xff]
      %v3027 = vld [vmem:[%s466 + $0x2c0] sm:$0xff]
      %v3028 = vld [vmem:[%s466 + $0x2c8] sm:$0xff]
      %v3029 = vld [vmem:[%s466 + $0x2d0] sm:$0xff]
      %v3030 = vld [vmem:[%s466 + $0x2d8] sm:$0xff]
      %v3031 = vld [vmem:[%s466 + $0x2e0] sm:$0xff]
      %v3032 = vld [vmem:[%s466 + $0x2e8] sm:$0xff]
      %v3033 = vld [vmem:[%s466 + $0x2f0] sm:$0xff]
      %v3034 = vld [vmem:[%s466 + $0x2f8] sm:$0xff]
      %v3035 = vld [vmem:[%s466 + $0x300] sm:$0xff]
      %v3036 = vld [vmem:[%s466 + $0x308] sm:$0xff]
      %v3037 = vld [vmem:[%s466 + $0x310] sm:$0xff]
      %v3038 = vld [vmem:[%s466 + $0x318] sm:$0xff]
      %v3039 = vld [vmem:[%s466 + $0x320] sm:$0xff]
      %v3040 = vld [vmem:[%s466 + $0x328] sm:$0xff]
      %v3041 = vld [vmem:[%s466 + $0x330] sm:$0xff]
      %v3042 = vld [vmem:[%s466 + $0x338] sm:$0xff]
      %v3043 = vld [vmem:[%s466 + $0x340] sm:$0xff]
      %v3044 = vld [vmem:[%s466 + $0x348] sm:$0xff]
      %v3045 = vld [vmem:[%s466 + $0x350] sm:$0xff]
      %v3046 = vld [vmem:[%s466 + $0x358] sm:$0xff]
      %v3047 = vld [vmem:[%s466 + $0x360] sm:$0xff]
      %v3048 = vld [vmem:[%s466 + $0x368] sm:$0xff]
      %v3049 = vld [vmem:[%s466 + $0x370] sm:$0xff]
      %v3050 = vld [vmem:[%s466 + $0x378] sm:$0xff]
      %v3051 = vld [vmem:[%s466 + $0x380] sm:$0xff]
      %v3052 = vld [vmem:[%s466 + $0x388] sm:$0xff]
      %v3053 = vld [vmem:[%s466 + $0x390] sm:$0xff]
      %v3054 = vld [vmem:[%s466 + $0x398] sm:$0xff]
      %v3055 = vld [vmem:[%s466 + $0x3a0] sm:$0xff]
      %v3056 = vld [vmem:[%s466 + $0x3a8] sm:$0xff]
      %v3057 = vld [vmem:[%s466 + $0x3b0] sm:$0xff]
      %v3058 = vld [vmem:[%s466 + $0x3b8] sm:$0xff]
      %v3059 = vld [vmem:[%s466 + $0x3c0] sm:$0xff]
      %v3060 = vld [vmem:[%s466 + $0x3c8] sm:$0xff]
      %v3061 = vld [vmem:[%s466 + $0x3d0] sm:$0xff]
      %v3062 = vld [vmem:[%s466 + $0x3d8] sm:$0xff]
      %v3063 = vld [vmem:[%s466 + $0x3e0] sm:$0xff]
      %v3064 = vld [vmem:[%s466 + $0x3e8] sm:$0xff]
      %v3065 = vld [vmem:[%s466 + $0x3f0] sm:$0xff]
      %v3066 = vld [vmem:[%s466 + $0x3f8] sm:$0xff]
      %v3067 = vld [vmem:[%s7] sm:$0x3]
      %vm3068 = vcmask 15360
      %v3070 = vsel %vm3068, %v2939, 0
      %v3073 = vsel %vm3068, %v2940, 0
      %v3076 = vsel %vm3068, %v2941, 0
      %v3079 = vsel %vm3068, %v2942, 0
      %v3082 = vsel %vm3068, %v2943, 0
      %v3085 = vsel %vm3068, %v2944, 0
      %v3088 = vsel %vm3068, %v2945, 0
      %v3091 = vsel %vm3068, %v2946, 0
      %v3094 = vsel %vm3068, %v2947, 0
      %v3097 = vsel %vm3068, %v2948, 0
      %v3100 = vsel %vm3068, %v2949, 0
      %v3103 = vsel %vm3068, %v2950, 0
      %v3106 = vsel %vm3068, %v2951, 0
      %v3109 = vsel %vm3068, %v2952, 0
      %v3112 = vsel %vm3068, %v2953, 0
      %v3115 = vsel %vm3068, %v2954, 0
      %v3118 = vsel %vm3068, %v2955, 0
      %v3121 = vsel %vm3068, %v2956, 0
      %v3124 = vsel %vm3068, %v2957, 0
      %v3127 = vsel %vm3068, %v2958, 0
      %v3130 = vsel %vm3068, %v2959, 0
      %v3133 = vsel %vm3068, %v2960, 0
      %v3136 = vsel %vm3068, %v2961, 0
      %v3139 = vsel %vm3068, %v2962, 0
      %v3142 = vsel %vm3068, %v2963, 0
      %v3145 = vsel %vm3068, %v2964, 0
      %v3148 = vsel %vm3068, %v2965, 0
      %v3151 = vsel %vm3068, %v2966, 0
      %v3154 = vsel %vm3068, %v2967, 0
      %v3157 = vsel %vm3068, %v2968, 0
      %v3160 = vsel %vm3068, %v2969, 0
      %v3163 = vsel %vm3068, %v2970, 0
      %v3166 = vsel %vm3068, %v2971, 0
      %v3169 = vsel %vm3068, %v2972, 0
      %v3172 = vsel %vm3068, %v2973, 0
      %v3175 = vsel %vm3068, %v2974, 0
      %v3178 = vsel %vm3068, %v2975, 0
      %v3181 = vsel %vm3068, %v2976, 0
      %v3184 = vsel %vm3068, %v2977, 0
      %v3187 = vsel %vm3068, %v2978, 0
      %v3190 = vsel %vm3068, %v2979, 0
      %v3193 = vsel %vm3068, %v2980, 0
      %v3196 = vsel %vm3068, %v2981, 0
      %v3199 = vsel %vm3068, %v2982, 0
      %v3202 = vsel %vm3068, %v2983, 0
      %v3205 = vsel %vm3068, %v2984, 0
      %v3208 = vsel %vm3068, %v2985, 0
      %v3211 = vsel %vm3068, %v2986, 0
      %v3214 = vsel %vm3068, %v2987, 0
      %v3217 = vsel %vm3068, %v2988, 0
      %v3220 = vsel %vm3068, %v2989, 0
      %v3223 = vsel %vm3068, %v2990, 0
      %v3226 = vsel %vm3068, %v2991, 0
      %v3229 = vsel %vm3068, %v2992, 0
      %v3232 = vsel %vm3068, %v2993, 0
      %v3235 = vsel %vm3068, %v2994, 0
      %v3238 = vsel %vm3068, %v2995, 0
      %v3241 = vsel %vm3068, %v2996, 0
      %v3244 = vsel %vm3068, %v2997, 0
      %v3247 = vsel %vm3068, %v2998, 0
      %v3250 = vsel %vm3068, %v2999, 0
      %v3253 = vsel %vm3068, %v3000, 0
      %v3256 = vsel %vm3068, %v3001, 0
      %v3259 = vsel %vm3068, %v3002, 0
      %v3262 = vsel %vm3068, %v3003, 0
      %v3265 = vsel %vm3068, %v3004, 0
      %v3268 = vsel %vm3068, %v3005, 0
      %v3271 = vsel %vm3068, %v3006, 0
      %v3274 = vsel %vm3068, %v3007, 0
      %v3277 = vsel %vm3068, %v3008, 0
      %v3280 = vsel %vm3068, %v3009, 0
      %v3283 = vsel %vm3068, %v3010, 0
      %v3286 = vsel %vm3068, %v3011, 0
      %v3289 = vsel %vm3068, %v3012, 0
      %v3292 = vsel %vm3068, %v3013, 0
      %v3295 = vsel %vm3068, %v3014, 0
      %v3298 = vsel %vm3068, %v3015, 0
      %v3301 = vsel %vm3068, %v3016, 0
      %v3304 = vsel %vm3068, %v3017, 0
      %v3307 = vsel %vm3068, %v3018, 0
      %v3310 = vsel %vm3068, %v3019, 0
      %v3313 = vsel %vm3068, %v3020, 0
      %v3316 = vsel %vm3068, %v3021, 0
      %v3319 = vsel %vm3068, %v3022, 0
      %v3322 = vsel %vm3068, %v3023, 0
      %v3325 = vsel %vm3068, %v3024, 0
      %v3328 = vsel %vm3068, %v3025, 0
      %v3331 = vsel %vm3068, %v3026, 0
      %v3334 = vsel %vm3068, %v3027, 0
      %v3337 = vsel %vm3068, %v3028, 0
      %v3340 = vsel %vm3068, %v3029, 0
      %v3343 = vsel %vm3068, %v3030, 0
      %v3346 = vsel %vm3068, %v3031, 0
      %v3349 = vsel %vm3068, %v3032, 0
      %v3352 = vsel %vm3068, %v3033, 0
      %v3355 = vsel %vm3068, %v3034, 0
      %v3358 = vsel %vm3068, %v3035, 0
      %v3361 = vsel %vm3068, %v3036, 0
      %v3364 = vsel %vm3068, %v3037, 0
      %v3367 = vsel %vm3068, %v3038, 0
      %v3370 = vsel %vm3068, %v3039, 0
      %v3373 = vsel %vm3068, %v3040, 0
      %v3376 = vsel %vm3068, %v3041, 0
      %v3379 = vsel %vm3068, %v3042, 0
      %v3382 = vsel %vm3068, %v3043, 0
      %v3385 = vsel %vm3068, %v3044, 0
      %v3388 = vsel %vm3068, %v3045, 0
      %v3391 = vsel %vm3068, %v3046, 0
      %v3394 = vsel %vm3068, %v3047, 0
      %v3397 = vsel %vm3068, %v3048, 0
      %v3400 = vsel %vm3068, %v3049, 0
      %v3403 = vsel %vm3068, %v3050, 0
      %v3406 = vsel %vm3068, %v3051, 0
      %v3409 = vsel %vm3068, %v3052, 0
      %v3412 = vsel %vm3068, %v3053, 0
      %v3415 = vsel %vm3068, %v3054, 0
      %v3418 = vsel %vm3068, %v3055, 0
      %v3421 = vsel %vm3068, %v3056, 0
      %v3424 = vsel %vm3068, %v3057, 0
      %v3427 = vsel %vm3068, %v3058, 0
      %v3430 = vsel %vm3068, %v3059, 0
      %v3433 = vsel %vm3068, %v3060, 0
      %v3436 = vsel %vm3068, %v3061, 0
      %v3439 = vsel %vm3068, %v3062, 0
      %v3442 = vsel %vm3068, %v3063, 0
      %v3445 = vsel %vm3068, %v3064, 0
      %v3448 = vsel %vm3068, %v3065, 0
      %v3451 = vsel %vm3068, %v3066, 0
      %v3454 = vsel %vm1136, %v3067, 0
      %3456 = vmatprep.subr.mxu0 0.0
      %3457 = vmatpush1.msra.mxu0 %v3454
      %3458 = vmatprep.subr.mxu0 0.0
      %3459 = vmatpush1.msra.mxu0 0.0
      %3460 = vmatprep.subr.mxu0 0.0
      %3461 = vmatpush1.msra.mxu0 0.0
      %3462 = vmatprep.subr.mxu0 0.0
      %3463 = vmatpush1.msra.mxu0 0.0
      %3464 = vmatprep.subr.mxu0 0.0
      %3465 = vmatpush1.msra.mxu0 0.0
      %3466 = vmatprep.subr.mxu0 0.0
      %3467 = vmatpush1.msra.mxu0 0.0
      %3468 = vmatprep.subr.mxu0 0.0
      %3469 = vmatpush1.msra.mxu0 0.0
      %3470 = vmatprep.subr.mxu0 0.0
      %3471 = vmatpush1.msra.mxu0 0.0
      %3472 = vmatprep.subr.mxu0 0.0
      %3473 = vmatpush1.msra.mxu0 0.0
      %3474 = vmatprep.subr.mxu0 0.0
      %3475 = vmatpush1.msra.mxu0 0.0
      %3476 = vmatprep.subr.mxu0 0.0
      %3477 = vmatpush1.msra.mxu0 0.0
      %3478 = vmatprep.subr.mxu0 0.0
      %3479 = vmatpush1.msra.mxu0 0.0
      %3480 = vmatprep.subr.mxu0 0.0
      %3481 = vmatpush1.msra.mxu0 0.0
      %3482 = vmatprep.subr.mxu0 0.0
      %3483 = vmatpush1.msra.mxu0 0.0
      %3484 = vmatprep.subr.mxu0 0.0
      %3485 = vmatpush1.msra.mxu0 0.0
      %3486 = vmatprep.subr.mxu0 0.0
      %3487 = vmatpush1.msra.mxu0 0.0
      %3488 = vmatprep.subr.mxu0 0.0
      %3489 = vmatpush1.msra.mxu0 0.0
      %3490 = vmatprep.subr.mxu0 0.0
      %3491 = vmatpush1.msra.mxu0 0.0
      %3492 = vmatprep.subr.mxu0 0.0
      %3493 = vmatpush1.msra.mxu0 0.0
      %3494 = vmatprep.subr.mxu0 0.0
      %3495 = vmatpush1.msra.mxu0 0.0
      %3496 = vmatprep.subr.mxu0 0.0
      %3497 = vmatpush1.msra.mxu0 0.0
      %3498 = vmatprep.subr.mxu0 0.0
      %3499 = vmatpush1.msra.mxu0 0.0
      %3500 = vmatprep.subr.mxu0 0.0
      %3501 = vmatpush1.msra.mxu0 0.0
      %3502 = vmatprep.subr.mxu0 0.0
      %3503 = vmatpush1.msra.mxu0 0.0
      %3504 = vmatprep.subr.mxu0 0.0
      %3505 = vmatpush1.msra.mxu0 0.0
      %3506 = vmatprep.subr.mxu0 0.0
      %3507 = vmatpush1.msra.mxu0 0.0
      %3508 = vmatprep.subr.mxu0 0.0
      %3509 = vmatpush1.msra.mxu0 0.0
      %3510 = vmatprep.subr.mxu0 0.0
      %3511 = vmatpush1.msra.mxu0 0.0
      %3512 = vmatprep.subr.mxu0 0.0
      %3513 = vmatpush1.msra.mxu0 0.0
      %3514 = vmatprep.subr.mxu0 0.0
      %3515 = vmatpush1.msra.mxu0 0.0
      %3516 = vmatprep.subr.mxu0 0.0
      %3517 = vmatpush1.msra.mxu0 0.0
      %3518 = vmatprep.subr.mxu0 0.0
      %3519 = vmatpush1.msra.mxu0 0.0
      %3520 = vmatprep.mubr.f32.mxu0 0.0
      %3521 = vmatmul.mubr.f32.gmra.mrb[0].mxu0 %v3070
      %v3522 = vpop.f32.mrb[0].mxu0
      %v3523 = vadd.f32 0.0, %v3522
      %v3524 = vpop.f32.mrb[0].mxu0
      %3525 = vmatprep.mubr.f32.mxu0 0.0
      %3526 = vmatmul.mubr.f32.gmra.mrb[0].mxu0 %v3073
      %v3527 = vpop.f32.mrb[0].mxu0
      %v3528 = vadd.f32 0.0, %v3527
      %v3529 = vpop.f32.mrb[0].mxu0
      %3530 = vmatprep.mubr.f32.mxu0 0.0
      %3531 = vmatmul.mubr.f32.gmra.mrb[0].mxu0 %v3076
      %v3532 = vpop.f32.mrb[0].mxu0
      %v3533 = vadd.f32 0.0, %v3532
      %v3534 = vpop.f32.mrb[0].mxu0
      %3535 = vmatprep.mubr.f32.mxu0 0.0
      %3536 = vmatmul.mubr.f32.gmra.mrb[0].mxu0 %v3079
      %v3537 = vpop.f32.mrb[0].mxu0
      %v3538 = vadd.f32 0.0, %v3537
      %v3539 = vpop.f32.mrb[0].mxu0
      %3540 = vmatprep.mubr.f32.mxu0 0.0
      %3541 = vmatmul.mubr.f32.gmra.mrb[0].mxu0 %v3082
      %v3542 = vpop.f32.mrb[0].mxu0
      %v3543 = vadd.f32 0.0, %v3542
      %v3544 = vpop.f32.mrb[0].mxu0
      %3545 = vmatprep.mubr.f32.mxu0 0.0
      %3546 = vmatmul.mubr.f32.gmra.mrb[0].mxu0 %v3085
      %v3547 = vpop.f32.mrb[0].mxu0
      %v3548 = vadd.f32 0.0, %v3547
      %v3549 = vpop.f32.mrb[0].mxu0
      %3550 = vmatprep.mubr.f32.mxu0 0.0
      %3551 = vmatmul.mubr.f32.gmra.mrb[0].mxu0 %v3088
      %v3552 = vpop.f32.mrb[0].mxu0
      %v3553 = vadd.f32 0.0, %v3552
      %v3554 = vpop.f32.mrb[0].mxu0
      %3555 = vmatprep.mubr.f32.mxu0 0.0
      %3556 = vmatmul.mubr.f32.gmra.mrb[0].mxu0 %v3091
      %v3557 = vpop.f32.mrb[0].mxu0
      %v3558 = vadd.f32 0.0, %v3557
      %v3559 = vpop.f32.mrb[0].mxu0
      %3560 = vmatprep.mubr.f32.mxu0 0.0
      %3561 = vmatmul.mubr.f32.gmra.mrb[0].mxu0 %v3094
      %v3562 = vpop.f32.mrb[0].mxu0
      %v3563 = vadd.f32 0.0, %v3562
      %v3564 = vpop.f32.mrb[0].mxu0
      %3565 = vmatprep.mubr.f32.mxu0 0.0
      %3566 = vmatmul.mubr.f32.gmra.mrb[0].mxu0 %v3097
      %v3567 = vpop.f32.mrb[0].mxu0
      %v3568 = vadd.f32 0.0, %v3567
      %v3569 = vpop.f32.mrb[0].mxu0
      %3570 = vmatprep.mubr.f32.mxu0 0.0
      %3571 = vmatmul.mubr.f32.gmra.mrb[0].mxu0 %v3100
      %v3572 = vpop.f32.mrb[0].mxu0
      %v3573 = vadd.f32 0.0, %v3572
      %v3574 = vpop.f32.mrb[0].mxu0
      %3575 = vmatprep.mubr.f32.mxu0 0.0
      %3576 = vmatmul.mubr.f32.gmra.mrb[0].mxu0 %v3103
      %v3577 = vpop.f32.mrb[0].mxu0
      %v3578 = vadd.f32 0.0, %v3577
      %v3579 = vpop.f32.mrb[0].mxu0
      %3580 = vmatprep.mubr.f32.mxu0 0.0
      %3581 = vmatmul.mubr.f32.gmra.mrb[0].mxu0 %v3106
      %v3582 = vpop.f32.mrb[0].mxu0
      %v3583 = vadd.f32 0.0, %v3582
      %v3584 = vpop.f32.mrb[0].mxu0
      %3585 = vmatprep.mubr.f32.mxu0 0.0
      %3586 = vmatmul.mubr.f32.gmra.mrb[0].mxu0 %v3109
      %v3587 = vpop.f32.mrb[0].mxu0
      %v3588 = vadd.f32 0.0, %v3587
      %v3589 = vpop.f32.mrb[0].mxu0
      %3590 = vmatprep.mubr.f32.mxu0 0.0
      %3591 = vmatmul.mubr.f32.gmra.mrb[0].mxu0 %v3112
      %v3592 = vpop.f32.mrb[0].mxu0
      %v3593 = vadd.f32 0.0, %v3592
      %v3594 = vpop.f32.mrb[0].mxu0
      %3595 = vmatprep.mubr.f32.mxu0 0.0
      %3596 = vmatmul.mubr.f32.gmra.mrb[0].mxu0 %v3115
      %v3597 = vpop.f32.mrb[0].mxu0
      %v3598 = vadd.f32 0.0, %v3597
      %v3599 = vpop.f32.mrb[0].mxu0
      %3600 = vmatprep.mubr.f32.mxu0 0.0
      %3601 = vmatmul.mubr.f32.gmra.mrb[0].mxu0 %v3118
      %v3602 = vpop.f32.mrb[0].mxu0
      %v3603 = vadd.f32 0.0, %v3602
      %v3604 = vpop.f32.mrb[0].mxu0
      %3605 = vmatprep.mubr.f32.mxu0 0.0
      %3606 = vmatmul.mubr.f32.gmra.mrb[0].mxu0 %v3121
      %v3607 = vpop.f32.mrb[0].mxu0
      %v3608 = vadd.f32 0.0, %v3607
      %v3609 = vpop.f32.mrb[0].mxu0
      %3610 = vmatprep.mubr.f32.mxu0 0.0
      %3611 = vmatmul.mubr.f32.gmra.mrb[0].mxu0 %v3124
      %v3612 = vpop.f32.mrb[0].mxu0
      %v3613 = vadd.f32 0.0, %v3612
      %v3614 = vpop.f32.mrb[0].mxu0
      %3615 = vmatprep.mubr.f32.mxu0 0.0
      %3616 = vmatmul.mubr.f32.gmra.mrb[0].mxu0 %v3127
      %v3617 = vpop.f32.mrb[0].mxu0
      %v3618 = vadd.f32 0.0, %v3617
      %v3619 = vpop.f32.mrb[0].mxu0
      %3620 = vmatprep.mubr.f32.mxu0 0.0
      %3621 = vmatmul.mubr.f32.gmra.mrb[0].mxu0 %v3130
      %v3622 = vpop.f32.mrb[0].mxu0
      %v3623 = vadd.f32 0.0, %v3622
      %v3624 = vpop.f32.mrb[0].mxu0
      %3625 = vmatprep.mubr.f32.mxu0 0.0
      %3626 = vmatmul.mubr.f32.gmra.mrb[0].mxu0 %v3133
      %v3627 = vpop.f32.mrb[0].mxu0
      %v3628 = vadd.f32 0.0, %v3627
      %v3629 = vpop.f32.mrb[0].mxu0
      %3630 = vmatprep.mubr.f32.mxu0 0.0
      %3631 = vmatmul.mubr.f32.gmra.mrb[0].mxu0 %v3136
      %v3632 = vpop.f32.mrb[0].mxu0
      %v3633 = vadd.f32 0.0, %v3632
      %v3634 = vpop.f32.mrb[0].mxu0
      %3635 = vmatprep.mubr.f32.mxu0 0.0
      %3636 = vmatmul.mubr.f32.gmra.mrb[0].mxu0 %v3139
      %v3637 = vpop.f32.mrb[0].mxu0
      %v3638 = vadd.f32 0.0, %v3637
      %v3639 = vpop.f32.mrb[0].mxu0
      %3640 = vmatprep.mubr.f32.mxu0 0.0
      %3641 = vmatmul.mubr.f32.gmra.mrb[0].mxu0 %v3142
      %v3642 = vpop.f32.mrb[0].mxu0
      %v3643 = vadd.f32 0.0, %v3642
      %v3644 = vpop.f32.mrb[0].mxu0
      %3645 = vmatprep.mubr.f32.mxu0 0.0
      %3646 = vmatmul.mubr.f32.gmra.mrb[0].mxu0 %v3145
      %v3647 = vpop.f32.mrb[0].mxu0
      %v3648 = vadd.f32 0.0, %v3647
      %v3649 = vpop.f32.mrb[0].mxu0
      %3650 = vmatprep.mubr.f32.mxu0 0.0
      %3651 = vmatmul.mubr.f32.gmra.mrb[0].mxu0 %v3148
      %v3652 = vpop.f32.mrb[0].mxu0
      %v3653 = vadd.f32 0.0, %v3652
      %v3654 = vpop.f32.mrb[0].mxu0
      %3655 = vmatprep.mubr.f32.mxu0 0.0
      %3656 = vmatmul.mubr.f32.gmra.mrb[0].mxu0 %v3151
      %v3657 = vpop.f32.mrb[0].mxu0
      %v3658 = vadd.f32 0.0, %v3657
      %v3659 = vpop.f32.mrb[0].mxu0
      %3660 = vmatprep.mubr.f32.mxu0 0.0
      %3661 = vmatmul.mubr.f32.gmra.mrb[0].mxu0 %v3154
      %v3662 = vpop.f32.mrb[0].mxu0
      %v3663 = vadd.f32 0.0, %v3662
      %v3664 = vpop.f32.mrb[0].mxu0
      %3665 = vmatprep.mubr.f32.mxu0 0.0
      %3666 = vmatmul.mubr.f32.gmra.mrb[0].mxu0 %v3157
      %v3667 = vpop.f32.mrb[0].mxu0
      %v3668 = vadd.f32 0.0, %v3667
      %v3669 = vpop.f32.mrb[0].mxu0
      %3670 = vmatprep.mubr.f32.mxu0 0.0
      %3671 = vmatmul.mubr.f32.gmra.mrb[0].mxu0 %v3160
      %v3672 = vpop.f32.mrb[0].mxu0
      %v3673 = vadd.f32 0.0, %v3672
      %v3674 = vpop.f32.mrb[0].mxu0
      %3675 = vmatprep.mubr.f32.mxu0 0.0
      %3676 = vmatmul.mubr.f32.gmra.mrb[0].mxu0 %v3163
      %v3677 = vpop.f32.mrb[0].mxu0
      %v3678 = vadd.f32 0.0, %v3677
      %v3679 = vpop.f32.mrb[0].mxu0
      %3680 = vmatprep.mubr.f32.mxu0 0.0
      %3681 = vmatmul.mubr.f32.gmra.mrb[0].mxu0 %v3166
      %v3682 = vpop.f32.mrb[0].mxu0
      %v3683 = vadd.f32 0.0, %v3682
      %v3684 = vpop.f32.mrb[0].mxu0
      %3685 = vmatprep.mubr.f32.mxu0 0.0
      %3686 = vmatmul.mubr.f32.gmra.mrb[0].mxu0 %v3169
      %v3687 = vpop.f32.mrb[0].mxu0
      %v3688 = vadd.f32 0.0, %v3687
      %v3689 = vpop.f32.mrb[0].mxu0
      %3690 = vmatprep.mubr.f32.mxu0 0.0
      %3691 = vmatmul.mubr.f32.gmra.mrb[0].mxu0 %v3172
      %v3692 = vpop.f32.mrb[0].mxu0
      %v3693 = vadd.f32 0.0, %v3692
      %v3694 = vpop.f32.mrb[0].mxu0
      %3695 = vmatprep.mubr.f32.mxu0 0.0
      %3696 = vmatmul.mubr.f32.gmra.mrb[0].mxu0 %v3175
      %v3697 = vpop.f32.mrb[0].mxu0
      %v3698 = vadd.f32 0.0, %v3697
      %v3699 = vpop.f32.mrb[0].mxu0
      %3700 = vmatprep.mubr.f32.mxu0 0.0
      %3701 = vmatmul.mubr.f32.gmra.mrb[0].mxu0 %v3178
      %v3702 = vpop.f32.mrb[0].mxu0
      %v3703 = vadd.f32 0.0, %v3702
      %v3704 = vpop.f32.mrb[0].mxu0
      %3705 = vmatprep.mubr.f32.mxu0 0.0
      %3706 = vmatmul.mubr.f32.gmra.mrb[0].mxu0 %v3181
      %v3707 = vpop.f32.mrb[0].mxu0
      %v3708 = vadd.f32 0.0, %v3707
      %v3709 = vpop.f32.mrb[0].mxu0
      %3710 = vmatprep.mubr.f32.mxu0 0.0
      %3711 = vmatmul.mubr.f32.gmra.mrb[0].mxu0 %v3184
      %v3712 = vpop.f32.mrb[0].mxu0
      %v3713 = vadd.f32 0.0, %v3712
      %v3714 = vpop.f32.mrb[0].mxu0
      %3715 = vmatprep.mubr.f32.mxu0 0.0
      %3716 = vmatmul.mubr.f32.gmra.mrb[0].mxu0 %v3187
      %v3717 = vpop.f32.mrb[0].mxu0
      %v3718 = vadd.f32 0.0, %v3717
      %v3719 = vpop.f32.mrb[0].mxu0
      %3720 = vmatprep.mubr.f32.mxu0 0.0
      %3721 = vmatmul.mubr.f32.gmra.mrb[0].mxu0 %v3190
      %v3722 = vpop.f32.mrb[0].mxu0
      %v3723 = vadd.f32 0.0, %v3722
      %v3724 = vpop.f32.mrb[0].mxu0
      %3725 = vmatprep.mubr.f32.mxu0 0.0
      %3726 = vmatmul.mubr.f32.gmra.mrb[0].mxu0 %v3193
      %v3727 = vpop.f32.mrb[0].mxu0
      %v3728 = vadd.f32 0.0, %v3727
      %v3729 = vpop.f32.mrb[0].mxu0
      %3730 = vmatprep.mubr.f32.mxu0 0.0
      %3731 = vmatmul.mubr.f32.gmra.mrb[0].mxu0 %v3196
      %v3732 = vpop.f32.mrb[0].mxu0
      %v3733 = vadd.f32 0.0, %v3732
      %v3734 = vpop.f32.mrb[0].mxu0
      %3735 = vmatprep.mubr.f32.mxu0 0.0
      %3736 = vmatmul.mubr.f32.gmra.mrb[0].mxu0 %v3199
      %v3737 = vpop.f32.mrb[0].mxu0
      %v3738 = vadd.f32 0.0, %v3737
      %v3739 = vpop.f32.mrb[0].mxu0
      %3740 = vmatprep.mubr.f32.mxu0 0.0
      %3741 = vmatmul.mubr.f32.gmra.mrb[0].mxu0 %v3202
      %v3742 = vpop.f32.mrb[0].mxu0
      %v3743 = vadd.f32 0.0, %v3742
      %v3744 = vpop.f32.mrb[0].mxu0
      %3745 = vmatprep.mubr.f32.mxu0 0.0
      %3746 = vmatmul.mubr.f32.gmra.mrb[0].mxu0 %v3205
      %v3747 = vpop.f32.mrb[0].mxu0
      %v3748 = vadd.f32 0.0, %v3747
      %v3749 = vpop.f32.mrb[0].mxu0
      %3750 = vmatprep.mubr.f32.mxu0 0.0
      %3751 = vmatmul.mubr.f32.gmra.mrb[0].mxu0 %v3208
      %v3752 = vpop.f32.mrb[0].mxu0
      %v3753 = vadd.f32 0.0, %v3752
      %v3754 = vpop.f32.mrb[0].mxu0
      %3755 = vmatprep.mubr.f32.mxu0 0.0
      %3756 = vmatmul.mubr.f32.gmra.mrb[0].mxu0 %v3211
      %v3757 = vpop.f32.mrb[0].mxu0
      %v3758 = vadd.f32 0.0, %v3757
      %v3759 = vpop.f32.mrb[0].mxu0
      %3760 = vmatprep.mubr.f32.mxu0 0.0
      %3761 = vmatmul.mubr.f32.gmra.mrb[0].mxu0 %v3214
      %v3762 = vpop.f32.mrb[0].mxu0
      %v3763 = vadd.f32 0.0, %v3762
      %v3764 = vpop.f32.mrb[0].mxu0
      %3765 = vmatprep.mubr.f32.mxu0 0.0
      %3766 = vmatmul.mubr.f32.gmra.mrb[0].mxu0 %v3217
      %v3767 = vpop.f32.mrb[0].mxu0
      %v3768 = vadd.f32 0.0, %v3767
      %v3769 = vpop.f32.mrb[0].mxu0
      %3770 = vmatprep.mubr.f32.mxu0 0.0
      %3771 = vmatmul.mubr.f32.gmra.mrb[0].mxu0 %v3220
      %v3772 = vpop.f32.mrb[0].mxu0
      %v3773 = vadd.f32 0.0, %v3772
      %v3774 = vpop.f32.mrb[0].mxu0
      %3775 = vmatprep.mubr.f32.mxu0 0.0
      %3776 = vmatmul.mubr.f32.gmra.mrb[0].mxu0 %v3223
      %v3777 = vpop.f32.mrb[0].mxu0
      %v3778 = vadd.f32 0.0, %v3777
      %v3779 = vpop.f32.mrb[0].mxu0
      %3780 = vmatprep.mubr.f32.mxu0 0.0
      %3781 = vmatmul.mubr.f32.gmra.mrb[0].mxu0 %v3226
      %v3782 = vpop.f32.mrb[0].mxu0
      %v3783 = vadd.f32 0.0, %v3782
      %v3784 = vpop.f32.mrb[0].mxu0
      %3785 = vmatprep.mubr.f32.mxu0 0.0
      %3786 = vmatmul.mubr.f32.gmra.mrb[0].mxu0 %v3229
      %v3787 = vpop.f32.mrb[0].mxu0
      %v3788 = vadd.f32 0.0, %v3787
      %v3789 = vpop.f32.mrb[0].mxu0
      %3790 = vmatprep.mubr.f32.mxu0 0.0
      %3791 = vmatmul.mubr.f32.gmra.mrb[0].mxu0 %v3232
      %v3792 = vpop.f32.mrb[0].mxu0
      %v3793 = vadd.f32 0.0, %v3792
      %v3794 = vpop.f32.mrb[0].mxu0
      %3795 = vmatprep.mubr.f32.mxu0 0.0
      %3796 = vmatmul.mubr.f32.gmra.mrb[0].mxu0 %v3235
      %v3797 = vpop.f32.mrb[0].mxu0
      %v3798 = vadd.f32 0.0, %v3797
      %v3799 = vpop.f32.mrb[0].mxu0
      %3800 = vmatprep.mubr.f32.mxu0 0.0
      %3801 = vmatmul.mubr.f32.gmra.mrb[0].mxu0 %v3238
      %v3802 = vpop.f32.mrb[0].mxu0
      %v3803 = vadd.f32 0.0, %v3802
      %v3804 = vpop.f32.mrb[0].mxu0
      %3805 = vmatprep.mubr.f32.mxu0 0.0
      %3806 = vmatmul.mubr.f32.gmra.mrb[0].mxu0 %v3241
      %v3807 = vpop.f32.mrb[0].mxu0
      %v3808 = vadd.f32 0.0, %v3807
      %v3809 = vpop.f32.mrb[0].mxu0
      %3810 = vmatprep.mubr.f32.mxu0 0.0
      %3811 = vmatmul.mubr.f32.gmra.mrb[0].mxu0 %v3244
      %v3812 = vpop.f32.mrb[0].mxu0
      %v3813 = vadd.f32 0.0, %v3812
      %v3814 = vpop.f32.mrb[0].mxu0
      %3815 = vmatprep.mubr.f32.mxu0 0.0
      %3816 = vmatmul.mubr.f32.gmra.mrb[0].mxu0 %v3247
      %v3817 = vpop.f32.mrb[0].mxu0
      %v3818 = vadd.f32 0.0, %v3817
      %v3819 = vpop.f32.mrb[0].mxu0
      %3820 = vmatprep.mubr.f32.mxu0 0.0
      %3821 = vmatmul.mubr.f32.gmra.mrb[0].mxu0 %v3250
      %v3822 = vpop.f32.mrb[0].mxu0
      %v3823 = vadd.f32 0.0, %v3822
      %v3824 = vpop.f32.mrb[0].mxu0
      %3825 = vmatprep.mubr.f32.mxu0 0.0
      %3826 = vmatmul.mubr.f32.gmra.mrb[0].mxu0 %v3253
      %v3827 = vpop.f32.mrb[0].mxu0
      %v3828 = vadd.f32 0.0, %v3827
      %v3829 = vpop.f32.mrb[0].mxu0
      %3830 = vmatprep.mubr.f32.mxu0 0.0
      %3831 = vmatmul.mubr.f32.gmra.mrb[0].mxu0 %v3256
      %v3832 = vpop.f32.mrb[0].mxu0
      %v3833 = vadd.f32 0.0, %v3832
      %v3834 = vpop.f32.mrb[0].mxu0
      %3835 = vmatprep.mubr.f32.mxu0 0.0
      %3836 = vmatmul.mubr.f32.gmra.mrb[0].mxu0 %v3259
      %v3837 = vpop.f32.mrb[0].mxu0
      %v3838 = vadd.f32 0.0, %v3837
      %v3839 = vpop.f32.mrb[0].mxu0
      %3840 = vmatprep.mubr.f32.mxu0 0.0
      %3841 = vmatmul.mubr.f32.gmra.mrb[0].mxu0 %v3262
      %v3842 = vpop.f32.mrb[0].mxu0
      %v3843 = vadd.f32 0.0, %v3842
      %v3844 = vpop.f32.mrb[0].mxu0
      %3845 = vmatprep.mubr.f32.mxu0 0.0
      %3846 = vmatmul.mubr.f32.gmra.mrb[0].mxu0 %v3265
      %v3847 = vpop.f32.mrb[0].mxu0
      %v3848 = vadd.f32 0.0, %v3847
      %v3849 = vpop.f32.mrb[0].mxu0
      %3850 = vmatprep.mubr.f32.mxu0 0.0
      %3851 = vmatmul.mubr.f32.gmra.mrb[0].mxu0 %v3268
      %v3852 = vpop.f32.mrb[0].mxu0
      %v3853 = vadd.f32 0.0, %v3852
      %v3854 = vpop.f32.mrb[0].mxu0
      %3855 = vmatprep.mubr.f32.mxu0 0.0
      %3856 = vmatmul.mubr.f32.gmra.mrb[0].mxu0 %v3271
      %v3857 = vpop.f32.mrb[0].mxu0
      %v3858 = vadd.f32 0.0, %v3857
      %v3859 = vpop.f32.mrb[0].mxu0
      %3860 = vmatprep.mubr.f32.mxu0 0.0
      %3861 = vmatmul.mubr.f32.gmra.mrb[0].mxu0 %v3274
      %v3862 = vpop.f32.mrb[0].mxu0
      %v3863 = vadd.f32 0.0, %v3862
      %v3864 = vpop.f32.mrb[0].mxu0
      %3865 = vmatprep.mubr.f32.mxu0 0.0
      %3866 = vmatmul.mubr.f32.gmra.mrb[0].mxu0 %v3277
      %v3867 = vpop.f32.mrb[0].mxu0
      %v3868 = vadd.f32 0.0, %v3867
      %v3869 = vpop.f32.mrb[0].mxu0
      %3870 = vmatprep.mubr.f32.mxu0 0.0
      %3871 = vmatmul.mubr.f32.gmra.mrb[0].mxu0 %v3280
      %v3872 = vpop.f32.mrb[0].mxu0
      %v3873 = vadd.f32 0.0, %v3872
      %v3874 = vpop.f32.mrb[0].mxu0
      %3875 = vmatprep.mubr.f32.mxu0 0.0
      %3876 = vmatmul.mubr.f32.gmra.mrb[0].mxu0 %v3283
      %v3877 = vpop.f32.mrb[0].mxu0
      %v3878 = vadd.f32 0.0, %v3877
      %v3879 = vpop.f32.mrb[0].mxu0
      %3880 = vmatprep.mubr.f32.mxu0 0.0
      %3881 = vmatmul.mubr.f32.gmra.mrb[0].mxu0 %v3286
      %v3882 = vpop.f32.mrb[0].mxu0
      %v3883 = vadd.f32 0.0, %v3882
      %v3884 = vpop.f32.mrb[0].mxu0
      %3885 = vmatprep.mubr.f32.mxu0 0.0
      %3886 = vmatmul.mubr.f32.gmra.mrb[0].mxu0 %v3289
      %v3887 = vpop.f32.mrb[0].mxu0
      %v3888 = vadd.f32 0.0, %v3887
      %v3889 = vpop.f32.mrb[0].mxu0
      %3890 = vmatprep.mubr.f32.mxu0 0.0
      %3891 = vmatmul.mubr.f32.gmra.mrb[0].mxu0 %v3292
      %v3892 = vpop.f32.mrb[0].mxu0
      %v3893 = vadd.f32 0.0, %v3892
      %v3894 = vpop.f32.mrb[0].mxu0
      %3895 = vmatprep.mubr.f32.mxu0 0.0
      %3896 = vmatmul.mubr.f32.gmra.mrb[0].mxu0 %v3295
      %v3897 = vpop.f32.mrb[0].mxu0
      %v3898 = vadd.f32 0.0, %v3897
      %v3899 = vpop.f32.mrb[0].mxu0
      %3900 = vmatprep.mubr.f32.mxu0 0.0
      %3901 = vmatmul.mubr.f32.gmra.mrb[0].mxu0 %v3298
      %v3902 = vpop.f32.mrb[0].mxu0
      %v3903 = vadd.f32 0.0, %v3902
      %v3904 = vpop.f32.mrb[0].mxu0
      %3905 = vmatprep.mubr.f32.mxu0 0.0
      %3906 = vmatmul.mubr.f32.gmra.mrb[0].mxu0 %v3301
      %v3907 = vpop.f32.mrb[0].mxu0
      %v3908 = vadd.f32 0.0, %v3907
      %v3909 = vpop.f32.mrb[0].mxu0
      %3910 = vmatprep.mubr.f32.mxu0 0.0
      %3911 = vmatmul.mubr.f32.gmra.mrb[0].mxu0 %v3304
      %v3912 = vpop.f32.mrb[0].mxu0
      %v3913 = vadd.f32 0.0, %v3912
      %v3914 = vpop.f32.mrb[0].mxu0
      %3915 = vmatprep.mubr.f32.mxu0 0.0
      %3916 = vmatmul.mubr.f32.gmra.mrb[0].mxu0 %v3307
      %v3917 = vpop.f32.mrb[0].mxu0
      %v3918 = vadd.f32 0.0, %v3917
      %v3919 = vpop.f32.mrb[0].mxu0
      %3920 = vmatprep.mubr.f32.mxu0 0.0
      %3921 = vmatmul.mubr.f32.gmra.mrb[0].mxu0 %v3310
      %v3922 = vpop.f32.mrb[0].mxu0
      %v3923 = vadd.f32 0.0, %v3922
      %v3924 = vpop.f32.mrb[0].mxu0
      %3925 = vmatprep.mubr.f32.mxu0 0.0
      %3926 = vmatmul.mubr.f32.gmra.mrb[0].mxu0 %v3313
      %v3927 = vpop.f32.mrb[0].mxu0
      %v3928 = vadd.f32 0.0, %v3927
      %v3929 = vpop.f32.mrb[0].mxu0
      %3930 = vmatprep.mubr.f32.mxu0 0.0
      %3931 = vmatmul.mubr.f32.gmra.mrb[0].mxu0 %v3316
      %v3932 = vpop.f32.mrb[0].mxu0
      %v3933 = vadd.f32 0.0, %v3932
      %v3934 = vpop.f32.mrb[0].mxu0
      %3935 = vmatprep.mubr.f32.mxu0 0.0
      %3936 = vmatmul.mubr.f32.gmra.mrb[0].mxu0 %v3319
      %v3937 = vpop.f32.mrb[0].mxu0
      %v3938 = vadd.f32 0.0, %v3937
      %v3939 = vpop.f32.mrb[0].mxu0
      %3940 = vmatprep.mubr.f32.mxu0 0.0
      %3941 = vmatmul.mubr.f32.gmra.mrb[0].mxu0 %v3322
      %v3942 = vpop.f32.mrb[0].mxu0
      %v3943 = vadd.f32 0.0, %v3942
      %v3944 = vpop.f32.mrb[0].mxu0
      %3945 = vmatprep.mubr.f32.mxu0 0.0
      %3946 = vmatmul.mubr.f32.gmra.mrb[0].mxu0 %v3325
      %v3947 = vpop.f32.mrb[0].mxu0
      %v3948 = vadd.f32 0.0, %v3947
      %v3949 = vpop.f32.mrb[0].mxu0
      %3950 = vmatprep.mubr.f32.mxu0 0.0
      %3951 = vmatmul.mubr.f32.gmra.mrb[0].mxu0 %v3328
      %v3952 = vpop.f32.mrb[0].mxu0
      %v3953 = vadd.f32 0.0, %v3952
      %v3954 = vpop.f32.mrb[0].mxu0
      %3955 = vmatprep.mubr.f32.mxu0 0.0
      %3956 = vmatmul.mubr.f32.gmra.mrb[0].mxu0 %v3331
      %v3957 = vpop.f32.mrb[0].mxu0
      %v3958 = vadd.f32 0.0, %v3957
      %v3959 = vpop.f32.mrb[0].mxu0
      %3960 = vmatprep.mubr.f32.mxu0 0.0
      %3961 = vmatmul.mubr.f32.gmra.mrb[0].mxu0 %v3334
      %v3962 = vpop.f32.mrb[0].mxu0
      %v3963 = vadd.f32 0.0, %v3962
      %v3964 = vpop.f32.mrb[0].mxu0
      %3965 = vmatprep.mubr.f32.mxu0 0.0
      %3966 = vmatmul.mubr.f32.gmra.mrb[0].mxu0 %v3337
      %v3967 = vpop.f32.mrb[0].mxu0
      %v3968 = vadd.f32 0.0, %v3967
      %v3969 = vpop.f32.mrb[0].mxu0
      %3970 = vmatprep.mubr.f32.mxu0 0.0
      %3971 = vmatmul.mubr.f32.gmra.mrb[0].mxu0 %v3340
      %v3972 = vpop.f32.mrb[0].mxu0
      %v3973 = vadd.f32 0.0, %v3972
      %v3974 = vpop.f32.mrb[0].mxu0
      %3975 = vmatprep.mubr.f32.mxu0 0.0
      %3976 = vmatmul.mubr.f32.gmra.mrb[0].mxu0 %v3343
      %v3977 = vpop.f32.mrb[0].mxu0
      %v3978 = vadd.f32 0.0, %v3977
      %v3979 = vpop.f32.mrb[0].mxu0
      %3980 = vmatprep.mubr.f32.mxu0 0.0
      %3981 = vmatmul.mubr.f32.gmra.mrb[0].mxu0 %v3346
      %v3982 = vpop.f32.mrb[0].mxu0
      %v3983 = vadd.f32 0.0, %v3982
      %v3984 = vpop.f32.mrb[0].mxu0
      %3985 = vmatprep.mubr.f32.mxu0 0.0
      %3986 = vmatmul.mubr.f32.gmra.mrb[0].mxu0 %v3349
      %v3987 = vpop.f32.mrb[0].mxu0
      %v3988 = vadd.f32 0.0, %v3987
      %v3989 = vpop.f32.mrb[0].mxu0
      %3990 = vmatprep.mubr.f32.mxu0 0.0
      %3991 = vmatmul.mubr.f32.gmra.mrb[0].mxu0 %v3352
      %v3992 = vpop.f32.mrb[0].mxu0
      %v3993 = vadd.f32 0.0, %v3992
      %v3994 = vpop.f32.mrb[0].mxu0
      %3995 = vmatprep.mubr.f32.mxu0 0.0
      %3996 = vmatmul.mubr.f32.gmra.mrb[0].mxu0 %v3355
      %v3997 = vpop.f32.mrb[0].mxu0
      %v3998 = vadd.f32 0.0, %v3997
      %v3999 = vpop.f32.mrb[0].mxu0
      %4000 = vmatprep.mubr.f32.mxu0 0.0
      %4001 = vmatmul.mubr.f32.gmra.mrb[0].mxu0 %v3358
      %v4002 = vpop.f32.mrb[0].mxu0
      %v4003 = vadd.f32 0.0, %v4002
      %v4004 = vpop.f32.mrb[0].mxu0
      %4005 = vmatprep.mubr.f32.mxu0 0.0
      %4006 = vmatmul.mubr.f32.gmra.mrb[0].mxu0 %v3361
      %v4007 = vpop.f32.mrb[0].mxu0
      %v4008 = vadd.f32 0.0, %v4007
      %v4009 = vpop.f32.mrb[0].mxu0
      %4010 = vmatprep.mubr.f32.mxu0 0.0
      %4011 = vmatmul.mubr.f32.gmra.mrb[0].mxu0 %v3364
      %v4012 = vpop.f32.mrb[0].mxu0
      %v4013 = vadd.f32 0.0, %v4012
      %v4014 = vpop.f32.mrb[0].mxu0
      %4015 = vmatprep.mubr.f32.mxu0 0.0
      %4016 = vmatmul.mubr.f32.gmra.mrb[0].mxu0 %v3367
      %v4017 = vpop.f32.mrb[0].mxu0
      %v4018 = vadd.f32 0.0, %v4017
      %v4019 = vpop.f32.mrb[0].mxu0
      %4020 = vmatprep.mubr.f32.mxu0 0.0
      %4021 = vmatmul.mubr.f32.gmra.mrb[0].mxu0 %v3370
      %v4022 = vpop.f32.mrb[0].mxu0
      %v4023 = vadd.f32 0.0, %v4022
      %v4024 = vpop.f32.mrb[0].mxu0
      %4025 = vmatprep.mubr.f32.mxu0 0.0
      %4026 = vmatmul.mubr.f32.gmra.mrb[0].mxu0 %v3373
      %v4027 = vpop.f32.mrb[0].mxu0
      %v4028 = vadd.f32 0.0, %v4027
      %v4029 = vpop.f32.mrb[0].mxu0
      %4030 = vmatprep.mubr.f32.mxu0 0.0
      %4031 = vmatmul.mubr.f32.gmra.mrb[0].mxu0 %v3376
      %v4032 = vpop.f32.mrb[0].mxu0
      %v4033 = vadd.f32 0.0, %v4032
      %v4034 = vpop.f32.mrb[0].mxu0
      %4035 = vmatprep.mubr.f32.mxu0 0.0
      %4036 = vmatmul.mubr.f32.gmra.mrb[0].mxu0 %v3379
      %v4037 = vpop.f32.mrb[0].mxu0
      %v4038 = vadd.f32 0.0, %v4037
      %v4039 = vpop.f32.mrb[0].mxu0
      %4040 = vmatprep.mubr.f32.mxu0 0.0
      %4041 = vmatmul.mubr.f32.gmra.mrb[0].mxu0 %v3382
      %v4042 = vpop.f32.mrb[0].mxu0
      %v4043 = vadd.f32 0.0, %v4042
      %v4044 = vpop.f32.mrb[0].mxu0
      %4045 = vmatprep.mubr.f32.mxu0 0.0
      %4046 = vmatmul.mubr.f32.gmra.mrb[0].mxu0 %v3385
      %v4047 = vpop.f32.mrb[0].mxu0
      %v4048 = vadd.f32 0.0, %v4047
      %v4049 = vpop.f32.mrb[0].mxu0
      %4050 = vmatprep.mubr.f32.mxu0 0.0
      %4051 = vmatmul.mubr.f32.gmra.mrb[0].mxu0 %v3388
      %v4052 = vpop.f32.mrb[0].mxu0
      %v4053 = vadd.f32 0.0, %v4052
      %v4054 = vpop.f32.mrb[0].mxu0
      %4055 = vmatprep.mubr.f32.mxu0 0.0
      %4056 = vmatmul.mubr.f32.gmra.mrb[0].mxu0 %v3391
      %v4057 = vpop.f32.mrb[0].mxu0
      %v4058 = vadd.f32 0.0, %v4057
      %v4059 = vpop.f32.mrb[0].mxu0
      %4060 = vmatprep.mubr.f32.mxu0 0.0
      %4061 = vmatmul.mubr.f32.gmra.mrb[0].mxu0 %v3394
      %v4062 = vpop.f32.mrb[0].mxu0
      %v4063 = vadd.f32 0.0, %v4062
      %v4064 = vpop.f32.mrb[0].mxu0
      %4065 = vmatprep.mubr.f32.mxu0 0.0
      %4066 = vmatmul.mubr.f32.gmra.mrb[0].mxu0 %v3397
      %v4067 = vpop.f32.mrb[0].mxu0
      %v4068 = vadd.f32 0.0, %v4067
      %v4069 = vpop.f32.mrb[0].mxu0
      %4070 = vmatprep.mubr.f32.mxu0 0.0
      %4071 = vmatmul.mubr.f32.gmra.mrb[0].mxu0 %v3400
      %v4072 = vpop.f32.mrb[0].mxu0
      %v4073 = vadd.f32 0.0, %v4072
      %v4074 = vpop.f32.mrb[0].mxu0
      %4075 = vmatprep.mubr.f32.mxu0 0.0
      %4076 = vmatmul.mubr.f32.gmra.mrb[0].mxu0 %v3403
      %v4077 = vpop.f32.mrb[0].mxu0
      %v4078 = vadd.f32 0.0, %v4077
      %v4079 = vpop.f32.mrb[0].mxu0
      %4080 = vmatprep.mubr.f32.mxu0 0.0
      %4081 = vmatmul.mubr.f32.gmra.mrb[0].mxu0 %v3406
      %v4082 = vpop.f32.mrb[0].mxu0
      %v4083 = vadd.f32 0.0, %v4082
      %v4084 = vpop.f32.mrb[0].mxu0
      %4085 = vmatprep.mubr.f32.mxu0 0.0
      %4086 = vmatmul.mubr.f32.gmra.mrb[0].mxu0 %v3409
      %v4087 = vpop.f32.mrb[0].mxu0
      %v4088 = vadd.f32 0.0, %v4087
      %v4089 = vpop.f32.mrb[0].mxu0
      %4090 = vmatprep.mubr.f32.mxu0 0.0
      %4091 = vmatmul.mubr.f32.gmra.mrb[0].mxu0 %v3412
      %v4092 = vpop.f32.mrb[0].mxu0
      %v4093 = vadd.f32 0.0, %v4092
      %v4094 = vpop.f32.mrb[0].mxu0
      %4095 = vmatprep.mubr.f32.mxu0 0.0
      %4096 = vmatmul.mubr.f32.gmra.mrb[0].mxu0 %v3415
      %v4097 = vpop.f32.mrb[0].mxu0
      %v4098 = vadd.f32 0.0, %v4097
      %v4099 = vpop.f32.mrb[0].mxu0
      %4100 = vmatprep.mubr.f32.mxu0 0.0
      %4101 = vmatmul.mubr.f32.gmra.mrb[0].mxu0 %v3418
      %v4102 = vpop.f32.mrb[0].mxu0
      %v4103 = vadd.f32 0.0, %v4102
      %v4104 = vpop.f32.mrb[0].mxu0
      %4105 = vmatprep.mubr.f32.mxu0 0.0
      %4106 = vmatmul.mubr.f32.gmra.mrb[0].mxu0 %v3421
      %v4107 = vpop.f32.mrb[0].mxu0
      %v4108 = vadd.f32 0.0, %v4107
      %v4109 = vpop.f32.mrb[0].mxu0
      %4110 = vmatprep.mubr.f32.mxu0 0.0
      %4111 = vmatmul.mubr.f32.gmra.mrb[0].mxu0 %v3424
      %v4112 = vpop.f32.mrb[0].mxu0
      %v4113 = vadd.f32 0.0, %v4112
      %v4114 = vpop.f32.mrb[0].mxu0
      %4115 = vmatprep.mubr.f32.mxu0 0.0
      %4116 = vmatmul.mubr.f32.gmra.mrb[0].mxu0 %v3427
      %v4117 = vpop.f32.mrb[0].mxu0
      %v4118 = vadd.f32 0.0, %v4117
      %v4119 = vpop.f32.mrb[0].mxu0
      %4120 = vmatprep.mubr.f32.mxu0 0.0
      %4121 = vmatmul.mubr.f32.gmra.mrb[0].mxu0 %v3430
      %v4122 = vpop.f32.mrb[0].mxu0
      %v4123 = vadd.f32 0.0, %v4122
      %v4124 = vpop.f32.mrb[0].mxu0
      %4125 = vmatprep.mubr.f32.mxu0 0.0
      %4126 = vmatmul.mubr.f32.gmra.mrb[0].mxu0 %v3433
      %v4127 = vpop.f32.mrb[0].mxu0
      %v4128 = vadd.f32 0.0, %v4127
      %v4129 = vpop.f32.mrb[0].mxu0
      %4130 = vmatprep.mubr.f32.mxu0 0.0
      %4131 = vmatmul.mubr.f32.gmra.mrb[0].mxu0 %v3436
      %v4132 = vpop.f32.mrb[0].mxu0
      %v4133 = vadd.f32 0.0, %v4132
      %v4134 = vpop.f32.mrb[0].mxu0
      %4135 = vmatprep.mubr.f32.mxu0 0.0
      %4136 = vmatmul.mubr.f32.gmra.mrb[0].mxu0 %v3439
      %v4137 = vpop.f32.mrb[0].mxu0
      %v4138 = vadd.f32 0.0, %v4137
      %v4139 = vpop.f32.mrb[0].mxu0
      %4140 = vmatprep.mubr.f32.mxu0 0.0
      %4141 = vmatmul.mubr.f32.gmra.mrb[0].mxu0 %v3442
      %v4142 = vpop.f32.mrb[0].mxu0
      %v4143 = vadd.f32 0.0, %v4142
      %v4144 = vpop.f32.mrb[0].mxu0
      %4145 = vmatprep.mubr.f32.mxu0 0.0
      %4146 = vmatmul.mubr.f32.gmra.mrb[0].mxu0 %v3445
      %v4147 = vpop.f32.mrb[0].mxu0
      %v4148 = vadd.f32 0.0, %v4147
      %v4149 = vpop.f32.mrb[0].mxu0
      %4150 = vmatprep.mubr.f32.mxu0 0.0
      %4151 = vmatmul.mubr.f32.gmra.mrb[0].mxu0 %v3448
      %v4152 = vpop.f32.mrb[0].mxu0
      %v4153 = vadd.f32 0.0, %v4152
      %v4154 = vpop.f32.mrb[0].mxu0
      %4155 = vmatprep.mubr.f32.mxu0 0.0
      %4156 = vmatmul.mubr.f32.gmra.mrb[0].mxu0 %v3451
      %v4157 = vpop.f32.mrb[0].mxu0
      %v4158 = vadd.f32 0.0, %v4157
      %v4159 = vpop.f32.mrb[0].mxu0
      %4160 = vdwg.mxu0
      %v4161 = vadd.f32 %v2301, %v3523
      %v4162 = vadd.f32 %v2306, %v3528
      %v4163 = vadd.f32 %v2311, %v3533
      %v4164 = vadd.f32 %v2316, %v3538
      %v4165 = vadd.f32 %v2321, %v3543
      %v4166 = vadd.f32 %v2326, %v3548
      %v4167 = vadd.f32 %v2331, %v3553
      %v4168 = vadd.f32 %v2336, %v3558
      %v4169 = vadd.f32 %v2341, %v3563
      %v4170 = vadd.f32 %v2346, %v3568
      %v4171 = vadd.f32 %v2351, %v3573
      %v4172 = vadd.f32 %v2356, %v3578
      %v4173 = vadd.f32 %v2361, %v3583
      %v4174 = vadd.f32 %v2366, %v3588
      %v4175 = vadd.f32 %v2371, %v3593
      %v4176 = vadd.f32 %v2376, %v3598
      %v4177 = vadd.f32 %v2381, %v3603
      %v4178 = vadd.f32 %v2386, %v3608
      %v4179 = vadd.f32 %v2391, %v3613
      %v4180 = vadd.f32 %v2396, %v3618
      %v4181 = vadd.f32 %v2401, %v3623
      %v4182 = vadd.f32 %v2406, %v3628
      %v4183 = vadd.f32 %v2411, %v3633
      %v4184 = vadd.f32 %v2416, %v3638
      %v4185 = vadd.f32 %v2421, %v3643
      %v4186 = vadd.f32 %v2426, %v3648
      %v4187 = vadd.f32 %v2431, %v3653
      %v4188 = vadd.f32 %v2436, %v3658
      %v4189 = vadd.f32 %v2441, %v3663
      %v4190 = vadd.f32 %v2446, %v3668
      %v4191 = vadd.f32 %v2451, %v3673
      %v4192 = vadd.f32 %v2456, %v3678
      %v4193 = vadd.f32 %v2461, %v3683
      %v4194 = vadd.f32 %v2466, %v3688
      %v4195 = vadd.f32 %v2471, %v3693
      %v4196 = vadd.f32 %v2476, %v3698
      %v4197 = vadd.f32 %v2481, %v3703
      %v4198 = vadd.f32 %v2486, %v3708
      %v4199 = vadd.f32 %v2491, %v3713
      %v4200 = vadd.f32 %v2496, %v3718
      %v4201 = vadd.f32 %v2501, %v3723
      %v4202 = vadd.f32 %v2506, %v3728
      %v4203 = vadd.f32 %v2511, %v3733
      %v4204 = vadd.f32 %v2516, %v3738
      %v4205 = vadd.f32 %v2521, %v3743
      %v4206 = vadd.f32 %v2526, %v3748
      %v4207 = vadd.f32 %v2531, %v3753
      %v4208 = vadd.f32 %v2536, %v3758
      %v4209 = vadd.f32 %v2541, %v3763
      %v4210 = vadd.f32 %v2546, %v3768
      %v4211 = vadd.f32 %v2551, %v3773
      %v4212 = vadd.f32 %v2556, %v3778
      %v4213 = vadd.f32 %v2561, %v3783
      %v4214 = vadd.f32 %v2566, %v3788
      %v4215 = vadd.f32 %v2571, %v3793
      %v4216 = vadd.f32 %v2576, %v3798
      %v4217 = vadd.f32 %v2581, %v3803
      %v4218 = vadd.f32 %v2586, %v3808
      %v4219 = vadd.f32 %v2591, %v3813
      %v4220 = vadd.f32 %v2596, %v3818
      %v4221 = vadd.f32 %v2601, %v3823
      %v4222 = vadd.f32 %v2606, %v3828
      %v4223 = vadd.f32 %v2611, %v3833
      %v4224 = vadd.f32 %v2616, %v3838
      %v4225 = vadd.f32 %v2621, %v3843
      %v4226 = vadd.f32 %v2626, %v3848
      %v4227 = vadd.f32 %v2631, %v3853
      %v4228 = vadd.f32 %v2636, %v3858
      %v4229 = vadd.f32 %v2641, %v3863
      %v4230 = vadd.f32 %v2646, %v3868
      %v4231 = vadd.f32 %v2651, %v3873
      %v4232 = vadd.f32 %v2656, %v3878
      %v4233 = vadd.f32 %v2661, %v3883
      %v4234 = vadd.f32 %v2666, %v3888
      %v4235 = vadd.f32 %v2671, %v3893
      %v4236 = vadd.f32 %v2676, %v3898
      %v4237 = vadd.f32 %v2681, %v3903
      %v4238 = vadd.f32 %v2686, %v3908
      %v4239 = vadd.f32 %v2691, %v3913
      %v4240 = vadd.f32 %v2696, %v3918
      %v4241 = vadd.f32 %v2701, %v3923
      %v4242 = vadd.f32 %v2706, %v3928
      %v4243 = vadd.f32 %v2711, %v3933
      %v4244 = vadd.f32 %v2716, %v3938
      %v4245 = vadd.f32 %v2721, %v3943
      %v4246 = vadd.f32 %v2726, %v3948
      %v4247 = vadd.f32 %v2731, %v3953
      %v4248 = vadd.f32 %v2736, %v3958
      %v4249 = vadd.f32 %v2741, %v3963
      %v4250 = vadd.f32 %v2746, %v3968
      %v4251 = vadd.f32 %v2751, %v3973
      %v4252 = vadd.f32 %v2756, %v3978
      %v4253 = vadd.f32 %v2761, %v3983
      %v4254 = vadd.f32 %v2766, %v3988
      %v4255 = vadd.f32 %v2771, %v3993
      %v4256 = vadd.f32 %v2776, %v3998
      %v4257 = vadd.f32 %v2781, %v4003
      %v4258 = vadd.f32 %v2786, %v4008
      %v4259 = vadd.f32 %v2791, %v4013
      %v4260 = vadd.f32 %v2796, %v4018
      %v4261 = vadd.f32 %v2801, %v4023
      %v4262 = vadd.f32 %v2806, %v4028
      %v4263 = vadd.f32 %v2811, %v4033
      %v4264 = vadd.f32 %v2816, %v4038
      %v4265 = vadd.f32 %v2821, %v4043
      %v4266 = vadd.f32 %v2826, %v4048
      %v4267 = vadd.f32 %v2831, %v4053
      %v4268 = vadd.f32 %v2836, %v4058
      %v4269 = vadd.f32 %v2841, %v4063
      %v4270 = vadd.f32 %v2846, %v4068
      %v4271 = vadd.f32 %v2851, %v4073
      %v4272 = vadd.f32 %v2856, %v4078
      %v4273 = vadd.f32 %v2861, %v4083
      %v4274 = vadd.f32 %v2866, %v4088
      %v4275 = vadd.f32 %v2871, %v4093
      %v4276 = vadd.f32 %v2876, %v4098
      %v4277 = vadd.f32 %v2881, %v4103
      %v4278 = vadd.f32 %v2886, %v4108
      %v4279 = vadd.f32 %v2891, %v4113
      %v4280 = vadd.f32 %v2896, %v4118
      %v4281 = vadd.f32 %v2901, %v4123
      %v4282 = vadd.f32 %v2906, %v4128
      %v4283 = vadd.f32 %v2911, %v4133
      %v4284 = vadd.f32 %v2916, %v4138
      %v4285 = vadd.f32 %v2921, %v4143
      %v4286 = vadd.f32 %v2926, %v4148
      %v4287 = vadd.f32 %v2931, %v4153
      %v4288 = vadd.f32 %v2936, %v4158
      %vm4289 = vcmask 64512
      %4290 = vst.msk [vmem:[%s484] sm:$0xff] %vm4289, %v4161
      %4291 = vst.msk [vmem:[%s484 + $0x8] sm:$0xff] %vm4289, %v4162
      %4292 = vst.msk [vmem:[%s484 + $0x10] sm:$0xff] %vm4289, %v4163
      %4293 = vst.msk [vmem:[%s484 + $0x18] sm:$0xff] %vm4289, %v4164
      %4294 = vst.msk [vmem:[%s484 + $0x20] sm:$0xff] %vm4289, %v4165
      %4295 = vst.msk [vmem:[%s484 + $0x28] sm:$0xff] %vm4289, %v4166
      %4296 = vst.msk [vmem:[%s484 + $0x30] sm:$0xff] %vm4289, %v4167
      %4297 = vst.msk [vmem:[%s484 + $0x38] sm:$0xff] %vm4289, %v4168
      %4298 = vst.msk [vmem:[%s484 + $0x40] sm:$0xff] %vm4289, %v4169
      %4299 = vst.msk [vmem:[%s484 + $0x48] sm:$0xff] %vm4289, %v4170
      %4300 = vst.msk [vmem:[%s484 + $0x50] sm:$0xff] %vm4289, %v4171
      %4301 = vst.msk [vmem:[%s484 + $0x58] sm:$0xff] %vm4289, %v4172
      %4302 = vst.msk [vmem:[%s484 + $0x60] sm:$0xff] %vm4289, %v4173
      %4303 = vst.msk [vmem:[%s484 + $0x68] sm:$0xff] %vm4289, %v4174
      %4304 = vst.msk [vmem:[%s484 + $0x70] sm:$0xff] %vm4289, %v4175
      %4305 = vst.msk [vmem:[%s484 + $0x78] sm:$0xff] %vm4289, %v4176
      %4306 = vst.msk [vmem:[%s484 + $0x80] sm:$0xff] %vm4289, %v4177
      %4307 = vst.msk [vmem:[%s484 + $0x88] sm:$0xff] %vm4289, %v4178
      %4308 = vst.msk [vmem:[%s484 + $0x90] sm:$0xff] %vm4289, %v4179
      %4309 = vst.msk [vmem:[%s484 + $0x98] sm:$0xff] %vm4289, %v4180
      %4310 = vst.msk [vmem:[%s484 + $0xa0] sm:$0xff] %vm4289, %v4181
      %4311 = vst.msk [vmem:[%s484 + $0xa8] sm:$0xff] %vm4289, %v4182
      %4312 = vst.msk [vmem:[%s484 + $0xb0] sm:$0xff] %vm4289, %v4183
      %4313 = vst.msk [vmem:[%s484 + $0xb8] sm:$0xff] %vm4289, %v4184
      %4314 = vst.msk [vmem:[%s484 + $0xc0] sm:$0xff] %vm4289, %v4185
      %4315 = vst.msk [vmem:[%s484 + $0xc8] sm:$0xff] %vm4289, %v4186
      %4316 = vst.msk [vmem:[%s484 + $0xd0] sm:$0xff] %vm4289, %v4187
      %4317 = vst.msk [vmem:[%s484 + $0xd8] sm:$0xff] %vm4289, %v4188
      %4318 = vst.msk [vmem:[%s484 + $0xe0] sm:$0xff] %vm4289, %v4189
      %4319 = vst.msk [vmem:[%s484 + $0xe8] sm:$0xff] %vm4289, %v4190
      %4320 = vst.msk [vmem:[%s484 + $0xf0] sm:$0xff] %vm4289, %v4191
      %4321 = vst.msk [vmem:[%s484 + $0xf8] sm:$0xff] %vm4289, %v4192
      %4322 = vst.msk [vmem:[%s484 + $0x100] sm:$0xff] %vm4289, %v4193
      %4323 = vst.msk [vmem:[%s484 + $0x108] sm:$0xff] %vm4289, %v4194
      %4324 = vst.msk [vmem:[%s484 + $0x110] sm:$0xff] %vm4289, %v4195
      %4325 = vst.msk [vmem:[%s484 + $0x118] sm:$0xff] %vm4289, %v4196
      %4326 = vst.msk [vmem:[%s484 + $0x120] sm:$0xff] %vm4289, %v4197
      %4327 = vst.msk [vmem:[%s484 + $0x128] sm:$0xff] %vm4289, %v4198
      %4328 = vst.msk [vmem:[%s484 + $0x130] sm:$0xff] %vm4289, %v4199
      %4329 = vst.msk [vmem:[%s484 + $0x138] sm:$0xff] %vm4289, %v4200
      %4330 = vst.msk [vmem:[%s484 + $0x140] sm:$0xff] %vm4289, %v4201
      %4331 = vst.msk [vmem:[%s484 + $0x148] sm:$0xff] %vm4289, %v4202
      %4332 = vst.msk [vmem:[%s484 + $0x150] sm:$0xff] %vm4289, %v4203
      %4333 = vst.msk [vmem:[%s484 + $0x158] sm:$0xff] %vm4289, %v4204
      %4334 = vst.msk [vmem:[%s484 + $0x160] sm:$0xff] %vm4289, %v4205
      %4335 = vst.msk [vmem:[%s484 + $0x168] sm:$0xff] %vm4289, %v4206
      %4336 = vst.msk [vmem:[%s484 + $0x170] sm:$0xff] %vm4289, %v4207
      %4337 = vst.msk [vmem:[%s484 + $0x178] sm:$0xff] %vm4289, %v4208
      %4338 = vst.msk [vmem:[%s484 + $0x180] sm:$0xff] %vm4289, %v4209
      %4339 = vst.msk [vmem:[%s484 + $0x188] sm:$0xff] %vm4289, %v4210
      %4340 = vst.msk [vmem:[%s484 + $0x190] sm:$0xff] %vm4289, %v4211
      %4341 = vst.msk [vmem:[%s484 + $0x198] sm:$0xff] %vm4289, %v4212
      %4342 = vst.msk [vmem:[%s484 + $0x1a0] sm:$0xff] %vm4289, %v4213
      %4343 = vst.msk [vmem:[%s484 + $0x1a8] sm:$0xff] %vm4289, %v4214
      %4344 = vst.msk [vmem:[%s484 + $0x1b0] sm:$0xff] %vm4289, %v4215
      %4345 = vst.msk [vmem:[%s484 + $0x1b8] sm:$0xff] %vm4289, %v4216
      %4346 = vst.msk [vmem:[%s484 + $0x1c0] sm:$0xff] %vm4289, %v4217
      %4347 = vst.msk [vmem:[%s484 + $0x1c8] sm:$0xff] %vm4289, %v4218
      %4348 = vst.msk [vmem:[%s484 + $0x1d0] sm:$0xff] %vm4289, %v4219
      %4349 = vst.msk [vmem:[%s484 + $0x1d8] sm:$0xff] %vm4289, %v4220
      %4350 = vst.msk [vmem:[%s484 + $0x1e0] sm:$0xff] %vm4289, %v4221
      %4351 = vst.msk [vmem:[%s484 + $0x1e8] sm:$0xff] %vm4289, %v4222
      %4352 = vst.msk [vmem:[%s484 + $0x1f0] sm:$0xff] %vm4289, %v4223
      %4353 = vst.msk [vmem:[%s484 + $0x1f8] sm:$0xff] %vm4289, %v4224
      %4354 = vst.msk [vmem:[%s484 + $0x200] sm:$0xff] %vm4289, %v4225
      %4355 = vst.msk [vmem:[%s484 + $0x208] sm:$0xff] %vm4289, %v4226
      %4356 = vst.msk [vmem:[%s484 + $0x210] sm:$0xff] %vm4289, %v4227
      %4357 = vst.msk [vmem:[%s484 + $0x218] sm:$0xff] %vm4289, %v4228
      %4358 = vst.msk [vmem:[%s484 + $0x220] sm:$0xff] %vm4289, %v4229
      %4359 = vst.msk [vmem:[%s484 + $0x228] sm:$0xff] %vm4289, %v4230
      %4360 = vst.msk [vmem:[%s484 + $0x230] sm:$0xff] %vm4289, %v4231
      %4361 = vst.msk [vmem:[%s484 + $0x238] sm:$0xff] %vm4289, %v4232
      %4362 = vst.msk [vmem:[%s484 + $0x240] sm:$0xff] %vm4289, %v4233
      %4363 = vst.msk [vmem:[%s484 + $0x248] sm:$0xff] %vm4289, %v4234
      %4364 = vst.msk [vmem:[%s484 + $0x250] sm:$0xff] %vm4289, %v4235
      %4365 = vst.msk [vmem:[%s484 + $0x258] sm:$0xff] %vm4289, %v4236
      %4366 = vst.msk [vmem:[%s484 + $0x260] sm:$0xff] %vm4289, %v4237
      %4367 = vst.msk [vmem:[%s484 + $0x268] sm:$0xff] %vm4289, %v4238
      %4368 = vst.msk [vmem:[%s484 + $0x270] sm:$0xff] %vm4289, %v4239
      %4369 = vst.msk [vmem:[%s484 + $0x278] sm:$0xff] %vm4289, %v4240
      %4370 = vst.msk [vmem:[%s484 + $0x280] sm:$0xff] %vm4289, %v4241
      %4371 = vst.msk [vmem:[%s484 + $0x288] sm:$0xff] %vm4289, %v4242
      %4372 = vst.msk [vmem:[%s484 + $0x290] sm:$0xff] %vm4289, %v4243
      %4373 = vst.msk [vmem:[%s484 + $0x298] sm:$0xff] %vm4289, %v4244
      %4374 = vst.msk [vmem:[%s484 + $0x2a0] sm:$0xff] %vm4289, %v4245
      %4375 = vst.msk [vmem:[%s484 + $0x2a8] sm:$0xff] %vm4289, %v4246
      %4376 = vst.msk [vmem:[%s484 + $0x2b0] sm:$0xff] %vm4289, %v4247
      %4377 = vst.msk [vmem:[%s484 + $0x2b8] sm:$0xff] %vm4289, %v4248
      %4378 = vst.msk [vmem:[%s484 + $0x2c0] sm:$0xff] %vm4289, %v4249
      %4379 = vst.msk [vmem:[%s484 + $0x2c8] sm:$0xff] %vm4289, %v4250
      %4380 = vst.msk [vmem:[%s484 + $0x2d0] sm:$0xff] %vm4289, %v4251
      %4381 = vst.msk [vmem:[%s484 + $0x2d8] sm:$0xff] %vm4289, %v4252
      %4382 = vst.msk [vmem:[%s484 + $0x2e0] sm:$0xff] %vm4289, %v4253
      %4383 = vst.msk [vmem:[%s484 + $0x2e8] sm:$0xff] %vm4289, %v4254
      %4384 = vst.msk [vmem:[%s484 + $0x2f0] sm:$0xff] %vm4289, %v4255
      %4385 = vst.msk [vmem:[%s484 + $0x2f8] sm:$0xff] %vm4289, %v4256
      %4386 = vst.msk [vmem:[%s484 + $0x300] sm:$0xff] %vm4289, %v4257
      %4387 = vst.msk [vmem:[%s484 + $0x308] sm:$0xff] %vm4289, %v4258
      %4388 = vst.msk [vmem:[%s484 + $0x310] sm:$0xff] %vm4289, %v4259
      %4389 = vst.msk [vmem:[%s484 + $0x318] sm:$0xff] %vm4289, %v4260
      %4390 = vst.msk [vmem:[%s484 + $0x320] sm:$0xff] %vm4289, %v4261
      %4391 = vst.msk [vmem:[%s484 + $0x328] sm:$0xff] %vm4289, %v4262
      %4392 = vst.msk [vmem:[%s484 + $0x330] sm:$0xff] %vm4289, %v4263
      %4393 = vst.msk [vmem:[%s484 + $0x338] sm:$0xff] %vm4289, %v4264
      %4394 = vst.msk [vmem:[%s484 + $0x340] sm:$0xff] %vm4289, %v4265
      %4395 = vst.msk [vmem:[%s484 + $0x348] sm:$0xff] %vm4289, %v4266
      %4396 = vst.msk [vmem:[%s484 + $0x350] sm:$0xff] %vm4289, %v4267
      %4397 = vst.msk [vmem:[%s484 + $0x358] sm:$0xff] %vm4289, %v4268
      %4398 = vst.msk [vmem:[%s484 + $0x360] sm:$0xff] %vm4289, %v4269
      %4399 = vst.msk [vmem:[%s484 + $0x368] sm:$0xff] %vm4289, %v4270
      %4400 = vst.msk [vmem:[%s484 + $0x370] sm:$0xff] %vm4289, %v4271
      %4401 = vst.msk [vmem:[%s484 + $0x378] sm:$0xff] %vm4289, %v4272
      %4402 = vst.msk [vmem:[%s484 + $0x380] sm:$0xff] %vm4289, %v4273
      %4403 = vst.msk [vmem:[%s484 + $0x388] sm:$0xff] %vm4289, %v4274
      %4404 = vst.msk [vmem:[%s484 + $0x390] sm:$0xff] %vm4289, %v4275
      %4405 = vst.msk [vmem:[%s484 + $0x398] sm:$0xff] %vm4289, %v4276
      %4406 = vst.msk [vmem:[%s484 + $0x3a0] sm:$0xff] %vm4289, %v4277
      %4407 = vst.msk [vmem:[%s484 + $0x3a8] sm:$0xff] %vm4289, %v4278
      %4408 = vst.msk [vmem:[%s484 + $0x3b0] sm:$0xff] %vm4289, %v4279
      %4409 = vst.msk [vmem:[%s484 + $0x3b8] sm:$0xff] %vm4289, %v4280
      %4410 = vst.msk [vmem:[%s484 + $0x3c0] sm:$0xff] %vm4289, %v4281
      %4411 = vst.msk [vmem:[%s484 + $0x3c8] sm:$0xff] %vm4289, %v4282
      %4412 = vst.msk [vmem:[%s484 + $0x3d0] sm:$0xff] %vm4289, %v4283
      %4413 = vst.msk [vmem:[%s484 + $0x3d8] sm:$0xff] %vm4289, %v4284
      %4414 = vst.msk [vmem:[%s484 + $0x3e0] sm:$0xff] %vm4289, %v4285
      %4415 = vst.msk [vmem:[%s484 + $0x3e8] sm:$0xff] %vm4289, %v4286
      %4416 = vst.msk [vmem:[%s484 + $0x3f0] sm:$0xff] %vm4289, %v4287
      %4417 = vst.msk [vmem:[%s484 + $0x3f8] sm:$0xff] %vm4289, %v4288
      %v4418 = vld [vmem:[%s472] sm:$0xff]
      %v4419 = vld [vmem:[%s472 + $0x8] sm:$0xff]
      %v4420 = vld [vmem:[%s472 + $0x10] sm:$0xff]
      %v4421 = vld [vmem:[%s472 + $0x18] sm:$0xff]
      %v4422 = vld [vmem:[%s472 + $0x20] sm:$0xff]
      %v4423 = vld [vmem:[%s472 + $0x28] sm:$0xff]
      %v4424 = vld [vmem:[%s472 + $0x30] sm:$0xff]
      %v4425 = vld [vmem:[%s472 + $0x38] sm:$0xff]
      %v4426 = vld [vmem:[%s472 + $0x40] sm:$0xff]
      %v4427 = vld [vmem:[%s472 + $0x48] sm:$0xff]
      %v4428 = vld [vmem:[%s472 + $0x50] sm:$0xff]
      %v4429 = vld [vmem:[%s472 + $0x58] sm:$0xff]
      %v4430 = vld [vmem:[%s472 + $0x60] sm:$0xff]
      %v4431 = vld [vmem:[%s472 + $0x68] sm:$0xff]
      %v4432 = vld [vmem:[%s472 + $0x70] sm:$0xff]
      %v4433 = vld [vmem:[%s472 + $0x78] sm:$0xff]
      %v4434 = vld [vmem:[%s472 + $0x80] sm:$0xff]
      %v4435 = vld [vmem:[%s472 + $0x88] sm:$0xff]
      %v4436 = vld [vmem:[%s472 + $0x90] sm:$0xff]
      %v4437 = vld [vmem:[%s472 + $0x98] sm:$0xff]
      %v4438 = vld [vmem:[%s472 + $0xa0] sm:$0xff]
      %v4439 = vld [vmem:[%s472 + $0xa8] sm:$0xff]
      %v4440 = vld [vmem:[%s472 + $0xb0] sm:$0xff]
      %v4441 = vld [vmem:[%s472 + $0xb8] sm:$0xff]
      %v4442 = vld [vmem:[%s472 + $0xc0] sm:$0xff]
      %v4443 = vld [vmem:[%s472 + $0xc8] sm:$0xff]
      %v4444 = vld [vmem:[%s472 + $0xd0] sm:$0xff]
      %v4445 = vld [vmem:[%s472 + $0xd8] sm:$0xff]
      %v4446 = vld [vmem:[%s472 + $0xe0] sm:$0xff]
      %v4447 = vld [vmem:[%s472 + $0xe8] sm:$0xff]
      %v4448 = vld [vmem:[%s472 + $0xf0] sm:$0xff]
      %v4449 = vld [vmem:[%s472 + $0xf8] sm:$0xff]
      %v4450 = vld [vmem:[%s472 + $0x100] sm:$0xff]
      %v4451 = vld [vmem:[%s472 + $0x108] sm:$0xff]
      %v4452 = vld [vmem:[%s472 + $0x110] sm:$0xff]
      %v4453 = vld [vmem:[%s472 + $0x118] sm:$0xff]
      %v4454 = vld [vmem:[%s472 + $0x120] sm:$0xff]
      %v4455 = vld [vmem:[%s472 + $0x128] sm:$0xff]
      %v4456 = vld [vmem:[%s472 + $0x130] sm:$0xff]
      %v4457 = vld [vmem:[%s472 + $0x138] sm:$0xff]
      %v4458 = vld [vmem:[%s472 + $0x140] sm:$0xff]
      %v4459 = vld [vmem:[%s472 + $0x148] sm:$0xff]
      %v4460 = vld [vmem:[%s472 + $0x150] sm:$0xff]
      %v4461 = vld [vmem:[%s472 + $0x158] sm:$0xff]
      %v4462 = vld [vmem:[%s472 + $0x160] sm:$0xff]
      %v4463 = vld [vmem:[%s472 + $0x168] sm:$0xff]
      %v4464 = vld [vmem:[%s472 + $0x170] sm:$0xff]
      %v4465 = vld [vmem:[%s472 + $0x178] sm:$0xff]
      %v4466 = vld [vmem:[%s472 + $0x180] sm:$0xff]
      %v4467 = vld [vmem:[%s472 + $0x188] sm:$0xff]
      %v4468 = vld [vmem:[%s472 + $0x190] sm:$0xff]
      %v4469 = vld [vmem:[%s472 + $0x198] sm:$0xff]
      %v4470 = vld [vmem:[%s472 + $0x1a0] sm:$0xff]
      %v4471 = vld [vmem:[%s472 + $0x1a8] sm:$0xff]
      %v4472 = vld [vmem:[%s472 + $0x1b0] sm:$0xff]
      %v4473 = vld [vmem:[%s472 + $0x1b8] sm:$0xff]
      %v4474 = vld [vmem:[%s472 + $0x1c0] sm:$0xff]
      %v4475 = vld [vmem:[%s472 + $0x1c8] sm:$0xff]
      %v4476 = vld [vmem:[%s472 + $0x1d0] sm:$0xff]
      %v4477 = vld [vmem:[%s472 + $0x1d8] sm:$0xff]
      %v4478 = vld [vmem:[%s472 + $0x1e0] sm:$0xff]
      %v4479 = vld [vmem:[%s472 + $0x1e8] sm:$0xff]
      %v4480 = vld [vmem:[%s472 + $0x1f0] sm:$0xff]
      %v4481 = vld [vmem:[%s472 + $0x1f8] sm:$0xff]
      %v4482 = vld [vmem:[%s472 + $0x200] sm:$0xff]
      %v4483 = vld [vmem:[%s472 + $0x208] sm:$0xff]
      %v4484 = vld [vmem:[%s472 + $0x210] sm:$0xff]
      %v4485 = vld [vmem:[%s472 + $0x218] sm:$0xff]
      %v4486 = vld [vmem:[%s472 + $0x220] sm:$0xff]
      %v4487 = vld [vmem:[%s472 + $0x228] sm:$0xff]
      %v4488 = vld [vmem:[%s472 + $0x230] sm:$0xff]
      %v4489 = vld [vmem:[%s472 + $0x238] sm:$0xff]
      %v4490 = vld [vmem:[%s472 + $0x240] sm:$0xff]
      %v4491 = vld [vmem:[%s472 + $0x248] sm:$0xff]
      %v4492 = vld [vmem:[%s472 + $0x250] sm:$0xff]
      %v4493 = vld [vmem:[%s472 + $0x258] sm:$0xff]
      %v4494 = vld [vmem:[%s472 + $0x260] sm:$0xff]
      %v4495 = vld [vmem:[%s472 + $0x268] sm:$0xff]
      %v4496 = vld [vmem:[%s472 + $0x270] sm:$0xff]
      %v4497 = vld [vmem:[%s472 + $0x278] sm:$0xff]
      %v4498 = vld [vmem:[%s472 + $0x280] sm:$0xff]
      %v4499 = vld [vmem:[%s472 + $0x288] sm:$0xff]
      %v4500 = vld [vmem:[%s472 + $0x290] sm:$0xff]
      %v4501 = vld [vmem:[%s472 + $0x298] sm:$0xff]
      %v4502 = vld [vmem:[%s472 + $0x2a0] sm:$0xff]
      %v4503 = vld [vmem:[%s472 + $0x2a8] sm:$0xff]
      %v4504 = vld [vmem:[%s472 + $0x2b0] sm:$0xff]
      %v4505 = vld [vmem:[%s472 + $0x2b8] sm:$0xff]
      %v4506 = vld [vmem:[%s472 + $0x2c0] sm:$0xff]
      %v4507 = vld [vmem:[%s472 + $0x2c8] sm:$0xff]
      %v4508 = vld [vmem:[%s472 + $0x2d0] sm:$0xff]
      %v4509 = vld [vmem:[%s472 + $0x2d8] sm:$0xff]
      %v4510 = vld [vmem:[%s472 + $0x2e0] sm:$0xff]
      %v4511 = vld [vmem:[%s472 + $0x2e8] sm:$0xff]
      %v4512 = vld [vmem:[%s472 + $0x2f0] sm:$0xff]
      %v4513 = vld [vmem:[%s472 + $0x2f8] sm:$0xff]
      %v4514 = vld [vmem:[%s472 + $0x300] sm:$0xff]
      %v4515 = vld [vmem:[%s472 + $0x308] sm:$0xff]
      %v4516 = vld [vmem:[%s472 + $0x310] sm:$0xff]
      %v4517 = vld [vmem:[%s472 + $0x318] sm:$0xff]
      %v4518 = vld [vmem:[%s472 + $0x320] sm:$0xff]
      %v4519 = vld [vmem:[%s472 + $0x328] sm:$0xff]
      %v4520 = vld [vmem:[%s472 + $0x330] sm:$0xff]
      %v4521 = vld [vmem:[%s472 + $0x338] sm:$0xff]
      %v4522 = vld [vmem:[%s472 + $0x340] sm:$0xff]
      %v4523 = vld [vmem:[%s472 + $0x348] sm:$0xff]
      %v4524 = vld [vmem:[%s472 + $0x350] sm:$0xff]
      %v4525 = vld [vmem:[%s472 + $0x358] sm:$0xff]
      %v4526 = vld [vmem:[%s472 + $0x360] sm:$0xff]
      %v4527 = vld [vmem:[%s472 + $0x368] sm:$0xff]
      %v4528 = vld [vmem:[%s472 + $0x370] sm:$0xff]
      %v4529 = vld [vmem:[%s472 + $0x378] sm:$0xff]
      %v4530 = vld [vmem:[%s472 + $0x380] sm:$0xff]
      %v4531 = vld [vmem:[%s472 + $0x388] sm:$0xff]
      %v4532 = vld [vmem:[%s472 + $0x390] sm:$0xff]
      %v4533 = vld [vmem:[%s472 + $0x398] sm:$0xff]
      %v4534 = vld [vmem:[%s472 + $0x3a0] sm:$0xff]
      %v4535 = vld [vmem:[%s472 + $0x3a8] sm:$0xff]
      %v4536 = vld [vmem:[%s472 + $0x3b0] sm:$0xff]
      %v4537 = vld [vmem:[%s472 + $0x3b8] sm:$0xff]
      %v4538 = vld [vmem:[%s472 + $0x3c0] sm:$0xff]
      %v4539 = vld [vmem:[%s472 + $0x3c8] sm:$0xff]
      %v4540 = vld [vmem:[%s472 + $0x3d0] sm:$0xff]
      %v4541 = vld [vmem:[%s472 + $0x3d8] sm:$0xff]
      %v4542 = vld [vmem:[%s472 + $0x3e0] sm:$0xff]
      %v4543 = vld [vmem:[%s472 + $0x3e8] sm:$0xff]
      %v4544 = vld [vmem:[%s472 + $0x3f0] sm:$0xff]
      %v4545 = vld [vmem:[%s472 + $0x3f8] sm:$0xff]
      %v4546 = vld [vmem:[%s8] sm:$0xf]
      %v4547 = vld [vmem:[%s478] sm:$0xff]
      %v4548 = vld [vmem:[%s478 + $0x8] sm:$0xff]
      %v4549 = vld [vmem:[%s478 + $0x10] sm:$0xff]
      %v4550 = vld [vmem:[%s478 + $0x18] sm:$0xff]
      %v4551 = vld [vmem:[%s478 + $0x20] sm:$0xff]
      %v4552 = vld [vmem:[%s478 + $0x28] sm:$0xff]
      %v4553 = vld [vmem:[%s478 + $0x30] sm:$0xff]
      %v4554 = vld [vmem:[%s478 + $0x38] sm:$0xff]
      %v4555 = vld [vmem:[%s478 + $0x40] sm:$0xff]
      %v4556 = vld [vmem:[%s478 + $0x48] sm:$0xff]
      %v4557 = vld [vmem:[%s478 + $0x50] sm:$0xff]
      %v4558 = vld [vmem:[%s478 + $0x58] sm:$0xff]
      %v4559 = vld [vmem:[%s478 + $0x60] sm:$0xff]
      %v4560 = vld [vmem:[%s478 + $0x68] sm:$0xff]
      %v4561 = vld [vmem:[%s478 + $0x70] sm:$0xff]
      %v4562 = vld [vmem:[%s478 + $0x78] sm:$0xff]
      %v4563 = vld [vmem:[%s478 + $0x80] sm:$0xff]
      %v4564 = vld [vmem:[%s478 + $0x88] sm:$0xff]
      %v4565 = vld [vmem:[%s478 + $0x90] sm:$0xff]
      %v4566 = vld [vmem:[%s478 + $0x98] sm:$0xff]
      %v4567 = vld [vmem:[%s478 + $0xa0] sm:$0xff]
      %v4568 = vld [vmem:[%s478 + $0xa8] sm:$0xff]
      %v4569 = vld [vmem:[%s478 + $0xb0] sm:$0xff]
      %v4570 = vld [vmem:[%s478 + $0xb8] sm:$0xff]
      %v4571 = vld [vmem:[%s478 + $0xc0] sm:$0xff]
      %v4572 = vld [vmem:[%s478 + $0xc8] sm:$0xff]
      %v4573 = vld [vmem:[%s478 + $0xd0] sm:$0xff]
      %v4574 = vld [vmem:[%s478 + $0xd8] sm:$0xff]
      %v4575 = vld [vmem:[%s478 + $0xe0] sm:$0xff]
      %v4576 = vld [vmem:[%s478 + $0xe8] sm:$0xff]
      %v4577 = vld [vmem:[%s478 + $0xf0] sm:$0xff]
      %v4578 = vld [vmem:[%s478 + $0xf8] sm:$0xff]
      %v4579 = vld [vmem:[%s478 + $0x100] sm:$0xff]
      %v4580 = vld [vmem:[%s478 + $0x108] sm:$0xff]
      %v4581 = vld [vmem:[%s478 + $0x110] sm:$0xff]
      %v4582 = vld [vmem:[%s478 + $0x118] sm:$0xff]
      %v4583 = vld [vmem:[%s478 + $0x120] sm:$0xff]
      %v4584 = vld [vmem:[%s478 + $0x128] sm:$0xff]
      %v4585 = vld [vmem:[%s478 + $0x130] sm:$0xff]
      %v4586 = vld [vmem:[%s478 + $0x138] sm:$0xff]
      %v4587 = vld [vmem:[%s478 + $0x140] sm:$0xff]
      %v4588 = vld [vmem:[%s478 + $0x148] sm:$0xff]
      %v4589 = vld [vmem:[%s478 + $0x150] sm:$0xff]
      %v4590 = vld [vmem:[%s478 + $0x158] sm:$0xff]
      %v4591 = vld [vmem:[%s478 + $0x160] sm:$0xff]
      %v4592 = vld [vmem:[%s478 + $0x168] sm:$0xff]
      %v4593 = vld [vmem:[%s478 + $0x170] sm:$0xff]
      %v4594 = vld [vmem:[%s478 + $0x178] sm:$0xff]
      %v4595 = vld [vmem:[%s478 + $0x180] sm:$0xff]
      %v4596 = vld [vmem:[%s478 + $0x188] sm:$0xff]
      %v4597 = vld [vmem:[%s478 + $0x190] sm:$0xff]
      %v4598 = vld [vmem:[%s478 + $0x198] sm:$0xff]
      %v4599 = vld [vmem:[%s478 + $0x1a0] sm:$0xff]
      %v4600 = vld [vmem:[%s478 + $0x1a8] sm:$0xff]
      %v4601 = vld [vmem:[%s478 + $0x1b0] sm:$0xff]
      %v4602 = vld [vmem:[%s478 + $0x1b8] sm:$0xff]
      %v4603 = vld [vmem:[%s478 + $0x1c0] sm:$0xff]
      %v4604 = vld [vmem:[%s478 + $0x1c8] sm:$0xff]
      %v4605 = vld [vmem:[%s478 + $0x1d0] sm:$0xff]
      %v4606 = vld [vmem:[%s478 + $0x1d8] sm:$0xff]
      %v4607 = vld [vmem:[%s478 + $0x1e0] sm:$0xff]
      %v4608 = vld [vmem:[%s478 + $0x1e8] sm:$0xff]
      %v4609 = vld [vmem:[%s478 + $0x1f0] sm:$0xff]
      %v4610 = vld [vmem:[%s478 + $0x1f8] sm:$0xff]
      %v4611 = vld [vmem:[%s478 + $0x200] sm:$0xff]
      %v4612 = vld [vmem:[%s478 + $0x208] sm:$0xff]
      %v4613 = vld [vmem:[%s478 + $0x210] sm:$0xff]
      %v4614 = vld [vmem:[%s478 + $0x218] sm:$0xff]
      %v4615 = vld [vmem:[%s478 + $0x220] sm:$0xff]
      %v4616 = vld [vmem:[%s478 + $0x228] sm:$0xff]
      %v4617 = vld [vmem:[%s478 + $0x230] sm:$0xff]
      %v4618 = vld [vmem:[%s478 + $0x238] sm:$0xff]
      %v4619 = vld [vmem:[%s478 + $0x240] sm:$0xff]
      %v4620 = vld [vmem:[%s478 + $0x248] sm:$0xff]
      %v4621 = vld [vmem:[%s478 + $0x250] sm:$0xff]
      %v4622 = vld [vmem:[%s478 + $0x258] sm:$0xff]
      %v4623 = vld [vmem:[%s478 + $0x260] sm:$0xff]
      %v4624 = vld [vmem:[%s478 + $0x268] sm:$0xff]
      %v4625 = vld [vmem:[%s478 + $0x270] sm:$0xff]
      %v4626 = vld [vmem:[%s478 + $0x278] sm:$0xff]
      %v4627 = vld [vmem:[%s478 + $0x280] sm:$0xff]
      %v4628 = vld [vmem:[%s478 + $0x288] sm:$0xff]
      %v4629 = vld [vmem:[%s478 + $0x290] sm:$0xff]
      %v4630 = vld [vmem:[%s478 + $0x298] sm:$0xff]
      %v4631 = vld [vmem:[%s478 + $0x2a0] sm:$0xff]
      %v4632 = vld [vmem:[%s478 + $0x2a8] sm:$0xff]
      %v4633 = vld [vmem:[%s478 + $0x2b0] sm:$0xff]
      %v4634 = vld [vmem:[%s478 + $0x2b8] sm:$0xff]
      %v4635 = vld [vmem:[%s478 + $0x2c0] sm:$0xff]
      %v4636 = vld [vmem:[%s478 + $0x2c8] sm:$0xff]
      %v4637 = vld [vmem:[%s478 + $0x2d0] sm:$0xff]
      %v4638 = vld [vmem:[%s478 + $0x2d8] sm:$0xff]
      %v4639 = vld [vmem:[%s478 + $0x2e0] sm:$0xff]
      %v4640 = vld [vmem:[%s478 + $0x2e8] sm:$0xff]
      %v4641 = vld [vmem:[%s478 + $0x2f0] sm:$0xff]
      %v4642 = vld [vmem:[%s478 + $0x2f8] sm:$0xff]
      %v4643 = vld [vmem:[%s478 + $0x300] sm:$0xff]
      %v4644 = vld [vmem:[%s478 + $0x308] sm:$0xff]
      %v4645 = vld [vmem:[%s478 + $0x310] sm:$0xff]
      %v4646 = vld [vmem:[%s478 + $0x318] sm:$0xff]
      %v4647 = vld [vmem:[%s478 + $0x320] sm:$0xff]
      %v4648 = vld [vmem:[%s478 + $0x328] sm:$0xff]
      %v4649 = vld [vmem:[%s478 + $0x330] sm:$0xff]
      %v4650 = vld [vmem:[%s478 + $0x338] sm:$0xff]
      %v4651 = vld [vmem:[%s478 + $0x340] sm:$0xff]
      %v4652 = vld [vmem:[%s478 + $0x348] sm:$0xff]
      %v4653 = vld [vmem:[%s478 + $0x350] sm:$0xff]
      %v4654 = vld [vmem:[%s478 + $0x358] sm:$0xff]
      %v4655 = vld [vmem:[%s478 + $0x360] sm:$0xff]
      %v4656 = vld [vmem:[%s478 + $0x368] sm:$0xff]
      %v4657 = vld [vmem:[%s478 + $0x370] sm:$0xff]
      %v4658 = vld [vmem:[%s478 + $0x378] sm:$0xff]
      %v4659 = vld [vmem:[%s478 + $0x380] sm:$0xff]
      %v4660 = vld [vmem:[%s478 + $0x388] sm:$0xff]
      %v4661 = vld [vmem:[%s478 + $0x390] sm:$0xff]
      %v4662 = vld [vmem:[%s478 + $0x398] sm:$0xff]
      %v4663 = vld [vmem:[%s478 + $0x3a0] sm:$0xff]
      %v4664 = vld [vmem:[%s478 + $0x3a8] sm:$0xff]
      %v4665 = vld [vmem:[%s478 + $0x3b0] sm:$0xff]
      %v4666 = vld [vmem:[%s478 + $0x3b8] sm:$0xff]
      %v4667 = vld [vmem:[%s478 + $0x3c0] sm:$0xff]
      %v4668 = vld [vmem:[%s478 + $0x3c8] sm:$0xff]
      %v4669 = vld [vmem:[%s478 + $0x3d0] sm:$0xff]
      %v4670 = vld [vmem:[%s478 + $0x3d8] sm:$0xff]
      %v4671 = vld [vmem:[%s478 + $0x3e0] sm:$0xff]
      %v4672 = vld [vmem:[%s478 + $0x3e8] sm:$0xff]
      %v4673 = vld [vmem:[%s478 + $0x3f0] sm:$0xff]
      %v4674 = vld [vmem:[%s478 + $0x3f8] sm:$0xff]
      %v4675 = vld [vmem:[%s9] sm:$0xff]
      %v4677 = vsel %vm4289, %v4547, 0
      %v4680 = vsel %vm4289, %v4548, 0
      %v4683 = vsel %vm4289, %v4549, 0
      %v4686 = vsel %vm4289, %v4550, 0
      %v4689 = vsel %vm4289, %v4551, 0
      %v4692 = vsel %vm4289, %v4552, 0
      %v4695 = vsel %vm4289, %v4553, 0
      %v4698 = vsel %vm4289, %v4554, 0
      %v4701 = vsel %vm4289, %v4555, 0
      %v4704 = vsel %vm4289, %v4556, 0
      %v4707 = vsel %vm4289, %v4557, 0
      %v4710 = vsel %vm4289, %v4558, 0
      %v4713 = vsel %vm4289, %v4559, 0
      %v4716 = vsel %vm4289, %v4560, 0
      %v4719 = vsel %vm4289, %v4561, 0
      %v4722 = vsel %vm4289, %v4562, 0
      %v4725 = vsel %vm4289, %v4563, 0
      %v4728 = vsel %vm4289, %v4564, 0
      %v4731 = vsel %vm4289, %v4565, 0
      %v4734 = vsel %vm4289, %v4566, 0
      %v4737 = vsel %vm4289, %v4567, 0
      %v4740 = vsel %vm4289, %v4568, 0
      %v4743 = vsel %vm4289, %v4569, 0
      %v4746 = vsel %vm4289, %v4570, 0
      %v4749 = vsel %vm4289, %v4571, 0
      %v4752 = vsel %vm4289, %v4572, 0
      %v4755 = vsel %vm4289, %v4573, 0
      %v4758 = vsel %vm4289, %v4574, 0
      %v4761 = vsel %vm4289, %v4575, 0
      %v4764 = vsel %vm4289, %v4576, 0
      %v4767 = vsel %vm4289, %v4577, 0
      %v4770 = vsel %vm4289, %v4578, 0
      %v4773 = vsel %vm4289, %v4579, 0
      %v4776 = vsel %vm4289, %v4580, 0
      %v4779 = vsel %vm4289, %v4581, 0
      %v4782 = vsel %vm4289, %v4582, 0
      %v4785 = vsel %vm4289, %v4583, 0
      %v4788 = vsel %vm4289, %v4584, 0
      %v4791 = vsel %vm4289, %v4585, 0
      %v4794 = vsel %vm4289, %v4586, 0
      %v4797 = vsel %vm4289, %v4587, 0
      %v4800 = vsel %vm4289, %v4588, 0
      %v4803 = vsel %vm4289, %v4589, 0
      %v4806 = vsel %vm4289, %v4590, 0
      %v4809 = vsel %vm4289, %v4591, 0
      %v4812 = vsel %vm4289, %v4592, 0
      %v4815 = vsel %vm4289, %v4593, 0
      %v4818 = vsel %vm4289, %v4594, 0
      %v4821 = vsel %vm4289, %v4595, 0
      %v4824 = vsel %vm4289, %v4596, 0
      %v4827 = vsel %vm4289, %v4597, 0
      %v4830 = vsel %vm4289, %v4598, 0
      %v4833 = vsel %vm4289, %v4599, 0
      %v4836 = vsel %vm4289, %v4600, 0
      %v4839 = vsel %vm4289, %v4601, 0
      %v4842 = vsel %vm4289, %v4602, 0
      %v4845 = vsel %vm4289, %v4603, 0
      %v4848 = vsel %vm4289, %v4604, 0
      %v4851 = vsel %vm4289, %v4605, 0
      %v4854 = vsel %vm4289, %v4606, 0
      %v4857 = vsel %vm4289, %v4607, 0
      %v4860 = vsel %vm4289, %v4608, 0
      %v4863 = vsel %vm4289, %v4609, 0
      %v4866 = vsel %vm4289, %v4610, 0
      %v4869 = vsel %vm4289, %v4611, 0
      %v4872 = vsel %vm4289, %v4612, 0
      %v4875 = vsel %vm4289, %v4613, 0
      %v4878 = vsel %vm4289, %v4614, 0
      %v4881 = vsel %vm4289, %v4615, 0
      %v4884 = vsel %vm4289, %v4616, 0
      %v4887 = vsel %vm4289, %v4617, 0
      %v4890 = vsel %vm4289, %v4618, 0
      %v4893 = vsel %vm4289, %v4619, 0
      %v4896 = vsel %vm4289, %v4620, 0
      %v4899 = vsel %vm4289, %v4621, 0
      %v4902 = vsel %vm4289, %v4622, 0
      %v4905 = vsel %vm4289, %v4623, 0
      %v4908 = vsel %vm4289, %v4624, 0
      %v4911 = vsel %vm4289, %v4625, 0
      %v4914 = vsel %vm4289, %v4626, 0
      %v4917 = vsel %vm4289, %v4627, 0
      %v4920 = vsel %vm4289, %v4628, 0
      %v4923 = vsel %vm4289, %v4629, 0
      %v4926 = vsel %vm4289, %v4630, 0
      %v4929 = vsel %vm4289, %v4631, 0
      %v4932 = vsel %vm4289, %v4632, 0
      %v4935 = vsel %vm4289, %v4633, 0
      %v4938 = vsel %vm4289, %v4634, 0
      %v4941 = vsel %vm4289, %v4635, 0
      %v4944 = vsel %vm4289, %v4636, 0
      %v4947 = vsel %vm4289, %v4637, 0
      %v4950 = vsel %vm4289, %v4638, 0
      %v4953 = vsel %vm4289, %v4639, 0
      %v4956 = vsel %vm4289, %v4640, 0
      %v4959 = vsel %vm4289, %v4641, 0
      %v4962 = vsel %vm4289, %v4642, 0
      %v4965 = vsel %vm4289, %v4643, 0
      %v4968 = vsel %vm4289, %v4644, 0
      %v4971 = vsel %vm4289, %v4645, 0
      %v4974 = vsel %vm4289, %v4646, 0
      %v4977 = vsel %vm4289, %v4647, 0
      %v4980 = vsel %vm4289, %v4648, 0
      %v4983 = vsel %vm4289, %v4649, 0
      %v4986 = vsel %vm4289, %v4650, 0
      %v4989 = vsel %vm4289, %v4651, 0
      %v4992 = vsel %vm4289, %v4652, 0
      %v4995 = vsel %vm4289, %v4653, 0
      %v4998 = vsel %vm4289, %v4654, 0
      %v5001 = vsel %vm4289, %v4655, 0
      %v5004 = vsel %vm4289, %v4656, 0
      %v5007 = vsel %vm4289, %v4657, 0
      %v5010 = vsel %vm4289, %v4658, 0
      %v5013 = vsel %vm4289, %v4659, 0
      %v5016 = vsel %vm4289, %v4660, 0
      %v5019 = vsel %vm4289, %v4661, 0
      %v5022 = vsel %vm4289, %v4662, 0
      %v5025 = vsel %vm4289, %v4663, 0
      %v5028 = vsel %vm4289, %v4664, 0
      %v5031 = vsel %vm4289, %v4665, 0
      %v5034 = vsel %vm4289, %v4666, 0
      %v5037 = vsel %vm4289, %v4667, 0
      %v5040 = vsel %vm4289, %v4668, 0
      %v5043 = vsel %vm4289, %v4669, 0
      %v5046 = vsel %vm4289, %v4670, 0
      %v5049 = vsel %vm4289, %v4671, 0
      %v5052 = vsel %vm4289, %v4672, 0
      %v5055 = vsel %vm4289, %v4673, 0
      %v5058 = vsel %vm4289, %v4674, 0
      %5060 = vmatprep.subr.mxu0 0.0
      %5061 = vmatpush1.msra.mxu0 %v4675
      %5062 = vmatprep.subr.mxu0 0.0
      %5063 = vmatpush1.msra.mxu0 0.0
      %5064 = vmatprep.subr.mxu0 0.0
      %5065 = vmatpush1.msra.mxu0 0.0
      %5066 = vmatprep.subr.mxu0 0.0
      %5067 = vmatpush1.msra.mxu0 0.0
      %5068 = vmatprep.subr.mxu0 0.0
      %5069 = vmatpush1.msra.mxu0 0.0
      %5070 = vmatprep.subr.mxu0 0.0
      %5071 = vmatpush1.msra.mxu0 0.0
      %5072 = vmatprep.subr.mxu0 0.0
      %5073 = vmatpush1.msra.mxu0 0.0
      %5074 = vmatprep.subr.mxu0 0.0
      %5075 = vmatpush1.msra.mxu0 0.0
      %5076 = vmatprep.subr.mxu0 0.0
      %5077 = vmatpush1.msra.mxu0 0.0
      %5078 = vmatprep.subr.mxu0 0.0
      %5079 = vmatpush1.msra.mxu0 0.0
      %5080 = vmatprep.subr.mxu0 0.0
      %5081 = vmatpush1.msra.mxu0 0.0
      %5082 = vmatprep.subr.mxu0 0.0
      %5083 = vmatpush1.msra.mxu0 0.0
      %5084 = vmatprep.subr.mxu0 0.0
      %5085 = vmatpush1.msra.mxu0 0.0
      %5086 = vmatprep.subr.mxu0 0.0
      %5087 = vmatpush1.msra.mxu0 0.0
      %5088 = vmatprep.subr.mxu0 0.0
      %5089 = vmatpush1.msra.mxu0 0.0
      %5090 = vmatprep.subr.mxu0 0.0
      %5091 = vmatpush1.msra.mxu0 0.0
      %5092 = vmatprep.subr.mxu0 0.0
      %5093 = vmatpush1.msra.mxu0 0.0
      %5094 = vmatprep.subr.mxu0 0.0
      %5095 = vmatpush1.msra.mxu0 0.0
      %5096 = vmatprep.subr.mxu0 0.0
      %5097 = vmatpush1.msra.mxu0 0.0
      %5098 = vmatprep.subr.mxu0 0.0
      %5099 = vmatpush1.msra.mxu0 0.0
      %5100 = vmatprep.subr.mxu0 0.0
      %5101 = vmatpush1.msra.mxu0 0.0
      %5102 = vmatprep.subr.mxu0 0.0
      %5103 = vmatpush1.msra.mxu0 0.0
      %5104 = vmatprep.subr.mxu0 0.0
      %5105 = vmatpush1.msra.mxu0 0.0
      %5106 = vmatprep.subr.mxu0 0.0
      %5107 = vmatpush1.msra.mxu0 0.0
      %5108 = vmatprep.subr.mxu0 0.0
      %5109 = vmatpush1.msra.mxu0 0.0
      %5110 = vmatprep.subr.mxu0 0.0
      %5111 = vmatpush1.msra.mxu0 0.0
      %5112 = vmatprep.subr.mxu0 0.0
      %5113 = vmatpush1.msra.mxu0 0.0
      %5114 = vmatprep.subr.mxu0 0.0
      %5115 = vmatpush1.msra.mxu0 0.0
      %5116 = vmatprep.subr.mxu0 0.0
      %5117 = vmatpush1.msra.mxu0 0.0
      %5118 = vmatprep.subr.mxu0 0.0
      %5119 = vmatpush1.msra.mxu0 0.0
      %5120 = vmatprep.subr.mxu0 0.0
      %5121 = vmatpush1.msra.mxu0 0.0
      %5122 = vmatprep.subr.mxu0 0.0
      %5123 = vmatpush1.msra.mxu0 0.0
      %5124 = vmatprep.mubr.f32.mxu0 0.0
      %5125 = vmatmul.mubr.f32.gmra.mrb[0].mxu0 %v4677
      %v5126 = vpop.f32.mrb[0].mxu0
      %v5127 = vadd.f32 0.0, %v5126
      %v5128 = vpop.f32.mrb[0].mxu0
      %5129 = vmatprep.mubr.f32.mxu0 0.0
      %5130 = vmatmul.mubr.f32.gmra.mrb[0].mxu0 %v4680
      %v5131 = vpop.f32.mrb[0].mxu0
      %v5132 = vadd.f32 0.0, %v5131
      %v5133 = vpop.f32.mrb[0].mxu0
      %5134 = vmatprep.mubr.f32.mxu0 0.0
      %5135 = vmatmul.mubr.f32.gmra.mrb[0].mxu0 %v4683
      %v5136 = vpop.f32.mrb[0].mxu0
      %v5137 = vadd.f32 0.0, %v5136
      %v5138 = vpop.f32.mrb[0].mxu0
      %5139 = vmatprep.mubr.f32.mxu0 0.0
      %5140 = vmatmul.mubr.f32.gmra.mrb[0].mxu0 %v4686
      %v5141 = vpop.f32.mrb[0].mxu0
      %v5142 = vadd.f32 0.0, %v5141
      %v5143 = vpop.f32.mrb[0].mxu0
      %5144 = vmatprep.mubr.f32.mxu0 0.0
      %5145 = vmatmul.mubr.f32.gmra.mrb[0].mxu0 %v4689
      %v5146 = vpop.f32.mrb[0].mxu0
      %v5147 = vadd.f32 0.0, %v5146
      %v5148 = vpop.f32.mrb[0].mxu0
      %5149 = vmatprep.mubr.f32.mxu0 0.0
      %5150 = vmatmul.mubr.f32.gmra.mrb[0].mxu0 %v4692
      %v5151 = vpop.f32.mrb[0].mxu0
      %v5152 = vadd.f32 0.0, %v5151
      %v5153 = vpop.f32.mrb[0].mxu0
      %5154 = vmatprep.mubr.f32.mxu0 0.0
      %5155 = vmatmul.mubr.f32.gmra.mrb[0].mxu0 %v4695
      %v5156 = vpop.f32.mrb[0].mxu0
      %v5157 = vadd.f32 0.0, %v5156
      %v5158 = vpop.f32.mrb[0].mxu0
      %5159 = vmatprep.mubr.f32.mxu0 0.0
      %5160 = vmatmul.mubr.f32.gmra.mrb[0].mxu0 %v4698
      %v5161 = vpop.f32.mrb[0].mxu0
      %v5162 = vadd.f32 0.0, %v5161
      %v5163 = vpop.f32.mrb[0].mxu0
      %5164 = vmatprep.mubr.f32.mxu0 0.0
      %5165 = vmatmul.mubr.f32.gmra.mrb[0].mxu0 %v4701
      %v5166 = vpop.f32.mrb[0].mxu0
      %v5167 = vadd.f32 0.0, %v5166
      %v5168 = vpop.f32.mrb[0].mxu0
      %5169 = vmatprep.mubr.f32.mxu0 0.0
      %5170 = vmatmul.mubr.f32.gmra.mrb[0].mxu0 %v4704
      %v5171 = vpop.f32.mrb[0].mxu0
      %v5172 = vadd.f32 0.0, %v5171
      %v5173 = vpop.f32.mrb[0].mxu0
      %5174 = vmatprep.mubr.f32.mxu0 0.0
      %5175 = vmatmul.mubr.f32.gmra.mrb[0].mxu0 %v4707
      %v5176 = vpop.f32.mrb[0].mxu0
      %v5177 = vadd.f32 0.0, %v5176
      %v5178 = vpop.f32.mrb[0].mxu0
      %5179 = vmatprep.mubr.f32.mxu0 0.0
      %5180 = vmatmul.mubr.f32.gmra.mrb[0].mxu0 %v4710
      %v5181 = vpop.f32.mrb[0].mxu0
      %v5182 = vadd.f32 0.0, %v5181
      %v5183 = vpop.f32.mrb[0].mxu0
      %5184 = vmatprep.mubr.f32.mxu0 0.0
      %5185 = vmatmul.mubr.f32.gmra.mrb[0].mxu0 %v4713
      %v5186 = vpop.f32.mrb[0].mxu0
      %v5187 = vadd.f32 0.0, %v5186
      %v5188 = vpop.f32.mrb[0].mxu0
      %5189 = vmatprep.mubr.f32.mxu0 0.0
      %5190 = vmatmul.mubr.f32.gmra.mrb[0].mxu0 %v4716
      %v5191 = vpop.f32.mrb[0].mxu0
      %v5192 = vadd.f32 0.0, %v5191
      %v5193 = vpop.f32.mrb[0].mxu0
      %5194 = vmatprep.mubr.f32.mxu0 0.0
      %5195 = vmatmul.mubr.f32.gmra.mrb[0].mxu0 %v4719
      %v5196 = vpop.f32.mrb[0].mxu0
      %v5197 = vadd.f32 0.0, %v5196
      %v5198 = vpop.f32.mrb[0].mxu0
      %5199 = vmatprep.mubr.f32.mxu0 0.0
      %5200 = vmatmul.mubr.f32.gmra.mrb[0].mxu0 %v4722
      %v5201 = vpop.f32.mrb[0].mxu0
      %v5202 = vadd.f32 0.0, %v5201
      %v5203 = vpop.f32.mrb[0].mxu0
      %5204 = vmatprep.mubr.f32.mxu0 0.0
      %5205 = vmatmul.mubr.f32.gmra.mrb[0].mxu0 %v4725
      %v5206 = vpop.f32.mrb[0].mxu0
      %v5207 = vadd.f32 0.0, %v5206
      %v5208 = vpop.f32.mrb[0].mxu0
      %5209 = vmatprep.mubr.f32.mxu0 0.0
      %5210 = vmatmul.mubr.f32.gmra.mrb[0].mxu0 %v4728
      %v5211 = vpop.f32.mrb[0].mxu0
      %v5212 = vadd.f32 0.0, %v5211
      %v5213 = vpop.f32.mrb[0].mxu0
      %5214 = vmatprep.mubr.f32.mxu0 0.0
      %5215 = vmatmul.mubr.f32.gmra.mrb[0].mxu0 %v4731
      %v5216 = vpop.f32.mrb[0].mxu0
      %v5217 = vadd.f32 0.0, %v5216
      %v5218 = vpop.f32.mrb[0].mxu0
      %5219 = vmatprep.mubr.f32.mxu0 0.0
      %5220 = vmatmul.mubr.f32.gmra.mrb[0].mxu0 %v4734
      %v5221 = vpop.f32.mrb[0].mxu0
      %v5222 = vadd.f32 0.0, %v5221
      %v5223 = vpop.f32.mrb[0].mxu0
      %5224 = vmatprep.mubr.f32.mxu0 0.0
      %5225 = vmatmul.mubr.f32.gmra.mrb[0].mxu0 %v4737
      %v5226 = vpop.f32.mrb[0].mxu0
      %v5227 = vadd.f32 0.0, %v5226
      %v5228 = vpop.f32.mrb[0].mxu0
      %5229 = vmatprep.mubr.f32.mxu0 0.0
      %5230 = vmatmul.mubr.f32.gmra.mrb[0].mxu0 %v4740
      %v5231 = vpop.f32.mrb[0].mxu0
      %v5232 = vadd.f32 0.0, %v5231
      %v5233 = vpop.f32.mrb[0].mxu0
      %5234 = vmatprep.mubr.f32.mxu0 0.0
      %5235 = vmatmul.mubr.f32.gmra.mrb[0].mxu0 %v4743
      %v5236 = vpop.f32.mrb[0].mxu0
      %v5237 = vadd.f32 0.0, %v5236
      %v5238 = vpop.f32.mrb[0].mxu0
      %5239 = vmatprep.mubr.f32.mxu0 0.0
      %5240 = vmatmul.mubr.f32.gmra.mrb[0].mxu0 %v4746
      %v5241 = vpop.f32.mrb[0].mxu0
      %v5242 = vadd.f32 0.0, %v5241
      %v5243 = vpop.f32.mrb[0].mxu0
      %5244 = vmatprep.mubr.f32.mxu0 0.0
      %5245 = vmatmul.mubr.f32.gmra.mrb[0].mxu0 %v4749
      %v5246 = vpop.f32.mrb[0].mxu0
      %v5247 = vadd.f32 0.0, %v5246
      %v5248 = vpop.f32.mrb[0].mxu0
      %5249 = vmatprep.mubr.f32.mxu0 0.0
      %5250 = vmatmul.mubr.f32.gmra.mrb[0].mxu0 %v4752
      %v5251 = vpop.f32.mrb[0].mxu0
      %v5252 = vadd.f32 0.0, %v5251
      %v5253 = vpop.f32.mrb[0].mxu0
      %5254 = vmatprep.mubr.f32.mxu0 0.0
      %5255 = vmatmul.mubr.f32.gmra.mrb[0].mxu0 %v4755
      %v5256 = vpop.f32.mrb[0].mxu0
      %v5257 = vadd.f32 0.0, %v5256
      %v5258 = vpop.f32.mrb[0].mxu0
      %5259 = vmatprep.mubr.f32.mxu0 0.0
      %5260 = vmatmul.mubr.f32.gmra.mrb[0].mxu0 %v4758
      %v5261 = vpop.f32.mrb[0].mxu0
      %v5262 = vadd.f32 0.0, %v5261
      %v5263 = vpop.f32.mrb[0].mxu0
      %5264 = vmatprep.mubr.f32.mxu0 0.0
      %5265 = vmatmul.mubr.f32.gmra.mrb[0].mxu0 %v4761
      %v5266 = vpop.f32.mrb[0].mxu0
      %v5267 = vadd.f32 0.0, %v5266
      %v5268 = vpop.f32.mrb[0].mxu0
      %5269 = vmatprep.mubr.f32.mxu0 0.0
      %5270 = vmatmul.mubr.f32.gmra.mrb[0].mxu0 %v4764
      %v5271 = vpop.f32.mrb[0].mxu0
      %v5272 = vadd.f32 0.0, %v5271
      %v5273 = vpop.f32.mrb[0].mxu0
      %5274 = vmatprep.mubr.f32.mxu0 0.0
      %5275 = vmatmul.mubr.f32.gmra.mrb[0].mxu0 %v4767
      %v5276 = vpop.f32.mrb[0].mxu0
      %v5277 = vadd.f32 0.0, %v5276
      %v5278 = vpop.f32.mrb[0].mxu0
      %5279 = vmatprep.mubr.f32.mxu0 0.0
      %5280 = vmatmul.mubr.f32.gmra.mrb[0].mxu0 %v4770
      %v5281 = vpop.f32.mrb[0].mxu0
      %v5282 = vadd.f32 0.0, %v5281
      %v5283 = vpop.f32.mrb[0].mxu0
      %5284 = vmatprep.mubr.f32.mxu0 0.0
      %5285 = vmatmul.mubr.f32.gmra.mrb[0].mxu0 %v4773
      %v5286 = vpop.f32.mrb[0].mxu0
      %v5287 = vadd.f32 0.0, %v5286
      %v5288 = vpop.f32.mrb[0].mxu0
      %5289 = vmatprep.mubr.f32.mxu0 0.0
      %5290 = vmatmul.mubr.f32.gmra.mrb[0].mxu0 %v4776
      %v5291 = vpop.f32.mrb[0].mxu0
      %v5292 = vadd.f32 0.0, %v5291
      %v5293 = vpop.f32.mrb[0].mxu0
      %5294 = vmatprep.mubr.f32.mxu0 0.0
      %5295 = vmatmul.mubr.f32.gmra.mrb[0].mxu0 %v4779
      %v5296 = vpop.f32.mrb[0].mxu0
      %v5297 = vadd.f32 0.0, %v5296
      %v5298 = vpop.f32.mrb[0].mxu0
      %5299 = vmatprep.mubr.f32.mxu0 0.0
      %5300 = vmatmul.mubr.f32.gmra.mrb[0].mxu0 %v4782
      %v5301 = vpop.f32.mrb[0].mxu0
      %v5302 = vadd.f32 0.0, %v5301
      %v5303 = vpop.f32.mrb[0].mxu0
      %5304 = vmatprep.mubr.f32.mxu0 0.0
      %5305 = vmatmul.mubr.f32.gmra.mrb[0].mxu0 %v4785
      %v5306 = vpop.f32.mrb[0].mxu0
      %v5307 = vadd.f32 0.0, %v5306
      %v5308 = vpop.f32.mrb[0].mxu0
      %5309 = vmatprep.mubr.f32.mxu0 0.0
      %5310 = vmatmul.mubr.f32.gmra.mrb[0].mxu0 %v4788
      %v5311 = vpop.f32.mrb[0].mxu0
      %v5312 = vadd.f32 0.0, %v5311
      %v5313 = vpop.f32.mrb[0].mxu0
      %5314 = vmatprep.mubr.f32.mxu0 0.0
      %5315 = vmatmul.mubr.f32.gmra.mrb[0].mxu0 %v4791
      %v5316 = vpop.f32.mrb[0].mxu0
      %v5317 = vadd.f32 0.0, %v5316
      %v5318 = vpop.f32.mrb[0].mxu0
      %5319 = vmatprep.mubr.f32.mxu0 0.0
      %5320 = vmatmul.mubr.f32.gmra.mrb[0].mxu0 %v4794
      %v5321 = vpop.f32.mrb[0].mxu0
      %v5322 = vadd.f32 0.0, %v5321
      %v5323 = vpop.f32.mrb[0].mxu0
      %5324 = vmatprep.mubr.f32.mxu0 0.0
      %5325 = vmatmul.mubr.f32.gmra.mrb[0].mxu0 %v4797
      %v5326 = vpop.f32.mrb[0].mxu0
      %v5327 = vadd.f32 0.0, %v5326
      %v5328 = vpop.f32.mrb[0].mxu0
      %5329 = vmatprep.mubr.f32.mxu0 0.0
      %5330 = vmatmul.mubr.f32.gmra.mrb[0].mxu0 %v4800
      %v5331 = vpop.f32.mrb[0].mxu0
      %v5332 = vadd.f32 0.0, %v5331
      %v5333 = vpop.f32.mrb[0].mxu0
      %5334 = vmatprep.mubr.f32.mxu0 0.0
      %5335 = vmatmul.mubr.f32.gmra.mrb[0].mxu0 %v4803
      %v5336 = vpop.f32.mrb[0].mxu0
      %v5337 = vadd.f32 0.0, %v5336
      %v5338 = vpop.f32.mrb[0].mxu0
      %5339 = vmatprep.mubr.f32.mxu0 0.0
      %5340 = vmatmul.mubr.f32.gmra.mrb[0].mxu0 %v4806
      %v5341 = vpop.f32.mrb[0].mxu0
      %v5342 = vadd.f32 0.0, %v5341
      %v5343 = vpop.f32.mrb[0].mxu0
      %5344 = vmatprep.mubr.f32.mxu0 0.0
      %5345 = vmatmul.mubr.f32.gmra.mrb[0].mxu0 %v4809
      %v5346 = vpop.f32.mrb[0].mxu0
      %v5347 = vadd.f32 0.0, %v5346
      %v5348 = vpop.f32.mrb[0].mxu0
      %5349 = vmatprep.mubr.f32.mxu0 0.0
      %5350 = vmatmul.mubr.f32.gmra.mrb[0].mxu0 %v4812
      %v5351 = vpop.f32.mrb[0].mxu0
      %v5352 = vadd.f32 0.0, %v5351
      %v5353 = vpop.f32.mrb[0].mxu0
      %5354 = vmatprep.mubr.f32.mxu0 0.0
      %5355 = vmatmul.mubr.f32.gmra.mrb[0].mxu0 %v4815
      %v5356 = vpop.f32.mrb[0].mxu0
      %v5357 = vadd.f32 0.0, %v5356
      %v5358 = vpop.f32.mrb[0].mxu0
      %5359 = vmatprep.mubr.f32.mxu0 0.0
      %5360 = vmatmul.mubr.f32.gmra.mrb[0].mxu0 %v4818
      %v5361 = vpop.f32.mrb[0].mxu0
      %v5362 = vadd.f32 0.0, %v5361
      %v5363 = vpop.f32.mrb[0].mxu0
      %5364 = vmatprep.mubr.f32.mxu0 0.0
      %5365 = vmatmul.mubr.f32.gmra.mrb[0].mxu0 %v4821
      %v5366 = vpop.f32.mrb[0].mxu0
      %v5367 = vadd.f32 0.0, %v5366
      %v5368 = vpop.f32.mrb[0].mxu0
      %5369 = vmatprep.mubr.f32.mxu0 0.0
      %5370 = vmatmul.mubr.f32.gmra.mrb[0].mxu0 %v4824
      %v5371 = vpop.f32.mrb[0].mxu0
      %v5372 = vadd.f32 0.0, %v5371
      %v5373 = vpop.f32.mrb[0].mxu0
      %5374 = vmatprep.mubr.f32.mxu0 0.0
      %5375 = vmatmul.mubr.f32.gmra.mrb[0].mxu0 %v4827
      %v5376 = vpop.f32.mrb[0].mxu0
      %v5377 = vadd.f32 0.0, %v5376
      %v5378 = vpop.f32.mrb[0].mxu0
      %5379 = vmatprep.mubr.f32.mxu0 0.0
      %5380 = vmatmul.mubr.f32.gmra.mrb[0].mxu0 %v4830
      %v5381 = vpop.f32.mrb[0].mxu0
      %v5382 = vadd.f32 0.0, %v5381
      %v5383 = vpop.f32.mrb[0].mxu0
      %5384 = vmatprep.mubr.f32.mxu0 0.0
      %5385 = vmatmul.mubr.f32.gmra.mrb[0].mxu0 %v4833
      %v5386 = vpop.f32.mrb[0].mxu0
      %v5387 = vadd.f32 0.0, %v5386
      %v5388 = vpop.f32.mrb[0].mxu0
      %5389 = vmatprep.mubr.f32.mxu0 0.0
      %5390 = vmatmul.mubr.f32.gmra.mrb[0].mxu0 %v4836
      %v5391 = vpop.f32.mrb[0].mxu0
      %v5392 = vadd.f32 0.0, %v5391
      %v5393 = vpop.f32.mrb[0].mxu0
      %5394 = vmatprep.mubr.f32.mxu0 0.0
      %5395 = vmatmul.mubr.f32.gmra.mrb[0].mxu0 %v4839
      %v5396 = vpop.f32.mrb[0].mxu0
      %v5397 = vadd.f32 0.0, %v5396
      %v5398 = vpop.f32.mrb[0].mxu0
      %5399 = vmatprep.mubr.f32.mxu0 0.0
      %5400 = vmatmul.mubr.f32.gmra.mrb[0].mxu0 %v4842
      %v5401 = vpop.f32.mrb[0].mxu0
      %v5402 = vadd.f32 0.0, %v5401
      %v5403 = vpop.f32.mrb[0].mxu0
      %5404 = vmatprep.mubr.f32.mxu0 0.0
      %5405 = vmatmul.mubr.f32.gmra.mrb[0].mxu0 %v4845
      %v5406 = vpop.f32.mrb[0].mxu0
      %v5407 = vadd.f32 0.0, %v5406
      %v5408 = vpop.f32.mrb[0].mxu0
      %5409 = vmatprep.mubr.f32.mxu0 0.0
      %5410 = vmatmul.mubr.f32.gmra.mrb[0].mxu0 %v4848
      %v5411 = vpop.f32.mrb[0].mxu0
      %v5412 = vadd.f32 0.0, %v5411
      %v5413 = vpop.f32.mrb[0].mxu0
      %5414 = vmatprep.mubr.f32.mxu0 0.0
      %5415 = vmatmul.mubr.f32.gmra.mrb[0].mxu0 %v4851
      %v5416 = vpop.f32.mrb[0].mxu0
      %v5417 = vadd.f32 0.0, %v5416
      %v5418 = vpop.f32.mrb[0].mxu0
      %5419 = vmatprep.mubr.f32.mxu0 0.0
      %5420 = vmatmul.mubr.f32.gmra.mrb[0].mxu0 %v4854
      %v5421 = vpop.f32.mrb[0].mxu0
      %v5422 = vadd.f32 0.0, %v5421
      %v5423 = vpop.f32.mrb[0].mxu0
      %5424 = vmatprep.mubr.f32.mxu0 0.0
      %5425 = vmatmul.mubr.f32.gmra.mrb[0].mxu0 %v4857
      %v5426 = vpop.f32.mrb[0].mxu0
      %v5427 = vadd.f32 0.0, %v5426
      %v5428 = vpop.f32.mrb[0].mxu0
      %5429 = vmatprep.mubr.f32.mxu0 0.0
      %5430 = vmatmul.mubr.f32.gmra.mrb[0].mxu0 %v4860
      %v5431 = vpop.f32.mrb[0].mxu0
      %v5432 = vadd.f32 0.0, %v5431
      %v5433 = vpop.f32.mrb[0].mxu0
      %5434 = vmatprep.mubr.f32.mxu0 0.0
      %5435 = vmatmul.mubr.f32.gmra.mrb[0].mxu0 %v4863
      %v5436 = vpop.f32.mrb[0].mxu0
      %v5437 = vadd.f32 0.0, %v5436
      %v5438 = vpop.f32.mrb[0].mxu0
      %5439 = vmatprep.mubr.f32.mxu0 0.0
      %5440 = vmatmul.mubr.f32.gmra.mrb[0].mxu0 %v4866
      %v5441 = vpop.f32.mrb[0].mxu0
      %v5442 = vadd.f32 0.0, %v5441
      %v5443 = vpop.f32.mrb[0].mxu0
      %5444 = vmatprep.mubr.f32.mxu0 0.0
      %5445 = vmatmul.mubr.f32.gmra.mrb[0].mxu0 %v4869
      %v5446 = vpop.f32.mrb[0].mxu0
      %v5447 = vadd.f32 0.0, %v5446
      %v5448 = vpop.f32.mrb[0].mxu0
      %5449 = vmatprep.mubr.f32.mxu0 0.0
      %5450 = vmatmul.mubr.f32.gmra.mrb[0].mxu0 %v4872
      %v5451 = vpop.f32.mrb[0].mxu0
      %v5452 = vadd.f32 0.0, %v5451
      %v5453 = vpop.f32.mrb[0].mxu0
      %5454 = vmatprep.mubr.f32.mxu0 0.0
      %5455 = vmatmul.mubr.f32.gmra.mrb[0].mxu0 %v4875
      %v5456 = vpop.f32.mrb[0].mxu0
      %v5457 = vadd.f32 0.0, %v5456
      %v5458 = vpop.f32.mrb[0].mxu0
      %5459 = vmatprep.mubr.f32.mxu0 0.0
      %5460 = vmatmul.mubr.f32.gmra.mrb[0].mxu0 %v4878
      %v5461 = vpop.f32.mrb[0].mxu0
      %v5462 = vadd.f32 0.0, %v5461
      %v5463 = vpop.f32.mrb[0].mxu0
      %5464 = vmatprep.mubr.f32.mxu0 0.0
      %5465 = vmatmul.mubr.f32.gmra.mrb[0].mxu0 %v4881
      %v5466 = vpop.f32.mrb[0].mxu0
      %v5467 = vadd.f32 0.0, %v5466
      %v5468 = vpop.f32.mrb[0].mxu0
      %5469 = vmatprep.mubr.f32.mxu0 0.0
      %5470 = vmatmul.mubr.f32.gmra.mrb[0].mxu0 %v4884
      %v5471 = vpop.f32.mrb[0].mxu0
      %v5472 = vadd.f32 0.0, %v5471
      %v5473 = vpop.f32.mrb[0].mxu0
      %5474 = vmatprep.mubr.f32.mxu0 0.0
      %5475 = vmatmul.mubr.f32.gmra.mrb[0].mxu0 %v4887
      %v5476 = vpop.f32.mrb[0].mxu0
      %v5477 = vadd.f32 0.0, %v5476
      %v5478 = vpop.f32.mrb[0].mxu0
      %5479 = vmatprep.mubr.f32.mxu0 0.0
      %5480 = vmatmul.mubr.f32.gmra.mrb[0].mxu0 %v4890
      %v5481 = vpop.f32.mrb[0].mxu0
      %v5482 = vadd.f32 0.0, %v5481
      %v5483 = vpop.f32.mrb[0].mxu0
      %5484 = vmatprep.mubr.f32.mxu0 0.0
      %5485 = vmatmul.mubr.f32.gmra.mrb[0].mxu0 %v4893
      %v5486 = vpop.f32.mrb[0].mxu0
      %v5487 = vadd.f32 0.0, %v5486
      %v5488 = vpop.f32.mrb[0].mxu0
      %5489 = vmatprep.mubr.f32.mxu0 0.0
      %5490 = vmatmul.mubr.f32.gmra.mrb[0].mxu0 %v4896
      %v5491 = vpop.f32.mrb[0].mxu0
      %v5492 = vadd.f32 0.0, %v5491
      %v5493 = vpop.f32.mrb[0].mxu0
      %5494 = vmatprep.mubr.f32.mxu0 0.0
      %5495 = vmatmul.mubr.f32.gmra.mrb[0].mxu0 %v4899
      %v5496 = vpop.f32.mrb[0].mxu0
      %v5497 = vadd.f32 0.0, %v5496
      %v5498 = vpop.f32.mrb[0].mxu0
      %5499 = vmatprep.mubr.f32.mxu0 0.0
      %5500 = vmatmul.mubr.f32.gmra.mrb[0].mxu0 %v4902
      %v5501 = vpop.f32.mrb[0].mxu0
      %v5502 = vadd.f32 0.0, %v5501
      %v5503 = vpop.f32.mrb[0].mxu0
      %5504 = vmatprep.mubr.f32.mxu0 0.0
      %5505 = vmatmul.mubr.f32.gmra.mrb[0].mxu0 %v4905
      %v5506 = vpop.f32.mrb[0].mxu0
      %v5507 = vadd.f32 0.0, %v5506
      %v5508 = vpop.f32.mrb[0].mxu0
      %5509 = vmatprep.mubr.f32.mxu0 0.0
      %5510 = vmatmul.mubr.f32.gmra.mrb[0].mxu0 %v4908
      %v5511 = vpop.f32.mrb[0].mxu0
      %v5512 = vadd.f32 0.0, %v5511
      %v5513 = vpop.f32.mrb[0].mxu0
      %5514 = vmatprep.mubr.f32.mxu0 0.0
      %5515 = vmatmul.mubr.f32.gmra.mrb[0].mxu0 %v4911
      %v5516 = vpop.f32.mrb[0].mxu0
      %v5517 = vadd.f32 0.0, %v5516
      %v5518 = vpop.f32.mrb[0].mxu0
      %5519 = vmatprep.mubr.f32.mxu0 0.0
      %5520 = vmatmul.mubr.f32.gmra.mrb[0].mxu0 %v4914
      %v5521 = vpop.f32.mrb[0].mxu0
      %v5522 = vadd.f32 0.0, %v5521
      %v5523 = vpop.f32.mrb[0].mxu0
      %5524 = vmatprep.mubr.f32.mxu0 0.0
      %5525 = vmatmul.mubr.f32.gmra.mrb[0].mxu0 %v4917
      %v5526 = vpop.f32.mrb[0].mxu0
      %v5527 = vadd.f32 0.0, %v5526
      %v5528 = vpop.f32.mrb[0].mxu0
      %5529 = vmatprep.mubr.f32.mxu0 0.0
      %5530 = vmatmul.mubr.f32.gmra.mrb[0].mxu0 %v4920
      %v5531 = vpop.f32.mrb[0].mxu0
      %v5532 = vadd.f32 0.0, %v5531
      %v5533 = vpop.f32.mrb[0].mxu0
      %5534 = vmatprep.mubr.f32.mxu0 0.0
      %5535 = vmatmul.mubr.f32.gmra.mrb[0].mxu0 %v4923
      %v5536 = vpop.f32.mrb[0].mxu0
      %v5537 = vadd.f32 0.0, %v5536
      %v5538 = vpop.f32.mrb[0].mxu0
      %5539 = vmatprep.mubr.f32.mxu0 0.0
      %5540 = vmatmul.mubr.f32.gmra.mrb[0].mxu0 %v4926
      %v5541 = vpop.f32.mrb[0].mxu0
      %v5542 = vadd.f32 0.0, %v5541
      %v5543 = vpop.f32.mrb[0].mxu0
      %5544 = vmatprep.mubr.f32.mxu0 0.0
      %5545 = vmatmul.mubr.f32.gmra.mrb[0].mxu0 %v4929
      %v5546 = vpop.f32.mrb[0].mxu0
      %v5547 = vadd.f32 0.0, %v5546
      %v5548 = vpop.f32.mrb[0].mxu0
      %5549 = vmatprep.mubr.f32.mxu0 0.0
      %5550 = vmatmul.mubr.f32.gmra.mrb[0].mxu0 %v4932
      %v5551 = vpop.f32.mrb[0].mxu0
      %v5552 = vadd.f32 0.0, %v5551
      %v5553 = vpop.f32.mrb[0].mxu0
      %5554 = vmatprep.mubr.f32.mxu0 0.0
      %5555 = vmatmul.mubr.f32.gmra.mrb[0].mxu0 %v4935
      %v5556 = vpop.f32.mrb[0].mxu0
      %v5557 = vadd.f32 0.0, %v5556
      %v5558 = vpop.f32.mrb[0].mxu0
      %5559 = vmatprep.mubr.f32.mxu0 0.0
      %5560 = vmatmul.mubr.f32.gmra.mrb[0].mxu0 %v4938
      %v5561 = vpop.f32.mrb[0].mxu0
      %v5562 = vadd.f32 0.0, %v5561
      %v5563 = vpop.f32.mrb[0].mxu0
      %5564 = vmatprep.mubr.f32.mxu0 0.0
      %5565 = vmatmul.mubr.f32.gmra.mrb[0].mxu0 %v4941
      %v5566 = vpop.f32.mrb[0].mxu0
      %v5567 = vadd.f32 0.0, %v5566
      %v5568 = vpop.f32.mrb[0].mxu0
      %5569 = vmatprep.mubr.f32.mxu0 0.0
      %5570 = vmatmul.mubr.f32.gmra.mrb[0].mxu0 %v4944
      %v5571 = vpop.f32.mrb[0].mxu0
      %v5572 = vadd.f32 0.0, %v5571
      %v5573 = vpop.f32.mrb[0].mxu0
      %5574 = vmatprep.mubr.f32.mxu0 0.0
      %5575 = vmatmul.mubr.f32.gmra.mrb[0].mxu0 %v4947
      %v5576 = vpop.f32.mrb[0].mxu0
      %v5577 = vadd.f32 0.0, %v5576
      %v5578 = vpop.f32.mrb[0].mxu0
      %5579 = vmatprep.mubr.f32.mxu0 0.0
      %5580 = vmatmul.mubr.f32.gmra.mrb[0].mxu0 %v4950
      %v5581 = vpop.f32.mrb[0].mxu0
      %v5582 = vadd.f32 0.0, %v5581
      %v5583 = vpop.f32.mrb[0].mxu0
      %5584 = vmatprep.mubr.f32.mxu0 0.0
      %5585 = vmatmul.mubr.f32.gmra.mrb[0].mxu0 %v4953
      %v5586 = vpop.f32.mrb[0].mxu0
      %v5587 = vadd.f32 0.0, %v5586
      %v5588 = vpop.f32.mrb[0].mxu0
      %5589 = vmatprep.mubr.f32.mxu0 0.0
      %5590 = vmatmul.mubr.f32.gmra.mrb[0].mxu0 %v4956
      %v5591 = vpop.f32.mrb[0].mxu0
      %v5592 = vadd.f32 0.0, %v5591
      %v5593 = vpop.f32.mrb[0].mxu0
      %5594 = vmatprep.mubr.f32.mxu0 0.0
      %5595 = vmatmul.mubr.f32.gmra.mrb[0].mxu0 %v4959
      %v5596 = vpop.f32.mrb[0].mxu0
      %v5597 = vadd.f32 0.0, %v5596
      %v5598 = vpop.f32.mrb[0].mxu0
      %5599 = vmatprep.mubr.f32.mxu0 0.0
      %5600 = vmatmul.mubr.f32.gmra.mrb[0].mxu0 %v4962
      %v5601 = vpop.f32.mrb[0].mxu0
      %v5602 = vadd.f32 0.0, %v5601
      %v5603 = vpop.f32.mrb[0].mxu0
      %5604 = vmatprep.mubr.f32.mxu0 0.0
      %5605 = vmatmul.mubr.f32.gmra.mrb[0].mxu0 %v4965
      %v5606 = vpop.f32.mrb[0].mxu0
      %v5607 = vadd.f32 0.0, %v5606
      %v5608 = vpop.f32.mrb[0].mxu0
      %5609 = vmatprep.mubr.f32.mxu0 0.0
      %5610 = vmatmul.mubr.f32.gmra.mrb[0].mxu0 %v4968
      %v5611 = vpop.f32.mrb[0].mxu0
      %v5612 = vadd.f32 0.0, %v5611
      %v5613 = vpop.f32.mrb[0].mxu0
      %5614 = vmatprep.mubr.f32.mxu0 0.0
      %5615 = vmatmul.mubr.f32.gmra.mrb[0].mxu0 %v4971
      %v5616 = vpop.f32.mrb[0].mxu0
      %v5617 = vadd.f32 0.0, %v5616
      %v5618 = vpop.f32.mrb[0].mxu0
      %5619 = vmatprep.mubr.f32.mxu0 0.0
      %5620 = vmatmul.mubr.f32.gmra.mrb[0].mxu0 %v4974
      %v5621 = vpop.f32.mrb[0].mxu0
      %v5622 = vadd.f32 0.0, %v5621
      %v5623 = vpop.f32.mrb[0].mxu0
      %5624 = vmatprep.mubr.f32.mxu0 0.0
      %5625 = vmatmul.mubr.f32.gmra.mrb[0].mxu0 %v4977
      %v5626 = vpop.f32.mrb[0].mxu0
      %v5627 = vadd.f32 0.0, %v5626
      %v5628 = vpop.f32.mrb[0].mxu0
      %5629 = vmatprep.mubr.f32.mxu0 0.0
      %5630 = vmatmul.mubr.f32.gmra.mrb[0].mxu0 %v4980
      %v5631 = vpop.f32.mrb[0].mxu0
      %v5632 = vadd.f32 0.0, %v5631
      %v5633 = vpop.f32.mrb[0].mxu0
      %5634 = vmatprep.mubr.f32.mxu0 0.0
      %5635 = vmatmul.mubr.f32.gmra.mrb[0].mxu0 %v4983
      %v5636 = vpop.f32.mrb[0].mxu0
      %v5637 = vadd.f32 0.0, %v5636
      %v5638 = vpop.f32.mrb[0].mxu0
      %5639 = vmatprep.mubr.f32.mxu0 0.0
      %5640 = vmatmul.mubr.f32.gmra.mrb[0].mxu0 %v4986
      %v5641 = vpop.f32.mrb[0].mxu0
      %v5642 = vadd.f32 0.0, %v5641
      %v5643 = vpop.f32.mrb[0].mxu0
      %5644 = vmatprep.mubr.f32.mxu0 0.0
      %5645 = vmatmul.mubr.f32.gmra.mrb[0].mxu0 %v4989
      %v5646 = vpop.f32.mrb[0].mxu0
      %v5647 = vadd.f32 0.0, %v5646
      %v5648 = vpop.f32.mrb[0].mxu0
      %5649 = vmatprep.mubr.f32.mxu0 0.0
      %5650 = vmatmul.mubr.f32.gmra.mrb[0].mxu0 %v4992
      %v5651 = vpop.f32.mrb[0].mxu0
      %v5652 = vadd.f32 0.0, %v5651
      %v5653 = vpop.f32.mrb[0].mxu0
      %5654 = vmatprep.mubr.f32.mxu0 0.0
      %5655 = vmatmul.mubr.f32.gmra.mrb[0].mxu0 %v4995
      %v5656 = vpop.f32.mrb[0].mxu0
      %v5657 = vadd.f32 0.0, %v5656
      %v5658 = vpop.f32.mrb[0].mxu0
      %5659 = vmatprep.mubr.f32.mxu0 0.0
      %5660 = vmatmul.mubr.f32.gmra.mrb[0].mxu0 %v4998
      %v5661 = vpop.f32.mrb[0].mxu0
      %v5662 = vadd.f32 0.0, %v5661
      %v5663 = vpop.f32.mrb[0].mxu0
      %5664 = vmatprep.mubr.f32.mxu0 0.0
      %5665 = vmatmul.mubr.f32.gmra.mrb[0].mxu0 %v5001
      %v5666 = vpop.f32.mrb[0].mxu0
      %v5667 = vadd.f32 0.0, %v5666
      %v5668 = vpop.f32.mrb[0].mxu0
      %5669 = vmatprep.mubr.f32.mxu0 0.0
      %5670 = vmatmul.mubr.f32.gmra.mrb[0].mxu0 %v5004
      %v5671 = vpop.f32.mrb[0].mxu0
      %v5672 = vadd.f32 0.0, %v5671
      %v5673 = vpop.f32.mrb[0].mxu0
      %5674 = vmatprep.mubr.f32.mxu0 0.0
      %5675 = vmatmul.mubr.f32.gmra.mrb[0].mxu0 %v5007
      %v5676 = vpop.f32.mrb[0].mxu0
      %v5677 = vadd.f32 0.0, %v5676
      %v5678 = vpop.f32.mrb[0].mxu0
      %5679 = vmatprep.mubr.f32.mxu0 0.0
      %5680 = vmatmul.mubr.f32.gmra.mrb[0].mxu0 %v5010
      %v5681 = vpop.f32.mrb[0].mxu0
      %v5682 = vadd.f32 0.0, %v5681
      %v5683 = vpop.f32.mrb[0].mxu0
      %5684 = vmatprep.mubr.f32.mxu0 0.0
      %5685 = vmatmul.mubr.f32.gmra.mrb[0].mxu0 %v5013
      %v5686 = vpop.f32.mrb[0].mxu0
      %v5687 = vadd.f32 0.0, %v5686
      %v5688 = vpop.f32.mrb[0].mxu0
      %5689 = vmatprep.mubr.f32.mxu0 0.0
      %5690 = vmatmul.mubr.f32.gmra.mrb[0].mxu0 %v5016
      %v5691 = vpop.f32.mrb[0].mxu0
      %v5692 = vadd.f32 0.0, %v5691
      %v5693 = vpop.f32.mrb[0].mxu0
      %5694 = vmatprep.mubr.f32.mxu0 0.0
      %5695 = vmatmul.mubr.f32.gmra.mrb[0].mxu0 %v5019
      %v5696 = vpop.f32.mrb[0].mxu0
      %v5697 = vadd.f32 0.0, %v5696
      %v5698 = vpop.f32.mrb[0].mxu0
      %5699 = vmatprep.mubr.f32.mxu0 0.0
      %5700 = vmatmul.mubr.f32.gmra.mrb[0].mxu0 %v5022
      %v5701 = vpop.f32.mrb[0].mxu0
      %v5702 = vadd.f32 0.0, %v5701
      %v5703 = vpop.f32.mrb[0].mxu0
      %5704 = vmatprep.mubr.f32.mxu0 0.0
      %5705 = vmatmul.mubr.f32.gmra.mrb[0].mxu0 %v5025
      %v5706 = vpop.f32.mrb[0].mxu0
      %v5707 = vadd.f32 0.0, %v5706
      %v5708 = vpop.f32.mrb[0].mxu0
      %5709 = vmatprep.mubr.f32.mxu0 0.0
      %5710 = vmatmul.mubr.f32.gmra.mrb[0].mxu0 %v5028
      %v5711 = vpop.f32.mrb[0].mxu0
      %v5712 = vadd.f32 0.0, %v5711
      %v5713 = vpop.f32.mrb[0].mxu0
      %5714 = vmatprep.mubr.f32.mxu0 0.0
      %5715 = vmatmul.mubr.f32.gmra.mrb[0].mxu0 %v5031
      %v5716 = vpop.f32.mrb[0].mxu0
      %v5717 = vadd.f32 0.0, %v5716
      %v5718 = vpop.f32.mrb[0].mxu0
      %5719 = vmatprep.mubr.f32.mxu0 0.0
      %5720 = vmatmul.mubr.f32.gmra.mrb[0].mxu0 %v5034
      %v5721 = vpop.f32.mrb[0].mxu0
      %v5722 = vadd.f32 0.0, %v5721
      %v5723 = vpop.f32.mrb[0].mxu0
      %5724 = vmatprep.mubr.f32.mxu0 0.0
      %5725 = vmatmul.mubr.f32.gmra.mrb[0].mxu0 %v5037
      %v5726 = vpop.f32.mrb[0].mxu0
      %v5727 = vadd.f32 0.0, %v5726
      %v5728 = vpop.f32.mrb[0].mxu0
      %5729 = vmatprep.mubr.f32.mxu0 0.0
      %5730 = vmatmul.mubr.f32.gmra.mrb[0].mxu0 %v5040
      %v5731 = vpop.f32.mrb[0].mxu0
      %v5732 = vadd.f32 0.0, %v5731
      %v5733 = vpop.f32.mrb[0].mxu0
      %5734 = vmatprep.mubr.f32.mxu0 0.0
      %5735 = vmatmul.mubr.f32.gmra.mrb[0].mxu0 %v5043
      %v5736 = vpop.f32.mrb[0].mxu0
      %v5737 = vadd.f32 0.0, %v5736
      %v5738 = vpop.f32.mrb[0].mxu0
      %5739 = vmatprep.mubr.f32.mxu0 0.0
      %5740 = vmatmul.mubr.f32.gmra.mrb[0].mxu0 %v5046
      %v5741 = vpop.f32.mrb[0].mxu0
      %v5742 = vadd.f32 0.0, %v5741
      %v5743 = vpop.f32.mrb[0].mxu0
      %5744 = vmatprep.mubr.f32.mxu0 0.0
      %5745 = vmatmul.mubr.f32.gmra.mrb[0].mxu0 %v5049
      %v5746 = vpop.f32.mrb[0].mxu0
      %v5747 = vadd.f32 0.0, %v5746
      %v5748 = vpop.f32.mrb[0].mxu0
      %5749 = vmatprep.mubr.f32.mxu0 0.0
      %5750 = vmatmul.mubr.f32.gmra.mrb[0].mxu0 %v5052
      %v5751 = vpop.f32.mrb[0].mxu0
      %v5752 = vadd.f32 0.0, %v5751
      %v5753 = vpop.f32.mrb[0].mxu0
      %5754 = vmatprep.mubr.f32.mxu0 0.0
      %5755 = vmatmul.mubr.f32.gmra.mrb[0].mxu0 %v5055
      %v5756 = vpop.f32.mrb[0].mxu0
      %v5757 = vadd.f32 0.0, %v5756
      %v5758 = vpop.f32.mrb[0].mxu0
      %5759 = vmatprep.mubr.f32.mxu0 0.0
      %5760 = vmatmul.mubr.f32.gmra.mrb[0].mxu0 %v5058
      %v5761 = vpop.f32.mrb[0].mxu0
      %v5762 = vadd.f32 0.0, %v5761
      %v5763 = vpop.f32.mrb[0].mxu0
      %5764 = vdwg.mxu0
      %vm5765 = vcmask 31744
      %v5767 = vsel %vm5765, %v4418, 0
      %v5770 = vsel %vm5765, %v4419, 0
      %v5773 = vsel %vm5765, %v4420, 0
      %v5776 = vsel %vm5765, %v4421, 0
      %v5779 = vsel %vm5765, %v4422, 0
      %v5782 = vsel %vm5765, %v4423, 0
      %v5785 = vsel %vm5765, %v4424, 0
      %v5788 = vsel %vm5765, %v4425, 0
      %v5791 = vsel %vm5765, %v4426, 0
      %v5794 = vsel %vm5765, %v4427, 0
      %v5797 = vsel %vm5765, %v4428, 0
      %v5800 = vsel %vm5765, %v4429, 0
      %v5803 = vsel %vm5765, %v4430, 0
      %v5806 = vsel %vm5765, %v4431, 0
      %v5809 = vsel %vm5765, %v4432, 0
      %v5812 = vsel %vm5765, %v4433, 0
      %v5815 = vsel %vm5765, %v4434, 0
      %v5818 = vsel %vm5765, %v4435, 0
      %v5821 = vsel %vm5765, %v4436, 0
      %v5824 = vsel %vm5765, %v4437, 0
      %v5827 = vsel %vm5765, %v4438, 0
      %v5830 = vsel %vm5765, %v4439, 0
      %v5833 = vsel %vm5765, %v4440, 0
      %v5836 = vsel %vm5765, %v4441, 0
      %v5839 = vsel %vm5765, %v4442, 0
      %v5842 = vsel %vm5765, %v4443, 0
      %v5845 = vsel %vm5765, %v4444, 0
      %v5848 = vsel %vm5765, %v4445, 0
      %v5851 = vsel %vm5765, %v4446, 0
      %v5854 = vsel %vm5765, %v4447, 0
      %v5857 = vsel %vm5765, %v4448, 0
      %v5860 = vsel %vm5765, %v4449, 0
      %v5863 = vsel %vm5765, %v4450, 0
      %v5866 = vsel %vm5765, %v4451, 0
      %v5869 = vsel %vm5765, %v4452, 0
      %v5872 = vsel %vm5765, %v4453, 0
      %v5875 = vsel %vm5765, %v4454, 0
      %v5878 = vsel %vm5765, %v4455, 0
      %v5881 = vsel %vm5765, %v4456, 0
      %v5884 = vsel %vm5765, %v4457, 0
      %v5887 = vsel %vm5765, %v4458, 0
      %v5890 = vsel %vm5765, %v4459, 0
      %v5893 = vsel %vm5765, %v4460, 0
      %v5896 = vsel %vm5765, %v4461, 0
      %v5899 = vsel %vm5765, %v4462, 0
      %v5902 = vsel %vm5765, %v4463, 0
      %v5905 = vsel %vm5765, %v4464, 0
      %v5908 = vsel %vm5765, %v4465, 0
      %v5911 = vsel %vm5765, %v4466, 0
      %v5914 = vsel %vm5765, %v4467, 0
      %v5917 = vsel %vm5765, %v4468, 0
      %v5920 = vsel %vm5765, %v4469, 0
      %v5923 = vsel %vm5765, %v4470, 0
      %v5926 = vsel %vm5765, %v4471, 0
      %v5929 = vsel %vm5765, %v4472, 0
      %v5932 = vsel %vm5765, %v4473, 0
      %v5935 = vsel %vm5765, %v4474, 0
      %v5938 = vsel %vm5765, %v4475, 0
      %v5941 = vsel %vm5765, %v4476, 0
      %v5944 = vsel %vm5765, %v4477, 0
      %v5947 = vsel %vm5765, %v4478, 0
      %v5950 = vsel %vm5765, %v4479, 0
      %v5953 = vsel %vm5765, %v4480, 0
      %v5956 = vsel %vm5765, %v4481, 0
      %v5959 = vsel %vm5765, %v4482, 0
      %v5962 = vsel %vm5765, %v4483, 0
      %v5965 = vsel %vm5765, %v4484, 0
      %v5968 = vsel %vm5765, %v4485, 0
      %v5971 = vsel %vm5765, %v4486, 0
      %v5974 = vsel %vm5765, %v4487, 0
      %v5977 = vsel %vm5765, %v4488, 0
      %v5980 = vsel %vm5765, %v4489, 0
      %v5983 = vsel %vm5765, %v4490, 0
      %v5986 = vsel %vm5765, %v4491, 0
      %v5989 = vsel %vm5765, %v4492, 0
      %v5992 = vsel %vm5765, %v4493, 0
      %v5995 = vsel %vm5765, %v4494, 0
      %v5998 = vsel %vm5765, %v4495, 0
      %v6001 = vsel %vm5765, %v4496, 0
      %v6004 = vsel %vm5765, %v4497, 0
      %v6007 = vsel %vm5765, %v4498, 0
      %v6010 = vsel %vm5765, %v4499, 0
      %v6013 = vsel %vm5765, %v4500, 0
      %v6016 = vsel %vm5765, %v4501, 0
      %v6019 = vsel %vm5765, %v4502, 0
      %v6022 = vsel %vm5765, %v4503, 0
      %v6025 = vsel %vm5765, %v4504, 0
      %v6028 = vsel %vm5765, %v4505, 0
      %v6031 = vsel %vm5765, %v4506, 0
      %v6034 = vsel %vm5765, %v4507, 0
      %v6037 = vsel %vm5765, %v4508, 0
      %v6040 = vsel %vm5765, %v4509, 0
      %v6043 = vsel %vm5765, %v4510, 0
      %v6046 = vsel %vm5765, %v4511, 0
      %v6049 = vsel %vm5765, %v4512, 0
      %v6052 = vsel %vm5765, %v4513, 0
      %v6055 = vsel %vm5765, %v4514, 0
      %v6058 = vsel %vm5765, %v4515, 0
      %v6061 = vsel %vm5765, %v4516, 0
      %v6064 = vsel %vm5765, %v4517, 0
      %v6067 = vsel %vm5765, %v4518, 0
      %v6070 = vsel %vm5765, %v4519, 0
      %v6073 = vsel %vm5765, %v4520, 0
      %v6076 = vsel %vm5765, %v4521, 0
      %v6079 = vsel %vm5765, %v4522, 0
      %v6082 = vsel %vm5765, %v4523, 0
      %v6085 = vsel %vm5765, %v4524, 0
      %v6088 = vsel %vm5765, %v4525, 0
      %v6091 = vsel %vm5765, %v4526, 0
      %v6094 = vsel %vm5765, %v4527, 0
      %v6097 = vsel %vm5765, %v4528, 0
      %v6100 = vsel %vm5765, %v4529, 0
      %v6103 = vsel %vm5765, %v4530, 0
      %v6106 = vsel %vm5765, %v4531, 0
      %v6109 = vsel %vm5765, %v4532, 0
      %v6112 = vsel %vm5765, %v4533, 0
      %v6115 = vsel %vm5765, %v4534, 0
      %v6118 = vsel %vm5765, %v4535, 0
      %v6121 = vsel %vm5765, %v4536, 0
      %v6124 = vsel %vm5765, %v4537, 0
      %v6127 = vsel %vm5765, %v4538, 0
      %v6130 = vsel %vm5765, %v4539, 0
      %v6133 = vsel %vm5765, %v4540, 0
      %v6136 = vsel %vm5765, %v4541, 0
      %v6139 = vsel %vm5765, %v4542, 0
      %v6142 = vsel %vm5765, %v4543, 0
      %v6145 = vsel %vm5765, %v4544, 0
      %v6148 = vsel %vm5765, %v4545, 0
      %vm6150 = vcmask 1043456
      %v6152 = vsel %vm6150, %v4546, 0
      %6154 = vmatprep.subr.mxu0 0.0
      %6155 = vmatpush1.msra.mxu0 %v6152
      %6156 = vmatprep.subr.mxu0 0.0
      %6157 = vmatpush1.msra.mxu0 0.0
      %6158 = vmatprep.subr.mxu0 0.0
      %6159 = vmatpush1.msra.mxu0 0.0
      %6160 = vmatprep.subr.mxu0 0.0
      %6161 = vmatpush1.msra.mxu0 0.0
      %6162 = vmatprep.subr.mxu0 0.0
      %6163 = vmatpush1.msra.mxu0 0.0
      %6164 = vmatprep.subr.mxu0 0.0
      %6165 = vmatpush1.msra.mxu0 0.0
      %6166 = vmatprep.subr.mxu0 0.0
      %6167 = vmatpush1.msra.mxu0 0.0
      %6168 = vmatprep.subr.mxu0 0.0
      %6169 = vmatpush1.msra.mxu0 0.0
      %6170 = vmatprep.subr.mxu0 0.0
      %6171 = vmatpush1.msra.mxu0 0.0
      %6172 = vmatprep.subr.mxu0 0.0
      %6173 = vmatpush1.msra.mxu0 0.0
      %6174 = vmatprep.subr.mxu0 0.0
      %6175 = vmatpush1.msra.mxu0 0.0
      %6176 = vmatprep.subr.mxu0 0.0
      %6177 = vmatpush1.msra.mxu0 0.0
      %6178 = vmatprep.subr.mxu0 0.0
      %6179 = vmatpush1.msra.mxu0 0.0
      %6180 = vmatprep.subr.mxu0 0.0
      %6181 = vmatpush1.msra.mxu0 0.0
      %6182 = vmatprep.subr.mxu0 0.0
      %6183 = vmatpush1.msra.mxu0 0.0
      %6184 = vmatprep.subr.mxu0 0.0
      %6185 = vmatpush1.msra.mxu0 0.0
      %6186 = vmatprep.subr.mxu0 0.0
      %6187 = vmatpush1.msra.mxu0 0.0
      %6188 = vmatprep.subr.mxu0 0.0
      %6189 = vmatpush1.msra.mxu0 0.0
      %6190 = vmatprep.subr.mxu0 0.0
      %6191 = vmatpush1.msra.mxu0 0.0
      %6192 = vmatprep.subr.mxu0 0.0
      %6193 = vmatpush1.msra.mxu0 0.0
      %6194 = vmatprep.subr.mxu0 0.0
      %6195 = vmatpush1.msra.mxu0 0.0
      %6196 = vmatprep.subr.mxu0 0.0
      %6197 = vmatpush1.msra.mxu0 0.0
      %6198 = vmatprep.subr.mxu0 0.0
      %6199 = vmatpush1.msra.mxu0 0.0
      %6200 = vmatprep.subr.mxu0 0.0
      %6201 = vmatpush1.msra.mxu0 0.0
      %6202 = vmatprep.subr.mxu0 0.0
      %6203 = vmatpush1.msra.mxu0 0.0
      %6204 = vmatprep.subr.mxu0 0.0
      %6205 = vmatpush1.msra.mxu0 0.0
      %6206 = vmatprep.subr.mxu0 0.0
      %6207 = vmatpush1.msra.mxu0 0.0
      %6208 = vmatprep.subr.mxu0 0.0
      %6209 = vmatpush1.msra.mxu0 0.0
      %6210 = vmatprep.subr.mxu0 0.0
      %6211 = vmatpush1.msra.mxu0 0.0
      %6212 = vmatprep.subr.mxu0 0.0
      %6213 = vmatpush1.msra.mxu0 0.0
      %6214 = vmatprep.subr.mxu0 0.0
      %6215 = vmatpush1.msra.mxu0 0.0
      %6216 = vmatprep.subr.mxu0 0.0
      %6217 = vmatpush1.msra.mxu0 0.0
      %6218 = vmatprep.mubr.f32.mxu0 0.0
      %6219 = vmatmul.mubr.f32.gmra.mrb[0].mxu0 %v5767
      %v6220 = vpop.f32.mrb[0].mxu0
      %v6221 = vadd.f32 %v5127, %v6220
      %v6222 = vpop.f32.mrb[0].mxu0
      %6223 = vmatprep.mubr.f32.mxu0 0.0
      %6224 = vmatmul.mubr.f32.gmra.mrb[0].mxu0 %v5770
      %v6225 = vpop.f32.mrb[0].mxu0
      %v6226 = vadd.f32 %v5132, %v6225
      %v6227 = vpop.f32.mrb[0].mxu0
      %6228 = vmatprep.mubr.f32.mxu0 0.0
      %6229 = vmatmul.mubr.f32.gmra.mrb[0].mxu0 %v5773
      %v6230 = vpop.f32.mrb[0].mxu0
      %v6231 = vadd.f32 %v5137, %v6230
      %v6232 = vpop.f32.mrb[0].mxu0
      %6233 = vmatprep.mubr.f32.mxu0 0.0
      %6234 = vmatmul.mubr.f32.gmra.mrb[0].mxu0 %v5776
      %v6235 = vpop.f32.mrb[0].mxu0
      %v6236 = vadd.f32 %v5142, %v6235
      %v6237 = vpop.f32.mrb[0].mxu0
      %6238 = vmatprep.mubr.f32.mxu0 0.0
      %6239 = vmatmul.mubr.f32.gmra.mrb[0].mxu0 %v5779
      %v6240 = vpop.f32.mrb[0].mxu0
      %v6241 = vadd.f32 %v5147, %v6240
      %v6242 = vpop.f32.mrb[0].mxu0
      %6243 = vmatprep.mubr.f32.mxu0 0.0
      %6244 = vmatmul.mubr.f32.gmra.mrb[0].mxu0 %v5782
      %v6245 = vpop.f32.mrb[0].mxu0
      %v6246 = vadd.f32 %v5152, %v6245
      %v6247 = vpop.f32.mrb[0].mxu0
      %6248 = vmatprep.mubr.f32.mxu0 0.0
      %6249 = vmatmul.mubr.f32.gmra.mrb[0].mxu0 %v5785
      %v6250 = vpop.f32.mrb[0].mxu0
      %v6251 = vadd.f32 %v5157, %v6250
      %v6252 = vpop.f32.mrb[0].mxu0
      %6253 = vmatprep.mubr.f32.mxu0 0.0
      %6254 = vmatmul.mubr.f32.gmra.mrb[0].mxu0 %v5788
      %v6255 = vpop.f32.mrb[0].mxu0
      %v6256 = vadd.f32 %v5162, %v6255
      %v6257 = vpop.f32.mrb[0].mxu0
      %6258 = vmatprep.mubr.f32.mxu0 0.0
      %6259 = vmatmul.mubr.f32.gmra.mrb[0].mxu0 %v5791
      %v6260 = vpop.f32.mrb[0].mxu0
      %v6261 = vadd.f32 %v5167, %v6260
      %v6262 = vpop.f32.mrb[0].mxu0
      %6263 = vmatprep.mubr.f32.mxu0 0.0
      %6264 = vmatmul.mubr.f32.gmra.mrb[0].mxu0 %v5794
      %v6265 = vpop.f32.mrb[0].mxu0
      %v6266 = vadd.f32 %v5172, %v6265
      %v6267 = vpop.f32.mrb[0].mxu0
      %6268 = vmatprep.mubr.f32.mxu0 0.0
      %6269 = vmatmul.mubr.f32.gmra.mrb[0].mxu0 %v5797
      %v6270 = vpop.f32.mrb[0].mxu0
      %v6271 = vadd.f32 %v5177, %v6270
      %v6272 = vpop.f32.mrb[0].mxu0
      %6273 = vmatprep.mubr.f32.mxu0 0.0
      %6274 = vmatmul.mubr.f32.gmra.mrb[0].mxu0 %v5800
      %v6275 = vpop.f32.mrb[0].mxu0
      %v6276 = vadd.f32 %v5182, %v6275
      %v6277 = vpop.f32.mrb[0].mxu0
      %6278 = vmatprep.mubr.f32.mxu0 0.0
      %6279 = vmatmul.mubr.f32.gmra.mrb[0].mxu0 %v5803
      %v6280 = vpop.f32.mrb[0].mxu0
      %v6281 = vadd.f32 %v5187, %v6280
      %v6282 = vpop.f32.mrb[0].mxu0
      %6283 = vmatprep.mubr.f32.mxu0 0.0
      %6284 = vmatmul.mubr.f32.gmra.mrb[0].mxu0 %v5806
      %v6285 = vpop.f32.mrb[0].mxu0
      %v6286 = vadd.f32 %v5192, %v6285
      %v6287 = vpop.f32.mrb[0].mxu0
      %6288 = vmatprep.mubr.f32.mxu0 0.0
      %6289 = vmatmul.mubr.f32.gmra.mrb[0].mxu0 %v5809
      %v6290 = vpop.f32.mrb[0].mxu0
      %v6291 = vadd.f32 %v5197, %v6290
      %v6292 = vpop.f32.mrb[0].mxu0
      %6293 = vmatprep.mubr.f32.mxu0 0.0
      %6294 = vmatmul.mubr.f32.gmra.mrb[0].mxu0 %v5812
      %v6295 = vpop.f32.mrb[0].mxu0
      %v6296 = vadd.f32 %v5202, %v6295
      %v6297 = vpop.f32.mrb[0].mxu0
      %6298 = vmatprep.mubr.f32.mxu0 0.0
      %6299 = vmatmul.mubr.f32.gmra.mrb[0].mxu0 %v5815
      %v6300 = vpop.f32.mrb[0].mxu0
      %v6301 = vadd.f32 %v5207, %v6300
      %v6302 = vpop.f32.mrb[0].mxu0
      %6303 = vmatprep.mubr.f32.mxu0 0.0
      %6304 = vmatmul.mubr.f32.gmra.mrb[0].mxu0 %v5818
      %v6305 = vpop.f32.mrb[0].mxu0
      %v6306 = vadd.f32 %v5212, %v6305
      %v6307 = vpop.f32.mrb[0].mxu0
      %6308 = vmatprep.mubr.f32.mxu0 0.0
      %6309 = vmatmul.mubr.f32.gmra.mrb[0].mxu0 %v5821
      %v6310 = vpop.f32.mrb[0].mxu0
      %v6311 = vadd.f32 %v5217, %v6310
      %v6312 = vpop.f32.mrb[0].mxu0
      %6313 = vmatprep.mubr.f32.mxu0 0.0
      %6314 = vmatmul.mubr.f32.gmra.mrb[0].mxu0 %v5824
      %v6315 = vpop.f32.mrb[0].mxu0
      %v6316 = vadd.f32 %v5222, %v6315
      %v6317 = vpop.f32.mrb[0].mxu0
      %6318 = vmatprep.mubr.f32.mxu0 0.0
      %6319 = vmatmul.mubr.f32.gmra.mrb[0].mxu0 %v5827
      %v6320 = vpop.f32.mrb[0].mxu0
      %v6321 = vadd.f32 %v5227, %v6320
      %v6322 = vpop.f32.mrb[0].mxu0
      %6323 = vmatprep.mubr.f32.mxu0 0.0
      %6324 = vmatmul.mubr.f32.gmra.mrb[0].mxu0 %v5830
      %v6325 = vpop.f32.mrb[0].mxu0
      %v6326 = vadd.f32 %v5232, %v6325
      %v6327 = vpop.f32.mrb[0].mxu0
      %6328 = vmatprep.mubr.f32.mxu0 0.0
      %6329 = vmatmul.mubr.f32.gmra.mrb[0].mxu0 %v5833
      %v6330 = vpop.f32.mrb[0].mxu0
      %v6331 = vadd.f32 %v5237, %v6330
      %v6332 = vpop.f32.mrb[0].mxu0
      %6333 = vmatprep.mubr.f32.mxu0 0.0
      %6334 = vmatmul.mubr.f32.gmra.mrb[0].mxu0 %v5836
      %v6335 = vpop.f32.mrb[0].mxu0
      %v6336 = vadd.f32 %v5242, %v6335
      %v6337 = vpop.f32.mrb[0].mxu0
      %6338 = vmatprep.mubr.f32.mxu0 0.0
      %6339 = vmatmul.mubr.f32.gmra.mrb[0].mxu0 %v5839
      %v6340 = vpop.f32.mrb[0].mxu0
      %v6341 = vadd.f32 %v5247, %v6340
      %v6342 = vpop.f32.mrb[0].mxu0
      %6343 = vmatprep.mubr.f32.mxu0 0.0
      %6344 = vmatmul.mubr.f32.gmra.mrb[0].mxu0 %v5842
      %v6345 = vpop.f32.mrb[0].mxu0
      %v6346 = vadd.f32 %v5252, %v6345
      %v6347 = vpop.f32.mrb[0].mxu0
      %6348 = vmatprep.mubr.f32.mxu0 0.0
      %6349 = vmatmul.mubr.f32.gmra.mrb[0].mxu0 %v5845
      %v6350 = vpop.f32.mrb[0].mxu0
      %v6351 = vadd.f32 %v5257, %v6350
      %v6352 = vpop.f32.mrb[0].mxu0
      %6353 = vmatprep.mubr.f32.mxu0 0.0
      %6354 = vmatmul.mubr.f32.gmra.mrb[0].mxu0 %v5848
      %v6355 = vpop.f32.mrb[0].mxu0
      %v6356 = vadd.f32 %v5262, %v6355
      %v6357 = vpop.f32.mrb[0].mxu0
      %6358 = vmatprep.mubr.f32.mxu0 0.0
      %6359 = vmatmul.mubr.f32.gmra.mrb[0].mxu0 %v5851
      %v6360 = vpop.f32.mrb[0].mxu0
      %v6361 = vadd.f32 %v5267, %v6360
      %v6362 = vpop.f32.mrb[0].mxu0
      %6363 = vmatprep.mubr.f32.mxu0 0.0
      %6364 = vmatmul.mubr.f32.gmra.mrb[0].mxu0 %v5854
      %v6365 = vpop.f32.mrb[0].mxu0
      %v6366 = vadd.f32 %v5272, %v6365
      %v6367 = vpop.f32.mrb[0].mxu0
      %6368 = vmatprep.mubr.f32.mxu0 0.0
      %6369 = vmatmul.mubr.f32.gmra.mrb[0].mxu0 %v5857
      %v6370 = vpop.f32.mrb[0].mxu0
      %v6371 = vadd.f32 %v5277, %v6370
      %v6372 = vpop.f32.mrb[0].mxu0
      %6373 = vmatprep.mubr.f32.mxu0 0.0
      %6374 = vmatmul.mubr.f32.gmra.mrb[0].mxu0 %v5860
      %v6375 = vpop.f32.mrb[0].mxu0
      %v6376 = vadd.f32 %v5282, %v6375
      %v6377 = vpop.f32.mrb[0].mxu0
      %6378 = vmatprep.mubr.f32.mxu0 0.0
      %6379 = vmatmul.mubr.f32.gmra.mrb[0].mxu0 %v5863
      %v6380 = vpop.f32.mrb[0].mxu0
      %v6381 = vadd.f32 %v5287, %v6380
      %v6382 = vpop.f32.mrb[0].mxu0
      %6383 = vmatprep.mubr.f32.mxu0 0.0
      %6384 = vmatmul.mubr.f32.gmra.mrb[0].mxu0 %v5866
      %v6385 = vpop.f32.mrb[0].mxu0
      %v6386 = vadd.f32 %v5292, %v6385
      %v6387 = vpop.f32.mrb[0].mxu0
      %6388 = vmatprep.mubr.f32.mxu0 0.0
      %6389 = vmatmul.mubr.f32.gmra.mrb[0].mxu0 %v5869
      %v6390 = vpop.f32.mrb[0].mxu0
      %v6391 = vadd.f32 %v5297, %v6390
      %v6392 = vpop.f32.mrb[0].mxu0
      %6393 = vmatprep.mubr.f32.mxu0 0.0
      %6394 = vmatmul.mubr.f32.gmra.mrb[0].mxu0 %v5872
      %v6395 = vpop.f32.mrb[0].mxu0
      %v6396 = vadd.f32 %v5302, %v6395
      %v6397 = vpop.f32.mrb[0].mxu0
      %6398 = vmatprep.mubr.f32.mxu0 0.0
      %6399 = vmatmul.mubr.f32.gmra.mrb[0].mxu0 %v5875
      %v6400 = vpop.f32.mrb[0].mxu0
      %v6401 = vadd.f32 %v5307, %v6400
      %v6402 = vpop.f32.mrb[0].mxu0
      %6403 = vmatprep.mubr.f32.mxu0 0.0
      %6404 = vmatmul.mubr.f32.gmra.mrb[0].mxu0 %v5878
      %v6405 = vpop.f32.mrb[0].mxu0
      %v6406 = vadd.f32 %v5312, %v6405
      %v6407 = vpop.f32.mrb[0].mxu0
      %6408 = vmatprep.mubr.f32.mxu0 0.0
      %6409 = vmatmul.mubr.f32.gmra.mrb[0].mxu0 %v5881
      %v6410 = vpop.f32.mrb[0].mxu0
      %v6411 = vadd.f32 %v5317, %v6410
      %v6412 = vpop.f32.mrb[0].mxu0
      %6413 = vmatprep.mubr.f32.mxu0 0.0
      %6414 = vmatmul.mubr.f32.gmra.mrb[0].mxu0 %v5884
      %v6415 = vpop.f32.mrb[0].mxu0
      %v6416 = vadd.f32 %v5322, %v6415
      %v6417 = vpop.f32.mrb[0].mxu0
      %6418 = vmatprep.mubr.f32.mxu0 0.0
      %6419 = vmatmul.mubr.f32.gmra.mrb[0].mxu0 %v5887
      %v6420 = vpop.f32.mrb[0].mxu0
      %v6421 = vadd.f32 %v5327, %v6420
      %v6422 = vpop.f32.mrb[0].mxu0
      %6423 = vmatprep.mubr.f32.mxu0 0.0
      %6424 = vmatmul.mubr.f32.gmra.mrb[0].mxu0 %v5890
      %v6425 = vpop.f32.mrb[0].mxu0
      %v6426 = vadd.f32 %v5332, %v6425
      %v6427 = vpop.f32.mrb[0].mxu0
      %6428 = vmatprep.mubr.f32.mxu0 0.0
      %6429 = vmatmul.mubr.f32.gmra.mrb[0].mxu0 %v5893
      %v6430 = vpop.f32.mrb[0].mxu0
      %v6431 = vadd.f32 %v5337, %v6430
      %v6432 = vpop.f32.mrb[0].mxu0
      %6433 = vmatprep.mubr.f32.mxu0 0.0
      %6434 = vmatmul.mubr.f32.gmra.mrb[0].mxu0 %v5896
      %v6435 = vpop.f32.mrb[0].mxu0
      %v6436 = vadd.f32 %v5342, %v6435
      %v6437 = vpop.f32.mrb[0].mxu0
      %6438 = vmatprep.mubr.f32.mxu0 0.0
      %6439 = vmatmul.mubr.f32.gmra.mrb[0].mxu0 %v5899
      %v6440 = vpop.f32.mrb[0].mxu0
      %v6441 = vadd.f32 %v5347, %v6440
      %v6442 = vpop.f32.mrb[0].mxu0
      %6443 = vmatprep.mubr.f32.mxu0 0.0
      %6444 = vmatmul.mubr.f32.gmra.mrb[0].mxu0 %v5902
      %v6445 = vpop.f32.mrb[0].mxu0
      %v6446 = vadd.f32 %v5352, %v6445
      %v6447 = vpop.f32.mrb[0].mxu0
      %6448 = vmatprep.mubr.f32.mxu0 0.0
      %6449 = vmatmul.mubr.f32.gmra.mrb[0].mxu0 %v5905
      %v6450 = vpop.f32.mrb[0].mxu0
      %v6451 = vadd.f32 %v5357, %v6450
      %v6452 = vpop.f32.mrb[0].mxu0
      %6453 = vmatprep.mubr.f32.mxu0 0.0
      %6454 = vmatmul.mubr.f32.gmra.mrb[0].mxu0 %v5908
      %v6455 = vpop.f32.mrb[0].mxu0
      %v6456 = vadd.f32 %v5362, %v6455
      %v6457 = vpop.f32.mrb[0].mxu0
      %6458 = vmatprep.mubr.f32.mxu0 0.0
      %6459 = vmatmul.mubr.f32.gmra.mrb[0].mxu0 %v5911
      %v6460 = vpop.f32.mrb[0].mxu0
      %v6461 = vadd.f32 %v5367, %v6460
      %v6462 = vpop.f32.mrb[0].mxu0
      %6463 = vmatprep.mubr.f32.mxu0 0.0
      %6464 = vmatmul.mubr.f32.gmra.mrb[0].mxu0 %v5914
      %v6465 = vpop.f32.mrb[0].mxu0
      %v6466 = vadd.f32 %v5372, %v6465
      %v6467 = vpop.f32.mrb[0].mxu0
      %6468 = vmatprep.mubr.f32.mxu0 0.0
      %6469 = vmatmul.mubr.f32.gmra.mrb[0].mxu0 %v5917
      %v6470 = vpop.f32.mrb[0].mxu0
      %v6471 = vadd.f32 %v5377, %v6470
      %v6472 = vpop.f32.mrb[0].mxu0
      %6473 = vmatprep.mubr.f32.mxu0 0.0
      %6474 = vmatmul.mubr.f32.gmra.mrb[0].mxu0 %v5920
      %v6475 = vpop.f32.mrb[0].mxu0
      %v6476 = vadd.f32 %v5382, %v6475
      %v6477 = vpop.f32.mrb[0].mxu0
      %6478 = vmatprep.mubr.f32.mxu0 0.0
      %6479 = vmatmul.mubr.f32.gmra.mrb[0].mxu0 %v5923
      %v6480 = vpop.f32.mrb[0].mxu0
      %v6481 = vadd.f32 %v5387, %v6480
      %v6482 = vpop.f32.mrb[0].mxu0
      %6483 = vmatprep.mubr.f32.mxu0 0.0
      %6484 = vmatmul.mubr.f32.gmra.mrb[0].mxu0 %v5926
      %v6485 = vpop.f32.mrb[0].mxu0
      %v6486 = vadd.f32 %v5392, %v6485
      %v6487 = vpop.f32.mrb[0].mxu0
      %6488 = vmatprep.mubr.f32.mxu0 0.0
      %6489 = vmatmul.mubr.f32.gmra.mrb[0].mxu0 %v5929
      %v6490 = vpop.f32.mrb[0].mxu0
      %v6491 = vadd.f32 %v5397, %v6490
      %v6492 = vpop.f32.mrb[0].mxu0
      %6493 = vmatprep.mubr.f32.mxu0 0.0
      %6494 = vmatmul.mubr.f32.gmra.mrb[0].mxu0 %v5932
      %v6495 = vpop.f32.mrb[0].mxu0
      %v6496 = vadd.f32 %v5402, %v6495
      %v6497 = vpop.f32.mrb[0].mxu0
      %6498 = vmatprep.mubr.f32.mxu0 0.0
      %6499 = vmatmul.mubr.f32.gmra.mrb[0].mxu0 %v5935
      %v6500 = vpop.f32.mrb[0].mxu0
      %v6501 = vadd.f32 %v5407, %v6500
      %v6502 = vpop.f32.mrb[0].mxu0
      %6503 = vmatprep.mubr.f32.mxu0 0.0
      %6504 = vmatmul.mubr.f32.gmra.mrb[0].mxu0 %v5938
      %v6505 = vpop.f32.mrb[0].mxu0
      %v6506 = vadd.f32 %v5412, %v6505
      %v6507 = vpop.f32.mrb[0].mxu0
      %6508 = vmatprep.mubr.f32.mxu0 0.0
      %6509 = vmatmul.mubr.f32.gmra.mrb[0].mxu0 %v5941
      %v6510 = vpop.f32.mrb[0].mxu0
      %v6511 = vadd.f32 %v5417, %v6510
      %v6512 = vpop.f32.mrb[0].mxu0
      %6513 = vmatprep.mubr.f32.mxu0 0.0
      %6514 = vmatmul.mubr.f32.gmra.mrb[0].mxu0 %v5944
      %v6515 = vpop.f32.mrb[0].mxu0
      %v6516 = vadd.f32 %v5422, %v6515
      %v6517 = vpop.f32.mrb[0].mxu0
      %6518 = vmatprep.mubr.f32.mxu0 0.0
      %6519 = vmatmul.mubr.f32.gmra.mrb[0].mxu0 %v5947
      %v6520 = vpop.f32.mrb[0].mxu0
      %v6521 = vadd.f32 %v5427, %v6520
      %v6522 = vpop.f32.mrb[0].mxu0
      %6523 = vmatprep.mubr.f32.mxu0 0.0
      %6524 = vmatmul.mubr.f32.gmra.mrb[0].mxu0 %v5950
      %v6525 = vpop.f32.mrb[0].mxu0
      %v6526 = vadd.f32 %v5432, %v6525
      %v6527 = vpop.f32.mrb[0].mxu0
      %6528 = vmatprep.mubr.f32.mxu0 0.0
      %6529 = vmatmul.mubr.f32.gmra.mrb[0].mxu0 %v5953
      %v6530 = vpop.f32.mrb[0].mxu0
      %v6531 = vadd.f32 %v5437, %v6530
      %v6532 = vpop.f32.mrb[0].mxu0
      %6533 = vmatprep.mubr.f32.mxu0 0.0
      %6534 = vmatmul.mubr.f32.gmra.mrb[0].mxu0 %v5956
      %v6535 = vpop.f32.mrb[0].mxu0
      %v6536 = vadd.f32 %v5442, %v6535
      %v6537 = vpop.f32.mrb[0].mxu0
      %6538 = vmatprep.mubr.f32.mxu0 0.0
      %6539 = vmatmul.mubr.f32.gmra.mrb[0].mxu0 %v5959
      %v6540 = vpop.f32.mrb[0].mxu0
      %v6541 = vadd.f32 %v5447, %v6540
      %v6542 = vpop.f32.mrb[0].mxu0
      %6543 = vmatprep.mubr.f32.mxu0 0.0
      %6544 = vmatmul.mubr.f32.gmra.mrb[0].mxu0 %v5962
      %v6545 = vpop.f32.mrb[0].mxu0
      %v6546 = vadd.f32 %v5452, %v6545
      %v6547 = vpop.f32.mrb[0].mxu0
      %6548 = vmatprep.mubr.f32.mxu0 0.0
      %6549 = vmatmul.mubr.f32.gmra.mrb[0].mxu0 %v5965
      %v6550 = vpop.f32.mrb[0].mxu0
      %v6551 = vadd.f32 %v5457, %v6550
      %v6552 = vpop.f32.mrb[0].mxu0
      %6553 = vmatprep.mubr.f32.mxu0 0.0
      %6554 = vmatmul.mubr.f32.gmra.mrb[0].mxu0 %v5968
      %v6555 = vpop.f32.mrb[0].mxu0
      %v6556 = vadd.f32 %v5462, %v6555
      %v6557 = vpop.f32.mrb[0].mxu0
      %6558 = vmatprep.mubr.f32.mxu0 0.0
      %6559 = vmatmul.mubr.f32.gmra.mrb[0].mxu0 %v5971
      %v6560 = vpop.f32.mrb[0].mxu0
      %v6561 = vadd.f32 %v5467, %v6560
      %v6562 = vpop.f32.mrb[0].mxu0
      %6563 = vmatprep.mubr.f32.mxu0 0.0
      %6564 = vmatmul.mubr.f32.gmra.mrb[0].mxu0 %v5974
      %v6565 = vpop.f32.mrb[0].mxu0
      %v6566 = vadd.f32 %v5472, %v6565
      %v6567 = vpop.f32.mrb[0].mxu0
      %6568 = vmatprep.mubr.f32.mxu0 0.0
      %6569 = vmatmul.mubr.f32.gmra.mrb[0].mxu0 %v5977
      %v6570 = vpop.f32.mrb[0].mxu0
      %v6571 = vadd.f32 %v5477, %v6570
      %v6572 = vpop.f32.mrb[0].mxu0
      %6573 = vmatprep.mubr.f32.mxu0 0.0
      %6574 = vmatmul.mubr.f32.gmra.mrb[0].mxu0 %v5980
      %v6575 = vpop.f32.mrb[0].mxu0
      %v6576 = vadd.f32 %v5482, %v6575
      %v6577 = vpop.f32.mrb[0].mxu0
      %6578 = vmatprep.mubr.f32.mxu0 0.0
      %6579 = vmatmul.mubr.f32.gmra.mrb[0].mxu0 %v5983
      %v6580 = vpop.f32.mrb[0].mxu0
      %v6581 = vadd.f32 %v5487, %v6580
      %v6582 = vpop.f32.mrb[0].mxu0
      %6583 = vmatprep.mubr.f32.mxu0 0.0
      %6584 = vmatmul.mubr.f32.gmra.mrb[0].mxu0 %v5986
      %v6585 = vpop.f32.mrb[0].mxu0
      %v6586 = vadd.f32 %v5492, %v6585
      %v6587 = vpop.f32.mrb[0].mxu0
      %6588 = vmatprep.mubr.f32.mxu0 0.0
      %6589 = vmatmul.mubr.f32.gmra.mrb[0].mxu0 %v5989
      %v6590 = vpop.f32.mrb[0].mxu0
      %v6591 = vadd.f32 %v5497, %v6590
      %v6592 = vpop.f32.mrb[0].mxu0
      %6593 = vmatprep.mubr.f32.mxu0 0.0
      %6594 = vmatmul.mubr.f32.gmra.mrb[0].mxu0 %v5992
      %v6595 = vpop.f32.mrb[0].mxu0
      %v6596 = vadd.f32 %v5502, %v6595
      %v6597 = vpop.f32.mrb[0].mxu0
      %6598 = vmatprep.mubr.f32.mxu0 0.0
      %6599 = vmatmul.mubr.f32.gmra.mrb[0].mxu0 %v5995
      %v6600 = vpop.f32.mrb[0].mxu0
      %v6601 = vadd.f32 %v5507, %v6600
      %v6602 = vpop.f32.mrb[0].mxu0
      %6603 = vmatprep.mubr.f32.mxu0 0.0
      %6604 = vmatmul.mubr.f32.gmra.mrb[0].mxu0 %v5998
      %v6605 = vpop.f32.mrb[0].mxu0
      %v6606 = vadd.f32 %v5512, %v6605
      %v6607 = vpop.f32.mrb[0].mxu0
      %6608 = vmatprep.mubr.f32.mxu0 0.0
      %6609 = vmatmul.mubr.f32.gmra.mrb[0].mxu0 %v6001
      %v6610 = vpop.f32.mrb[0].mxu0
      %v6611 = vadd.f32 %v5517, %v6610
      %v6612 = vpop.f32.mrb[0].mxu0
      %6613 = vmatprep.mubr.f32.mxu0 0.0
      %6614 = vmatmul.mubr.f32.gmra.mrb[0].mxu0 %v6004
      %v6615 = vpop.f32.mrb[0].mxu0
      %v6616 = vadd.f32 %v5522, %v6615
      %v6617 = vpop.f32.mrb[0].mxu0
      %6618 = vmatprep.mubr.f32.mxu0 0.0
      %6619 = vmatmul.mubr.f32.gmra.mrb[0].mxu0 %v6007
      %v6620 = vpop.f32.mrb[0].mxu0
      %v6621 = vadd.f32 %v5527, %v6620
      %v6622 = vpop.f32.mrb[0].mxu0
      %6623 = vmatprep.mubr.f32.mxu0 0.0
      %6624 = vmatmul.mubr.f32.gmra.mrb[0].mxu0 %v6010
      %v6625 = vpop.f32.mrb[0].mxu0
      %v6626 = vadd.f32 %v5532, %v6625
      %v6627 = vpop.f32.mrb[0].mxu0
      %6628 = vmatprep.mubr.f32.mxu0 0.0
      %6629 = vmatmul.mubr.f32.gmra.mrb[0].mxu0 %v6013
      %v6630 = vpop.f32.mrb[0].mxu0
      %v6631 = vadd.f32 %v5537, %v6630
      %v6632 = vpop.f32.mrb[0].mxu0
      %6633 = vmatprep.mubr.f32.mxu0 0.0
      %6634 = vmatmul.mubr.f32.gmra.mrb[0].mxu0 %v6016
      %v6635 = vpop.f32.mrb[0].mxu0
      %v6636 = vadd.f32 %v5542, %v6635
      %v6637 = vpop.f32.mrb[0].mxu0
      %6638 = vmatprep.mubr.f32.mxu0 0.0
      %6639 = vmatmul.mubr.f32.gmra.mrb[0].mxu0 %v6019
      %v6640 = vpop.f32.mrb[0].mxu0
      %v6641 = vadd.f32 %v5547, %v6640
      %v6642 = vpop.f32.mrb[0].mxu0
      %6643 = vmatprep.mubr.f32.mxu0 0.0
      %6644 = vmatmul.mubr.f32.gmra.mrb[0].mxu0 %v6022
      %v6645 = vpop.f32.mrb[0].mxu0
      %v6646 = vadd.f32 %v5552, %v6645
      %v6647 = vpop.f32.mrb[0].mxu0
      %6648 = vmatprep.mubr.f32.mxu0 0.0
      %6649 = vmatmul.mubr.f32.gmra.mrb[0].mxu0 %v6025
      %v6650 = vpop.f32.mrb[0].mxu0
      %v6651 = vadd.f32 %v5557, %v6650
      %v6652 = vpop.f32.mrb[0].mxu0
      %6653 = vmatprep.mubr.f32.mxu0 0.0
      %6654 = vmatmul.mubr.f32.gmra.mrb[0].mxu0 %v6028
      %v6655 = vpop.f32.mrb[0].mxu0
      %v6656 = vadd.f32 %v5562, %v6655
      %v6657 = vpop.f32.mrb[0].mxu0
      %6658 = vmatprep.mubr.f32.mxu0 0.0
      %6659 = vmatmul.mubr.f32.gmra.mrb[0].mxu0 %v6031
      %v6660 = vpop.f32.mrb[0].mxu0
      %v6661 = vadd.f32 %v5567, %v6660
      %v6662 = vpop.f32.mrb[0].mxu0
      %6663 = vmatprep.mubr.f32.mxu0 0.0
      %6664 = vmatmul.mubr.f32.gmra.mrb[0].mxu0 %v6034
      %v6665 = vpop.f32.mrb[0].mxu0
      %v6666 = vadd.f32 %v5572, %v6665
      %v6667 = vpop.f32.mrb[0].mxu0
      %6668 = vmatprep.mubr.f32.mxu0 0.0
      %6669 = vmatmul.mubr.f32.gmra.mrb[0].mxu0 %v6037
      %v6670 = vpop.f32.mrb[0].mxu0
      %v6671 = vadd.f32 %v5577, %v6670
      %v6672 = vpop.f32.mrb[0].mxu0
      %6673 = vmatprep.mubr.f32.mxu0 0.0
      %6674 = vmatmul.mubr.f32.gmra.mrb[0].mxu0 %v6040
      %v6675 = vpop.f32.mrb[0].mxu0
      %v6676 = vadd.f32 %v5582, %v6675
      %v6677 = vpop.f32.mrb[0].mxu0
      %6678 = vmatprep.mubr.f32.mxu0 0.0
      %6679 = vmatmul.mubr.f32.gmra.mrb[0].mxu0 %v6043
      %v6680 = vpop.f32.mrb[0].mxu0
      %v6681 = vadd.f32 %v5587, %v6680
      %v6682 = vpop.f32.mrb[0].mxu0
      %6683 = vmatprep.mubr.f32.mxu0 0.0
      %6684 = vmatmul.mubr.f32.gmra.mrb[0].mxu0 %v6046
      %v6685 = vpop.f32.mrb[0].mxu0
      %v6686 = vadd.f32 %v5592, %v6685
      %v6687 = vpop.f32.mrb[0].mxu0
      %6688 = vmatprep.mubr.f32.mxu0 0.0
      %6689 = vmatmul.mubr.f32.gmra.mrb[0].mxu0 %v6049
      %v6690 = vpop.f32.mrb[0].mxu0
      %v6691 = vadd.f32 %v5597, %v6690
      %v6692 = vpop.f32.mrb[0].mxu0
      %6693 = vmatprep.mubr.f32.mxu0 0.0
      %6694 = vmatmul.mubr.f32.gmra.mrb[0].mxu0 %v6052
      %v6695 = vpop.f32.mrb[0].mxu0
      %v6696 = vadd.f32 %v5602, %v6695
      %v6697 = vpop.f32.mrb[0].mxu0
      %6698 = vmatprep.mubr.f32.mxu0 0.0
      %6699 = vmatmul.mubr.f32.gmra.mrb[0].mxu0 %v6055
      %v6700 = vpop.f32.mrb[0].mxu0
      %v6701 = vadd.f32 %v5607, %v6700
      %v6702 = vpop.f32.mrb[0].mxu0
      %6703 = vmatprep.mubr.f32.mxu0 0.0
      %6704 = vmatmul.mubr.f32.gmra.mrb[0].mxu0 %v6058
      %v6705 = vpop.f32.mrb[0].mxu0
      %v6706 = vadd.f32 %v5612, %v6705
      %v6707 = vpop.f32.mrb[0].mxu0
      %6708 = vmatprep.mubr.f32.mxu0 0.0
      %6709 = vmatmul.mubr.f32.gmra.mrb[0].mxu0 %v6061
      %v6710 = vpop.f32.mrb[0].mxu0
      %v6711 = vadd.f32 %v5617, %v6710
      %v6712 = vpop.f32.mrb[0].mxu0
      %6713 = vmatprep.mubr.f32.mxu0 0.0
      %6714 = vmatmul.mubr.f32.gmra.mrb[0].mxu0 %v6064
      %v6715 = vpop.f32.mrb[0].mxu0
      %v6716 = vadd.f32 %v5622, %v6715
      %v6717 = vpop.f32.mrb[0].mxu0
      %6718 = vmatprep.mubr.f32.mxu0 0.0
      %6719 = vmatmul.mubr.f32.gmra.mrb[0].mxu0 %v6067
      %v6720 = vpop.f32.mrb[0].mxu0
      %v6721 = vadd.f32 %v5627, %v6720
      %v6722 = vpop.f32.mrb[0].mxu0
      %6723 = vmatprep.mubr.f32.mxu0 0.0
      %6724 = vmatmul.mubr.f32.gmra.mrb[0].mxu0 %v6070
      %v6725 = vpop.f32.mrb[0].mxu0
      %v6726 = vadd.f32 %v5632, %v6725
      %v6727 = vpop.f32.mrb[0].mxu0
      %6728 = vmatprep.mubr.f32.mxu0 0.0
      %6729 = vmatmul.mubr.f32.gmra.mrb[0].mxu0 %v6073
      %v6730 = vpop.f32.mrb[0].mxu0
      %v6731 = vadd.f32 %v5637, %v6730
      %v6732 = vpop.f32.mrb[0].mxu0
      %6733 = vmatprep.mubr.f32.mxu0 0.0
      %6734 = vmatmul.mubr.f32.gmra.mrb[0].mxu0 %v6076
      %v6735 = vpop.f32.mrb[0].mxu0
      %v6736 = vadd.f32 %v5642, %v6735
      %v6737 = vpop.f32.mrb[0].mxu0
      %6738 = vmatprep.mubr.f32.mxu0 0.0
      %6739 = vmatmul.mubr.f32.gmra.mrb[0].mxu0 %v6079
      %v6740 = vpop.f32.mrb[0].mxu0
      %v6741 = vadd.f32 %v5647, %v6740
      %v6742 = vpop.f32.mrb[0].mxu0
      %6743 = vmatprep.mubr.f32.mxu0 0.0
      %6744 = vmatmul.mubr.f32.gmra.mrb[0].mxu0 %v6082
      %v6745 = vpop.f32.mrb[0].mxu0
      %v6746 = vadd.f32 %v5652, %v6745
      %v6747 = vpop.f32.mrb[0].mxu0
      %6748 = vmatprep.mubr.f32.mxu0 0.0
      %6749 = vmatmul.mubr.f32.gmra.mrb[0].mxu0 %v6085
      %v6750 = vpop.f32.mrb[0].mxu0
      %v6751 = vadd.f32 %v5657, %v6750
      %v6752 = vpop.f32.mrb[0].mxu0
      %6753 = vmatprep.mubr.f32.mxu0 0.0
      %6754 = vmatmul.mubr.f32.gmra.mrb[0].mxu0 %v6088
      %v6755 = vpop.f32.mrb[0].mxu0
      %v6756 = vadd.f32 %v5662, %v6755
      %v6757 = vpop.f32.mrb[0].mxu0
      %6758 = vmatprep.mubr.f32.mxu0 0.0
      %6759 = vmatmul.mubr.f32.gmra.mrb[0].mxu0 %v6091
      %v6760 = vpop.f32.mrb[0].mxu0
      %v6761 = vadd.f32 %v5667, %v6760
      %v6762 = vpop.f32.mrb[0].mxu0
      %6763 = vmatprep.mubr.f32.mxu0 0.0
      %6764 = vmatmul.mubr.f32.gmra.mrb[0].mxu0 %v6094
      %v6765 = vpop.f32.mrb[0].mxu0
      %v6766 = vadd.f32 %v5672, %v6765
      %v6767 = vpop.f32.mrb[0].mxu0
      %6768 = vmatprep.mubr.f32.mxu0 0.0
      %6769 = vmatmul.mubr.f32.gmra.mrb[0].mxu0 %v6097
      %v6770 = vpop.f32.mrb[0].mxu0
      %v6771 = vadd.f32 %v5677, %v6770
      %v6772 = vpop.f32.mrb[0].mxu0
      %6773 = vmatprep.mubr.f32.mxu0 0.0
      %6774 = vmatmul.mubr.f32.gmra.mrb[0].mxu0 %v6100
      %v6775 = vpop.f32.mrb[0].mxu0
      %v6776 = vadd.f32 %v5682, %v6775
      %v6777 = vpop.f32.mrb[0].mxu0
      %6778 = vmatprep.mubr.f32.mxu0 0.0
      %6779 = vmatmul.mubr.f32.gmra.mrb[0].mxu0 %v6103
      %v6780 = vpop.f32.mrb[0].mxu0
      %v6781 = vadd.f32 %v5687, %v6780
      %v6782 = vpop.f32.mrb[0].mxu0
      %6783 = vmatprep.mubr.f32.mxu0 0.0
      %6784 = vmatmul.mubr.f32.gmra.mrb[0].mxu0 %v6106
      %v6785 = vpop.f32.mrb[0].mxu0
      %v6786 = vadd.f32 %v5692, %v6785
      %v6787 = vpop.f32.mrb[0].mxu0
      %6788 = vmatprep.mubr.f32.mxu0 0.0
      %6789 = vmatmul.mubr.f32.gmra.mrb[0].mxu0 %v6109
      %v6790 = vpop.f32.mrb[0].mxu0
      %v6791 = vadd.f32 %v5697, %v6790
      %v6792 = vpop.f32.mrb[0].mxu0
      %6793 = vmatprep.mubr.f32.mxu0 0.0
      %6794 = vmatmul.mubr.f32.gmra.mrb[0].mxu0 %v6112
      %v6795 = vpop.f32.mrb[0].mxu0
      %v6796 = vadd.f32 %v5702, %v6795
      %v6797 = vpop.f32.mrb[0].mxu0
      %6798 = vmatprep.mubr.f32.mxu0 0.0
      %6799 = vmatmul.mubr.f32.gmra.mrb[0].mxu0 %v6115
      %v6800 = vpop.f32.mrb[0].mxu0
      %v6801 = vadd.f32 %v5707, %v6800
      %v6802 = vpop.f32.mrb[0].mxu0
      %6803 = vmatprep.mubr.f32.mxu0 0.0
      %6804 = vmatmul.mubr.f32.gmra.mrb[0].mxu0 %v6118
      %v6805 = vpop.f32.mrb[0].mxu0
      %v6806 = vadd.f32 %v5712, %v6805
      %v6807 = vpop.f32.mrb[0].mxu0
      %6808 = vmatprep.mubr.f32.mxu0 0.0
      %6809 = vmatmul.mubr.f32.gmra.mrb[0].mxu0 %v6121
      %v6810 = vpop.f32.mrb[0].mxu0
      %v6811 = vadd.f32 %v5717, %v6810
      %v6812 = vpop.f32.mrb[0].mxu0
      %6813 = vmatprep.mubr.f32.mxu0 0.0
      %6814 = vmatmul.mubr.f32.gmra.mrb[0].mxu0 %v6124
      %v6815 = vpop.f32.mrb[0].mxu0
      %v6816 = vadd.f32 %v5722, %v6815
      %v6817 = vpop.f32.mrb[0].mxu0
      %6818 = vmatprep.mubr.f32.mxu0 0.0
      %6819 = vmatmul.mubr.f32.gmra.mrb[0].mxu0 %v6127
      %v6820 = vpop.f32.mrb[0].mxu0
      %v6821 = vadd.f32 %v5727, %v6820
      %v6822 = vpop.f32.mrb[0].mxu0
      %6823 = vmatprep.mubr.f32.mxu0 0.0
      %6824 = vmatmul.mubr.f32.gmra.mrb[0].mxu0 %v6130
      %v6825 = vpop.f32.mrb[0].mxu0
      %v6826 = vadd.f32 %v5732, %v6825
      %v6827 = vpop.f32.mrb[0].mxu0
      %6828 = vmatprep.mubr.f32.mxu0 0.0
      %6829 = vmatmul.mubr.f32.gmra.mrb[0].mxu0 %v6133
      %v6830 = vpop.f32.mrb[0].mxu0
      %v6831 = vadd.f32 %v5737, %v6830
      %v6832 = vpop.f32.mrb[0].mxu0
      %6833 = vmatprep.mubr.f32.mxu0 0.0
      %6834 = vmatmul.mubr.f32.gmra.mrb[0].mxu0 %v6136
      %v6835 = vpop.f32.mrb[0].mxu0
      %v6836 = vadd.f32 %v5742, %v6835
      %v6837 = vpop.f32.mrb[0].mxu0
      %6838 = vmatprep.mubr.f32.mxu0 0.0
      %6839 = vmatmul.mubr.f32.gmra.mrb[0].mxu0 %v6139
      %v6840 = vpop.f32.mrb[0].mxu0
      %v6841 = vadd.f32 %v5747, %v6840
      %v6842 = vpop.f32.mrb[0].mxu0
      %6843 = vmatprep.mubr.f32.mxu0 0.0
      %6844 = vmatmul.mubr.f32.gmra.mrb[0].mxu0 %v6142
      %v6845 = vpop.f32.mrb[0].mxu0
      %v6846 = vadd.f32 %v5752, %v6845
      %v6847 = vpop.f32.mrb[0].mxu0
      %6848 = vmatprep.mubr.f32.mxu0 0.0
      %6849 = vmatmul.mubr.f32.gmra.mrb[0].mxu0 %v6145
      %v6850 = vpop.f32.mrb[0].mxu0
      %v6851 = vadd.f32 %v5757, %v6850
      %v6852 = vpop.f32.mrb[0].mxu0
      %6853 = vmatprep.mubr.f32.mxu0 0.0
      %6854 = vmatmul.mubr.f32.gmra.mrb[0].mxu0 %v6148
      %v6855 = vpop.f32.mrb[0].mxu0
      %v6856 = vadd.f32 %v5762, %v6855
      %v6857 = vpop.f32.mrb[0].mxu0
      %6858 = vdwg.mxu0
      %6859 = vst.msk [vmem:[%s490] sm:$0xff] %vm4289, %v6221
      %6860 = vst.msk [vmem:[%s490 + $0x8] sm:$0xff] %vm4289, %v6226
      %6861 = vst.msk [vmem:[%s490 + $0x10] sm:$0xff] %vm4289, %v6231
      %6862 = vst.msk [vmem:[%s490 + $0x18] sm:$0xff] %vm4289, %v6236
      %6863 = vst.msk [vmem:[%s490 + $0x20] sm:$0xff] %vm4289, %v6241
      %6864 = vst.msk [vmem:[%s490 + $0x28] sm:$0xff] %vm4289, %v6246
      %6865 = vst.msk [vmem:[%s490 + $0x30] sm:$0xff] %vm4289, %v6251
      %6866 = vst.msk [vmem:[%s490 + $0x38] sm:$0xff] %vm4289, %v6256
      %6867 = vst.msk [vmem:[%s490 + $0x40] sm:$0xff] %vm4289, %v6261
      %6868 = vst.msk [vmem:[%s490 + $0x48] sm:$0xff] %vm4289, %v6266
      %6869 = vst.msk [vmem:[%s490 + $0x50] sm:$0xff] %vm4289, %v6271
      %6870 = vst.msk [vmem:[%s490 + $0x58] sm:$0xff] %vm4289, %v6276
      %6871 = vst.msk [vmem:[%s490 + $0x60] sm:$0xff] %vm4289, %v6281
      %6872 = vst.msk [vmem:[%s490 + $0x68] sm:$0xff] %vm4289, %v6286
      %6873 = vst.msk [vmem:[%s490 + $0x70] sm:$0xff] %vm4289, %v6291
      %6874 = vst.msk [vmem:[%s490 + $0x78] sm:$0xff] %vm4289, %v6296
      %6875 = vst.msk [vmem:[%s490 + $0x80] sm:$0xff] %vm4289, %v6301
      %6876 = vst.msk [vmem:[%s490 + $0x88] sm:$0xff] %vm4289, %v6306
      %6877 = vst.msk [vmem:[%s490 + $0x90] sm:$0xff] %vm4289, %v6311
      %6878 = vst.msk [vmem:[%s490 + $0x98] sm:$0xff] %vm4289, %v6316
      %6879 = vst.msk [vmem:[%s490 + $0xa0] sm:$0xff] %vm4289, %v6321
      %6880 = vst.msk [vmem:[%s490 + $0xa8] sm:$0xff] %vm4289, %v6326
      %6881 = vst.msk [vmem:[%s490 + $0xb0] sm:$0xff] %vm4289, %v6331
      %6882 = vst.msk [vmem:[%s490 + $0xb8] sm:$0xff] %vm4289, %v6336
      %6883 = vst.msk [vmem:[%s490 + $0xc0] sm:$0xff] %vm4289, %v6341
      %6884 = vst.msk [vmem:[%s490 + $0xc8] sm:$0xff] %vm4289, %v6346
      %6885 = vst.msk [vmem:[%s490 + $0xd0] sm:$0xff] %vm4289, %v6351
      %6886 = vst.msk [vmem:[%s490 + $0xd8] sm:$0xff] %vm4289, %v6356
      %6887 = vst.msk [vmem:[%s490 + $0xe0] sm:$0xff] %vm4289, %v6361
      %6888 = vst.msk [vmem:[%s490 + $0xe8] sm:$0xff] %vm4289, %v6366
      %6889 = vst.msk [vmem:[%s490 + $0xf0] sm:$0xff] %vm4289, %v6371
      %6890 = vst.msk [vmem:[%s490 + $0xf8] sm:$0xff] %vm4289, %v6376
      %6891 = vst.msk [vmem:[%s490 + $0x100] sm:$0xff] %vm4289, %v6381
      %6892 = vst.msk [vmem:[%s490 + $0x108] sm:$0xff] %vm4289, %v6386
      %6893 = vst.msk [vmem:[%s490 + $0x110] sm:$0xff] %vm4289, %v6391
      %6894 = vst.msk [vmem:[%s490 + $0x118] sm:$0xff] %vm4289, %v6396
      %6895 = vst.msk [vmem:[%s490 + $0x120] sm:$0xff] %vm4289, %v6401
      %6896 = vst.msk [vmem:[%s490 + $0x128] sm:$0xff] %vm4289, %v6406
      %6897 = vst.msk [vmem:[%s490 + $0x130] sm:$0xff] %vm4289, %v6411
      %6898 = vst.msk [vmem:[%s490 + $0x138] sm:$0xff] %vm4289, %v6416
      %6899 = vst.msk [vmem:[%s490 + $0x140] sm:$0xff] %vm4289, %v6421
      %6900 = vst.msk [vmem:[%s490 + $0x148] sm:$0xff] %vm4289, %v6426
      %6901 = vst.msk [vmem:[%s490 + $0x150] sm:$0xff] %vm4289, %v6431
      %6902 = vst.msk [vmem:[%s490 + $0x158] sm:$0xff] %vm4289, %v6436
      %6903 = vst.msk [vmem:[%s490 + $0x160] sm:$0xff] %vm4289, %v6441
      %6904 = vst.msk [vmem:[%s490 + $0x168] sm:$0xff] %vm4289, %v6446
      %6905 = vst.msk [vmem:[%s490 + $0x170] sm:$0xff] %vm4289, %v6451
      %6906 = vst.msk [vmem:[%s490 + $0x178] sm:$0xff] %vm4289, %v6456
      %6907 = vst.msk [vmem:[%s490 + $0x180] sm:$0xff] %vm4289, %v6461
      %6908 = vst.msk [vmem:[%s490 + $0x188] sm:$0xff] %vm4289, %v6466
      %6909 = vst.msk [vmem:[%s490 + $0x190] sm:$0xff] %vm4289, %v6471
      %6910 = vst.msk [vmem:[%s490 + $0x198] sm:$0xff] %vm4289, %v6476
      %6911 = vst.msk [vmem:[%s490 + $0x1a0] sm:$0xff] %vm4289, %v6481
      %6912 = vst.msk [vmem:[%s490 + $0x1a8] sm:$0xff] %vm4289, %v6486
      %6913 = vst.msk [vmem:[%s490 + $0x1b0] sm:$0xff] %vm4289, %v6491
      %6914 = vst.msk [vmem:[%s490 + $0x1b8] sm:$0xff] %vm4289, %v6496
      %6915 = vst.msk [vmem:[%s490 + $0x1c0] sm:$0xff] %vm4289, %v6501
      %6916 = vst.msk [vmem:[%s490 + $0x1c8] sm:$0xff] %vm4289, %v6506
      %6917 = vst.msk [vmem:[%s490 + $0x1d0] sm:$0xff] %vm4289, %v6511
      %6918 = vst.msk [vmem:[%s490 + $0x1d8] sm:$0xff] %vm4289, %v6516
      %6919 = vst.msk [vmem:[%s490 + $0x1e0] sm:$0xff] %vm4289, %v6521
      %6920 = vst.msk [vmem:[%s490 + $0x1e8] sm:$0xff] %vm4289, %v6526
      %6921 = vst.msk [vmem:[%s490 + $0x1f0] sm:$0xff] %vm4289, %v6531
      %6922 = vst.msk [vmem:[%s490 + $0x1f8] sm:$0xff] %vm4289, %v6536
      %6923 = vst.msk [vmem:[%s490 + $0x200] sm:$0xff] %vm4289, %v6541
      %6924 = vst.msk [vmem:[%s490 + $0x208] sm:$0xff] %vm4289, %v6546
      %6925 = vst.msk [vmem:[%s490 + $0x210] sm:$0xff] %vm4289, %v6551
      %6926 = vst.msk [vmem:[%s490 + $0x218] sm:$0xff] %vm4289, %v6556
      %6927 = vst.msk [vmem:[%s490 + $0x220] sm:$0xff] %vm4289, %v6561
      %6928 = vst.msk [vmem:[%s490 + $0x228] sm:$0xff] %vm4289, %v6566
      %6929 = vst.msk [vmem:[%s490 + $0x230] sm:$0xff] %vm4289, %v6571
      %6930 = vst.msk [vmem:[%s490 + $0x238] sm:$0xff] %vm4289, %v6576
      %6931 = vst.msk [vmem:[%s490 + $0x240] sm:$0xff] %vm4289, %v6581
      %6932 = vst.msk [vmem:[%s490 + $0x248] sm:$0xff] %vm4289, %v6586
      %6933 = vst.msk [vmem:[%s490 + $0x250] sm:$0xff] %vm4289, %v6591
      %6934 = vst.msk [vmem:[%s490 + $0x258] sm:$0xff] %vm4289, %v6596
      %6935 = vst.msk [vmem:[%s490 + $0x260] sm:$0xff] %vm4289, %v6601
      %6936 = vst.msk [vmem:[%s490 + $0x268] sm:$0xff] %vm4289, %v6606
      %6937 = vst.msk [vmem:[%s490 + $0x270] sm:$0xff] %vm4289, %v6611
      %6938 = vst.msk [vmem:[%s490 + $0x278] sm:$0xff] %vm4289, %v6616
      %6939 = vst.msk [vmem:[%s490 + $0x280] sm:$0xff] %vm4289, %v6621
      %6940 = vst.msk [vmem:[%s490 + $0x288] sm:$0xff] %vm4289, %v6626
      %6941 = vst.msk [vmem:[%s490 + $0x290] sm:$0xff] %vm4289, %v6631
      %6942 = vst.msk [vmem:[%s490 + $0x298] sm:$0xff] %vm4289, %v6636
      %6943 = vst.msk [vmem:[%s490 + $0x2a0] sm:$0xff] %vm4289, %v6641
      %6944 = vst.msk [vmem:[%s490 + $0x2a8] sm:$0xff] %vm4289, %v6646
      %6945 = vst.msk [vmem:[%s490 + $0x2b0] sm:$0xff] %vm4289, %v6651
      %6946 = vst.msk [vmem:[%s490 + $0x2b8] sm:$0xff] %vm4289, %v6656
      %6947 = vst.msk [vmem:[%s490 + $0x2c0] sm:$0xff] %vm4289, %v6661
      %6948 = vst.msk [vmem:[%s490 + $0x2c8] sm:$0xff] %vm4289, %v6666
      %6949 = vst.msk [vmem:[%s490 + $0x2d0] sm:$0xff] %vm4289, %v6671
      %6950 = vst.msk [vmem:[%s490 + $0x2d8] sm:$0xff] %vm4289, %v6676
      %6951 = vst.msk [vmem:[%s490 + $0x2e0] sm:$0xff] %vm4289, %v6681
      %6952 = vst.msk [vmem:[%s490 + $0x2e8] sm:$0xff] %vm4289, %v6686
      %6953 = vst.msk [vmem:[%s490 + $0x2f0] sm:$0xff] %vm4289, %v6691
      %6954 = vst.msk [vmem:[%s490 + $0x2f8] sm:$0xff] %vm4289, %v6696
      %6955 = vst.msk [vmem:[%s490 + $0x300] sm:$0xff] %vm4289, %v6701
      %6956 = vst.msk [vmem:[%s490 + $0x308] sm:$0xff] %vm4289, %v6706
      %6957 = vst.msk [vmem:[%s490 + $0x310] sm:$0xff] %vm4289, %v6711
      %6958 = vst.msk [vmem:[%s490 + $0x318] sm:$0xff] %vm4289, %v6716
      %6959 = vst.msk [vmem:[%s490 + $0x320] sm:$0xff] %vm4289, %v6721
      %6960 = vst.msk [vmem:[%s490 + $0x328] sm:$0xff] %vm4289, %v6726
      %6961 = vst.msk [vmem:[%s490 + $0x330] sm:$0xff] %vm4289, %v6731
      %6962 = vst.msk [vmem:[%s490 + $0x338] sm:$0xff] %vm4289, %v6736
      %6963 = vst.msk [vmem:[%s490 + $0x340] sm:$0xff] %vm4289, %v6741
      %6964 = vst.msk [vmem:[%s490 + $0x348] sm:$0xff] %vm4289, %v6746
      %6965 = vst.msk [vmem:[%s490 + $0x350] sm:$0xff] %vm4289, %v6751
      %6966 = vst.msk [vmem:[%s490 + $0x358] sm:$0xff] %vm4289, %v6756
      %6967 = vst.msk [vmem:[%s490 + $0x360] sm:$0xff] %vm4289, %v6761
      %6968 = vst.msk [vmem:[%s490 + $0x368] sm:$0xff] %vm4289, %v6766
      %6969 = vst.msk [vmem:[%s490 + $0x370] sm:$0xff] %vm4289, %v6771
      %6970 = vst.msk [vmem:[%s490 + $0x378] sm:$0xff] %vm4289, %v6776
      %6971 = vst.msk [vmem:[%s490 + $0x380] sm:$0xff] %vm4289, %v6781
      %6972 = vst.msk [vmem:[%s490 + $0x388] sm:$0xff] %vm4289, %v6786
      %6973 = vst.msk [vmem:[%s490 + $0x390] sm:$0xff] %vm4289, %v6791
      %6974 = vst.msk [vmem:[%s490 + $0x398] sm:$0xff] %vm4289, %v6796
      %6975 = vst.msk [vmem:[%s490 + $0x3a0] sm:$0xff] %vm4289, %v6801
      %6976 = vst.msk [vmem:[%s490 + $0x3a8] sm:$0xff] %vm4289, %v6806
      %6977 = vst.msk [vmem:[%s490 + $0x3b0] sm:$0xff] %vm4289, %v6811
      %6978 = vst.msk [vmem:[%s490 + $0x3b8] sm:$0xff] %vm4289, %v6816
      %6979 = vst.msk [vmem:[%s490 + $0x3c0] sm:$0xff] %vm4289, %v6821
      %6980 = vst.msk [vmem:[%s490 + $0x3c8] sm:$0xff] %vm4289, %v6826
      %6981 = vst.msk [vmem:[%s490 + $0x3d0] sm:$0xff] %vm4289, %v6831
      %6982 = vst.msk [vmem:[%s490 + $0x3d8] sm:$0xff] %vm4289, %v6836
      %6983 = vst.msk [vmem:[%s490 + $0x3e0] sm:$0xff] %vm4289, %v6841
      %6984 = vst.msk [vmem:[%s490 + $0x3e8] sm:$0xff] %vm4289, %v6846
      %6985 = vst.msk [vmem:[%s490 + $0x3f0] sm:$0xff] %vm4289, %v6851
      %6986 = vst.msk [vmem:[%s490 + $0x3f8] sm:$0xff] %vm4289, %v6856
      %s6987 = smul.u32 128, %s23
      %p6988 = scmp.lt.s32.totalorder %s6987, 255
      %s6989 = scalar_select %p6988, %s6987, 255
      %s6990 = smul.addr %s6989, 8
      %s6991 = scalar_lea.vmem %s10, %s6990
      %s6992 = smul.u32 128, %s23
      %p6993 = scmp.lt.s32.totalorder %s6992, 255
      %s6994 = scalar_select %p6993, %s6992, 255
      %s6995 = smul.addr %s6994, 8
      %s6996 = scalar_lea.vmem %s11, %s6995
      // Predicated region
      $region61: #{tpu_custom_call.1} parent=59 // pred_check
        %p6997 = pneg %p276
      $region62: #{tpu_custom_call.1} parent=59 // pred_check_branch
        %6999 = sbr.rel (%p6997) target = $region64
      $region63: #{tpu_custom_call.1} parent=59 // pred_region
        %s7000 = smul.u32 128, %s23
      $region64: #{tpu_custom_call.1} parent=59 // pred_fallthru
        _
      // Predicated region
      $region65: #{tpu_custom_call.1} parent=59 // pred_check
        %p7001 = pneg %p302
      $region66: #{tpu_custom_call.1} parent=59 // pred_check_branch
        %7003 = sbr.rel (%p7001) target = $region68
      $region67: #{tpu_custom_call.1} parent=59 // pred_region
        %s7004 = smul.u32 128, %s23
      $region68: #{tpu_custom_call.1} parent=59 // pred_fallthru
        _
    $region60: #{tpu_custom_call.1} parent=5 // pred_fallthru
      _
    %p7005 = scmp.le.s32.totalorder 2, %s18
    // Predicated region
    $region69: #{tpu_custom_call.1} parent=5 // pred_check
      %p7006 = pneg %p7005
    $region70: #{tpu_custom_call.1} parent=5 // pred_check_branch
      %7008 = sbr.rel (%p7006) target = $region72
    $region71: #{tpu_custom_call.1} parent=5 // pred_region
      %s7009 = ssub.s32 %s18, 2
      // Predicated region
      $region73: #{tpu_custom_call.1} parent=71 // pred_check
        %p7010 = pneg %p282
      $region74: #{tpu_custom_call.1} parent=71 // pred_check_branch
        %7012 = sbr.rel (%p7010) target = $region76
      $region75: #{tpu_custom_call.1} parent=71 // pred_region
        %s7013 = smul.u32 128, %s24
        %p7014 = scmp.lt.s32.totalorder %s7013, 255
        %s7015 = scalar_select %p7014, %s7013, 255
        %s7016 = smul.addr %s7015, 8
        %s7017 = scalar_lea.vmem %s10, %s7016
      $region76: #{tpu_custom_call.1} parent=71 // pred_fallthru
        _
      // Predicated region
      $region77: #{tpu_custom_call.1} parent=71 // pred_check
        %p7018 = pneg %p308
      $region78: #{tpu_custom_call.1} parent=71 // pred_check_branch
        %7020 = sbr.rel (%p7018) target = $region80
      $region79: #{tpu_custom_call.1} parent=71 // pred_region
        %s7021 = smul.u32 128, %s24
        %p7022 = scmp.lt.s32.totalorder %s7021, 255
        %s7023 = scalar_select %p7022, %s7021, 255
        %s7024 = smul.addr %s7023, 8
        %s7025 = scalar_lea.vmem %s11, %s7024
      $region80: #{tpu_custom_call.1} parent=71 // pred_fallthru
        _
    $region72: #{tpu_custom_call.1} parent=5 // pred_fallthru
      _
  $region6: #{tpu_custom_call.1} parent=0 // loop_footer
    %s22 = sadd.s32 1, %s18
  $region7: #{tpu_custom_call.1} parent=0 // loop_footer_branch
    %17 = sbr.rel target = $region3
  $region8: #{tpu_custom_call.1} parent=0 // loop_exit
    _

</llo_original>
